<compile_context>
chip_gen: v5e
topology: v5e:2x2
jax: 0.10.0
libtpu: 0.0.40
codegen_flags: <defaults>
</compile_context>

<pallas_src>
import functools

import jax
import jax.numpy as jnp
from jax.experimental import pallas as pl
from jax.experimental.pallas import tpu as pltpu

EPS = 1e-5          # nn.BatchNorm2d default eps
LANES = 128         # lane width; outputs are (M, multiple-of-128) lane-dense
MAX_TILE_M = 512    # rows per M tile for the plain (no-BN) conv


def _round_up(x, m):
    return (x + m - 1) // m * m


# ----------------------------------------------------------------------------
# Pallas kernels
# ----------------------------------------------------------------------------
def _conv_bn_kernel(x_ref, w_ref, aux_ref, *rest, m_real, pad_rows,
                    relu_mode, use_res):
    """Single-phase conv + train-mode BatchNorm (+residual) (+ReLU).

    The whole (mp, K) im2col block is resident, so y is computed ONCE, the
    per-channel batch statistics are reduced over the resident block, and the
    normalize (+residual) (+ReLU) epilogue is applied immediately.

    aux rows: 0 = bias, 1 = gamma, 2 = beta, 3 = per-lane ReLU mask
    (padded channels are all zero).
    """
    if use_res:
        res_ref, o_ref = rest
    else:
        (o_ref,) = rest

    aux = aux_ref[...]
    bias = aux[0:1, :]

    y = jnp.dot(x_ref[...], w_ref[...], preferred_element_type=jnp.float32)
    y = y + bias

    inv_m = 1.0 / float(m_real)
    s1 = jnp.sum(y, axis=0, keepdims=True)
    if pad_rows:                       # padded x rows are zero -> y == bias
        s1 = s1 - float(pad_rows) * bias
    mean = s1 * inv_m

    d = y - mean                       # centered second pass (y is resident)
    s2 = jnp.sum(d * d, axis=0, keepdims=True)
    if pad_rows:
        db = bias - mean
        s2 = s2 - float(pad_rows) * (db * db)
    var = jnp.maximum(s2 * inv_m, 0.0)         # biased (train-mode) variance

    scale = aux[1:2, :] * jax.lax.rsqrt(var + EPS)
    shift = aux[2:3, :] - mean * scale
    out = y * scale + shift
    if use_res:
        out = out + res_ref[...].astype(jnp.float32)
    if relu_mode == "all":
        out = jnp.maximum(out, 0.0)
    elif relu_mode == "mask":
        out = jnp.where(aux[3:4, :] > 0.0, jnp.maximum(out, 0.0), out)
    o_ref[...] = out.astype(o_ref.dtype)


def _conv_kernel(x_ref, w_ref, aux_ref, o_ref, *, relu_mode):
    """Plain M-tiled matmul + bias (+ReLU) for the final no-BN conv."""
    y = jnp.dot(x_ref[...], w_ref[...], preferred_element_type=jnp.float32)
    y = y + aux_ref[0:1, :]
    if relu_mode == "all":
        y = jnp.maximum(y, 0.0)
    o_ref[...] = y.astype(o_ref.dtype)


# ----------------------------------------------------------------------------
# Convolution / pooling wrappers (JAX glue around the Pallas kernels)
# ----------------------------------------------------------------------------
def _im2col_bf16(x, kh, kw, stride, padding):
    n, h, w, c = x.shape
    ho = (h + 2 * padding - kh) // stride + 1
    wo = (w + 2 * padding - kw) // stride + 1
    xp = jnp.pad(x, ((0, 0), (padding, padding), (padding, padding), (0, 0)))
    cols = []
    for i in range(kh):
        for j in range(kw):
            cols.append(
                xp[:, i:i + stride * ho:stride, j:j + stride * wo:stride, :])
    patches = jnp.concatenate(cols, axis=-1).astype(jnp.bfloat16)
    return patches.reshape(n * ho * wo, kh * kw * c), (n, ho, wo)


def conv_block(x, pk, *, stride=1, padding=1, relu="all", residual=None,
               out_dtype=jnp.bfloat16):
    """x: (N,H,W,Cin) f32/bf16.  pk: packed conv params (see _pack_conv)."""
    kh, kw, _cin, cout, bn = pk['meta']
    xm, (n, ho, wo) = _im2col_bf16(x, kh, kw, stride, padding)
    m, k = xm.shape
    kp, nl = pk['w'].shape             # padded K, padded/lane-dense N

    mp = _round_up(m, 8)
    xm = jnp.pad(xm, ((0, mp - m), (0, kp - k)))

    if bn:
        # Whole M resident in one block: single-phase fused conv+BN epilogue.
        # TODO(synk): y-stashing two-phase fallback when mp is too large.
        in_specs = [pl.BlockSpec((mp, kp), lambda i: (0, 0)),
                    pl.BlockSpec((kp, nl), lambda i: (0, 0)),
                    pl.BlockSpec((8, nl), lambda i: (0, 0))]
        args = [xm, pk['w'], pk['aux']]
        if residual is not None:
            r = residual.reshape(m, -1).astype(jnp.bfloat16)
            rc = r.shape[1]
            r = jnp.pad(r, ((0, mp - m), (0, nl - rc)))
            in_specs.append(pl.BlockSpec((mp, nl), lambda i: (0, 0)))
            args.append(r)

        kern = functools.partial(_conv_bn_kernel, m_real=m, pad_rows=mp - m,
                                 relu_mode=relu,
                                 use_res=residual is not None)
        out = pl.pallas_call(
            kern,
            out_shape=jax.ShapeDtypeStruct((mp, nl), out_dtype),
            grid=(1,),
            in_specs=in_specs,
            out_specs=pl.BlockSpec((mp, nl), lambda i: (0, 0)),
            compiler_params=pltpu.CompilerParams(
                dimension_semantics=("arbitrary",)),
        )(*args)
    else:
        tile_m = min(MAX_TILE_M, mp)
        mp2 = _round_up(mp, tile_m)
        if mp2 > mp:
            xm = jnp.pad(xm, ((0, mp2 - mp), (0, 0)))
        num_mt = mp2 // tile_m
        kern = functools.partial(_conv_kernel, relu_mode=relu)
        out = pl.pallas_call(
            kern,
            out_shape=jax.ShapeDtypeStruct((mp2, nl), out_dtype),
            grid=(num_mt,),
            in_specs=[pl.BlockSpec((tile_m, kp), lambda i: (i, 0)),
                      pl.BlockSpec((kp, nl), lambda i: (0, 0)),
                      pl.BlockSpec((8, nl), lambda i: (0, 0))],
            out_specs=pl.BlockSpec((tile_m, nl), lambda i: (i, 0)),
            compiler_params=pltpu.CompilerParams(
                dimension_semantics=("parallel",)),
        )(xm, pk['w'], pk['aux'])

    return out[:m, :cout].reshape(n, ho, wo, cout)


def maxpool_3x3_s2_p1(x):
    # Trivial VPU work: pairwise max in glue, XLA fuses the 9 shifted slices.
    n, h, w, c = x.shape
    ho = (h + 2 - 3) // 2 + 1
    wo = (w + 2 - 3) // 2 + 1
    xp = jnp.pad(x, ((0, 0), (1, 1), (1, 1), (0, 0)),
                 constant_values=-jnp.inf)
    out = None
    for i in range(3):
        for j in range(3):
            win = xp[:, i:i + 2 * ho:2, j:j + 2 * wo:2, :]
            out = win if out is None else jnp.maximum(out, win)
    return out


def upsample2x(x):
    # nn.Upsample(scale_factor=2) default mode='nearest' (pure replication);
    # XLA fuses this broadcast into the consumer's im2col slicing.
    return jnp.repeat(jnp.repeat(x, 2, axis=1), 2, axis=2)


def basic_block(x, p, *, stride=1):
    out = conv_block(x, p['conv1'], stride=stride, padding=1, relu="all")
    out = conv_block(out, p['conv2'], stride=1, padding=1, relu="all",
                     residual=x)
    return out


def basic_block_down(x, p, *, stride=2):
    # conv1 (3x3 s2) and its 1x1-s2 downsample share the input: one matmul at
    # N=256 (full MXU width on v6e/v7x), ReLU applied only to the conv1 half.
    both = conv_block(x, p['conv1_down'], stride=stride, padding=1,
                      relu="mask")
    out, identity = both[..., :128], both[..., 128:]
    out = conv_block(out, p['conv2'], stride=1, padding=1, relu="all",
                     residual=identity)
    return out


# ----------------------------------------------------------------------------
# Full forward pass (resnet18 children[0:6] + upsample head)
# ----------------------------------------------------------------------------
def colorization_forward(packed, x_nchw):
    x = jnp.transpose(x_nchw, (0, 2, 3, 1))  # NCHW -> NHWC

    # midlevel_resnet = [conv1, bn1, relu, maxpool, layer1, layer2]
    x = conv_block(x, packed['conv1'], stride=2, padding=3, relu="all")
    x = maxpool_3x3_s2_p1(x)
    x = basic_block(x, packed['layer1'][0])
    x = basic_block(x, packed['layer1'][1])
    x = basic_block_down(x, packed['layer2'][0])
    x = basic_block(x, packed['layer2'][1])

    # upsample head
    x = conv_block(x, packed['up1'], relu="all")
    x = upsample2x(x)
    x = conv_block(x, packed['up2'], relu="all")
    x = conv_block(x, packed['up3'], relu="all")
    x = upsample2x(x)
    x = conv_block(x, packed['up4'], relu="all")
    x = conv_block(x, packed['up5'], relu="none", out_dtype=jnp.float32)
    x = upsample2x(x)

    return jnp.transpose(x, (0, 3, 1, 2)).astype(jnp.float32)  # NHWC -> NCHW


# ----------------------------------------------------------------------------
# Parameter packing (done ONCE outside jit) and deterministic init
# ----------------------------------------------------------------------------
def _pack_conv(p, bn):
    w = p['w']
    cout, cin, kh, kw = w.shape
    k = kh * kw * cin
    kp = _round_up(k, LANES)
    nl = _round_up(cout, LANES)
    wm = jnp.transpose(w, (2, 3, 1, 0)).reshape(k, cout).astype(jnp.bfloat16)
    wm = jnp.pad(wm, ((0, kp - k), (0, nl - cout)))
    aux = jnp.zeros((8, nl), jnp.float32)
    if 'b' in p:
        aux = aux.at[0, :cout].set(p['b'])
    if bn:
        aux = aux.at[1, :cout].set(p['gamma'])
        aux = aux.at[2, :cout].set(p['beta'])
    aux = aux.at[3, :cout].set(1.0)    # ReLU mask row (only used in 'mask' mode)
    return {'w': wm, 'aux': aux, 'meta': (kh, kw, cin, cout, bn)}


def _pack_merged_conv_down(conv_p, down_p):
    """Pack layer2[0].conv1 (3x3 s2) + its 1x1-s2 downsample along N=256."""
    wc = conv_p['w']                       # (128, 64, 3, 3)
    wd = down_p['w']                       # (128, 64, 1, 1)
    cout_c, cin, kh, kw = wc.shape
    cout_d = wd.shape[0]
    # 1x1 stride-2 pad-0 conv == centre tap of the 3x3 stride-2 pad-1 conv.
    wd3 = jnp.zeros((cout_d, cin, kh, kw), jnp.float32)
    wd3 = wd3.at[:, :, kh // 2, kw // 2].set(wd[:, :, 0, 0])
    w = jnp.concatenate([wc, wd3], axis=0)  # (256, 64, 3, 3)
    cout = cout_c + cout_d
    k = kh * kw * cin
    kp = _round_up(k, LANES)
    nl = _round_up(cout, LANES)
    wm = jnp.transpose(w, (2, 3, 1, 0)).reshape(k, cout).astype(jnp.bfloat16)
    wm = jnp.pad(wm, ((0, kp - k), (0, nl - cout)))
    aux = jnp.zeros((8, nl), jnp.float32)
    aux = aux.at[1, :cout_c].set(conv_p['gamma'])
    aux = aux.at[2, :cout_c].set(conv_p['beta'])
    aux = aux.at[1, cout_c:cout].set(down_p['gamma'])
    aux = aux.at[2, cout_c:cout].set(down_p['beta'])
    aux = aux.at[3, :cout_c].set(1.0)   # ReLU only on the conv1 half
    return {'w': wm, 'aux': aux, 'meta': (kh, kw, cin, cout, True)}


def pack_params(params):
    pk = {'conv1': _pack_conv(params['conv1'], True)}
    pk['layer1'] = [{'conv1': _pack_conv(b['conv1'], True),
                     'conv2': _pack_conv(b['conv2'], True)}
                    for b in params['layer1']]
    b0, b1 = params['layer2']
    pk['layer2'] = [
        {'conv1_down': _pack_merged_conv_down(b0['conv1'], b0['down']),
         'conv2': _pack_conv(b0['conv2'], True)},
        {'conv1': _pack_conv(b1['conv1'], True),
         'conv2': _pack_conv(b1['conv2'], True)},
    ]
    for name in ('up1', 'up2', 'up3', 'up4'):
        pk[name] = _pack_conv(params[name], True)
    pk['up5'] = _pack_conv(params['up5'], False)
    return pk


def init_params(key):
    counter = [0]

    def nxt():
        counter[0] += 1
        return jax.random.fold_in(key, counter[0])

    def conv(cout, cin, kh, kw, bias=False):
        p = {'w': 0.05 * jax.random.normal(nxt(), (cout, cin, kh, kw),
                                           jnp.float32)}
        if bias:
            p['b'] = 0.05 * jax.random.normal(nxt(), (cout,), jnp.float32)
        return p

    def with_bn(p, c):
        p['gamma'] = 1.0 + 0.1 * jax.random.normal(nxt(), (c,), jnp.float32)
        p['beta'] = 0.1 * jax.random.normal(nxt(), (c,), jnp.float32)
        return p

    params = {}
    # resnet.conv1: original (64,3,7,7), summed over input channels -> (64,1,7,7)
    w3 = 0.05 * jax.random.normal(nxt(), (64, 3, 7, 7), jnp.float32)
    params['conv1'] = with_bn({'w': jnp.sum(w3, axis=1, keepdims=True)}, 64)

    params['layer1'] = [
        {'conv1': with_bn(conv(64, 64, 3, 3), 64),
         'conv2': with_bn(conv(64, 64, 3, 3), 64)}
        for _ in range(2)
    ]
    params['layer2'] = [
        {'conv1': with_bn(conv(128, 64, 3, 3), 128),
         'conv2': with_bn(conv(128, 128, 3, 3), 128),
         'down':  with_bn(conv(128, 64, 1, 1), 128)},
        {'conv1': with_bn(conv(128, 128, 3, 3), 128),
         'conv2': with_bn(conv(128, 128, 3, 3), 128)},
    ]

    params['up1'] = with_bn(conv(128, 128, 3, 3, bias=True), 128)
    params['up2'] = with_bn(conv(64, 128, 3, 3, bias=True), 64)
    params['up3'] = with_bn(conv(64, 64, 3, 3, bias=True), 64)
    params['up4'] = with_bn(conv(32, 64, 3, 3, bias=True), 32)
    params['up5'] = conv(2, 32, 3, 3, bias=True)   # final conv, no BN/ReLU
    return params


if __name__ == "__main__":
    key = jax.random.PRNGKey(0)
    params = init_params(jax.random.fold_in(key, 1))
    packed = pack_params(params)   # pack / pad / bf16-cast weights once

    # grayscale input, NCHW like the PyTorch module (small spatial size 32)
    x = jax.random.normal(jax.random.fold_in(key, 2), (2, 1, 32, 32),
                          jnp.float32)

    fwd = jax.jit(functools.partial(colorization_forward, packed))
    out = jax.block_until_ready(fwd(x))

    assert out.shape == (2, 2, 32, 32), out.shape
    assert bool(jnp.all(jnp.isfinite(out)))
    print("KERNEL_OK")
</pallas_src>

<mosaic_0001>
module attributes {stable_mosaic.version = 11 : i64} {
  func.func @_conv_bn_kernel(%arg0: i32, %arg1: memref<512x128xbf16, #tpu.memory_space<vmem>>, %arg2: memref<128x128xbf16, #tpu.memory_space<vmem>>, %arg3: memref<8x128xf32, #tpu.memory_space<vmem>>, %arg4: memref<512x128xbf16, #tpu.memory_space<vmem>>) attributes {dimension_semantics = [#tpu.dimension_semantics<arbitrary>], iteration_bounds = array<i64: 1>, scalar_prefetch = 0 : i64, scratch_operands = 0 : i64, tpu.core_type = #tpu.core_type<tc>, window_params = [{pipeline_mode = #tpu.pipeline_mode<synchronous>, transform_indices = @transform_0, window_bounds = array<i64: 512, 128>}, {pipeline_mode = #tpu.pipeline_mode<synchronous>, transform_indices = @transform_1, window_bounds = array<i64: 128, 128>}, {pipeline_mode = #tpu.pipeline_mode<synchronous>, transform_indices = @transform_2, window_bounds = array<i64: 8, 128>}, {pipeline_mode = #tpu.pipeline_mode<synchronous>, transform_indices = @transform_3, window_bounds = array<i64: 512, 128>}]} {
    %c0 = arith.constant 0 : index
    %c0_0 = arith.constant 0 : index
    %0 = vector.load %arg3[%c0, %c0_0] : memref<8x128xf32, #tpu.memory_space<vmem>>, vector<8x128xf32>
    %1 = vector.extract_strided_slice %0 {offsets = [0, 0], sizes = [1, 128], strides = [1, 1]} : vector<8x128xf32> to vector<1x128xf32>
    %c0_1 = arith.constant 0 : index
    %c0_2 = arith.constant 0 : index
    %2 = vector.load %arg1[%c0_1, %c0_2] : memref<512x128xbf16, #tpu.memory_space<vmem>>, vector<512x128xbf16>
    %c0_3 = arith.constant 0 : index
    %c0_4 = arith.constant 0 : index
    %3 = vector.load %arg2[%c0_3, %c0_4] : memref<128x128xbf16, #tpu.memory_space<vmem>>, vector<128x128xbf16>
    %cst = arith.constant dense<0.000000e+00> : vector<512x128xf32>
    %4 = tpu.matmul %2, %3, %cst {dimension_numbers = #tpu.dot_dimension_numbers<[1], [0], [0], [1], [0, 0, 1, 1], [], []>} : vector<512x128xbf16>, vector<128x128xbf16>, vector<512x128xf32> -> vector<512x128xf32>
    %5 = vector.broadcast %1 : vector<1x128xf32> to vector<512x128xf32>
    %6 = arith.addf %4, %5 : vector<512x128xf32>
    %cst_5 = arith.constant dense<0.000000e+00> : vector<128xf32>
    %7 = vector.multi_reduction <add>, %6, %cst_5 [0] : vector<512x128xf32> to vector<128xf32>
    %8 = vector.shape_cast %7 : vector<128xf32> to vector<1x128xf32>
    %cst_6 = arith.constant 0.001953125 : f32
    %9 = vector.broadcast %cst_6 : f32 to vector<1x128xf32>
    %10 = arith.mulf %8, %9 : vector<1x128xf32>
    %11 = vector.broadcast %10 : vector<1x128xf32> to vector<512x128xf32>
    %12 = arith.subf %6, %11 : vector<512x128xf32>
    %13 = arith.mulf %12, %12 : vector<512x128xf32>
    %cst_7 = arith.constant dense<0.000000e+00> : vector<128xf32>
    %14 = vector.multi_reduction <add>, %13, %cst_7 [0] : vector<512x128xf32> to vector<128xf32>
    %15 = vector.shape_cast %14 : vector<128xf32> to vector<1x128xf32>
    %cst_8 = arith.constant 0.001953125 : f32
    %16 = vector.broadcast %cst_8 : f32 to vector<1x128xf32>
    %17 = arith.mulf %15, %16 : vector<1x128xf32>
    %cst_9 = arith.constant 0.000000e+00 : f32
    %18 = vector.broadcast %cst_9 : f32 to vector<1x128xf32>
    %19 = arith.maximumf %17, %18 : vector<1x128xf32>
    %20 = vector.extract_strided_slice %0 {offsets = [1, 0], sizes = [1, 128], strides = [1, 1]} : vector<8x128xf32> to vector<1x128xf32>
    %cst_10 = arith.constant 9.99999974E-6 : f32
    %21 = vector.broadcast %cst_10 : f32 to vector<1x128xf32>
    %22 = arith.addf %19, %21 : vector<1x128xf32>
    %23 = math.rsqrt %22 : vector<1x128xf32>
    %24 = arith.mulf %20, %23 : vector<1x128xf32>
    %25 = vector.extract_strided_slice %0 {offsets = [2, 0], sizes = [1, 128], strides = [1, 1]} : vector<8x128xf32> to vector<1x128xf32>
    %26 = arith.mulf %10, %24 : vector<1x128xf32>
    %27 = arith.subf %25, %26 : vector<1x128xf32>
    %28 = vector.broadcast %24 : vector<1x128xf32> to vector<512x128xf32>
    %29 = arith.mulf %6, %28 : vector<512x128xf32>
    %30 = vector.broadcast %27 : vector<1x128xf32> to vector<512x128xf32>
    %31 = arith.addf %29, %30 : vector<512x128xf32>
    %cst_11 = arith.constant 0.000000e+00 : f32
    %32 = vector.broadcast %cst_11 : f32 to vector<512x128xf32>
    %33 = arith.maximumf %31, %32 : vector<512x128xf32>
    %34 = arith.truncf %33 : vector<512x128xf32> to vector<512x128xbf16>
    %c0_12 = arith.constant 0 : index
    %c0_13 = arith.constant 0 : index
    %35 = vector.load %arg4[%c0_12, %c0_13] : memref<512x128xbf16, #tpu.memory_space<vmem>>, vector<512x128xbf16>
    tpu.vector_store %arg4[%c0_12, %c0_13], %34 {strides = array<i32>} : memref<512x128xbf16, #tpu.memory_space<vmem>>, vector<512x128xbf16>,
    return
  }
  func.func @transform_0(%arg0: i32) -> (i32, i32) {
    %c0_i32 = arith.constant 0 : i32
    %c0_i32_0 = arith.constant 0 : i32
    %c0_i32_1 = arith.constant 0 : i32
    return %c0_i32, %c0_i32_0 : i32, i32
  }
  func.func @transform_1(%arg0: i32) -> (i32, i32) {
    %c0_i32 = arith.constant 0 : i32
    %c0_i32_0 = arith.constant 0 : i32
    %c0_i32_1 = arith.constant 0 : i32
    return %c0_i32, %c0_i32_0 : i32, i32
  }
  func.func @transform_2(%arg0: i32) -> (i32, i32) {
    %c0_i32 = arith.constant 0 : i32
    %c0_i32_0 = arith.constant 0 : i32
    %c0_i32_1 = arith.constant 0 : i32
    return %c0_i32, %c0_i32_0 : i32, i32
  }
  func.func @transform_3(%arg0: i32) -> (i32, i32) {
    %c0_i32 = arith.constant 0 : i32
    %c0_i32_0 = arith.constant 0 : i32
    %c0_i32_1 = arith.constant 0 : i32
    return %c0_i32, %c0_i32_0 : i32, i32
  }
}

module attributes {stable_mosaic.version = 11 : i64} {
  func.func @_conv_bn_kernel(%arg0: i32, %arg1: memref<128x640xbf16, #tpu.memory_space<vmem>>, %arg2: memref<640x128xbf16, #tpu.memory_space<vmem>>, %arg3: memref<8x128xf32, #tpu.memory_space<vmem>>, %arg4: memref<128x128xbf16, #tpu.memory_space<vmem>>) attributes {dimension_semantics = [#tpu.dimension_semantics<arbitrary>], iteration_bounds = array<i64: 1>, scalar_prefetch = 0 : i64, scratch_operands = 0 : i64, tpu.core_type = #tpu.core_type<tc>, window_params = [{pipeline_mode = #tpu.pipeline_mode<synchronous>, transform_indices = @transform_0, window_bounds = array<i64: 128, 640>}, {pipeline_mode = #tpu.pipeline_mode<synchronous>, transform_indices = @transform_1, window_bounds = array<i64: 640, 128>}, {pipeline_mode = #tpu.pipeline_mode<synchronous>, transform_indices = @transform_2, window_bounds = array<i64: 8, 128>}, {pipeline_mode = #tpu.pipeline_mode<synchronous>, transform_indices = @transform_3, window_bounds = array<i64: 128, 128>}]} {
    %c0 = arith.constant 0 : index
    %c0_0 = arith.constant 0 : index
    %0 = vector.load %arg3[%c0, %c0_0] : memref<8x128xf32, #tpu.memory_space<vmem>>, vector<8x128xf32>
    %1 = vector.extract_strided_slice %0 {offsets = [0, 0], sizes = [1, 128], strides = [1, 1]} : vector<8x128xf32> to vector<1x128xf32>
    %c0_1 = arith.constant 0 : index
    %c0_2 = arith.constant 0 : index
    %2 = vector.load %arg1[%c0_1, %c0_2] : memref<128x640xbf16, #tpu.memory_space<vmem>>, vector<128x640xbf16>
    %c0_3 = arith.constant 0 : index
    %c0_4 = arith.constant 0 : index
    %3 = vector.load %arg2[%c0_3, %c0_4] : memref<640x128xbf16, #tpu.memory_space<vmem>>, vector<640x128xbf16>
    %cst = arith.constant dense<0.000000e+00> : vector<128x128xf32>
    %4 = tpu.matmul %2, %3, %cst {dimension_numbers = #tpu.dot_dimension_numbers<[1], [0], [0], [1], [0, 0, 1, 1], [], []>} : vector<128x640xbf16>, vector<640x128xbf16>, vector<128x128xf32> -> vector<128x128xf32>
    %5 = vector.broadcast %1 : vector<1x128xf32> to vector<128x128xf32>
    %6 = arith.addf %4, %5 : vector<128x128xf32>
    %cst_5 = arith.constant dense<0.000000e+00> : vector<128xf32>
    %7 = vector.multi_reduction <add>, %6, %cst_5 [0] : vector<128x128xf32> to vector<128xf32>
    %8 = vector.shape_cast %7 : vector<128xf32> to vector<1x128xf32>
    %cst_6 = arith.constant 7.812500e-03 : f32
    %9 = vector.broadcast %cst_6 : f32 to vector<1x128xf32>
    %10 = arith.mulf %8, %9 : vector<1x128xf32>
    %11 = vector.broadcast %10 : vector<1x128xf32> to vector<128x128xf32>
    %12 = arith.subf %6, %11 : vector<128x128xf32>
    %13 = arith.mulf %12, %12 : vector<128x128xf32>
    %cst_7 = arith.constant dense<0.000000e+00> : vector<128xf32>
    %14 = vector.multi_reduction <add>, %13, %cst_7 [0] : vector<128x128xf32> to vector<128xf32>
    %15 = vector.shape_cast %14 : vector<128xf32> to vector<1x128xf32>
    %cst_8 = arith.constant 7.812500e-03 : f32
    %16 = vector.broadcast %cst_8 : f32 to vector<1x128xf32>
    %17 = arith.mulf %15, %16 : vector<1x128xf32>
    %cst_9 = arith.constant 0.000000e+00 : f32
    %18 = vector.broadcast %cst_9 : f32 to vector<1x128xf32>
    %19 = arith.maximumf %17, %18 : vector<1x128xf32>
    %20 = vector.extract_strided_slice %0 {offsets = [1, 0], sizes = [1, 128], strides = [1, 1]} : vector<8x128xf32> to vector<1x128xf32>
    %cst_10 = arith.constant 9.99999974E-6 : f32
    %21 = vector.broadcast %cst_10 : f32 to vector<1x128xf32>
    %22 = arith.addf %19, %21 : vector<1x128xf32>
    %23 = math.rsqrt %22 : vector<1x128xf32>
    %24 = arith.mulf %20, %23 : vector<1x128xf32>
    %25 = vector.extract_strided_slice %0 {offsets = [2, 0], sizes = [1, 128], strides = [1, 1]} : vector<8x128xf32> to vector<1x128xf32>
    %26 = arith.mulf %10, %24 : vector<1x128xf32>
    %27 = arith.subf %25, %26 : vector<1x128xf32>
    %28 = vector.broadcast %24 : vector<1x128xf32> to vector<128x128xf32>
    %29 = arith.mulf %6, %28 : vector<128x128xf32>
    %30 = vector.broadcast %27 : vector<1x128xf32> to vector<128x128xf32>
    %31 = arith.addf %29, %30 : vector<128x128xf32>
    %cst_11 = arith.constant 0.000000e+00 : f32
    %32 = vector.broadcast %cst_11 : f32 to vector<128x128xf32>
    %33 = arith.maximumf %31, %32 : vector<128x128xf32>
    %34 = arith.truncf %33 : vector<128x128xf32> to vector<128x128xbf16>
    %c0_12 = arith.constant 0 : index
    %c0_13 = arith.constant 0 : index
    %35 = vector.load %arg4[%c0_12, %c0_13] : memref<128x128xbf16, #tpu.memory_space<vmem>>, vector<128x128xbf16>
    tpu.vector_store %arg4[%c0_12, %c0_13], %34 {strides = array<i32>} : memref<128x128xbf16, #tpu.memory_space<vmem>>, vector<128x128xbf16>,
    return
  }
  func.func @transform_0(%arg0: i32) -> (i32, i32) {
    %c0_i32 = arith.constant 0 : i32
    %c0_i32_0 = arith.constant 0 : i32
    %c0_i32_1 = arith.constant 0 : i32
    return %c0_i32, %c0_i32_0 : i32, i32
  }
  func.func @transform_1(%arg0: i32) -> (i32, i32) {
    %c0_i32 = arith.constant 0 : i32
    %c0_i32_0 = arith.constant 0 : i32
    %c0_i32_1 = arith.constant 0 : i32
    return %c0_i32, %c0_i32_0 : i32, i32
  }
  func.func @transform_2(%arg0: i32) -> (i32, i32) {
    %c0_i32 = arith.constant 0 : i32
    %c0_i32_0 = arith.constant 0 : i32
    %c0_i32_1 = arith.constant 0 : i32
    return %c0_i32, %c0_i32_0 : i32, i32
  }
  func.func @transform_3(%arg0: i32) -> (i32, i32) {
    %c0_i32 = arith.constant 0 : i32
    %c0_i32_0 = arith.constant 0 : i32
    %c0_i32_1 = arith.constant 0 : i32
    return %c0_i32, %c0_i32_0 : i32, i32
  }
}

module attributes {stable_mosaic.version = 11 : i64} {
  func.func @_conv_bn_kernel(%arg0: i32, %arg1: memref<128x640xbf16, #tpu.memory_space<vmem>>, %arg2: memref<640x128xbf16, #tpu.memory_space<vmem>>, %arg3: memref<8x128xf32, #tpu.memory_space<vmem>>, %arg4: memref<128x128xbf16, #tpu.memory_space<vmem>>, %arg5: memref<128x128xbf16, #tpu.memory_space<vmem>>) attributes {dimension_semantics = [#tpu.dimension_semantics<arbitrary>], iteration_bounds = array<i64: 1>, scalar_prefetch = 0 : i64, scratch_operands = 0 : i64, tpu.core_type = #tpu.core_type<tc>, window_params = [{pipeline_mode = #tpu.pipeline_mode<synchronous>, transform_indices = @transform_0, window_bounds = array<i64: 128, 640>}, {pipeline_mode = #tpu.pipeline_mode<synchronous>, transform_indices = @transform_1, window_bounds = array<i64: 640, 128>}, {pipeline_mode = #tpu.pipeline_mode<synchronous>, transform_indices = @transform_2, window_bounds = array<i64: 8, 128>}, {pipeline_mode = #tpu.pipeline_mode<synchronous>, transform_indices = @transform_3, window_bounds = array<i64: 128, 128>}, {pipeline_mode = #tpu.pipeline_mode<synchronous>, transform_indices = @transform_4, window_bounds = array<i64: 128, 128>}]} {
    %c0 = arith.constant 0 : index
    %c0_0 = arith.constant 0 : index
    %0 = vector.load %arg3[%c0, %c0_0] : memref<8x128xf32, #tpu.memory_space<vmem>>, vector<8x128xf32>
    %1 = vector.extract_strided_slice %0 {offsets = [0, 0], sizes = [1, 128], strides = [1, 1]} : vector<8x128xf32> to vector<1x128xf32>
    %c0_1 = arith.constant 0 : index
    %c0_2 = arith.constant 0 : index
    %2 = vector.load %arg1[%c0_1, %c0_2] : memref<128x640xbf16, #tpu.memory_space<vmem>>, vector<128x640xbf16>
    %c0_3 = arith.constant 0 : index
    %c0_4 = arith.constant 0 : index
    %3 = vector.load %arg2[%c0_3, %c0_4] : memref<640x128xbf16, #tpu.memory_space<vmem>>, vector<640x128xbf16>
    %cst = arith.constant dense<0.000000e+00> : vector<128x128xf32>
    %4 = tpu.matmul %2, %3, %cst {dimension_numbers = #tpu.dot_dimension_numbers<[1], [0], [0], [1], [0, 0, 1, 1], [], []>} : vector<128x640xbf16>, vector<640x128xbf16>, vector<128x128xf32> -> vector<128x128xf32>
    %5 = vector.broadcast %1 : vector<1x128xf32> to vector<128x128xf32>
    %6 = arith.addf %4, %5 : vector<128x128xf32>
    %cst_5 = arith.constant dense<0.000000e+00> : vector<128xf32>
    %7 = vector.multi_reduction <add>, %6, %cst_5 [0] : vector<128x128xf32> to vector<128xf32>
    %8 = vector.shape_cast %7 : vector<128xf32> to vector<1x128xf32>
    %cst_6 = arith.constant 7.812500e-03 : f32
    %9 = vector.broadcast %cst_6 : f32 to vector<1x128xf32>
    %10 = arith.mulf %8, %9 : vector<1x128xf32>
    %11 = vector.broadcast %10 : vector<1x128xf32> to vector<128x128xf32>
    %12 = arith.subf %6, %11 : vector<128x128xf32>
    %13 = arith.mulf %12, %12 : vector<128x128xf32>
    %cst_7 = arith.constant dense<0.000000e+00> : vector<128xf32>
    %14 = vector.multi_reduction <add>, %13, %cst_7 [0] : vector<128x128xf32> to vector<128xf32>
    %15 = vector.shape_cast %14 : vector<128xf32> to vector<1x128xf32>
    %cst_8 = arith.constant 7.812500e-03 : f32
    %16 = vector.broadcast %cst_8 : f32 to vector<1x128xf32>
    %17 = arith.mulf %15, %16 : vector<1x128xf32>
    %cst_9 = arith.constant 0.000000e+00 : f32
    %18 = vector.broadcast %cst_9 : f32 to vector<1x128xf32>
    %19 = arith.maximumf %17, %18 : vector<1x128xf32>
    %20 = vector.extract_strided_slice %0 {offsets = [1, 0], sizes = [1, 128], strides = [1, 1]} : vector<8x128xf32> to vector<1x128xf32>
    %cst_10 = arith.constant 9.99999974E-6 : f32
    %21 = vector.broadcast %cst_10 : f32 to vector<1x128xf32>
    %22 = arith.addf %19, %21 : vector<1x128xf32>
    %23 = math.rsqrt %22 : vector<1x128xf32>
    %24 = arith.mulf %20, %23 : vector<1x128xf32>
    %25 = vector.extract_strided_slice %0 {offsets = [2, 0], sizes = [1, 128], strides = [1, 1]} : vector<8x128xf32> to vector<1x128xf32>
    %26 = arith.mulf %10, %24 : vector<1x128xf32>
    %27 = arith.subf %25, %26 : vector<1x128xf32>
    %28 = vector.broadcast %24 : vector<1x128xf32> to vector<128x128xf32>
    %29 = arith.mulf %6, %28 : vector<128x128xf32>
    %30 = vector.broadcast %27 : vector<1x128xf32> to vector<128x128xf32>
    %31 = arith.addf %29, %30 : vector<128x128xf32>
    %c0_11 = arith.constant 0 : index
    %c0_12 = arith.constant 0 : index
    %32 = vector.load %arg4[%c0_11, %c0_12] : memref<128x128xbf16, #tpu.memory_space<vmem>>, vector<128x128xbf16>
    %33 = arith.extf %32 : vector<128x128xbf16> to vector<128x128xf32>
    %34 = arith.addf %31, %33 : vector<128x128xf32>
    %cst_13 = arith.constant 0.000000e+00 : f32
    %35 = vector.broadcast %cst_13 : f32 to vector<128x128xf32>
    %36 = arith.maximumf %34, %35 : vector<128x128xf32>
    %37 = arith.truncf %36 : vector<128x128xf32> to vector<128x128xbf16>
    %c0_14 = arith.constant 0 : index
    %c0_15 = arith.constant 0 : index
    %38 = vector.load %arg5[%c0_14, %c0_15] : memref<128x128xbf16, #tpu.memory_space<vmem>>, vector<128x128xbf16>
    tpu.vector_store %arg5[%c0_14, %c0_15], %37 {strides = array<i32>} : memref<128x128xbf16, #tpu.memory_space<vmem>>, vector<128x128xbf16>,
    return
  }
  func.func @transform_0(%arg0: i32) -> (i32, i32) {
    %c0_i32 = arith.constant 0 : i32
    %c0_i32_0 = arith.constant 0 : i32
    %c0_i32_1 = arith.constant 0 : i32
    return %c0_i32, %c0_i32_0 : i32, i32
  }
  func.func @transform_1(%arg0: i32) -> (i32, i32) {
    %c0_i32 = arith.constant 0 : i32
    %c0_i32_0 = arith.constant 0 : i32
    %c0_i32_1 = arith.constant 0 : i32
    return %c0_i32, %c0_i32_0 : i32, i32
  }
  func.func @transform_2(%arg0: i32) -> (i32, i32) {
    %c0_i32 = arith.constant 0 : i32
    %c0_i32_0 = arith.constant 0 : i32
    %c0_i32_1 = arith.constant 0 : i32
    return %c0_i32, %c0_i32_0 : i32, i32
  }
  func.func @transform_3(%arg0: i32) -> (i32, i32) {
    %c0_i32 = arith.constant 0 : i32
    %c0_i32_0 = arith.constant 0 : i32
    %c0_i32_1 = arith.constant 0 : i32
    return %c0_i32, %c0_i32_0 : i32, i32
  }
  func.func @transform_4(%arg0: i32) -> (i32, i32) {
    %c0_i32 = arith.constant 0 : i32
    %c0_i32_0 = arith.constant 0 : i32
    %c0_i32_1 = arith.constant 0 : i32
    return %c0_i32, %c0_i32_0 : i32, i32
  }
}

module attributes {stable_mosaic.version = 11 : i64} {
  func.func @_conv_bn_kernel(%arg0: i32, %arg1: memref<32x640xbf16, #tpu.memory_space<vmem>>, %arg2: memref<640x256xbf16, #tpu.memory_space<vmem>>, %arg3: memref<8x256xf32, #tpu.memory_space<vmem>>, %arg4: memref<32x256xbf16, #tpu.memory_space<vmem>>) attributes {dimension_semantics = [#tpu.dimension_semantics<arbitrary>], iteration_bounds = array<i64: 1>, scalar_prefetch = 0 : i64, scratch_operands = 0 : i64, tpu.core_type = #tpu.core_type<tc>, window_params = [{pipeline_mode = #tpu.pipeline_mode<synchronous>, transform_indices = @transform_0, window_bounds = array<i64: 32, 640>}, {pipeline_mode = #tpu.pipeline_mode<synchronous>, transform_indices = @transform_1, window_bounds = array<i64: 640, 256>}, {pipeline_mode = #tpu.pipeline_mode<synchronous>, transform_indices = @transform_2, window_bounds = array<i64: 8, 256>}, {pipeline_mode = #tpu.pipeline_mode<synchronous>, transform_indices = @transform_3, window_bounds = array<i64: 32, 256>}]} {
    %c0 = arith.constant 0 : index
    %c0_0 = arith.constant 0 : index
    %0 = vector.load %arg3[%c0, %c0_0] : memref<8x256xf32, #tpu.memory_space<vmem>>, vector<8x256xf32>
    %1 = vector.extract_strided_slice %0 {offsets = [0, 0], sizes = [1, 256], strides = [1, 1]} : vector<8x256xf32> to vector<1x256xf32>
    %c0_1 = arith.constant 0 : index
    %c0_2 = arith.constant 0 : index
    %2 = vector.load %arg1[%c0_1, %c0_2] : memref<32x640xbf16, #tpu.memory_space<vmem>>, vector<32x640xbf16>
    %c0_3 = arith.constant 0 : index
    %c0_4 = arith.constant 0 : index
    %3 = vector.load %arg2[%c0_3, %c0_4] : memref<640x256xbf16, #tpu.memory_space<vmem>>, vector<640x256xbf16>
    %cst = arith.constant dense<0.000000e+00> : vector<32x256xf32>
    %4 = tpu.matmul %2, %3, %cst {dimension_numbers = #tpu.dot_dimension_numbers<[1], [0], [0], [1], [0, 0, 1, 1], [], []>} : vector<32x640xbf16>, vector<640x256xbf16>, vector<32x256xf32> -> vector<32x256xf32>
    %5 = vector.broadcast %1 : vector<1x256xf32> to vector<32x256xf32>
    %6 = arith.addf %4, %5 : vector<32x256xf32>
    %cst_5 = arith.constant dense<0.000000e+00> : vector<256xf32>
    %7 = vector.multi_reduction <add>, %6, %cst_5 [0] : vector<32x256xf32> to vector<256xf32>
    %8 = vector.shape_cast %7 : vector<256xf32> to vector<1x256xf32>
    %cst_6 = arith.constant 3.125000e-02 : f32
    %9 = vector.broadcast %cst_6 : f32 to vector<1x256xf32>
    %10 = arith.mulf %8, %9 : vector<1x256xf32>
    %11 = vector.broadcast %10 : vector<1x256xf32> to vector<32x256xf32>
    %12 = arith.subf %6, %11 : vector<32x256xf32>
    %13 = arith.mulf %12, %12 : vector<32x256xf32>
    %cst_7 = arith.constant dense<0.000000e+00> : vector<256xf32>
    %14 = vector.multi_reduction <add>, %13, %cst_7 [0] : vector<32x256xf32> to vector<256xf32>
    %15 = vector.shape_cast %14 : vector<256xf32> to vector<1x256xf32>
    %cst_8 = arith.constant 3.125000e-02 : f32
    %16 = vector.broadcast %cst_8 : f32 to vector<1x256xf32>
    %17 = arith.mulf %15, %16 : vector<1x256xf32>
    %cst_9 = arith.constant 0.000000e+00 : f32
    %18 = vector.broadcast %cst_9 : f32 to vector<1x256xf32>
    %19 = arith.maximumf %17, %18 : vector<1x256xf32>
    %20 = vector.extract_strided_slice %0 {offsets = [1, 0], sizes = [1, 256], strides = [1, 1]} : vector<8x256xf32> to vector<1x256xf32>
    %cst_10 = arith.constant 9.99999974E-6 : f32
    %21 = vector.broadcast %cst_10 : f32 to vector<1x256xf32>
    %22 = arith.addf %19, %21 : vector<1x256xf32>
    %23 = math.rsqrt %22 : vector<1x256xf32>
    %24 = arith.mulf %20, %23 : vector<1x256xf32>
    %25 = vector.extract_strided_slice %0 {offsets = [2, 0], sizes = [1, 256], strides = [1, 1]} : vector<8x256xf32> to vector<1x256xf32>
    %26 = arith.mulf %10, %24 : vector<1x256xf32>
    %27 = arith.subf %25, %26 : vector<1x256xf32>
    %28 = vector.broadcast %24 : vector<1x256xf32> to vector<32x256xf32>
    %29 = arith.mulf %6, %28 : vector<32x256xf32>
    %30 = vector.broadcast %27 : vector<1x256xf32> to vector<32x256xf32>
    %31 = arith.addf %29, %30 : vector<32x256xf32>
    %32 = vector.extract_strided_slice %0 {offsets = [3, 0], sizes = [1, 256], strides = [1, 1]} : vector<8x256xf32> to vector<1x256xf32>
    %cst_11 = arith.constant 0.000000e+00 : f32
    %33 = vector.broadcast %cst_11 : f32 to vector<1x256xf32>
    %34 = arith.cmpf ogt, %32, %33 : vector<1x256xf32>
    %cst_12 = arith.constant 0.000000e+00 : f32
    %35 = vector.broadcast %cst_12 : f32 to vector<32x256xf32>
    %36 = arith.maximumf %31, %35 : vector<32x256xf32>
    %37 = vector.shape_cast %34 : vector<1x256xi1> to vector<1x256xi1>
    %38 = vector.broadcast %37 : vector<1x256xi1> to vector<32x256xi1>
    %39 = arith.select %38, %36, %31 : vector<32x256xi1>, vector<32x256xf32>
    %40 = arith.truncf %39 : vector<32x256xf32> to vector<32x256xbf16>
    %c0_13 = arith.constant 0 : index
    %c0_14 = arith.constant 0 : index
    %41 = vector.load %arg4[%c0_13, %c0_14] : memref<32x256xbf16, #tpu.memory_space<vmem>>, vector<32x256xbf16>
    tpu.vector_store %arg4[%c0_13, %c0_14], %40 {strides = array<i32>} : memref<32x256xbf16, #tpu.memory_space<vmem>>, vector<32x256xbf16>,
    return
  }
  func.func @transform_0(%arg0: i32) -> (i32, i32) {
    %c0_i32 = arith.constant 0 : i32
    %c0_i32_0 = arith.constant 0 : i32
    %c0_i32_1 = arith.constant 0 : i32
    return %c0_i32, %c0_i32_0 : i32, i32
  }
  func.func @transform_1(%arg0: i32) -> (i32, i32) {
    %c0_i32 = arith.constant 0 : i32
    %c0_i32_0 = arith.constant 0 : i32
    %c0_i32_1 = arith.constant 0 : i32
    return %c0_i32, %c0_i32_0 : i32, i32
  }
  func.func @transform_2(%arg0: i32) -> (i32, i32) {
    %c0_i32 = arith.constant 0 : i32
    %c0_i32_0 = arith.constant 0 : i32
    %c0_i32_1 = arith.constant 0 : i32
    return %c0_i32, %c0_i32_0 : i32, i32
  }
  func.func @transform_3(%arg0: i32) -> (i32, i32) {
    %c0_i32 = arith.constant 0 : i32
    %c0_i32_0 = arith.constant 0 : i32
    %c0_i32_1 = arith.constant 0 : i32
    return %c0_i32, %c0_i32_0 : i32, i32
  }
}

module attributes {stable_mosaic.version = 11 : i64} {
  func.func @_conv_bn_kernel(%arg0: i32, %arg1: memref<32x1152xbf16, #tpu.memory_space<vmem>>, %arg2: memref<1152x128xbf16, #tpu.memory_space<vmem>>, %arg3: memref<8x128xf32, #tpu.memory_space<vmem>>, %arg4: memref<32x128xbf16, #tpu.memory_space<vmem>>, %arg5: memref<32x128xbf16, #tpu.memory_space<vmem>>) attributes {dimension_semantics = [#tpu.dimension_semantics<arbitrary>], iteration_bounds = array<i64: 1>, scalar_prefetch = 0 : i64, scratch_operands = 0 : i64, tpu.core_type = #tpu.core_type<tc>, window_params = [{pipeline_mode = #tpu.pipeline_mode<synchronous>, transform_indices = @transform_0, window_bounds = array<i64: 32, 1152>}, {pipeline_mode = #tpu.pipeline_mode<synchronous>, transform_indices = @transform_1, window_bounds = array<i64: 1152, 128>}, {pipeline_mode = #tpu.pipeline_mode<synchronous>, transform_indices = @transform_2, window_bounds = array<i64: 8, 128>}, {pipeline_mode = #tpu.pipeline_mode<synchronous>, transform_indices = @transform_3, window_bounds = array<i64: 32, 128>}, {pipeline_mode = #tpu.pipeline_mode<synchronous>, transform_indices = @transform_4, window_bounds = array<i64: 32, 128>}]} {
    %c0 = arith.constant 0 : index
    %c0_0 = arith.constant 0 : index
    %0 = vector.load %arg3[%c0, %c0_0] : memref<8x128xf32, #tpu.memory_space<vmem>>, vector<8x128xf32>
    %1 = vector.extract_strided_slice %0 {offsets = [0, 0], sizes = [1, 128], strides = [1, 1]} : vector<8x128xf32> to vector<1x128xf32>
    %c0_1 = arith.constant 0 : index
    %c0_2 = arith.constant 0 : index
    %2 = vector.load %arg1[%c0_1, %c0_2] : memref<32x1152xbf16, #tpu.memory_space<vmem>>, vector<32x1152xbf16>
    %c0_3 = arith.constant 0 : index
    %c0_4 = arith.constant 0 : index
    %3 = vector.load %arg2[%c0_3, %c0_4] : memref<1152x128xbf16, #tpu.memory_space<vmem>>, vector<1152x128xbf16>
    %cst = arith.constant dense<0.000000e+00> : vector<32x128xf32>
    %4 = tpu.matmul %2, %3, %cst {dimension_numbers = #tpu.dot_dimension_numbers<[1], [0], [0], [1], [0, 0, 1, 1], [], []>} : vector<32x1152xbf16>, vector<1152x128xbf16>, vector<32x128xf32> -> vector<32x128xf32>
    %5 = vector.broadcast %1 : vector<1x128xf32> to vector<32x128xf32>
    %6 = arith.addf %4, %5 : vector<32x128xf32>
    %cst_5 = arith.constant dense<0.000000e+00> : vector<128xf32>
    %7 = vector.multi_reduction <add>, %6, %cst_5 [0] : vector<32x128xf32> to vector<128xf32>
    %8 = vector.shape_cast %7 : vector<128xf32> to vector<1x128xf32>
    %cst_6 = arith.constant 3.125000e-02 : f32
    %9 = vector.broadcast %cst_6 : f32 to vector<1x128xf32>
    %10 = arith.mulf %8, %9 : vector<1x128xf32>
    %11 = vector.broadcast %10 : vector<1x128xf32> to vector<32x128xf32>
    %12 = arith.subf %6, %11 : vector<32x128xf32>
    %13 = arith.mulf %12, %12 : vector<32x128xf32>
    %cst_7 = arith.constant dense<0.000000e+00> : vector<128xf32>
    %14 = vector.multi_reduction <add>, %13, %cst_7 [0] : vector<32x128xf32> to vector<128xf32>
    %15 = vector.shape_cast %14 : vector<128xf32> to vector<1x128xf32>
    %cst_8 = arith.constant 3.125000e-02 : f32
    %16 = vector.broadcast %cst_8 : f32 to vector<1x128xf32>
    %17 = arith.mulf %15, %16 : vector<1x128xf32>
    %cst_9 = arith.constant 0.000000e+00 : f32
    %18 = vector.broadcast %cst_9 : f32 to vector<1x128xf32>
    %19 = arith.maximumf %17, %18 : vector<1x128xf32>
    %20 = vector.extract_strided_slice %0 {offsets = [1, 0], sizes = [1, 128], strides = [1, 1]} : vector<8x128xf32> to vector<1x128xf32>
    %cst_10 = arith.constant 9.99999974E-6 : f32
    %21 = vector.broadcast %cst_10 : f32 to vector<1x128xf32>
    %22 = arith.addf %19, %21 : vector<1x128xf32>
    %23 = math.rsqrt %22 : vector<1x128xf32>
    %24 = arith.mulf %20, %23 : vector<1x128xf32>
    %25 = vector.extract_strided_slice %0 {offsets = [2, 0], sizes = [1, 128], strides = [1, 1]} : vector<8x128xf32> to vector<1x128xf32>
    %26 = arith.mulf %10, %24 : vector<1x128xf32>
    %27 = arith.subf %25, %26 : vector<1x128xf32>
    %28 = vector.broadcast %24 : vector<1x128xf32> to vector<32x128xf32>
    %29 = arith.mulf %6, %28 : vector<32x128xf32>
    %30 = vector.broadcast %27 : vector<1x128xf32> to vector<32x128xf32>
    %31 = arith.addf %29, %30 : vector<32x128xf32>
    %c0_11 = arith.constant 0 : index
    %c0_12 = arith.constant 0 : index
    %32 = vector.load %arg4[%c0_11, %c0_12] : memref<32x128xbf16, #tpu.memory_space<vmem>>, vector<32x128xbf16>
    %33 = arith.extf %32 : vector<32x128xbf16> to vector<32x128xf32>
    %34 = arith.addf %31, %33 : vector<32x128xf32>
    %cst_13 = arith.constant 0.000000e+00 : f32
    %35 = vector.broadcast %cst_13 : f32 to vector<32x128xf32>
    %36 = arith.maximumf %34, %35 : vector<32x128xf32>
    %37 = arith.truncf %36 : vector<32x128xf32> to vector<32x128xbf16>
    %c0_14 = arith.constant 0 : index
    %c0_15 = arith.constant 0 : index
    %38 = vector.load %arg5[%c0_14, %c0_15] : memref<32x128xbf16, #tpu.memory_space<vmem>>, vector<32x128xbf16>
    tpu.vector_store %arg5[%c0_14, %c0_15], %37 {strides = array<i32>} : memref<32x128xbf16, #tpu.memory_space<vmem>>, vector<32x128xbf16>,
    return
  }
  func.func @transform_0(%arg0: i32) -> (i32, i32) {
    %c0_i32 = arith.constant 0 : i32
    %c0_i32_0 = arith.constant 0 : i32
    %c0_i32_1 = arith.constant 0 : i32
    return %c0_i32, %c0_i32_0 : i32, i32
  }
  func.func @transform_1(%arg0: i32) -> (i32, i32) {
    %c0_i32 = arith.constant 0 : i32
    %c0_i32_0 = arith.constant 0 : i32
    %c0_i32_1 = arith.constant 0 : i32
    return %c0_i32, %c0_i32_0 : i32, i32
  }
  func.func @transform_2(%arg0: i32) -> (i32, i32) {
    %c0_i32 = arith.constant 0 : i32
    %c0_i32_0 = arith.constant 0 : i32
    %c0_i32_1 = arith.constant 0 : i32
    return %c0_i32, %c0_i32_0 : i32, i32
  }
  func.func @transform_3(%arg0: i32) -> (i32, i32) {
    %c0_i32 = arith.constant 0 : i32
    %c0_i32_0 = arith.constant 0 : i32
    %c0_i32_1 = arith.constant 0 : i32
    return %c0_i32, %c0_i32_0 : i32, i32
  }
  func.func @transform_4(%arg0: i32) -> (i32, i32) {
    %c0_i32 = arith.constant 0 : i32
    %c0_i32_0 = arith.constant 0 : i32
    %c0_i32_1 = arith.constant 0 : i32
    return %c0_i32, %c0_i32_0 : i32, i32
  }
}

module attributes {stable_mosaic.version = 11 : i64} {
  func.func @_conv_bn_kernel(%arg0: i32, %arg1: memref<32x1152xbf16, #tpu.memory_space<vmem>>, %arg2: memref<1152x128xbf16, #tpu.memory_space<vmem>>, %arg3: memref<8x128xf32, #tpu.memory_space<vmem>>, %arg4: memref<32x128xbf16, #tpu.memory_space<vmem>>) attributes {dimension_semantics = [#tpu.dimension_semantics<arbitrary>], iteration_bounds = array<i64: 1>, scalar_prefetch = 0 : i64, scratch_operands = 0 : i64, tpu.core_type = #tpu.core_type<tc>, window_params = [{pipeline_mode = #tpu.pipeline_mode<synchronous>, transform_indices = @transform_0, window_bounds = array<i64: 32, 1152>}, {pipeline_mode = #tpu.pipeline_mode<synchronous>, transform_indices = @transform_1, window_bounds = array<i64: 1152, 128>}, {pipeline_mode = #tpu.pipeline_mode<synchronous>, transform_indices = @transform_2, window_bounds = array<i64: 8, 128>}, {pipeline_mode = #tpu.pipeline_mode<synchronous>, transform_indices = @transform_3, window_bounds = array<i64: 32, 128>}]} {
    %c0 = arith.constant 0 : index
    %c0_0 = arith.constant 0 : index
    %0 = vector.load %arg3[%c0, %c0_0] : memref<8x128xf32, #tpu.memory_space<vmem>>, vector<8x128xf32>
    %1 = vector.extract_strided_slice %0 {offsets = [0, 0], sizes = [1, 128], strides = [1, 1]} : vector<8x128xf32> to vector<1x128xf32>
    %c0_1 = arith.constant 0 : index
    %c0_2 = arith.constant 0 : index
    %2 = vector.load %arg1[%c0_1, %c0_2] : memref<32x1152xbf16, #tpu.memory_space<vmem>>, vector<32x1152xbf16>
    %c0_3 = arith.constant 0 : index
    %c0_4 = arith.constant 0 : index
    %3 = vector.load %arg2[%c0_3, %c0_4] : memref<1152x128xbf16, #tpu.memory_space<vmem>>, vector<1152x128xbf16>
    %cst = arith.constant dense<0.000000e+00> : vector<32x128xf32>
    %4 = tpu.matmul %2, %3, %cst {dimension_numbers = #tpu.dot_dimension_numbers<[1], [0], [0], [1], [0, 0, 1, 1], [], []>} : vector<32x1152xbf16>, vector<1152x128xbf16>, vector<32x128xf32> -> vector<32x128xf32>
    %5 = vector.broadcast %1 : vector<1x128xf32> to vector<32x128xf32>
    %6 = arith.addf %4, %5 : vector<32x128xf32>
    %cst_5 = arith.constant dense<0.000000e+00> : vector<128xf32>
    %7 = vector.multi_reduction <add>, %6, %cst_5 [0] : vector<32x128xf32> to vector<128xf32>
    %8 = vector.shape_cast %7 : vector<128xf32> to vector<1x128xf32>
    %cst_6 = arith.constant 3.125000e-02 : f32
    %9 = vector.broadcast %cst_6 : f32 to vector<1x128xf32>
    %10 = arith.mulf %8, %9 : vector<1x128xf32>
    %11 = vector.broadcast %10 : vector<1x128xf32> to vector<32x128xf32>
    %12 = arith.subf %6, %11 : vector<32x128xf32>
    %13 = arith.mulf %12, %12 : vector<32x128xf32>
    %cst_7 = arith.constant dense<0.000000e+00> : vector<128xf32>
    %14 = vector.multi_reduction <add>, %13, %cst_7 [0] : vector<32x128xf32> to vector<128xf32>
    %15 = vector.shape_cast %14 : vector<128xf32> to vector<1x128xf32>
    %cst_8 = arith.constant 3.125000e-02 : f32
    %16 = vector.broadcast %cst_8 : f32 to vector<1x128xf32>
    %17 = arith.mulf %15, %16 : vector<1x128xf32>
    %cst_9 = arith.constant 0.000000e+00 : f32
    %18 = vector.broadcast %cst_9 : f32 to vector<1x128xf32>
    %19 = arith.maximumf %17, %18 : vector<1x128xf32>
    %20 = vector.extract_strided_slice %0 {offsets = [1, 0], sizes = [1, 128], strides = [1, 1]} : vector<8x128xf32> to vector<1x128xf32>
    %cst_10 = arith.constant 9.99999974E-6 : f32
    %21 = vector.broadcast %cst_10 : f32 to vector<1x128xf32>
    %22 = arith.addf %19, %21 : vector<1x128xf32>
    %23 = math.rsqrt %22 : vector<1x128xf32>
    %24 = arith.mulf %20, %23 : vector<1x128xf32>
    %25 = vector.extract_strided_slice %0 {offsets = [2, 0], sizes = [1, 128], strides = [1, 1]} : vector<8x128xf32> to vector<1x128xf32>
    %26 = arith.mulf %10, %24 : vector<1x128xf32>
    %27 = arith.subf %25, %26 : vector<1x128xf32>
    %28 = vector.broadcast %24 : vector<1x128xf32> to vector<32x128xf32>
    %29 = arith.mulf %6, %28 : vector<32x128xf32>
    %30 = vector.broadcast %27 : vector<1x128xf32> to vector<32x128xf32>
    %31 = arith.addf %29, %30 : vector<32x128xf32>
    %cst_11 = arith.constant 0.000000e+00 : f32
    %32 = vector.broadcast %cst_11 : f32 to vector<32x128xf32>
    %33 = arith.maximumf %31, %32 : vector<32x128xf32>
    %34 = arith.truncf %33 : vector<32x128xf32> to vector<32x128xbf16>
    %c0_12 = arith.constant 0 : index
    %c0_13 = arith.constant 0 : index
    %35 = vector.load %arg4[%c0_12, %c0_13] : memref<32x128xbf16, #tpu.memory_space<vmem>>, vector<32x128xbf16>
    tpu.vector_store %arg4[%c0_12, %c0_13], %34 {strides = array<i32>} : memref<32x128xbf16, #tpu.memory_space<vmem>>, vector<32x128xbf16>,
    return
  }
  func.func @transform_0(%arg0: i32) -> (i32, i32) {
    %c0_i32 = arith.constant 0 : i32
    %c0_i32_0 = arith.constant 0 : i32
    %c0_i32_1 = arith.constant 0 : i32
    return %c0_i32, %c0_i32_0 : i32, i32
  }
  func.func @transform_1(%arg0: i32) -> (i32, i32) {
    %c0_i32 = arith.constant 0 : i32
    %c0_i32_0 = arith.constant 0 : i32
    %c0_i32_1 = arith.constant 0 : i32
    return %c0_i32, %c0_i32_0 : i32, i32
  }
  func.func @transform_2(%arg0: i32) -> (i32, i32) {
    %c0_i32 = arith.constant 0 : i32
    %c0_i32_0 = arith.constant 0 : i32
    %c0_i32_1 = arith.constant 0 : i32
    return %c0_i32, %c0_i32_0 : i32, i32
  }
  func.func @transform_3(%arg0: i32) -> (i32, i32) {
    %c0_i32 = arith.constant 0 : i32
    %c0_i32_0 = arith.constant 0 : i32
    %c0_i32_1 = arith.constant 0 : i32
    return %c0_i32, %c0_i32_0 : i32, i32
  }
}

module attributes {stable_mosaic.version = 11 : i64} {
  func.func @_conv_bn_kernel(%arg0: i32, %arg1: memref<128x1152xbf16, #tpu.memory_space<vmem>>, %arg2: memref<1152x128xbf16, #tpu.memory_space<vmem>>, %arg3: memref<8x128xf32, #tpu.memory_space<vmem>>, %arg4: memref<128x128xbf16, #tpu.memory_space<vmem>>) attributes {dimension_semantics = [#tpu.dimension_semantics<arbitrary>], iteration_bounds = array<i64: 1>, scalar_prefetch = 0 : i64, scratch_operands = 0 : i64, tpu.core_type = #tpu.core_type<tc>, window_params = [{pipeline_mode = #tpu.pipeline_mode<synchronous>, transform_indices = @transform_0, window_bounds = array<i64: 128, 1152>}, {pipeline_mode = #tpu.pipeline_mode<synchronous>, transform_indices = @transform_1, window_bounds = array<i64: 1152, 128>}, {pipeline_mode = #tpu.pipeline_mode<synchronous>, transform_indices = @transform_2, window_bounds = array<i64: 8, 128>}, {pipeline_mode = #tpu.pipeline_mode<synchronous>, transform_indices = @transform_3, window_bounds = array<i64: 128, 128>}]} {
    %c0 = arith.constant 0 : index
    %c0_0 = arith.constant 0 : index
    %0 = vector.load %arg3[%c0, %c0_0] : memref<8x128xf32, #tpu.memory_space<vmem>>, vector<8x128xf32>
    %1 = vector.extract_strided_slice %0 {offsets = [0, 0], sizes = [1, 128], strides = [1, 1]} : vector<8x128xf32> to vector<1x128xf32>
    %c0_1 = arith.constant 0 : index
    %c0_2 = arith.constant 0 : index
    %2 = vector.load %arg1[%c0_1, %c0_2] : memref<128x1152xbf16, #tpu.memory_space<vmem>>, vector<128x1152xbf16>
    %c0_3 = arith.constant 0 : index
    %c0_4 = arith.constant 0 : index
    %3 = vector.load %arg2[%c0_3, %c0_4] : memref<1152x128xbf16, #tpu.memory_space<vmem>>, vector<1152x128xbf16>
    %cst = arith.constant dense<0.000000e+00> : vector<128x128xf32>
    %4 = tpu.matmul %2, %3, %cst {dimension_numbers = #tpu.dot_dimension_numbers<[1], [0], [0], [1], [0, 0, 1, 1], [], []>} : vector<128x1152xbf16>, vector<1152x128xbf16>, vector<128x128xf32> -> vector<128x128xf32>
    %5 = vector.broadcast %1 : vector<1x128xf32> to vector<128x128xf32>
    %6 = arith.addf %4, %5 : vector<128x128xf32>
    %cst_5 = arith.constant dense<0.000000e+00> : vector<128xf32>
    %7 = vector.multi_reduction <add>, %6, %cst_5 [0] : vector<128x128xf32> to vector<128xf32>
    %8 = vector.shape_cast %7 : vector<128xf32> to vector<1x128xf32>
    %cst_6 = arith.constant 7.812500e-03 : f32
    %9 = vector.broadcast %cst_6 : f32 to vector<1x128xf32>
    %10 = arith.mulf %8, %9 : vector<1x128xf32>
    %11 = vector.broadcast %10 : vector<1x128xf32> to vector<128x128xf32>
    %12 = arith.subf %6, %11 : vector<128x128xf32>
    %13 = arith.mulf %12, %12 : vector<128x128xf32>
    %cst_7 = arith.constant dense<0.000000e+00> : vector<128xf32>
    %14 = vector.multi_reduction <add>, %13, %cst_7 [0] : vector<128x128xf32> to vector<128xf32>
    %15 = vector.shape_cast %14 : vector<128xf32> to vector<1x128xf32>
    %cst_8 = arith.constant 7.812500e-03 : f32
    %16 = vector.broadcast %cst_8 : f32 to vector<1x128xf32>
    %17 = arith.mulf %15, %16 : vector<1x128xf32>
    %cst_9 = arith.constant 0.000000e+00 : f32
    %18 = vector.broadcast %cst_9 : f32 to vector<1x128xf32>
    %19 = arith.maximumf %17, %18 : vector<1x128xf32>
    %20 = vector.extract_strided_slice %0 {offsets = [1, 0], sizes = [1, 128], strides = [1, 1]} : vector<8x128xf32> to vector<1x128xf32>
    %cst_10 = arith.constant 9.99999974E-6 : f32
    %21 = vector.broadcast %cst_10 : f32 to vector<1x128xf32>
    %22 = arith.addf %19, %21 : vector<1x128xf32>
    %23 = math.rsqrt %22 : vector<1x128xf32>
    %24 = arith.mulf %20, %23 : vector<1x128xf32>
    %25 = vector.extract_strided_slice %0 {offsets = [2, 0], sizes = [1, 128], strides = [1, 1]} : vector<8x128xf32> to vector<1x128xf32>
    %26 = arith.mulf %10, %24 : vector<1x128xf32>
    %27 = arith.subf %25, %26 : vector<1x128xf32>
    %28 = vector.broadcast %24 : vector<1x128xf32> to vector<128x128xf32>
    %29 = arith.mulf %6, %28 : vector<128x128xf32>
    %30 = vector.broadcast %27 : vector<1x128xf32> to vector<128x128xf32>
    %31 = arith.addf %29, %30 : vector<128x128xf32>
    %cst_11 = arith.constant 0.000000e+00 : f32
    %32 = vector.broadcast %cst_11 : f32 to vector<128x128xf32>
    %33 = arith.maximumf %31, %32 : vector<128x128xf32>
    %34 = arith.truncf %33 : vector<128x128xf32> to vector<128x128xbf16>
    %c0_12 = arith.constant 0 : index
    %c0_13 = arith.constant 0 : index
    %35 = vector.load %arg4[%c0_12, %c0_13] : memref<128x128xbf16, #tpu.memory_space<vmem>>, vector<128x128xbf16>
    tpu.vector_store %arg4[%c0_12, %c0_13], %34 {strides = array<i32>} : memref<128x128xbf16, #tpu.memory_space<vmem>>, vector<128x128xbf16>,
    return
  }
  func.func @transform_0(%arg0: i32) -> (i32, i32) {
    %c0_i32 = arith.constant 0 : i32
    %c0_i32_0 = arith.constant 0 : i32
    %c0_i32_1 = arith.constant 0 : i32
    return %c0_i32, %c0_i32_0 : i32, i32
  }
  func.func @transform_1(%arg0: i32) -> (i32, i32) {
    %c0_i32 = arith.constant 0 : i32
    %c0_i32_0 = arith.constant 0 : i32
    %c0_i32_1 = arith.constant 0 : i32
    return %c0_i32, %c0_i32_0 : i32, i32
  }
  func.func @transform_2(%arg0: i32) -> (i32, i32) {
    %c0_i32 = arith.constant 0 : i32
    %c0_i32_0 = arith.constant 0 : i32
    %c0_i32_1 = arith.constant 0 : i32
    return %c0_i32, %c0_i32_0 : i32, i32
  }
  func.func @transform_3(%arg0: i32) -> (i32, i32) {
    %c0_i32 = arith.constant 0 : i32
    %c0_i32_0 = arith.constant 0 : i32
    %c0_i32_1 = arith.constant 0 : i32
    return %c0_i32, %c0_i32_0 : i32, i32
  }
}

module attributes {stable_mosaic.version = 11 : i64} {
  func.func @_conv_bn_kernel(%arg0: i32, %arg1: memref<512x640xbf16, #tpu.memory_space<vmem>>, %arg2: memref<640x128xbf16, #tpu.memory_space<vmem>>, %arg3: memref<8x128xf32, #tpu.memory_space<vmem>>, %arg4: memref<512x128xbf16, #tpu.memory_space<vmem>>) attributes {dimension_semantics = [#tpu.dimension_semantics<arbitrary>], iteration_bounds = array<i64: 1>, scalar_prefetch = 0 : i64, scratch_operands = 0 : i64, tpu.core_type = #tpu.core_type<tc>, window_params = [{pipeline_mode = #tpu.pipeline_mode<synchronous>, transform_indices = @transform_0, window_bounds = array<i64: 512, 640>}, {pipeline_mode = #tpu.pipeline_mode<synchronous>, transform_indices = @transform_1, window_bounds = array<i64: 640, 128>}, {pipeline_mode = #tpu.pipeline_mode<synchronous>, transform_indices = @transform_2, window_bounds = array<i64: 8, 128>}, {pipeline_mode = #tpu.pipeline_mode<synchronous>, transform_indices = @transform_3, window_bounds = array<i64: 512, 128>}]} {
    %c0 = arith.constant 0 : index
    %c0_0 = arith.constant 0 : index
    %0 = vector.load %arg3[%c0, %c0_0] : memref<8x128xf32, #tpu.memory_space<vmem>>, vector<8x128xf32>
    %1 = vector.extract_strided_slice %0 {offsets = [0, 0], sizes = [1, 128], strides = [1, 1]} : vector<8x128xf32> to vector<1x128xf32>
    %c0_1 = arith.constant 0 : index
    %c0_2 = arith.constant 0 : index
    %2 = vector.load %arg1[%c0_1, %c0_2] : memref<512x640xbf16, #tpu.memory_space<vmem>>, vector<512x640xbf16>
    %c0_3 = arith.constant 0 : index
    %c0_4 = arith.constant 0 : index
    %3 = vector.load %arg2[%c0_3, %c0_4] : memref<640x128xbf16, #tpu.memory_space<vmem>>, vector<640x128xbf16>
    %cst = arith.constant dense<0.000000e+00> : vector<512x128xf32>
    %4 = tpu.matmul %2, %3, %cst {dimension_numbers = #tpu.dot_dimension_numbers<[1], [0], [0], [1], [0, 0, 1, 1], [], []>} : vector<512x640xbf16>, vector<640x128xbf16>, vector<512x128xf32> -> vector<512x128xf32>
    %5 = vector.broadcast %1 : vector<1x128xf32> to vector<512x128xf32>
    %6 = arith.addf %4, %5 : vector<512x128xf32>
    %cst_5 = arith.constant dense<0.000000e+00> : vector<128xf32>
    %7 = vector.multi_reduction <add>, %6, %cst_5 [0] : vector<512x128xf32> to vector<128xf32>
    %8 = vector.shape_cast %7 : vector<128xf32> to vector<1x128xf32>
    %cst_6 = arith.constant 0.001953125 : f32
    %9 = vector.broadcast %cst_6 : f32 to vector<1x128xf32>
    %10 = arith.mulf %8, %9 : vector<1x128xf32>
    %11 = vector.broadcast %10 : vector<1x128xf32> to vector<512x128xf32>
    %12 = arith.subf %6, %11 : vector<512x128xf32>
    %13 = arith.mulf %12, %12 : vector<512x128xf32>
    %cst_7 = arith.constant dense<0.000000e+00> : vector<128xf32>
    %14 = vector.multi_reduction <add>, %13, %cst_7 [0] : vector<512x128xf32> to vector<128xf32>
    %15 = vector.shape_cast %14 : vector<128xf32> to vector<1x128xf32>
    %cst_8 = arith.constant 0.001953125 : f32
    %16 = vector.broadcast %cst_8 : f32 to vector<1x128xf32>
    %17 = arith.mulf %15, %16 : vector<1x128xf32>
    %cst_9 = arith.constant 0.000000e+00 : f32
    %18 = vector.broadcast %cst_9 : f32 to vector<1x128xf32>
    %19 = arith.maximumf %17, %18 : vector<1x128xf32>
    %20 = vector.extract_strided_slice %0 {offsets = [1, 0], sizes = [1, 128], strides = [1, 1]} : vector<8x128xf32> to vector<1x128xf32>
    %cst_10 = arith.constant 9.99999974E-6 : f32
    %21 = vector.broadcast %cst_10 : f32 to vector<1x128xf32>
    %22 = arith.addf %19, %21 : vector<1x128xf32>
    %23 = math.rsqrt %22 : vector<1x128xf32>
    %24 = arith.mulf %20, %23 : vector<1x128xf32>
    %25 = vector.extract_strided_slice %0 {offsets = [2, 0], sizes = [1, 128], strides = [1, 1]} : vector<8x128xf32> to vector<1x128xf32>
    %26 = arith.mulf %10, %24 : vector<1x128xf32>
    %27 = arith.subf %25, %26 : vector<1x128xf32>
    %28 = vector.broadcast %24 : vector<1x128xf32> to vector<512x128xf32>
    %29 = arith.mulf %6, %28 : vector<512x128xf32>
    %30 = vector.broadcast %27 : vector<1x128xf32> to vector<512x128xf32>
    %31 = arith.addf %29, %30 : vector<512x128xf32>
    %cst_11 = arith.constant 0.000000e+00 : f32
    %32 = vector.broadcast %cst_11 : f32 to vector<512x128xf32>
    %33 = arith.maximumf %31, %32 : vector<512x128xf32>
    %34 = arith.truncf %33 : vector<512x128xf32> to vector<512x128xbf16>
    %c0_12 = arith.constant 0 : index
    %c0_13 = arith.constant 0 : index
    %35 = vector.load %arg4[%c0_12, %c0_13] : memref<512x128xbf16, #tpu.memory_space<vmem>>, vector<512x128xbf16>
    tpu.vector_store %arg4[%c0_12, %c0_13], %34 {strides = array<i32>} : memref<512x128xbf16, #tpu.memory_space<vmem>>, vector<512x128xbf16>,
    return
  }
  func.func @transform_0(%arg0: i32) -> (i32, i32) {
    %c0_i32 = arith.constant 0 : i32
    %c0_i32_0 = arith.constant 0 : i32
    %c0_i32_1 = arith.constant 0 : i32
    return %c0_i32, %c0_i32_0 : i32, i32
  }
  func.func @transform_1(%arg0: i32) -> (i32, i32) {
    %c0_i32 = arith.constant 0 : i32
    %c0_i32_0 = arith.constant 0 : i32
    %c0_i32_1 = arith.constant 0 : i32
    return %c0_i32, %c0_i32_0 : i32, i32
  }
  func.func @transform_2(%arg0: i32) -> (i32, i32) {
    %c0_i32 = arith.constant 0 : i32
    %c0_i32_0 = arith.constant 0 : i32
    %c0_i32_1 = arith.constant 0 : i32
    return %c0_i32, %c0_i32_0 : i32, i32
  }
  func.func @transform_3(%arg0: i32) -> (i32, i32) {
    %c0_i32 = arith.constant 0 : i32
    %c0_i32_0 = arith.constant 0 : i32
    %c0_i32_1 = arith.constant 0 : i32
    return %c0_i32, %c0_i32_0 : i32, i32
  }
}

module attributes {stable_mosaic.version = 11 : i64} {
  func.func @_conv_kernel(%arg0: i32, %arg1: memref<512x384xbf16, #tpu.memory_space<vmem>>, %arg2: memref<384x128xbf16, #tpu.memory_space<vmem>>, %arg3: memref<8x128xf32, #tpu.memory_space<vmem>>, %arg4: memref<512x128xf32, #tpu.memory_space<vmem>>) attributes {dimension_semantics = [#tpu.dimension_semantics<parallel>], iteration_bounds = array<i64: 1>, scalar_prefetch = 0 : i64, scratch_operands = 0 : i64, tpu.core_type = #tpu.core_type<tc>, window_params = [{transform_indices = @transform_0, window_bounds = array<i64: 512, 384>}, {pipeline_mode = #tpu.pipeline_mode<synchronous>, transform_indices = @transform_1, window_bounds = array<i64: 384, 128>}, {pipeline_mode = #tpu.pipeline_mode<synchronous>, transform_indices = @transform_2, window_bounds = array<i64: 8, 128>}, {transform_indices = @transform_3, window_bounds = array<i64: 512, 128>}]} {
    %c0 = arith.constant 0 : index
    %c0_0 = arith.constant 0 : index
    %0 = vector.load %arg1[%c0, %c0_0] : memref<512x384xbf16, #tpu.memory_space<vmem>>, vector<512x384xbf16>
    %c0_1 = arith.constant 0 : index
    %c0_2 = arith.constant 0 : index
    %1 = vector.load %arg2[%c0_1, %c0_2] : memref<384x128xbf16, #tpu.memory_space<vmem>>, vector<384x128xbf16>
    %cst = arith.constant dense<0.000000e+00> : vector<512x128xf32>
    %2 = tpu.matmul %0, %1, %cst {dimension_numbers = #tpu.dot_dimension_numbers<[1], [0], [0], [1], [0, 0, 1, 1], [], []>} : vector<512x384xbf16>, vector<384x128xbf16>, vector<512x128xf32> -> vector<512x128xf32>
    %c0_3 = arith.constant 0 : index
    %c0_4 = arith.constant 0 : index
    %3 = vector.load %arg3[%c0_3, %c0_4] : memref<8x128xf32, #tpu.memory_space<vmem>>, vector<1x128xf32>
    %4 = vector.broadcast %3 : vector<1x128xf32> to vector<512x128xf32>
    %5 = arith.addf %2, %4 : vector<512x128xf32>
    %c0_5 = arith.constant 0 : index
    %c0_6 = arith.constant 0 : index
    %6 = vector.load %arg4[%c0_5, %c0_6] : memref<512x128xf32, #tpu.memory_space<vmem>>, vector<512x128xf32>
    tpu.vector_store %arg4[%c0_5, %c0_6], %5 {strides = array<i32>} : memref<512x128xf32, #tpu.memory_space<vmem>>, vector<512x128xf32>,
    return
  }
  func.func @transform_0(%arg0: i32) -> (i32, i32) {
    %c0_i32 = arith.constant 0 : i32
    %c0_i32_0 = arith.constant 0 : i32
    return %arg0, %c0_i32 : i32, i32
  }
  func.func @transform_1(%arg0: i32) -> (i32, i32) {
    %c0_i32 = arith.constant 0 : i32
    %c0_i32_0 = arith.constant 0 : i32
    %c0_i32_1 = arith.constant 0 : i32
    return %c0_i32, %c0_i32_0 : i32, i32
  }
  func.func @transform_2(%arg0: i32) -> (i32, i32) {
    %c0_i32 = arith.constant 0 : i32
    %c0_i32_0 = arith.constant 0 : i32
    %c0_i32_1 = arith.constant 0 : i32
    return %c0_i32, %c0_i32_0 : i32, i32
  }
  func.func @transform_3(%arg0: i32) -> (i32, i32) {
    %c0_i32 = arith.constant 0 : i32
    %c0_i32_0 = arith.constant 0 : i32
    return %arg0, %c0_i32 : i32, i32
  }
}

</mosaic_0001>

<llo_original>
// kernel: colorization_forward.14
$region0: #{colorization_forward.14}
  #allocation0 [shape = 'u32[]', space=smem, size = 0x4, offset = 0x4, fixed_abs, tag = 'smem constant byte address 0x4 - core index']
  #allocation1 [shape = 'u32[72,128]{1,0:T(1,128)}', space=vmem, size = 0x9000, scoped, tag = 'internal scratch']
  %s0 = inlined_call_operand.vmem [shape: bf16[512,128], index: 0, kind: input, shape index: {}]
  %s1 = inlined_call_operand.vmem [shape: bf16[128,128], index: 1, kind: input, shape index: {}]
  %s2 = inlined_call_operand.vmem [shape: f32[8,128], index: 2, kind: input, shape index: {}]
  %s3 = inlined_call_operand.vmem [shape: bf16[512,128], index: 3, kind: output, shape index: {}]
  %s4 = sld [smem:[#allocation0]]
  $region22: #{colorization_forward.14} parent=0
    _
  %s6 = ssub.s32 1, %s4
  %s7 = scalar_select 0, %s6, %s4
  // Predicated region
  $region2: #{colorization_forward.14} parent=0 // pred_check
    _
  $region3: #{colorization_forward.14} parent=0 // pred_check_branch
    %9 = sbr.rel (0) target = $region5
  $region4: #{colorization_forward.14} parent=0 // pred_region
    _
  $region5: #{colorization_forward.14} parent=0 // pred_fallthru
    _
  // Predicated region
  $region6: #{colorization_forward.14} parent=0 // pred_check
    _
  $region7: #{colorization_forward.14} parent=0 // pred_check_branch
    %11 = sbr.rel (0) target = $region9
  $region8: #{colorization_forward.14} parent=0 // pred_region
    _
  $region9: #{colorization_forward.14} parent=0 // pred_fallthru
    _
  // Predicated region
  $region10: #{colorization_forward.14} parent=0 // pred_check
    _
  $region11: #{colorization_forward.14} parent=0 // pred_check_branch
    %13 = sbr.rel (0) target = $region13
  $region12: #{colorization_forward.14} parent=0 // pred_region
    _
  $region13: #{colorization_forward.14} parent=0 // pred_fallthru
    _
  %v14 = vld [vmem:[%s2] sm:$0xff]
  %v15 = vld [vmem:[%s0] sm:$0xf]
  %v16 = vld [vmem:[%s0 + $0x4] sm:$0xf]
  %v17 = vld [vmem:[%s0 + $0x8] sm:$0xf]
  %v18 = vld [vmem:[%s0 + $0xc] sm:$0xf]
  %v19 = vld [vmem:[%s0 + $0x10] sm:$0xf]
  %v20 = vld [vmem:[%s0 + $0x14] sm:$0xf]
  %v21 = vld [vmem:[%s0 + $0x18] sm:$0xf]
  %v22 = vld [vmem:[%s0 + $0x1c] sm:$0xf]
  %v23 = vld [vmem:[%s0 + $0x20] sm:$0xf]
  %v24 = vld [vmem:[%s0 + $0x24] sm:$0xf]
  %v25 = vld [vmem:[%s0 + $0x28] sm:$0xf]
  %v26 = vld [vmem:[%s0 + $0x2c] sm:$0xf]
  %v27 = vld [vmem:[%s0 + $0x30] sm:$0xf]
  %v28 = vld [vmem:[%s0 + $0x34] sm:$0xf]
  %v29 = vld [vmem:[%s0 + $0x38] sm:$0xf]
  %v30 = vld [vmem:[%s0 + $0x3c] sm:$0xf]
  %v31 = vld [vmem:[%s0 + $0x40] sm:$0xf]
  %v32 = vld [vmem:[%s0 + $0x44] sm:$0xf]
  %v33 = vld [vmem:[%s0 + $0x48] sm:$0xf]
  %v34 = vld [vmem:[%s0 + $0x4c] sm:$0xf]
  %v35 = vld [vmem:[%s0 + $0x50] sm:$0xf]
  %v36 = vld [vmem:[%s0 + $0x54] sm:$0xf]
  %v37 = vld [vmem:[%s0 + $0x58] sm:$0xf]
  %v38 = vld [vmem:[%s0 + $0x5c] sm:$0xf]
  %v39 = vld [vmem:[%s0 + $0x60] sm:$0xf]
  %v40 = vld [vmem:[%s0 + $0x64] sm:$0xf]
  %v41 = vld [vmem:[%s0 + $0x68] sm:$0xf]
  %v42 = vld [vmem:[%s0 + $0x6c] sm:$0xf]
  %v43 = vld [vmem:[%s0 + $0x70] sm:$0xf]
  %v44 = vld [vmem:[%s0 + $0x74] sm:$0xf]
  %v45 = vld [vmem:[%s0 + $0x78] sm:$0xf]
  %v46 = vld [vmem:[%s0 + $0x7c] sm:$0xf]
  %v47 = vld [vmem:[%s0 + $0x80] sm:$0xf]
  %v48 = vld [vmem:[%s0 + $0x84] sm:$0xf]
  %v49 = vld [vmem:[%s0 + $0x88] sm:$0xf]
  %v50 = vld [vmem:[%s0 + $0x8c] sm:$0xf]
  %v51 = vld [vmem:[%s0 + $0x90] sm:$0xf]
  %v52 = vld [vmem:[%s0 + $0x94] sm:$0xf]
  %v53 = vld [vmem:[%s0 + $0x98] sm:$0xf]
  %v54 = vld [vmem:[%s0 + $0x9c] sm:$0xf]
  %v55 = vld [vmem:[%s0 + $0xa0] sm:$0xf]
  %v56 = vld [vmem:[%s0 + $0xa4] sm:$0xf]
  %v57 = vld [vmem:[%s0 + $0xa8] sm:$0xf]
  %v58 = vld [vmem:[%s0 + $0xac] sm:$0xf]
  %v59 = vld [vmem:[%s0 + $0xb0] sm:$0xf]
  %v60 = vld [vmem:[%s0 + $0xb4] sm:$0xf]
  %v61 = vld [vmem:[%s0 + $0xb8] sm:$0xf]
  %v62 = vld [vmem:[%s0 + $0xbc] sm:$0xf]
  %v63 = vld [vmem:[%s0 + $0xc0] sm:$0xf]
  %v64 = vld [vmem:[%s0 + $0xc4] sm:$0xf]
  %v65 = vld [vmem:[%s0 + $0xc8] sm:$0xf]
  %v66 = vld [vmem:[%s0 + $0xcc] sm:$0xf]
  %v67 = vld [vmem:[%s0 + $0xd0] sm:$0xf]
  %v68 = vld [vmem:[%s0 + $0xd4] sm:$0xf]
  %v69 = vld [vmem:[%s0 + $0xd8] sm:$0xf]
  %v70 = vld [vmem:[%s0 + $0xdc] sm:$0xf]
  %v71 = vld [vmem:[%s0 + $0xe0] sm:$0xf]
  %v72 = vld [vmem:[%s0 + $0xe4] sm:$0xf]
  %v73 = vld [vmem:[%s0 + $0xe8] sm:$0xf]
  %v74 = vld [vmem:[%s0 + $0xec] sm:$0xf]
  %v75 = vld [vmem:[%s0 + $0xf0] sm:$0xf]
  %v76 = vld [vmem:[%s0 + $0xf4] sm:$0xf]
  %v77 = vld [vmem:[%s0 + $0xf8] sm:$0xf]
  %v78 = vld [vmem:[%s0 + $0xfc] sm:$0xf]
  %v79 = vld [vmem:[%s1] sm:$0xf]
  %v80 = vld [vmem:[%s1 + $0x4] sm:$0xf]
  %v81 = vld [vmem:[%s1 + $0x8] sm:$0xf]
  %v82 = vld [vmem:[%s1 + $0xc] sm:$0xf]
  %v83 = vld [vmem:[%s1 + $0x10] sm:$0xf]
  %v84 = vld [vmem:[%s1 + $0x14] sm:$0xf]
  %v85 = vld [vmem:[%s1 + $0x18] sm:$0xf]
  %v86 = vld [vmem:[%s1 + $0x1c] sm:$0xf]
  %v87 = vld [vmem:[%s1 + $0x20] sm:$0xf]
  %v88 = vld [vmem:[%s1 + $0x24] sm:$0xf]
  %v89 = vld [vmem:[%s1 + $0x28] sm:$0xf]
  %v90 = vld [vmem:[%s1 + $0x2c] sm:$0xf]
  %v91 = vld [vmem:[%s1 + $0x30] sm:$0xf]
  %v92 = vld [vmem:[%s1 + $0x34] sm:$0xf]
  %v93 = vld [vmem:[%s1 + $0x38] sm:$0xf]
  %v94 = vld [vmem:[%s1 + $0x3c] sm:$0xf]
  %v95 = vperm.slane %v14, 0
  %v160 = vunpack.c.l.b16 %v15
  %v161 = vunpack.c.l.b16 %v16
  %v162 = vunpack.c.l.b16 %v17
  %v163 = vunpack.c.l.b16 %v18
  %v164 = vunpack.c.l.b16 %v19
  %v165 = vunpack.c.l.b16 %v20
  %v166 = vunpack.c.l.b16 %v21
  %v167 = vunpack.c.l.b16 %v22
  %v168 = vunpack.c.l.b16 %v23
  %v169 = vunpack.c.l.b16 %v24
  %v170 = vunpack.c.l.b16 %v25
  %v171 = vunpack.c.l.b16 %v26
  %v172 = vunpack.c.l.b16 %v27
  %v173 = vunpack.c.l.b16 %v28
  %v174 = vunpack.c.l.b16 %v29
  %v175 = vunpack.c.l.b16 %v30
  %v176 = vunpack.c.l.b16 %v31
  %v177 = vunpack.c.l.b16 %v32
  %v178 = vunpack.c.l.b16 %v33
  %v179 = vunpack.c.l.b16 %v34
  %v180 = vunpack.c.l.b16 %v35
  %v181 = vunpack.c.l.b16 %v36
  %v182 = vunpack.c.l.b16 %v37
  %v183 = vunpack.c.l.b16 %v38
  %v184 = vunpack.c.l.b16 %v39
  %v185 = vunpack.c.l.b16 %v40
  %v186 = vunpack.c.l.b16 %v41
  %v187 = vunpack.c.l.b16 %v42
  %v188 = vunpack.c.l.b16 %v43
  %v189 = vunpack.c.l.b16 %v44
  %v190 = vunpack.c.l.b16 %v45
  %v191 = vunpack.c.l.b16 %v46
  %v192 = vunpack.c.l.b16 %v47
  %v193 = vunpack.c.l.b16 %v48
  %v194 = vunpack.c.l.b16 %v49
  %v195 = vunpack.c.l.b16 %v50
  %v196 = vunpack.c.l.b16 %v51
  %v197 = vunpack.c.l.b16 %v52
  %v198 = vunpack.c.l.b16 %v53
  %v199 = vunpack.c.l.b16 %v54
  %v200 = vunpack.c.l.b16 %v55
  %v201 = vunpack.c.l.b16 %v56
  %v202 = vunpack.c.l.b16 %v57
  %v203 = vunpack.c.l.b16 %v58
  %v204 = vunpack.c.l.b16 %v59
  %v205 = vunpack.c.l.b16 %v60
  %v206 = vunpack.c.l.b16 %v61
  %v207 = vunpack.c.l.b16 %v62
  %v208 = vunpack.c.l.b16 %v63
  %v209 = vunpack.c.l.b16 %v64
  %v210 = vunpack.c.l.b16 %v65
  %v211 = vunpack.c.l.b16 %v66
  %v212 = vunpack.c.l.b16 %v67
  %v213 = vunpack.c.l.b16 %v68
  %v214 = vunpack.c.l.b16 %v69
  %v215 = vunpack.c.l.b16 %v70
  %v216 = vunpack.c.l.b16 %v71
  %v217 = vunpack.c.l.b16 %v72
  %v218 = vunpack.c.l.b16 %v73
  %v219 = vunpack.c.l.b16 %v74
  %v220 = vunpack.c.l.b16 %v75
  %v221 = vunpack.c.l.b16 %v76
  %v222 = vunpack.c.l.b16 %v77
  %v223 = vunpack.c.l.b16 %v78
  %v224 = vpack.c.b16 %v161, %v160
  %v225 = vpack.c.b16 %v163, %v162
  %v226 = vpack.c.b16 %v165, %v164
  %v227 = vpack.c.b16 %v167, %v166
  %v228 = vpack.c.b16 %v169, %v168
  %v229 = vpack.c.b16 %v171, %v170
  %v230 = vpack.c.b16 %v173, %v172
  %v231 = vpack.c.b16 %v175, %v174
  %v232 = vpack.c.b16 %v177, %v176
  %v233 = vpack.c.b16 %v179, %v178
  %v234 = vpack.c.b16 %v181, %v180
  %v235 = vpack.c.b16 %v183, %v182
  %v236 = vpack.c.b16 %v185, %v184
  %v237 = vpack.c.b16 %v187, %v186
  %v238 = vpack.c.b16 %v189, %v188
  %v239 = vpack.c.b16 %v191, %v190
  %v240 = vpack.c.b16 %v193, %v192
  %v241 = vpack.c.b16 %v195, %v194
  %v242 = vpack.c.b16 %v197, %v196
  %v243 = vpack.c.b16 %v199, %v198
  %v244 = vpack.c.b16 %v201, %v200
  %v245 = vpack.c.b16 %v203, %v202
  %v246 = vpack.c.b16 %v205, %v204
  %v247 = vpack.c.b16 %v207, %v206
  %v248 = vpack.c.b16 %v209, %v208
  %v249 = vpack.c.b16 %v211, %v210
  %v250 = vpack.c.b16 %v213, %v212
  %v251 = vpack.c.b16 %v215, %v214
  %v252 = vpack.c.b16 %v217, %v216
  %v253 = vpack.c.b16 %v219, %v218
  %v254 = vpack.c.b16 %v221, %v220
  %v255 = vpack.c.b16 %v223, %v222
  %v304 = vunpack.c.l.b16 %v79
  %v305 = vunpack.c.l.b16 %v80
  %v306 = vunpack.c.l.b16 %v81
  %v307 = vunpack.c.l.b16 %v82
  %v308 = vunpack.c.l.b16 %v83
  %v309 = vunpack.c.l.b16 %v84
  %v310 = vunpack.c.l.b16 %v85
  %v311 = vunpack.c.l.b16 %v86
  %v312 = vunpack.c.l.b16 %v87
  %v313 = vunpack.c.l.b16 %v88
  %v314 = vunpack.c.l.b16 %v89
  %v315 = vunpack.c.l.b16 %v90
  %v316 = vunpack.c.l.b16 %v91
  %v317 = vunpack.c.l.b16 %v92
  %v318 = vunpack.c.l.b16 %v93
  %v319 = vunpack.c.l.b16 %v94
  %v320 = vpack.c.b16 %v305, %v304
  %v321 = vpack.c.b16 %v307, %v306
  %v322 = vpack.c.b16 %v309, %v308
  %v323 = vpack.c.b16 %v311, %v310
  %v324 = vpack.c.b16 %v313, %v312
  %v325 = vpack.c.b16 %v315, %v314
  %v326 = vpack.c.b16 %v317, %v316
  %v327 = vpack.c.b16 %v319, %v318
  %336 = vmatpush.bf16.msra.mxu0 %v327
  %337 = vmatpush.bf16.msra.mxu0 %v326
  %338 = vmatpush.bf16.msra.mxu0 %v325
  %339 = vmatpush.bf16.msra.mxu0 %v324
  %340 = vmatpush.bf16.msra.mxu0 %v323
  %341 = vmatpush.bf16.msra.mxu0 %v322
  %342 = vmatpush.bf16.msra.mxu0 %v321
  %343 = vmatpush.bf16.msra.mxu0 %v320
  %344 = vmatmul.bf16.gmra.mxu0 %v224
  %v345 = vpop.f32.mrf.mxu0
  %v346 = vadd.f32 %v95, %v345
  %v347 = vpop.f32.mrf.mxu0
  %v348 = vadd.f32 %v95, %v347
  %349 = vmatmul.bf16.gmra.mxu0 %v225
  %v350 = vpop.f32.mrf.mxu0
  %v351 = vadd.f32 %v95, %v350
  %v352 = vpop.f32.mrf.mxu0
  %v353 = vadd.f32 %v95, %v352
  %354 = vmatmul.bf16.gmra.mxu0 %v226
  %v355 = vpop.f32.mrf.mxu0
  %v356 = vadd.f32 %v95, %v355
  %v357 = vpop.f32.mrf.mxu0
  %v358 = vadd.f32 %v95, %v357
  %359 = vmatmul.bf16.gmra.mxu0 %v227
  %v360 = vpop.f32.mrf.mxu0
  %v361 = vadd.f32 %v95, %v360
  %v362 = vpop.f32.mrf.mxu0
  %v363 = vadd.f32 %v95, %v362
  %364 = vmatmul.bf16.gmra.mxu0 %v228
  %v365 = vpop.f32.mrf.mxu0
  %v366 = vadd.f32 %v95, %v365
  %v367 = vpop.f32.mrf.mxu0
  %v368 = vadd.f32 %v95, %v367
  %369 = vmatmul.bf16.gmra.mxu0 %v229
  %v370 = vpop.f32.mrf.mxu0
  %v371 = vadd.f32 %v95, %v370
  %v372 = vpop.f32.mrf.mxu0
  %v373 = vadd.f32 %v95, %v372
  %374 = vmatmul.bf16.gmra.mxu0 %v230
  %v375 = vpop.f32.mrf.mxu0
  %v376 = vadd.f32 %v95, %v375
  %v377 = vpop.f32.mrf.mxu0
  %v378 = vadd.f32 %v95, %v377
  %379 = vmatmul.bf16.gmra.mxu0 %v231
  %v380 = vpop.f32.mrf.mxu0
  %v381 = vadd.f32 %v95, %v380
  %v382 = vpop.f32.mrf.mxu0
  %v383 = vadd.f32 %v95, %v382
  %384 = vmatmul.bf16.gmra.mxu0 %v232
  %v385 = vpop.f32.mrf.mxu0
  %v386 = vadd.f32 %v95, %v385
  %v387 = vpop.f32.mrf.mxu0
  %v388 = vadd.f32 %v95, %v387
  %389 = vmatmul.bf16.gmra.mxu0 %v233
  %v390 = vpop.f32.mrf.mxu0
  %v391 = vadd.f32 %v95, %v390
  %v392 = vpop.f32.mrf.mxu0
  %v393 = vadd.f32 %v95, %v392
  %394 = vmatmul.bf16.gmra.mxu0 %v234
  %v395 = vpop.f32.mrf.mxu0
  %v396 = vadd.f32 %v95, %v395
  %v397 = vpop.f32.mrf.mxu0
  %v398 = vadd.f32 %v95, %v397
  %399 = vmatmul.bf16.gmra.mxu0 %v235
  %v400 = vpop.f32.mrf.mxu0
  %v401 = vadd.f32 %v95, %v400
  %v402 = vpop.f32.mrf.mxu0
  %v403 = vadd.f32 %v95, %v402
  %404 = vmatmul.bf16.gmra.mxu0 %v236
  %v405 = vpop.f32.mrf.mxu0
  %v406 = vadd.f32 %v95, %v405
  %v407 = vpop.f32.mrf.mxu0
  %v408 = vadd.f32 %v95, %v407
  %409 = vmatmul.bf16.gmra.mxu0 %v237
  %v410 = vpop.f32.mrf.mxu0
  %v411 = vadd.f32 %v95, %v410
  %v412 = vpop.f32.mrf.mxu0
  %v413 = vadd.f32 %v95, %v412
  %414 = vmatmul.bf16.gmra.mxu0 %v238
  %v415 = vpop.f32.mrf.mxu0
  %v416 = vadd.f32 %v95, %v415
  %v417 = vpop.f32.mrf.mxu0
  %v418 = vadd.f32 %v95, %v417
  %419 = vmatmul.bf16.gmra.mxu0 %v239
  %v420 = vpop.f32.mrf.mxu0
  %v421 = vadd.f32 %v95, %v420
  %v422 = vpop.f32.mrf.mxu0
  %v423 = vadd.f32 %v95, %v422
  %424 = vmatmul.bf16.gmra.mxu0 %v240
  %v425 = vpop.f32.mrf.mxu0
  %v426 = vadd.f32 %v95, %v425
  %v427 = vpop.f32.mrf.mxu0
  %v428 = vadd.f32 %v95, %v427
  %429 = vmatmul.bf16.gmra.mxu0 %v241
  %v430 = vpop.f32.mrf.mxu0
  %v431 = vadd.f32 %v95, %v430
  %v432 = vpop.f32.mrf.mxu0
  %v433 = vadd.f32 %v95, %v432
  %434 = vmatmul.bf16.gmra.mxu0 %v242
  %v435 = vpop.f32.mrf.mxu0
  %v436 = vadd.f32 %v95, %v435
  %v437 = vpop.f32.mrf.mxu0
  %v438 = vadd.f32 %v95, %v437
  %439 = vmatmul.bf16.gmra.mxu0 %v243
  %v440 = vpop.f32.mrf.mxu0
  %v441 = vadd.f32 %v95, %v440
  %v442 = vpop.f32.mrf.mxu0
  %v443 = vadd.f32 %v95, %v442
  %444 = vmatmul.bf16.gmra.mxu0 %v244
  %v445 = vpop.f32.mrf.mxu0
  %v446 = vadd.f32 %v95, %v445
  %v447 = vpop.f32.mrf.mxu0
  %v448 = vadd.f32 %v95, %v447
  %449 = vmatmul.bf16.gmra.mxu0 %v245
  %v450 = vpop.f32.mrf.mxu0
  %v451 = vadd.f32 %v95, %v450
  %v452 = vpop.f32.mrf.mxu0
  %v453 = vadd.f32 %v95, %v452
  %454 = vmatmul.bf16.gmra.mxu0 %v246
  %v455 = vpop.f32.mrf.mxu0
  %v456 = vadd.f32 %v95, %v455
  %v457 = vpop.f32.mrf.mxu0
  %v458 = vadd.f32 %v95, %v457
  %459 = vmatmul.bf16.gmra.mxu0 %v247
  %v460 = vpop.f32.mrf.mxu0
  %v461 = vadd.f32 %v95, %v460
  %v462 = vpop.f32.mrf.mxu0
  %v463 = vadd.f32 %v95, %v462
  %464 = vmatmul.bf16.gmra.mxu0 %v248
  %v465 = vpop.f32.mrf.mxu0
  %v466 = vadd.f32 %v95, %v465
  %v467 = vpop.f32.mrf.mxu0
  %v468 = vadd.f32 %v95, %v467
  %469 = vmatmul.bf16.gmra.mxu0 %v249
  %v470 = vpop.f32.mrf.mxu0
  %v471 = vadd.f32 %v95, %v470
  %v472 = vpop.f32.mrf.mxu0
  %v473 = vadd.f32 %v95, %v472
  %474 = vmatmul.bf16.gmra.mxu0 %v250
  %v475 = vpop.f32.mrf.mxu0
  %v476 = vadd.f32 %v95, %v475
  %v477 = vpop.f32.mrf.mxu0
  %v478 = vadd.f32 %v95, %v477
  %479 = vmatmul.bf16.gmra.mxu0 %v251
  %v480 = vpop.f32.mrf.mxu0
  %v481 = vadd.f32 %v95, %v480
  %v482 = vpop.f32.mrf.mxu0
  %v483 = vadd.f32 %v95, %v482
  %484 = vmatmul.bf16.gmra.mxu0 %v252
  %v485 = vpop.f32.mrf.mxu0
  %v486 = vadd.f32 %v95, %v485
  %v487 = vpop.f32.mrf.mxu0
  %v488 = vadd.f32 %v95, %v487
  %489 = vmatmul.bf16.gmra.mxu0 %v253
  %v490 = vpop.f32.mrf.mxu0
  %v491 = vadd.f32 %v95, %v490
  %v492 = vpop.f32.mrf.mxu0
  %v493 = vadd.f32 %v95, %v492
  %494 = vmatmul.bf16.gmra.mxu0 %v254
  %v495 = vpop.f32.mrf.mxu0
  %v496 = vadd.f32 %v95, %v495
  %v497 = vpop.f32.mrf.mxu0
  %v498 = vadd.f32 %v95, %v497
  %499 = vmatmul.bf16.gmra.mxu0 %v255
  %v500 = vpop.f32.mrf.mxu0
  %v501 = vadd.f32 %v95, %v500
  %v502 = vpop.f32.mrf.mxu0
  %v503 = vadd.f32 %v95, %v502
  %504 = vdwg.mxu0
  %v505 = vadd.f32 %v346, %v348
  %v506 = vadd.f32 %v505, %v351
  %v507 = vadd.f32 %v506, %v353
  %v508 = vadd.f32 %v507, %v356
  %v509 = vadd.f32 %v508, %v358
  %v510 = vadd.f32 %v509, %v361
  %v511 = vadd.f32 %v510, %v363
  %v512 = vadd.f32 %v511, %v366
  %v513 = vadd.f32 %v512, %v368
  %v514 = vadd.f32 %v513, %v371
  %v515 = vadd.f32 %v514, %v373
  %v516 = vadd.f32 %v515, %v376
  %v517 = vadd.f32 %v516, %v378
  %v518 = vadd.f32 %v517, %v381
  %v519 = vadd.f32 %v518, %v383
  %v520 = vadd.f32 %v519, %v386
  %v521 = vadd.f32 %v520, %v388
  %v522 = vadd.f32 %v521, %v391
  %v523 = vadd.f32 %v522, %v393
  %v524 = vadd.f32 %v523, %v396
  %v525 = vadd.f32 %v524, %v398
  %v526 = vadd.f32 %v525, %v401
  %v527 = vadd.f32 %v526, %v403
  %v528 = vadd.f32 %v527, %v406
  %v529 = vadd.f32 %v528, %v408
  %v530 = vadd.f32 %v529, %v411
  %v531 = vadd.f32 %v530, %v413
  %v532 = vadd.f32 %v531, %v416
  %v533 = vadd.f32 %v532, %v418
  %v534 = vadd.f32 %v533, %v421
  %v535 = vadd.f32 %v534, %v423
  %v536 = vadd.f32 %v535, %v426
  %v537 = vadd.f32 %v536, %v428
  %v538 = vadd.f32 %v537, %v431
  %v539 = vadd.f32 %v538, %v433
  %v540 = vadd.f32 %v539, %v436
  %v541 = vadd.f32 %v540, %v438
  %v542 = vadd.f32 %v541, %v441
  %v543 = vadd.f32 %v542, %v443
  %v544 = vadd.f32 %v543, %v446
  %v545 = vadd.f32 %v544, %v448
  %v546 = vadd.f32 %v545, %v451
  %v547 = vadd.f32 %v546, %v453
  %v548 = vadd.f32 %v547, %v456
  %v549 = vadd.f32 %v548, %v458
  %v550 = vadd.f32 %v549, %v461
  %v551 = vadd.f32 %v550, %v463
  %v552 = vadd.f32 %v551, %v466
  %v553 = vadd.f32 %v552, %v468
  %v554 = vadd.f32 %v553, %v471
  %v555 = vadd.f32 %v554, %v473
  %v556 = vadd.f32 %v555, %v476
  %v557 = vadd.f32 %v556, %v478
  %v558 = vadd.f32 %v557, %v481
  %v559 = vadd.f32 %v558, %v483
  %v560 = vadd.f32 %v559, %v486
  %v561 = vadd.f32 %v560, %v488
  %v562 = vadd.f32 %v561, %v491
  %v563 = vadd.f32 %v562, %v493
  %v564 = vadd.f32 %v563, %v496
  %v565 = vadd.f32 %v564, %v498
  %v566 = vadd.f32 %v565, %v501
  %v567 = vadd.f32 %v566, %v503
  %v568 = vrot.slane %v567, 4
  %v569 = vadd.f32 %v567, %v568
  %v570 = vrot.slane %v569, 2
  %v571 = vadd.f32 %v569, %v570
  %v572 = vrot.slane %v571, 1
  %v573 = vadd.f32 %v571, %v572
  %v574 = vmul.f32 %v573, 0.001953125
  %v575 = vsub.f32 %v346, %v574
  %v576 = vsub.f32 %v348, %v574
  %v577 = vsub.f32 %v351, %v574
  %v578 = vsub.f32 %v353, %v574
  %v579 = vsub.f32 %v356, %v574
  %v580 = vsub.f32 %v358, %v574
  %v581 = vsub.f32 %v361, %v574
  %v582 = vsub.f32 %v363, %v574
  %v583 = vsub.f32 %v366, %v574
  %v584 = vsub.f32 %v368, %v574
  %v585 = vsub.f32 %v371, %v574
  %v586 = vsub.f32 %v373, %v574
  %v587 = vsub.f32 %v376, %v574
  %v588 = vsub.f32 %v378, %v574
  %v589 = vsub.f32 %v381, %v574
  %v590 = vsub.f32 %v383, %v574
  %v591 = vsub.f32 %v386, %v574
  %v592 = vsub.f32 %v388, %v574
  %v593 = vsub.f32 %v391, %v574
  %v594 = vsub.f32 %v393, %v574
  %v595 = vsub.f32 %v396, %v574
  %v596 = vsub.f32 %v398, %v574
  %v597 = vsub.f32 %v401, %v574
  %v598 = vsub.f32 %v403, %v574
  %v599 = vsub.f32 %v406, %v574
  %v600 = vsub.f32 %v408, %v574
  %v601 = vsub.f32 %v411, %v574
  %v602 = vsub.f32 %v413, %v574
  %v603 = vsub.f32 %v416, %v574
  %v604 = vsub.f32 %v418, %v574
  %v605 = vsub.f32 %v421, %v574
  %v606 = vsub.f32 %v423, %v574
  %v607 = vsub.f32 %v426, %v574
  %v608 = vsub.f32 %v428, %v574
  %v609 = vsub.f32 %v431, %v574
  %v610 = vsub.f32 %v433, %v574
  %v611 = vsub.f32 %v436, %v574
  %v612 = vsub.f32 %v438, %v574
  %v613 = vsub.f32 %v441, %v574
  %v614 = vsub.f32 %v443, %v574
  %v615 = vsub.f32 %v446, %v574
  %v616 = vsub.f32 %v448, %v574
  %v617 = vsub.f32 %v451, %v574
  %v618 = vsub.f32 %v453, %v574
  %v619 = vsub.f32 %v456, %v574
  %v620 = vsub.f32 %v458, %v574
  %v621 = vsub.f32 %v461, %v574
  %v622 = vsub.f32 %v463, %v574
  %v623 = vsub.f32 %v466, %v574
  %v624 = vsub.f32 %v468, %v574
  %v625 = vsub.f32 %v471, %v574
  %v626 = vsub.f32 %v473, %v574
  %v627 = vsub.f32 %v476, %v574
  %v628 = vsub.f32 %v478, %v574
  %v629 = vsub.f32 %v481, %v574
  %v630 = vsub.f32 %v483, %v574
  %v631 = vsub.f32 %v486, %v574
  %v632 = vsub.f32 %v488, %v574
  %v633 = vsub.f32 %v491, %v574
  %v634 = vsub.f32 %v493, %v574
  %v635 = vsub.f32 %v496, %v574
  %v636 = vsub.f32 %v498, %v574
  %v637 = vsub.f32 %v501, %v574
  %v638 = vsub.f32 %v503, %v574
  %v639 = vmul.f32 %v575, %v575
  %v640 = vmul.f32 %v576, %v576
  %v641 = vmul.f32 %v577, %v577
  %v642 = vmul.f32 %v578, %v578
  %v643 = vmul.f32 %v579, %v579
  %v644 = vmul.f32 %v580, %v580
  %v645 = vmul.f32 %v581, %v581
  %v646 = vmul.f32 %v582, %v582
  %v647 = vmul.f32 %v583, %v583
  %v648 = vmul.f32 %v584, %v584
  %v649 = vmul.f32 %v585, %v585
  %v650 = vmul.f32 %v586, %v586
  %v651 = vmul.f32 %v587, %v587
  %v652 = vmul.f32 %v588, %v588
  %v653 = vmul.f32 %v589, %v589
  %v654 = vmul.f32 %v590, %v590
  %v655 = vmul.f32 %v591, %v591
  %v656 = vmul.f32 %v592, %v592
  %v657 = vmul.f32 %v593, %v593
  %v658 = vmul.f32 %v594, %v594
  %v659 = vmul.f32 %v595, %v595
  %v660 = vmul.f32 %v596, %v596
  %v661 = vmul.f32 %v597, %v597
  %v662 = vmul.f32 %v598, %v598
  %v663 = vmul.f32 %v599, %v599
  %v664 = vmul.f32 %v600, %v600
  %v665 = vmul.f32 %v601, %v601
  %v666 = vmul.f32 %v602, %v602
  %v667 = vmul.f32 %v603, %v603
  %v668 = vmul.f32 %v604, %v604
  %v669 = vmul.f32 %v605, %v605
  %v670 = vmul.f32 %v606, %v606
  %v671 = vmul.f32 %v607, %v607
  %v672 = vmul.f32 %v608, %v608
  %v673 = vmul.f32 %v609, %v609
  %v674 = vmul.f32 %v610, %v610
  %v675 = vmul.f32 %v611, %v611
  %v676 = vmul.f32 %v612, %v612
  %v677 = vmul.f32 %v613, %v613
  %v678 = vmul.f32 %v614, %v614
  %v679 = vmul.f32 %v615, %v615
  %v680 = vmul.f32 %v616, %v616
  %v681 = vmul.f32 %v617, %v617
  %v682 = vmul.f32 %v618, %v618
  %v683 = vmul.f32 %v619, %v619
  %v684 = vmul.f32 %v620, %v620
  %v685 = vmul.f32 %v621, %v621
  %v686 = vmul.f32 %v622, %v622
  %v687 = vmul.f32 %v623, %v623
  %v688 = vmul.f32 %v624, %v624
  %v689 = vmul.f32 %v625, %v625
  %v690 = vmul.f32 %v626, %v626
  %v691 = vmul.f32 %v627, %v627
  %v692 = vmul.f32 %v628, %v628
  %v693 = vmul.f32 %v629, %v629
  %v694 = vmul.f32 %v630, %v630
  %v695 = vmul.f32 %v631, %v631
  %v696 = vmul.f32 %v632, %v632
  %v697 = vmul.f32 %v633, %v633
  %v698 = vmul.f32 %v634, %v634
  %v699 = vmul.f32 %v635, %v635
  %v700 = vmul.f32 %v636, %v636
  %v701 = vmul.f32 %v637, %v637
  %v702 = vmul.f32 %v638, %v638
  %v703 = vadd.f32 %v639, %v640
  %v704 = vadd.f32 %v703, %v641
  %v705 = vadd.f32 %v704, %v642
  %v706 = vadd.f32 %v705, %v643
  %v707 = vadd.f32 %v706, %v644
  %v708 = vadd.f32 %v707, %v645
  %v709 = vadd.f32 %v708, %v646
  %v710 = vadd.f32 %v709, %v647
  %v711 = vadd.f32 %v710, %v648
  %v712 = vadd.f32 %v711, %v649
  %v713 = vadd.f32 %v712, %v650
  %v714 = vadd.f32 %v713, %v651
  %v715 = vadd.f32 %v714, %v652
  %v716 = vadd.f32 %v715, %v653
  %v717 = vadd.f32 %v716, %v654
  %v718 = vadd.f32 %v717, %v655
  %v719 = vadd.f32 %v718, %v656
  %v720 = vadd.f32 %v719, %v657
  %v721 = vadd.f32 %v720, %v658
  %v722 = vadd.f32 %v721, %v659
  %v723 = vadd.f32 %v722, %v660
  %v724 = vadd.f32 %v723, %v661
  %v725 = vadd.f32 %v724, %v662
  %v726 = vadd.f32 %v725, %v663
  %v727 = vadd.f32 %v726, %v664
  %v728 = vadd.f32 %v727, %v665
  %v729 = vadd.f32 %v728, %v666
  %v730 = vadd.f32 %v729, %v667
  %v731 = vadd.f32 %v730, %v668
  %v732 = vadd.f32 %v731, %v669
  %v733 = vadd.f32 %v732, %v670
  %v734 = vadd.f32 %v733, %v671
  %v735 = vadd.f32 %v734, %v672
  %v736 = vadd.f32 %v735, %v673
  %v737 = vadd.f32 %v736, %v674
  %v738 = vadd.f32 %v737, %v675
  %v739 = vadd.f32 %v738, %v676
  %v740 = vadd.f32 %v739, %v677
  %v741 = vadd.f32 %v740, %v678
  %v742 = vadd.f32 %v741, %v679
  %v743 = vadd.f32 %v742, %v680
  %v744 = vadd.f32 %v743, %v681
  %v745 = vadd.f32 %v744, %v682
  %v746 = vadd.f32 %v745, %v683
  %v747 = vadd.f32 %v746, %v684
  %v748 = vadd.f32 %v747, %v685
  %v749 = vadd.f32 %v748, %v686
  %v750 = vadd.f32 %v749, %v687
  %v751 = vadd.f32 %v750, %v688
  %v752 = vadd.f32 %v751, %v689
  %v753 = vadd.f32 %v752, %v690
  %v754 = vadd.f32 %v753, %v691
  %v755 = vadd.f32 %v754, %v692
  %v756 = vadd.f32 %v755, %v693
  %v757 = vadd.f32 %v756, %v694
  %v758 = vadd.f32 %v757, %v695
  %v759 = vadd.f32 %v758, %v696
  %v760 = vadd.f32 %v759, %v697
  %v761 = vadd.f32 %v760, %v698
  %v762 = vadd.f32 %v761, %v699
  %v763 = vadd.f32 %v762, %v700
  %v764 = vadd.f32 %v763, %v701
  %v765 = vadd.f32 %v764, %v702
  %v766 = vrot.slane %v765, 4
  %v767 = vadd.f32 %v765, %v766
  %v768 = vrot.slane %v767, 2
  %v769 = vadd.f32 %v767, %v768
  %v770 = vrot.slane %v769, 1
  %v771 = vadd.f32 %v769, %v770
  %v772 = vmul.f32 %v771, 0.001953125
  %v773 = vmax.f32 %v772, 0.0
  %v774 = vadd.f32 %v773, 1e-05
  %v775 = vrsqrt.pop %v774
  %v776 = vmul.f32 %v775, %v774
  %v777 = vmul.f32 %v776, %v775
  %v778 = vmul.f32 0.5, %v777
  %v779 = vsub.f32 1.5, %v778
  %v780 = vmul.f32 %v775, %v779
  %vm781 = vweird.f32 %v774
  %vm782 = vweird.f32 %v775
  %vm783 = vmor %vm781, %vm782
  %v784 = vsel %vm783, %v775, %v780
  %v785 = vmul.f32 %v14, %v784
  %v786 = vmul.f32 %v574, %v785
  %v788 = vrot.slane %v786, 7
  %v790 = vsub.f32 %v14, %v788
  %v791 = vperm.slane %v785, 1
  %v792 = vmul.f32 %v346, %v791
  %v793 = vmul.f32 %v348, %v791
  %v794 = vmul.f32 %v351, %v791
  %v795 = vmul.f32 %v353, %v791
  %v796 = vmul.f32 %v356, %v791
  %v797 = vmul.f32 %v358, %v791
  %v798 = vmul.f32 %v361, %v791
  %v799 = vmul.f32 %v363, %v791
  %v800 = vmul.f32 %v366, %v791
  %v801 = vmul.f32 %v368, %v791
  %v802 = vmul.f32 %v371, %v791
  %v803 = vmul.f32 %v373, %v791
  %v804 = vmul.f32 %v376, %v791
  %v805 = vmul.f32 %v378, %v791
  %v806 = vmul.f32 %v381, %v791
  %v807 = vmul.f32 %v383, %v791
  %v808 = vmul.f32 %v386, %v791
  %v809 = vmul.f32 %v388, %v791
  %v810 = vmul.f32 %v391, %v791
  %v811 = vmul.f32 %v393, %v791
  %v812 = vmul.f32 %v396, %v791
  %v813 = vmul.f32 %v398, %v791
  %v814 = vmul.f32 %v401, %v791
  %v815 = vmul.f32 %v403, %v791
  %v816 = vmul.f32 %v406, %v791
  %v817 = vmul.f32 %v408, %v791
  %v818 = vmul.f32 %v411, %v791
  %v819 = vmul.f32 %v413, %v791
  %v820 = vmul.f32 %v416, %v791
  %v821 = vmul.f32 %v418, %v791
  %v822 = vmul.f32 %v421, %v791
  %v823 = vmul.f32 %v423, %v791
  %v824 = vmul.f32 %v426, %v791
  %v825 = vmul.f32 %v428, %v791
  %v826 = vmul.f32 %v431, %v791
  %v827 = vmul.f32 %v433, %v791
  %v828 = vmul.f32 %v436, %v791
  %v829 = vmul.f32 %v438, %v791
  %v830 = vmul.f32 %v441, %v791
  %v831 = vmul.f32 %v443, %v791
  %v832 = vmul.f32 %v446, %v791
  %v833 = vmul.f32 %v448, %v791
  %v834 = vmul.f32 %v451, %v791
  %v835 = vmul.f32 %v453, %v791
  %v836 = vmul.f32 %v456, %v791
  %v837 = vmul.f32 %v458, %v791
  %v838 = vmul.f32 %v461, %v791
  %v839 = vmul.f32 %v463, %v791
  %v840 = vmul.f32 %v466, %v791
  %v841 = vmul.f32 %v468, %v791
  %v842 = vmul.f32 %v471, %v791
  %v843 = vmul.f32 %v473, %v791
  %v844 = vmul.f32 %v476, %v791
  %v845 = vmul.f32 %v478, %v791
  %v846 = vmul.f32 %v481, %v791
  %v847 = vmul.f32 %v483, %v791
  %v848 = vmul.f32 %v486, %v791
  %v849 = vmul.f32 %v488, %v791
  %v850 = vmul.f32 %v491, %v791
  %v851 = vmul.f32 %v493, %v791
  %v852 = vmul.f32 %v496, %v791
  %v853 = vmul.f32 %v498, %v791
  %v854 = vmul.f32 %v501, %v791
  %v855 = vmul.f32 %v503, %v791
  %v856 = vperm.slane %v790, 2
  %v857 = vadd.f32 %v792, %v856
  %v858 = vadd.f32 %v793, %v856
  %v859 = vadd.f32 %v794, %v856
  %v860 = vadd.f32 %v795, %v856
  %v861 = vadd.f32 %v796, %v856
  %v862 = vadd.f32 %v797, %v856
  %v863 = vadd.f32 %v798, %v856
  %v864 = vadd.f32 %v799, %v856
  %v865 = vadd.f32 %v800, %v856
  %v866 = vadd.f32 %v801, %v856
  %v867 = vadd.f32 %v802, %v856
  %v868 = vadd.f32 %v803, %v856
  %v869 = vadd.f32 %v804, %v856
  %v870 = vadd.f32 %v805, %v856
  %v871 = vadd.f32 %v806, %v856
  %v872 = vadd.f32 %v807, %v856
  %v873 = vadd.f32 %v808, %v856
  %v874 = vadd.f32 %v809, %v856
  %v875 = vadd.f32 %v810, %v856
  %v876 = vadd.f32 %v811, %v856
  %v877 = vadd.f32 %v812, %v856
  %v878 = vadd.f32 %v813, %v856
  %v879 = vadd.f32 %v814, %v856
  %v880 = vadd.f32 %v815, %v856
  %v881 = vadd.f32 %v816, %v856
  %v882 = vadd.f32 %v817, %v856
  %v883 = vadd.f32 %v818, %v856
  %v884 = vadd.f32 %v819, %v856
  %v885 = vadd.f32 %v820, %v856
  %v886 = vadd.f32 %v821, %v856
  %v887 = vadd.f32 %v822, %v856
  %v888 = vadd.f32 %v823, %v856
  %v889 = vadd.f32 %v824, %v856
  %v890 = vadd.f32 %v825, %v856
  %v891 = vadd.f32 %v826, %v856
  %v892 = vadd.f32 %v827, %v856
  %v893 = vadd.f32 %v828, %v856
  %v894 = vadd.f32 %v829, %v856
  %v895 = vadd.f32 %v830, %v856
  %v896 = vadd.f32 %v831, %v856
  %v897 = vadd.f32 %v832, %v856
  %v898 = vadd.f32 %v833, %v856
  %v899 = vadd.f32 %v834, %v856
  %v900 = vadd.f32 %v835, %v856
  %v901 = vadd.f32 %v836, %v856
  %v902 = vadd.f32 %v837, %v856
  %v903 = vadd.f32 %v838, %v856
  %v904 = vadd.f32 %v839, %v856
  %v905 = vadd.f32 %v840, %v856
  %v906 = vadd.f32 %v841, %v856
  %v907 = vadd.f32 %v842, %v856
  %v908 = vadd.f32 %v843, %v856
  %v909 = vadd.f32 %v844, %v856
  %v910 = vadd.f32 %v845, %v856
  %v911 = vadd.f32 %v846, %v856
  %v912 = vadd.f32 %v847, %v856
  %v913 = vadd.f32 %v848, %v856
  %v914 = vadd.f32 %v849, %v856
  %v915 = vadd.f32 %v850, %v856
  %v916 = vadd.f32 %v851, %v856
  %v917 = vadd.f32 %v852, %v856
  %v918 = vadd.f32 %v853, %v856
  %v919 = vadd.f32 %v854, %v856
  %v920 = vadd.f32 %v855, %v856
  %v921 = vmax.f32 %v857, 0.0
  %v922 = vmax.f32 %v858, 0.0
  %v923 = vmax.f32 %v859, 0.0
  %v924 = vmax.f32 %v860, 0.0
  %v925 = vmax.f32 %v861, 0.0
  %v926 = vmax.f32 %v862, 0.0
  %v927 = vmax.f32 %v863, 0.0
  %v928 = vmax.f32 %v864, 0.0
  %v929 = vmax.f32 %v865, 0.0
  %v930 = vmax.f32 %v866, 0.0
  %v931 = vmax.f32 %v867, 0.0
  %v932 = vmax.f32 %v868, 0.0
  %v933 = vmax.f32 %v869, 0.0
  %v934 = vmax.f32 %v870, 0.0
  %v935 = vmax.f32 %v871, 0.0
  %v936 = vmax.f32 %v872, 0.0
  %v937 = vmax.f32 %v873, 0.0
  %v938 = vmax.f32 %v874, 0.0
  %v939 = vmax.f32 %v875, 0.0
  %v940 = vmax.f32 %v876, 0.0
  %v941 = vmax.f32 %v877, 0.0
  %v942 = vmax.f32 %v878, 0.0
  %v943 = vmax.f32 %v879, 0.0
  %v944 = vmax.f32 %v880, 0.0
  %v945 = vmax.f32 %v881, 0.0
  %v946 = vmax.f32 %v882, 0.0
  %v947 = vmax.f32 %v883, 0.0
  %v948 = vmax.f32 %v884, 0.0
  %v949 = vmax.f32 %v885, 0.0
  %v950 = vmax.f32 %v886, 0.0
  %v951 = vmax.f32 %v887, 0.0
  %v952 = vmax.f32 %v888, 0.0
  %v953 = vmax.f32 %v889, 0.0
  %v954 = vmax.f32 %v890, 0.0
  %v955 = vmax.f32 %v891, 0.0
  %v956 = vmax.f32 %v892, 0.0
  %v957 = vmax.f32 %v893, 0.0
  %v958 = vmax.f32 %v894, 0.0
  %v959 = vmax.f32 %v895, 0.0
  %v960 = vmax.f32 %v896, 0.0
  %v961 = vmax.f32 %v897, 0.0
  %v962 = vmax.f32 %v898, 0.0
  %v963 = vmax.f32 %v899, 0.0
  %v964 = vmax.f32 %v900, 0.0
  %v965 = vmax.f32 %v901, 0.0
  %v966 = vmax.f32 %v902, 0.0
  %v967 = vmax.f32 %v903, 0.0
  %v968 = vmax.f32 %v904, 0.0
  %v969 = vmax.f32 %v905, 0.0
  %v970 = vmax.f32 %v906, 0.0
  %v971 = vmax.f32 %v907, 0.0
  %v972 = vmax.f32 %v908, 0.0
  %v973 = vmax.f32 %v909, 0.0
  %v974 = vmax.f32 %v910, 0.0
  %v975 = vmax.f32 %v911, 0.0
  %v976 = vmax.f32 %v912, 0.0
  %v977 = vmax.f32 %v913, 0.0
  %v978 = vmax.f32 %v914, 0.0
  %v979 = vmax.f32 %v915, 0.0
  %v980 = vmax.f32 %v916, 0.0
  %v981 = vmax.f32 %v917, 0.0
  %v982 = vmax.f32 %v918, 0.0
  %v983 = vmax.f32 %v919, 0.0
  %v984 = vmax.f32 %v920, 0.0
  %v985 = vpack.c.bf16 %v921, %v921
  %v986 = vpack.c.bf16 %v922, %v922
  %v987 = vpack.c.bf16 %v923, %v923
  %v988 = vpack.c.bf16 %v924, %v924
  %v989 = vpack.c.bf16 %v925, %v925
  %v990 = vpack.c.bf16 %v926, %v926
  %v991 = vpack.c.bf16 %v927, %v927
  %v992 = vpack.c.bf16 %v928, %v928
  %v993 = vpack.c.bf16 %v929, %v929
  %v994 = vpack.c.bf16 %v930, %v930
  %v995 = vpack.c.bf16 %v931, %v931
  %v996 = vpack.c.bf16 %v932, %v932
  %v997 = vpack.c.bf16 %v933, %v933
  %v998 = vpack.c.bf16 %v934, %v934
  %v999 = vpack.c.bf16 %v935, %v935
  %v1000 = vpack.c.bf16 %v936, %v936
  %v1001 = vpack.c.bf16 %v937, %v937
  %v1002 = vpack.c.bf16 %v938, %v938
  %v1003 = vpack.c.bf16 %v939, %v939
  %v1004 = vpack.c.bf16 %v940, %v940
  %v1005 = vpack.c.bf16 %v941, %v941
  %v1006 = vpack.c.bf16 %v942, %v942
  %v1007 = vpack.c.bf16 %v943, %v943
  %v1008 = vpack.c.bf16 %v944, %v944
  %v1009 = vpack.c.bf16 %v945, %v945
  %v1010 = vpack.c.bf16 %v946, %v946
  %v1011 = vpack.c.bf16 %v947, %v947
  %v1012 = vpack.c.bf16 %v948, %v948
  %v1013 = vpack.c.bf16 %v949, %v949
  %v1014 = vpack.c.bf16 %v950, %v950
  %v1015 = vpack.c.bf16 %v951, %v951
  %v1016 = vpack.c.bf16 %v952, %v952
  %v1017 = vpack.c.bf16 %v953, %v953
  %v1018 = vpack.c.bf16 %v954, %v954
  %v1019 = vpack.c.bf16 %v955, %v955
  %v1020 = vpack.c.bf16 %v956, %v956
  %v1021 = vpack.c.bf16 %v957, %v957
  %v1022 = vpack.c.bf16 %v958, %v958
  %v1023 = vpack.c.bf16 %v959, %v959
  %v1024 = vpack.c.bf16 %v960, %v960
  %v1025 = vpack.c.bf16 %v961, %v961
  %v1026 = vpack.c.bf16 %v962, %v962
  %v1027 = vpack.c.bf16 %v963, %v963
  %v1028 = vpack.c.bf16 %v964, %v964
  %v1029 = vpack.c.bf16 %v965, %v965
  %v1030 = vpack.c.bf16 %v966, %v966
  %v1031 = vpack.c.bf16 %v967, %v967
  %v1032 = vpack.c.bf16 %v968, %v968
  %v1033 = vpack.c.bf16 %v969, %v969
  %v1034 = vpack.c.bf16 %v970, %v970
  %v1035 = vpack.c.bf16 %v971, %v971
  %v1036 = vpack.c.bf16 %v972, %v972
  %v1037 = vpack.c.bf16 %v973, %v973
  %v1038 = vpack.c.bf16 %v974, %v974
  %v1039 = vpack.c.bf16 %v975, %v975
  %v1040 = vpack.c.bf16 %v976, %v976
  %v1041 = vpack.c.bf16 %v977, %v977
  %v1042 = vpack.c.bf16 %v978, %v978
  %v1043 = vpack.c.bf16 %v979, %v979
  %v1044 = vpack.c.bf16 %v980, %v980
  %v1045 = vpack.c.bf16 %v981, %v981
  %v1046 = vpack.c.bf16 %v982, %v982
  %v1047 = vpack.c.bf16 %v983, %v983
  %v1048 = vpack.c.bf16 %v984, %v984
  %1049 = vst [vmem:[%s3] sm:$0xf] %v985
  %1050 = vst [vmem:[%s3 + $0x4] sm:$0xf] %v986
  %1051 = vst [vmem:[%s3 + $0x8] sm:$0xf] %v987
  %1052 = vst [vmem:[%s3 + $0xc] sm:$0xf] %v988
  %1053 = vst [vmem:[%s3 + $0x10] sm:$0xf] %v989
  %1054 = vst [vmem:[%s3 + $0x14] sm:$0xf] %v990
  %1055 = vst [vmem:[%s3 + $0x18] sm:$0xf] %v991
  %1056 = vst [vmem:[%s3 + $0x1c] sm:$0xf] %v992
  %1057 = vst [vmem:[%s3 + $0x20] sm:$0xf] %v993
  %1058 = vst [vmem:[%s3 + $0x24] sm:$0xf] %v994
  %1059 = vst [vmem:[%s3 + $0x28] sm:$0xf] %v995
  %1060 = vst [vmem:[%s3 + $0x2c] sm:$0xf] %v996
  %1061 = vst [vmem:[%s3 + $0x30] sm:$0xf] %v997
  %1062 = vst [vmem:[%s3 + $0x34] sm:$0xf] %v998
  %1063 = vst [vmem:[%s3 + $0x38] sm:$0xf] %v999
  %1064 = vst [vmem:[%s3 + $0x3c] sm:$0xf] %v1000
  %1065 = vst [vmem:[%s3 + $0x40] sm:$0xf] %v1001
  %1066 = vst [vmem:[%s3 + $0x44] sm:$0xf] %v1002
  %1067 = vst [vmem:[%s3 + $0x48] sm:$0xf] %v1003
  %1068 = vst [vmem:[%s3 + $0x4c] sm:$0xf] %v1004
  %1069 = vst [vmem:[%s3 + $0x50] sm:$0xf] %v1005
  %1070 = vst [vmem:[%s3 + $0x54] sm:$0xf] %v1006
  %1071 = vst [vmem:[%s3 + $0x58] sm:$0xf] %v1007
  %1072 = vst [vmem:[%s3 + $0x5c] sm:$0xf] %v1008
  %1073 = vst [vmem:[%s3 + $0x60] sm:$0xf] %v1009
  %1074 = vst [vmem:[%s3 + $0x64] sm:$0xf] %v1010
  %1075 = vst [vmem:[%s3 + $0x68] sm:$0xf] %v1011
  %1076 = vst [vmem:[%s3 + $0x6c] sm:$0xf] %v1012
  %1077 = vst [vmem:[%s3 + $0x70] sm:$0xf] %v1013
  %1078 = vst [vmem:[%s3 + $0x74] sm:$0xf] %v1014
  %1079 = vst [vmem:[%s3 + $0x78] sm:$0xf] %v1015
  %1080 = vst [vmem:[%s3 + $0x7c] sm:$0xf] %v1016
  %1081 = vst [vmem:[%s3 + $0x80] sm:$0xf] %v1017
  %1082 = vst [vmem:[%s3 + $0x84] sm:$0xf] %v1018
  %1083 = vst [vmem:[%s3 + $0x88] sm:$0xf] %v1019
  %1084 = vst [vmem:[%s3 + $0x8c] sm:$0xf] %v1020
  %1085 = vst [vmem:[%s3 + $0x90] sm:$0xf] %v1021
  %1086 = vst [vmem:[%s3 + $0x94] sm:$0xf] %v1022
  %1087 = vst [vmem:[%s3 + $0x98] sm:$0xf] %v1023
  %1088 = vst [vmem:[%s3 + $0x9c] sm:$0xf] %v1024
  %1089 = vst [vmem:[%s3 + $0xa0] sm:$0xf] %v1025
  %1090 = vst [vmem:[%s3 + $0xa4] sm:$0xf] %v1026
  %1091 = vst [vmem:[%s3 + $0xa8] sm:$0xf] %v1027
  %1092 = vst [vmem:[%s3 + $0xac] sm:$0xf] %v1028
  %1093 = vst [vmem:[%s3 + $0xb0] sm:$0xf] %v1029
  %1094 = vst [vmem:[%s3 + $0xb4] sm:$0xf] %v1030
  %1095 = vst [vmem:[%s3 + $0xb8] sm:$0xf] %v1031
  %1096 = vst [vmem:[%s3 + $0xbc] sm:$0xf] %v1032
  %1097 = vst [vmem:[%s3 + $0xc0] sm:$0xf] %v1033
  %1098 = vst [vmem:[%s3 + $0xc4] sm:$0xf] %v1034
  %1099 = vst [vmem:[%s3 + $0xc8] sm:$0xf] %v1035
  %1100 = vst [vmem:[%s3 + $0xcc] sm:$0xf] %v1036
  %1101 = vst [vmem:[%s3 + $0xd0] sm:$0xf] %v1037
  %1102 = vst [vmem:[%s3 + $0xd4] sm:$0xf] %v1038
  %1103 = vst [vmem:[%s3 + $0xd8] sm:$0xf] %v1039
  %1104 = vst [vmem:[%s3 + $0xdc] sm:$0xf] %v1040
  %1105 = vst [vmem:[%s3 + $0xe0] sm:$0xf] %v1041
  %1106 = vst [vmem:[%s3 + $0xe4] sm:$0xf] %v1042
  %1107 = vst [vmem:[%s3 + $0xe8] sm:$0xf] %v1043
  %1108 = vst [vmem:[%s3 + $0xec] sm:$0xf] %v1044
  %1109 = vst [vmem:[%s3 + $0xf0] sm:$0xf] %v1045
  %1110 = vst [vmem:[%s3 + $0xf4] sm:$0xf] %v1046
  %1111 = vst [vmem:[%s3 + $0xf8] sm:$0xf] %v1047
  %1112 = vst [vmem:[%s3 + $0xfc] sm:$0xf] %v1048
  // Predicated region
  $region14: #{colorization_forward.14} parent=0 // pred_check
    _
  $region15: #{colorization_forward.14} parent=0 // pred_check_branch
    %1114 = sbr.rel (0) target = $region17
  $region16: #{colorization_forward.14} parent=0 // pred_region
    _
  $region17: #{colorization_forward.14} parent=0 // pred_fallthru
    _
  // Predicated region
  $region18: #{colorization_forward.14} parent=0 // pred_check
    _
  $region19: #{colorization_forward.14} parent=0 // pred_check_branch
    %1116 = sbr.rel (0) target = $region21
  $region20: #{colorization_forward.14} parent=0 // pred_region
    _
  $region21: #{colorization_forward.14} parent=0 // pred_fallthru
    _

// kernel: colorization_forward.15
$region0: #{colorization_forward.15}
  #allocation0 [shape = 'u32[]', space=smem, size = 0x4, offset = 0x4, fixed_abs, tag = 'smem constant byte address 0x4 - core index']
  #allocation1 [shape = 'u32[72,128]{1,0:T(1,128)}', space=vmem, size = 0x9000, scoped, tag = 'internal scratch']
  %s0 = inlined_call_operand.vmem [shape: bf16[128,640], index: 0, kind: input, shape index: {}]
  %s1 = inlined_call_operand.vmem [shape: bf16[640,128], index: 1, kind: input, shape index: {}]
  %s2 = inlined_call_operand.vmem [shape: f32[8,128], index: 2, kind: input, shape index: {}]
  %s3 = inlined_call_operand.vmem [shape: bf16[128,128], index: 3, kind: output, shape index: {}]
  %s4 = sld [smem:[#allocation0]]
  $region22: #{colorization_forward.15} parent=0
    _
  %s6 = ssub.s32 1, %s4
  %s7 = scalar_select 0, %s6, %s4
  // Predicated region
  $region2: #{colorization_forward.15} parent=0 // pred_check
    _
  $region3: #{colorization_forward.15} parent=0 // pred_check_branch
    %9 = sbr.rel (0) target = $region5
  $region4: #{colorization_forward.15} parent=0 // pred_region
    _
  $region5: #{colorization_forward.15} parent=0 // pred_fallthru
    _
  // Predicated region
  $region6: #{colorization_forward.15} parent=0 // pred_check
    _
  $region7: #{colorization_forward.15} parent=0 // pred_check_branch
    %11 = sbr.rel (0) target = $region9
  $region8: #{colorization_forward.15} parent=0 // pred_region
    _
  $region9: #{colorization_forward.15} parent=0 // pred_fallthru
    _
  // Predicated region
  $region10: #{colorization_forward.15} parent=0 // pred_check
    _
  $region11: #{colorization_forward.15} parent=0 // pred_check_branch
    %13 = sbr.rel (0) target = $region13
  $region12: #{colorization_forward.15} parent=0 // pred_region
    _
  $region13: #{colorization_forward.15} parent=0 // pred_fallthru
    _
  %v14 = vld [vmem:[%s2] sm:$0xff]
  %v15 = vld [vmem:[%s0] sm:$0xff]
  %v16 = vld [vmem:[%s0 + $0x8] sm:$0xff]
  %v17 = vld [vmem:[%s0 + $0x10] sm:$0xf]
  %v18 = vld [vmem:[%s0 + $0x14] sm:$0xff]
  %v19 = vld [vmem:[%s0 + $0x1c] sm:$0xff]
  %v20 = vld [vmem:[%s0 + $0x24] sm:$0xf]
  %v21 = vld [vmem:[%s0 + $0x28] sm:$0xff]
  %v22 = vld [vmem:[%s0 + $0x30] sm:$0xff]
  %v23 = vld [vmem:[%s0 + $0x38] sm:$0xf]
  %v24 = vld [vmem:[%s0 + $0x3c] sm:$0xff]
  %v25 = vld [vmem:[%s0 + $0x44] sm:$0xff]
  %v26 = vld [vmem:[%s0 + $0x4c] sm:$0xf]
  %v27 = vld [vmem:[%s0 + $0x50] sm:$0xff]
  %v28 = vld [vmem:[%s0 + $0x58] sm:$0xff]
  %v29 = vld [vmem:[%s0 + $0x60] sm:$0xf]
  %v30 = vld [vmem:[%s0 + $0x64] sm:$0xff]
  %v31 = vld [vmem:[%s0 + $0x6c] sm:$0xff]
  %v32 = vld [vmem:[%s0 + $0x74] sm:$0xf]
  %v33 = vld [vmem:[%s0 + $0x78] sm:$0xff]
  %v34 = vld [vmem:[%s0 + $0x80] sm:$0xff]
  %v35 = vld [vmem:[%s0 + $0x88] sm:$0xf]
  %v36 = vld [vmem:[%s0 + $0x8c] sm:$0xff]
  %v37 = vld [vmem:[%s0 + $0x94] sm:$0xff]
  %v38 = vld [vmem:[%s0 + $0x9c] sm:$0xf]
  %v39 = vld [vmem:[%s0 + $0xa0] sm:$0xff]
  %v40 = vld [vmem:[%s0 + $0xa8] sm:$0xff]
  %v41 = vld [vmem:[%s0 + $0xb0] sm:$0xf]
  %v42 = vld [vmem:[%s0 + $0xb4] sm:$0xff]
  %v43 = vld [vmem:[%s0 + $0xbc] sm:$0xff]
  %v44 = vld [vmem:[%s0 + $0xc4] sm:$0xf]
  %v45 = vld [vmem:[%s0 + $0xc8] sm:$0xff]
  %v46 = vld [vmem:[%s0 + $0xd0] sm:$0xff]
  %v47 = vld [vmem:[%s0 + $0xd8] sm:$0xf]
  %v48 = vld [vmem:[%s0 + $0xdc] sm:$0xff]
  %v49 = vld [vmem:[%s0 + $0xe4] sm:$0xff]
  %v50 = vld [vmem:[%s0 + $0xec] sm:$0xf]
  %v51 = vld [vmem:[%s0 + $0xf0] sm:$0xff]
  %v52 = vld [vmem:[%s0 + $0xf8] sm:$0xff]
  %v53 = vld [vmem:[%s0 + $0x100] sm:$0xf]
  %v54 = vld [vmem:[%s0 + $0x104] sm:$0xff]
  %v55 = vld [vmem:[%s0 + $0x10c] sm:$0xff]
  %v56 = vld [vmem:[%s0 + $0x114] sm:$0xf]
  %v57 = vld [vmem:[%s0 + $0x118] sm:$0xff]
  %v58 = vld [vmem:[%s0 + $0x120] sm:$0xff]
  %v59 = vld [vmem:[%s0 + $0x128] sm:$0xf]
  %v60 = vld [vmem:[%s0 + $0x12c] sm:$0xff]
  %v61 = vld [vmem:[%s0 + $0x134] sm:$0xff]
  %v62 = vld [vmem:[%s0 + $0x13c] sm:$0xf]
  %v63 = vld [vmem:[%s1] sm:$0xf]
  %v64 = vld [vmem:[%s1 + $0x4] sm:$0xf]
  %v65 = vld [vmem:[%s1 + $0x8] sm:$0xf]
  %v66 = vld [vmem:[%s1 + $0xc] sm:$0xf]
  %v67 = vld [vmem:[%s1 + $0x10] sm:$0xf]
  %v68 = vld [vmem:[%s1 + $0x14] sm:$0xf]
  %v69 = vld [vmem:[%s1 + $0x18] sm:$0xf]
  %v70 = vld [vmem:[%s1 + $0x1c] sm:$0xf]
  %v71 = vld [vmem:[%s1 + $0x20] sm:$0xf]
  %v72 = vld [vmem:[%s1 + $0x24] sm:$0xf]
  %v73 = vld [vmem:[%s1 + $0x28] sm:$0xf]
  %v74 = vld [vmem:[%s1 + $0x2c] sm:$0xf]
  %v75 = vld [vmem:[%s1 + $0x30] sm:$0xf]
  %v76 = vld [vmem:[%s1 + $0x34] sm:$0xf]
  %v77 = vld [vmem:[%s1 + $0x38] sm:$0xf]
  %v78 = vld [vmem:[%s1 + $0x3c] sm:$0xf]
  %v79 = vld [vmem:[%s1 + $0x40] sm:$0xf]
  %v80 = vld [vmem:[%s1 + $0x44] sm:$0xf]
  %v81 = vld [vmem:[%s1 + $0x48] sm:$0xf]
  %v82 = vld [vmem:[%s1 + $0x4c] sm:$0xf]
  %v83 = vld [vmem:[%s1 + $0x50] sm:$0xf]
  %v84 = vld [vmem:[%s1 + $0x54] sm:$0xf]
  %v85 = vld [vmem:[%s1 + $0x58] sm:$0xf]
  %v86 = vld [vmem:[%s1 + $0x5c] sm:$0xf]
  %v87 = vld [vmem:[%s1 + $0x60] sm:$0xf]
  %v88 = vld [vmem:[%s1 + $0x64] sm:$0xf]
  %v89 = vld [vmem:[%s1 + $0x68] sm:$0xf]
  %v90 = vld [vmem:[%s1 + $0x6c] sm:$0xf]
  %v91 = vld [vmem:[%s1 + $0x70] sm:$0xf]
  %v92 = vld [vmem:[%s1 + $0x74] sm:$0xf]
  %v93 = vld [vmem:[%s1 + $0x78] sm:$0xf]
  %v94 = vld [vmem:[%s1 + $0x7c] sm:$0xf]
  %v95 = vld [vmem:[%s1 + $0x80] sm:$0xf]
  %v96 = vld [vmem:[%s1 + $0x84] sm:$0xf]
  %v97 = vld [vmem:[%s1 + $0x88] sm:$0xf]
  %v98 = vld [vmem:[%s1 + $0x8c] sm:$0xf]
  %v99 = vld [vmem:[%s1 + $0x90] sm:$0xf]
  %v100 = vld [vmem:[%s1 + $0x94] sm:$0xf]
  %v101 = vld [vmem:[%s1 + $0x98] sm:$0xf]
  %v102 = vld [vmem:[%s1 + $0x9c] sm:$0xf]
  %v103 = vld [vmem:[%s1 + $0xa0] sm:$0xf]
  %v104 = vld [vmem:[%s1 + $0xa4] sm:$0xf]
  %v105 = vld [vmem:[%s1 + $0xa8] sm:$0xf]
  %v106 = vld [vmem:[%s1 + $0xac] sm:$0xf]
  %v107 = vld [vmem:[%s1 + $0xb0] sm:$0xf]
  %v108 = vld [vmem:[%s1 + $0xb4] sm:$0xf]
  %v109 = vld [vmem:[%s1 + $0xb8] sm:$0xf]
  %v110 = vld [vmem:[%s1 + $0xbc] sm:$0xf]
  %v111 = vld [vmem:[%s1 + $0xc0] sm:$0xf]
  %v112 = vld [vmem:[%s1 + $0xc4] sm:$0xf]
  %v113 = vld [vmem:[%s1 + $0xc8] sm:$0xf]
  %v114 = vld [vmem:[%s1 + $0xcc] sm:$0xf]
  %v115 = vld [vmem:[%s1 + $0xd0] sm:$0xf]
  %v116 = vld [vmem:[%s1 + $0xd4] sm:$0xf]
  %v117 = vld [vmem:[%s1 + $0xd8] sm:$0xf]
  %v118 = vld [vmem:[%s1 + $0xdc] sm:$0xf]
  %v119 = vld [vmem:[%s1 + $0xe0] sm:$0xf]
  %v120 = vld [vmem:[%s1 + $0xe4] sm:$0xf]
  %v121 = vld [vmem:[%s1 + $0xe8] sm:$0xf]
  %v122 = vld [vmem:[%s1 + $0xec] sm:$0xf]
  %v123 = vld [vmem:[%s1 + $0xf0] sm:$0xf]
  %v124 = vld [vmem:[%s1 + $0xf4] sm:$0xf]
  %v125 = vld [vmem:[%s1 + $0xf8] sm:$0xf]
  %v126 = vld [vmem:[%s1 + $0xfc] sm:$0xf]
  %v127 = vld [vmem:[%s1 + $0x100] sm:$0xf]
  %v128 = vld [vmem:[%s1 + $0x104] sm:$0xf]
  %v129 = vld [vmem:[%s1 + $0x108] sm:$0xf]
  %v130 = vld [vmem:[%s1 + $0x10c] sm:$0xf]
  %v131 = vld [vmem:[%s1 + $0x110] sm:$0xf]
  %v132 = vld [vmem:[%s1 + $0x114] sm:$0xf]
  %v133 = vld [vmem:[%s1 + $0x118] sm:$0xf]
  %v134 = vld [vmem:[%s1 + $0x11c] sm:$0xf]
  %v135 = vld [vmem:[%s1 + $0x120] sm:$0xf]
  %v136 = vld [vmem:[%s1 + $0x124] sm:$0xf]
  %v137 = vld [vmem:[%s1 + $0x128] sm:$0xf]
  %v138 = vld [vmem:[%s1 + $0x12c] sm:$0xf]
  %v139 = vld [vmem:[%s1 + $0x130] sm:$0xf]
  %v140 = vld [vmem:[%s1 + $0x134] sm:$0xf]
  %v141 = vld [vmem:[%s1 + $0x138] sm:$0xf]
  %v142 = vld [vmem:[%s1 + $0x13c] sm:$0xf]
  %v143 = vperm.slane %v14, 0
  %v192 = vunpack.c.l.b16 %v15
  %v193 = vunpack.c.h.b16 %v15
  %v194 = vunpack.c.l.b16 %v16
  %v195 = vunpack.c.h.b16 %v16
  %v196 = vunpack.c.l.b16 %v17
  %v197 = vunpack.c.l.b16 %v18
  %v198 = vunpack.c.h.b16 %v18
  %v199 = vunpack.c.l.b16 %v19
  %v200 = vunpack.c.h.b16 %v19
  %v201 = vunpack.c.l.b16 %v20
  %v202 = vunpack.c.l.b16 %v21
  %v203 = vunpack.c.h.b16 %v21
  %v204 = vunpack.c.l.b16 %v22
  %v205 = vunpack.c.h.b16 %v22
  %v206 = vunpack.c.l.b16 %v23
  %v207 = vunpack.c.l.b16 %v24
  %v208 = vunpack.c.h.b16 %v24
  %v209 = vunpack.c.l.b16 %v25
  %v210 = vunpack.c.h.b16 %v25
  %v211 = vunpack.c.l.b16 %v26
  %v212 = vunpack.c.l.b16 %v27
  %v213 = vunpack.c.h.b16 %v27
  %v214 = vunpack.c.l.b16 %v28
  %v215 = vunpack.c.h.b16 %v28
  %v216 = vunpack.c.l.b16 %v29
  %v217 = vunpack.c.l.b16 %v30
  %v218 = vunpack.c.h.b16 %v30
  %v219 = vunpack.c.l.b16 %v31
  %v220 = vunpack.c.h.b16 %v31
  %v221 = vunpack.c.l.b16 %v32
  %v222 = vunpack.c.l.b16 %v33
  %v223 = vunpack.c.h.b16 %v33
  %v224 = vunpack.c.l.b16 %v34
  %v225 = vunpack.c.h.b16 %v34
  %v226 = vunpack.c.l.b16 %v35
  %v227 = vunpack.c.l.b16 %v36
  %v228 = vunpack.c.h.b16 %v36
  %v229 = vunpack.c.l.b16 %v37
  %v230 = vunpack.c.h.b16 %v37
  %v231 = vunpack.c.l.b16 %v38
  %v232 = vunpack.c.l.b16 %v39
  %v233 = vunpack.c.h.b16 %v39
  %v234 = vunpack.c.l.b16 %v40
  %v235 = vunpack.c.h.b16 %v40
  %v236 = vunpack.c.l.b16 %v41
  %v237 = vunpack.c.l.b16 %v42
  %v238 = vunpack.c.h.b16 %v42
  %v239 = vunpack.c.l.b16 %v43
  %v240 = vunpack.c.h.b16 %v43
  %v241 = vunpack.c.l.b16 %v44
  %v242 = vunpack.c.l.b16 %v45
  %v243 = vunpack.c.h.b16 %v45
  %v244 = vunpack.c.l.b16 %v46
  %v245 = vunpack.c.h.b16 %v46
  %v246 = vunpack.c.l.b16 %v47
  %v247 = vunpack.c.l.b16 %v48
  %v248 = vunpack.c.h.b16 %v48
  %v249 = vunpack.c.l.b16 %v49
  %v250 = vunpack.c.h.b16 %v49
  %v251 = vunpack.c.l.b16 %v50
  %v252 = vunpack.c.l.b16 %v51
  %v253 = vunpack.c.h.b16 %v51
  %v254 = vunpack.c.l.b16 %v52
  %v255 = vunpack.c.h.b16 %v52
  %v256 = vunpack.c.l.b16 %v53
  %v257 = vunpack.c.l.b16 %v54
  %v258 = vunpack.c.h.b16 %v54
  %v259 = vunpack.c.l.b16 %v55
  %v260 = vunpack.c.h.b16 %v55
  %v261 = vunpack.c.l.b16 %v56
  %v262 = vunpack.c.l.b16 %v57
  %v263 = vunpack.c.h.b16 %v57
  %v264 = vunpack.c.l.b16 %v58
  %v265 = vunpack.c.h.b16 %v58
  %v266 = vunpack.c.l.b16 %v59
  %v267 = vunpack.c.l.b16 %v60
  %v268 = vunpack.c.h.b16 %v60
  %v269 = vunpack.c.l.b16 %v61
  %v270 = vunpack.c.h.b16 %v61
  %v271 = vunpack.c.l.b16 %v62
  %v272 = vpack.c.b16 %v197, %v192
  %v273 = vpack.c.b16 %v198, %v193
  %v274 = vpack.c.b16 %v199, %v194
  %v275 = vpack.c.b16 %v200, %v195
  %v276 = vpack.c.b16 %v201, %v196
  %v277 = vpack.c.b16 %v207, %v202
  %v278 = vpack.c.b16 %v208, %v203
  %v279 = vpack.c.b16 %v209, %v204
  %v280 = vpack.c.b16 %v210, %v205
  %v281 = vpack.c.b16 %v211, %v206
  %v282 = vpack.c.b16 %v217, %v212
  %v283 = vpack.c.b16 %v218, %v213
  %v284 = vpack.c.b16 %v219, %v214
  %v285 = vpack.c.b16 %v220, %v215
  %v286 = vpack.c.b16 %v221, %v216
  %v287 = vpack.c.b16 %v227, %v222
  %v288 = vpack.c.b16 %v228, %v223
  %v289 = vpack.c.b16 %v229, %v224
  %v290 = vpack.c.b16 %v230, %v225
  %v291 = vpack.c.b16 %v231, %v226
  %v292 = vpack.c.b16 %v237, %v232
  %v293 = vpack.c.b16 %v238, %v233
  %v294 = vpack.c.b16 %v239, %v234
  %v295 = vpack.c.b16 %v240, %v235
  %v296 = vpack.c.b16 %v241, %v236
  %v297 = vpack.c.b16 %v247, %v242
  %v298 = vpack.c.b16 %v248, %v243
  %v299 = vpack.c.b16 %v249, %v244
  %v300 = vpack.c.b16 %v250, %v245
  %v301 = vpack.c.b16 %v251, %v246
  %v302 = vpack.c.b16 %v257, %v252
  %v303 = vpack.c.b16 %v258, %v253
  %v304 = vpack.c.b16 %v259, %v254
  %v305 = vpack.c.b16 %v260, %v255
  %v306 = vpack.c.b16 %v261, %v256
  %v307 = vpack.c.b16 %v267, %v262
  %v308 = vpack.c.b16 %v268, %v263
  %v309 = vpack.c.b16 %v269, %v264
  %v310 = vpack.c.b16 %v270, %v265
  %v311 = vpack.c.b16 %v271, %v266
  %v432 = vunpack.c.l.b16 %v63
  %v433 = vunpack.c.l.b16 %v64
  %v434 = vunpack.c.l.b16 %v65
  %v435 = vunpack.c.l.b16 %v66
  %v436 = vunpack.c.l.b16 %v67
  %v437 = vunpack.c.l.b16 %v68
  %v438 = vunpack.c.l.b16 %v69
  %v439 = vunpack.c.l.b16 %v70
  %v440 = vunpack.c.l.b16 %v71
  %v441 = vunpack.c.l.b16 %v72
  %v442 = vunpack.c.l.b16 %v73
  %v443 = vunpack.c.l.b16 %v74
  %v444 = vunpack.c.l.b16 %v75
  %v445 = vunpack.c.l.b16 %v76
  %v446 = vunpack.c.l.b16 %v77
  %v447 = vunpack.c.l.b16 %v78
  %v448 = vunpack.c.l.b16 %v79
  %v449 = vunpack.c.l.b16 %v80
  %v450 = vunpack.c.l.b16 %v81
  %v451 = vunpack.c.l.b16 %v82
  %v452 = vunpack.c.l.b16 %v83
  %v453 = vunpack.c.l.b16 %v84
  %v454 = vunpack.c.l.b16 %v85
  %v455 = vunpack.c.l.b16 %v86
  %v456 = vunpack.c.l.b16 %v87
  %v457 = vunpack.c.l.b16 %v88
  %v458 = vunpack.c.l.b16 %v89
  %v459 = vunpack.c.l.b16 %v90
  %v460 = vunpack.c.l.b16 %v91
  %v461 = vunpack.c.l.b16 %v92
  %v462 = vunpack.c.l.b16 %v93
  %v463 = vunpack.c.l.b16 %v94
  %v464 = vunpack.c.l.b16 %v95
  %v465 = vunpack.c.l.b16 %v96
  %v466 = vunpack.c.l.b16 %v97
  %v467 = vunpack.c.l.b16 %v98
  %v468 = vunpack.c.l.b16 %v99
  %v469 = vunpack.c.l.b16 %v100
  %v470 = vunpack.c.l.b16 %v101
  %v471 = vunpack.c.l.b16 %v102
  %v472 = vunpack.c.l.b16 %v103
  %v473 = vunpack.c.l.b16 %v104
  %v474 = vunpack.c.l.b16 %v105
  %v475 = vunpack.c.l.b16 %v106
  %v476 = vunpack.c.l.b16 %v107
  %v477 = vunpack.c.l.b16 %v108
  %v478 = vunpack.c.l.b16 %v109
  %v479 = vunpack.c.l.b16 %v110
  %v480 = vunpack.c.l.b16 %v111
  %v481 = vunpack.c.l.b16 %v112
  %v482 = vunpack.c.l.b16 %v113
  %v483 = vunpack.c.l.b16 %v114
  %v484 = vunpack.c.l.b16 %v115
  %v485 = vunpack.c.l.b16 %v116
  %v486 = vunpack.c.l.b16 %v117
  %v487 = vunpack.c.l.b16 %v118
  %v488 = vunpack.c.l.b16 %v119
  %v489 = vunpack.c.l.b16 %v120
  %v490 = vunpack.c.l.b16 %v121
  %v491 = vunpack.c.l.b16 %v122
  %v492 = vunpack.c.l.b16 %v123
  %v493 = vunpack.c.l.b16 %v124
  %v494 = vunpack.c.l.b16 %v125
  %v495 = vunpack.c.l.b16 %v126
  %v496 = vunpack.c.l.b16 %v127
  %v497 = vunpack.c.l.b16 %v128
  %v498 = vunpack.c.l.b16 %v129
  %v499 = vunpack.c.l.b16 %v130
  %v500 = vunpack.c.l.b16 %v131
  %v501 = vunpack.c.l.b16 %v132
  %v502 = vunpack.c.l.b16 %v133
  %v503 = vunpack.c.l.b16 %v134
  %v504 = vunpack.c.l.b16 %v135
  %v505 = vunpack.c.l.b16 %v136
  %v506 = vunpack.c.l.b16 %v137
  %v507 = vunpack.c.l.b16 %v138
  %v508 = vunpack.c.l.b16 %v139
  %v509 = vunpack.c.l.b16 %v140
  %v510 = vunpack.c.l.b16 %v141
  %v511 = vunpack.c.l.b16 %v142
  %v512 = vpack.c.b16 %v433, %v432
  %v513 = vpack.c.b16 %v435, %v434
  %v514 = vpack.c.b16 %v437, %v436
  %v515 = vpack.c.b16 %v439, %v438
  %v516 = vpack.c.b16 %v441, %v440
  %v517 = vpack.c.b16 %v443, %v442
  %v518 = vpack.c.b16 %v445, %v444
  %v519 = vpack.c.b16 %v447, %v446
  %v520 = vpack.c.b16 %v449, %v448
  %v521 = vpack.c.b16 %v451, %v450
  %v522 = vpack.c.b16 %v453, %v452
  %v523 = vpack.c.b16 %v455, %v454
  %v524 = vpack.c.b16 %v457, %v456
  %v525 = vpack.c.b16 %v459, %v458
  %v526 = vpack.c.b16 %v461, %v460
  %v527 = vpack.c.b16 %v463, %v462
  %v528 = vpack.c.b16 %v465, %v464
  %v529 = vpack.c.b16 %v467, %v466
  %v530 = vpack.c.b16 %v469, %v468
  %v531 = vpack.c.b16 %v471, %v470
  %v532 = vpack.c.b16 %v473, %v472
  %v533 = vpack.c.b16 %v475, %v474
  %v534 = vpack.c.b16 %v477, %v476
  %v535 = vpack.c.b16 %v479, %v478
  %v536 = vpack.c.b16 %v481, %v480
  %v537 = vpack.c.b16 %v483, %v482
  %v538 = vpack.c.b16 %v485, %v484
  %v539 = vpack.c.b16 %v487, %v486
  %v540 = vpack.c.b16 %v489, %v488
  %v541 = vpack.c.b16 %v491, %v490
  %v542 = vpack.c.b16 %v493, %v492
  %v543 = vpack.c.b16 %v495, %v494
  %v544 = vpack.c.b16 %v497, %v496
  %v545 = vpack.c.b16 %v499, %v498
  %v546 = vpack.c.b16 %v501, %v500
  %v547 = vpack.c.b16 %v503, %v502
  %v548 = vpack.c.b16 %v505, %v504
  %v549 = vpack.c.b16 %v507, %v506
  %v550 = vpack.c.b16 %v509, %v508
  %v551 = vpack.c.b16 %v511, %v510
  %592 = vmatpush.bf16.msra.mxu0 %v519
  %593 = vmatpush.bf16.msra.mxu0 %v518
  %594 = vmatpush.bf16.msra.mxu0 %v517
  %595 = vmatpush.bf16.msra.mxu0 %v516
  %596 = vmatpush.bf16.msra.mxu0 %v515
  %597 = vmatpush.bf16.msra.mxu0 %v514
  %598 = vmatpush.bf16.msra.mxu0 %v513
  %599 = vmatpush.bf16.msra.mxu0 %v512
  %600 = vmatmul.bf16.gmra.mxu0 %v272
  %v601 = vpop.f32.mrf.mxu0
  %v602 = vadd.f32 %v143, %v601
  %v603 = vpop.f32.mrf.mxu0
  %v604 = vadd.f32 %v143, %v603
  %605 = vmatmul.bf16.gmra.mxu0 %v277
  %v606 = vpop.f32.mrf.mxu0
  %v607 = vadd.f32 %v143, %v606
  %v608 = vpop.f32.mrf.mxu0
  %v609 = vadd.f32 %v143, %v608
  %610 = vmatmul.bf16.gmra.mxu0 %v282
  %v611 = vpop.f32.mrf.mxu0
  %v612 = vadd.f32 %v143, %v611
  %v613 = vpop.f32.mrf.mxu0
  %v614 = vadd.f32 %v143, %v613
  %615 = vmatmul.bf16.gmra.mxu0 %v287
  %v616 = vpop.f32.mrf.mxu0
  %v617 = vadd.f32 %v143, %v616
  %v618 = vpop.f32.mrf.mxu0
  %v619 = vadd.f32 %v143, %v618
  %620 = vmatmul.bf16.gmra.mxu0 %v292
  %v621 = vpop.f32.mrf.mxu0
  %v622 = vadd.f32 %v143, %v621
  %v623 = vpop.f32.mrf.mxu0
  %v624 = vadd.f32 %v143, %v623
  %625 = vmatmul.bf16.gmra.mxu0 %v297
  %v626 = vpop.f32.mrf.mxu0
  %v627 = vadd.f32 %v143, %v626
  %v628 = vpop.f32.mrf.mxu0
  %v629 = vadd.f32 %v143, %v628
  %630 = vmatmul.bf16.gmra.mxu0 %v302
  %v631 = vpop.f32.mrf.mxu0
  %v632 = vadd.f32 %v143, %v631
  %v633 = vpop.f32.mrf.mxu0
  %v634 = vadd.f32 %v143, %v633
  %635 = vmatmul.bf16.gmra.mxu0 %v307
  %v636 = vpop.f32.mrf.mxu0
  %v637 = vadd.f32 %v143, %v636
  %v638 = vpop.f32.mrf.mxu0
  %v639 = vadd.f32 %v143, %v638
  %640 = vdwg.mxu0
  %641 = vmatpush.bf16.msra.mxu0 %v527
  %642 = vmatpush.bf16.msra.mxu0 %v526
  %643 = vmatpush.bf16.msra.mxu0 %v525
  %644 = vmatpush.bf16.msra.mxu0 %v524
  %645 = vmatpush.bf16.msra.mxu0 %v523
  %646 = vmatpush.bf16.msra.mxu0 %v522
  %647 = vmatpush.bf16.msra.mxu0 %v521
  %648 = vmatpush.bf16.msra.mxu0 %v520
  %649 = vmatmul.bf16.gmra.mxu0 %v273
  %v650 = vpop.f32.mrf.mxu0
  %v651 = vadd.f32 %v602, %v650
  %v652 = vpop.f32.mrf.mxu0
  %v653 = vadd.f32 %v604, %v652
  %654 = vmatmul.bf16.gmra.mxu0 %v278
  %v655 = vpop.f32.mrf.mxu0
  %v656 = vadd.f32 %v607, %v655
  %v657 = vpop.f32.mrf.mxu0
  %v658 = vadd.f32 %v609, %v657
  %659 = vmatmul.bf16.gmra.mxu0 %v283
  %v660 = vpop.f32.mrf.mxu0
  %v661 = vadd.f32 %v612, %v660
  %v662 = vpop.f32.mrf.mxu0
  %v663 = vadd.f32 %v614, %v662
  %664 = vmatmul.bf16.gmra.mxu0 %v288
  %v665 = vpop.f32.mrf.mxu0
  %v666 = vadd.f32 %v617, %v665
  %v667 = vpop.f32.mrf.mxu0
  %v668 = vadd.f32 %v619, %v667
  %669 = vmatmul.bf16.gmra.mxu0 %v293
  %v670 = vpop.f32.mrf.mxu0
  %v671 = vadd.f32 %v622, %v670
  %v672 = vpop.f32.mrf.mxu0
  %v673 = vadd.f32 %v624, %v672
  %674 = vmatmul.bf16.gmra.mxu0 %v298
  %v675 = vpop.f32.mrf.mxu0
  %v676 = vadd.f32 %v627, %v675
  %v677 = vpop.f32.mrf.mxu0
  %v678 = vadd.f32 %v629, %v677
  %679 = vmatmul.bf16.gmra.mxu0 %v303
  %v680 = vpop.f32.mrf.mxu0
  %v681 = vadd.f32 %v632, %v680
  %v682 = vpop.f32.mrf.mxu0
  %v683 = vadd.f32 %v634, %v682
  %684 = vmatmul.bf16.gmra.mxu0 %v308
  %v685 = vpop.f32.mrf.mxu0
  %v686 = vadd.f32 %v637, %v685
  %v687 = vpop.f32.mrf.mxu0
  %v688 = vadd.f32 %v639, %v687
  %689 = vdwg.mxu0
  %690 = vmatpush.bf16.msra.mxu0 %v535
  %691 = vmatpush.bf16.msra.mxu0 %v534
  %692 = vmatpush.bf16.msra.mxu0 %v533
  %693 = vmatpush.bf16.msra.mxu0 %v532
  %694 = vmatpush.bf16.msra.mxu0 %v531
  %695 = vmatpush.bf16.msra.mxu0 %v530
  %696 = vmatpush.bf16.msra.mxu0 %v529
  %697 = vmatpush.bf16.msra.mxu0 %v528
  %698 = vmatmul.bf16.gmra.mxu0 %v274
  %v699 = vpop.f32.mrf.mxu0
  %v700 = vadd.f32 %v651, %v699
  %v701 = vpop.f32.mrf.mxu0
  %v702 = vadd.f32 %v653, %v701
  %703 = vmatmul.bf16.gmra.mxu0 %v279
  %v704 = vpop.f32.mrf.mxu0
  %v705 = vadd.f32 %v656, %v704
  %v706 = vpop.f32.mrf.mxu0
  %v707 = vadd.f32 %v658, %v706
  %708 = vmatmul.bf16.gmra.mxu0 %v284
  %v709 = vpop.f32.mrf.mxu0
  %v710 = vadd.f32 %v661, %v709
  %v711 = vpop.f32.mrf.mxu0
  %v712 = vadd.f32 %v663, %v711
  %713 = vmatmul.bf16.gmra.mxu0 %v289
  %v714 = vpop.f32.mrf.mxu0
  %v715 = vadd.f32 %v666, %v714
  %v716 = vpop.f32.mrf.mxu0
  %v717 = vadd.f32 %v668, %v716
  %718 = vmatmul.bf16.gmra.mxu0 %v294
  %v719 = vpop.f32.mrf.mxu0
  %v720 = vadd.f32 %v671, %v719
  %v721 = vpop.f32.mrf.mxu0
  %v722 = vadd.f32 %v673, %v721
  %723 = vmatmul.bf16.gmra.mxu0 %v299
  %v724 = vpop.f32.mrf.mxu0
  %v725 = vadd.f32 %v676, %v724
  %v726 = vpop.f32.mrf.mxu0
  %v727 = vadd.f32 %v678, %v726
  %728 = vmatmul.bf16.gmra.mxu0 %v304
  %v729 = vpop.f32.mrf.mxu0
  %v730 = vadd.f32 %v681, %v729
  %v731 = vpop.f32.mrf.mxu0
  %v732 = vadd.f32 %v683, %v731
  %733 = vmatmul.bf16.gmra.mxu0 %v309
  %v734 = vpop.f32.mrf.mxu0
  %v735 = vadd.f32 %v686, %v734
  %v736 = vpop.f32.mrf.mxu0
  %v737 = vadd.f32 %v688, %v736
  %738 = vdwg.mxu0
  %739 = vmatpush.bf16.msra.mxu0 %v543
  %740 = vmatpush.bf16.msra.mxu0 %v542
  %741 = vmatpush.bf16.msra.mxu0 %v541
  %742 = vmatpush.bf16.msra.mxu0 %v540
  %743 = vmatpush.bf16.msra.mxu0 %v539
  %744 = vmatpush.bf16.msra.mxu0 %v538
  %745 = vmatpush.bf16.msra.mxu0 %v537
  %746 = vmatpush.bf16.msra.mxu0 %v536
  %747 = vmatmul.bf16.gmra.mxu0 %v275
  %v748 = vpop.f32.mrf.mxu0
  %v749 = vadd.f32 %v700, %v748
  %v750 = vpop.f32.mrf.mxu0
  %v751 = vadd.f32 %v702, %v750
  %752 = vmatmul.bf16.gmra.mxu0 %v280
  %v753 = vpop.f32.mrf.mxu0
  %v754 = vadd.f32 %v705, %v753
  %v755 = vpop.f32.mrf.mxu0
  %v756 = vadd.f32 %v707, %v755
  %757 = vmatmul.bf16.gmra.mxu0 %v285
  %v758 = vpop.f32.mrf.mxu0
  %v759 = vadd.f32 %v710, %v758
  %v760 = vpop.f32.mrf.mxu0
  %v761 = vadd.f32 %v712, %v760
  %762 = vmatmul.bf16.gmra.mxu0 %v290
  %v763 = vpop.f32.mrf.mxu0
  %v764 = vadd.f32 %v715, %v763
  %v765 = vpop.f32.mrf.mxu0
  %v766 = vadd.f32 %v717, %v765
  %767 = vmatmul.bf16.gmra.mxu0 %v295
  %v768 = vpop.f32.mrf.mxu0
  %v769 = vadd.f32 %v720, %v768
  %v770 = vpop.f32.mrf.mxu0
  %v771 = vadd.f32 %v722, %v770
  %772 = vmatmul.bf16.gmra.mxu0 %v300
  %v773 = vpop.f32.mrf.mxu0
  %v774 = vadd.f32 %v725, %v773
  %v775 = vpop.f32.mrf.mxu0
  %v776 = vadd.f32 %v727, %v775
  %777 = vmatmul.bf16.gmra.mxu0 %v305
  %v778 = vpop.f32.mrf.mxu0
  %v779 = vadd.f32 %v730, %v778
  %v780 = vpop.f32.mrf.mxu0
  %v781 = vadd.f32 %v732, %v780
  %782 = vmatmul.bf16.gmra.mxu0 %v310
  %v783 = vpop.f32.mrf.mxu0
  %v784 = vadd.f32 %v735, %v783
  %v785 = vpop.f32.mrf.mxu0
  %v786 = vadd.f32 %v737, %v785
  %787 = vdwg.mxu0
  %788 = vmatpush.bf16.msra.mxu0 %v551
  %789 = vmatpush.bf16.msra.mxu0 %v550
  %790 = vmatpush.bf16.msra.mxu0 %v549
  %791 = vmatpush.bf16.msra.mxu0 %v548
  %792 = vmatpush.bf16.msra.mxu0 %v547
  %793 = vmatpush.bf16.msra.mxu0 %v546
  %794 = vmatpush.bf16.msra.mxu0 %v545
  %795 = vmatpush.bf16.msra.mxu0 %v544
  %796 = vmatmul.bf16.gmra.mxu0 %v276
  %v797 = vpop.f32.mrf.mxu0
  %v798 = vadd.f32 %v749, %v797
  %v799 = vpop.f32.mrf.mxu0
  %v800 = vadd.f32 %v751, %v799
  %801 = vmatmul.bf16.gmra.mxu0 %v281
  %v802 = vpop.f32.mrf.mxu0
  %v803 = vadd.f32 %v754, %v802
  %v804 = vpop.f32.mrf.mxu0
  %v805 = vadd.f32 %v756, %v804
  %806 = vmatmul.bf16.gmra.mxu0 %v286
  %v807 = vpop.f32.mrf.mxu0
  %v808 = vadd.f32 %v759, %v807
  %v809 = vpop.f32.mrf.mxu0
  %v810 = vadd.f32 %v761, %v809
  %811 = vmatmul.bf16.gmra.mxu0 %v291
  %v812 = vpop.f32.mrf.mxu0
  %v813 = vadd.f32 %v764, %v812
  %v814 = vpop.f32.mrf.mxu0
  %v815 = vadd.f32 %v766, %v814
  %816 = vmatmul.bf16.gmra.mxu0 %v296
  %v817 = vpop.f32.mrf.mxu0
  %v818 = vadd.f32 %v769, %v817
  %v819 = vpop.f32.mrf.mxu0
  %v820 = vadd.f32 %v771, %v819
  %821 = vmatmul.bf16.gmra.mxu0 %v301
  %v822 = vpop.f32.mrf.mxu0
  %v823 = vadd.f32 %v774, %v822
  %v824 = vpop.f32.mrf.mxu0
  %v825 = vadd.f32 %v776, %v824
  %826 = vmatmul.bf16.gmra.mxu0 %v306
  %v827 = vpop.f32.mrf.mxu0
  %v828 = vadd.f32 %v779, %v827
  %v829 = vpop.f32.mrf.mxu0
  %v830 = vadd.f32 %v781, %v829
  %831 = vmatmul.bf16.gmra.mxu0 %v311
  %v832 = vpop.f32.mrf.mxu0
  %v833 = vadd.f32 %v784, %v832
  %v834 = vpop.f32.mrf.mxu0
  %v835 = vadd.f32 %v786, %v834
  %836 = vdwg.mxu0
  %v837 = vadd.f32 %v798, %v800
  %v838 = vadd.f32 %v837, %v803
  %v839 = vadd.f32 %v838, %v805
  %v840 = vadd.f32 %v839, %v808
  %v841 = vadd.f32 %v840, %v810
  %v842 = vadd.f32 %v841, %v813
  %v843 = vadd.f32 %v842, %v815
  %v844 = vadd.f32 %v843, %v818
  %v845 = vadd.f32 %v844, %v820
  %v846 = vadd.f32 %v845, %v823
  %v847 = vadd.f32 %v846, %v825
  %v848 = vadd.f32 %v847, %v828
  %v849 = vadd.f32 %v848, %v830
  %v850 = vadd.f32 %v849, %v833
  %v851 = vadd.f32 %v850, %v835
  %v852 = vrot.slane %v851, 4
  %v853 = vadd.f32 %v851, %v852
  %v854 = vrot.slane %v853, 2
  %v855 = vadd.f32 %v853, %v854
  %v856 = vrot.slane %v855, 1
  %v857 = vadd.f32 %v855, %v856
  %v858 = vmul.f32 %v857, 0.0078125
  %v859 = vsub.f32 %v798, %v858
  %v860 = vsub.f32 %v800, %v858
  %v861 = vsub.f32 %v803, %v858
  %v862 = vsub.f32 %v805, %v858
  %v863 = vsub.f32 %v808, %v858
  %v864 = vsub.f32 %v810, %v858
  %v865 = vsub.f32 %v813, %v858
  %v866 = vsub.f32 %v815, %v858
  %v867 = vsub.f32 %v818, %v858
  %v868 = vsub.f32 %v820, %v858
  %v869 = vsub.f32 %v823, %v858
  %v870 = vsub.f32 %v825, %v858
  %v871 = vsub.f32 %v828, %v858
  %v872 = vsub.f32 %v830, %v858
  %v873 = vsub.f32 %v833, %v858
  %v874 = vsub.f32 %v835, %v858
  %v875 = vmul.f32 %v859, %v859
  %v876 = vmul.f32 %v860, %v860
  %v877 = vmul.f32 %v861, %v861
  %v878 = vmul.f32 %v862, %v862
  %v879 = vmul.f32 %v863, %v863
  %v880 = vmul.f32 %v864, %v864
  %v881 = vmul.f32 %v865, %v865
  %v882 = vmul.f32 %v866, %v866
  %v883 = vmul.f32 %v867, %v867
  %v884 = vmul.f32 %v868, %v868
  %v885 = vmul.f32 %v869, %v869
  %v886 = vmul.f32 %v870, %v870
  %v887 = vmul.f32 %v871, %v871
  %v888 = vmul.f32 %v872, %v872
  %v889 = vmul.f32 %v873, %v873
  %v890 = vmul.f32 %v874, %v874
  %v891 = vadd.f32 %v875, %v876
  %v892 = vadd.f32 %v891, %v877
  %v893 = vadd.f32 %v892, %v878
  %v894 = vadd.f32 %v893, %v879
  %v895 = vadd.f32 %v894, %v880
  %v896 = vadd.f32 %v895, %v881
  %v897 = vadd.f32 %v896, %v882
  %v898 = vadd.f32 %v897, %v883
  %v899 = vadd.f32 %v898, %v884
  %v900 = vadd.f32 %v899, %v885
  %v901 = vadd.f32 %v900, %v886
  %v902 = vadd.f32 %v901, %v887
  %v903 = vadd.f32 %v902, %v888
  %v904 = vadd.f32 %v903, %v889
  %v905 = vadd.f32 %v904, %v890
  %v906 = vrot.slane %v905, 4
  %v907 = vadd.f32 %v905, %v906
  %v908 = vrot.slane %v907, 2
  %v909 = vadd.f32 %v907, %v908
  %v910 = vrot.slane %v909, 1
  %v911 = vadd.f32 %v909, %v910
  %v912 = vmul.f32 %v911, 0.0078125
  %v913 = vmax.f32 %v912, 0.0
  %v914 = vadd.f32 %v913, 1e-05
  %v915 = vrsqrt.pop %v914
  %v916 = vmul.f32 %v915, %v914
  %v917 = vmul.f32 %v916, %v915
  %v918 = vmul.f32 0.5, %v917
  %v919 = vsub.f32 1.5, %v918
  %v920 = vmul.f32 %v915, %v919
  %vm921 = vweird.f32 %v914
  %vm922 = vweird.f32 %v915
  %vm923 = vmor %vm921, %vm922
  %v924 = vsel %vm923, %v915, %v920
  %v925 = vmul.f32 %v14, %v924
  %v926 = vmul.f32 %v858, %v925
  %v928 = vrot.slane %v926, 7
  %v930 = vsub.f32 %v14, %v928
  %v931 = vperm.slane %v925, 1
  %v932 = vmul.f32 %v798, %v931
  %v933 = vmul.f32 %v800, %v931
  %v934 = vmul.f32 %v803, %v931
  %v935 = vmul.f32 %v805, %v931
  %v936 = vmul.f32 %v808, %v931
  %v937 = vmul.f32 %v810, %v931
  %v938 = vmul.f32 %v813, %v931
  %v939 = vmul.f32 %v815, %v931
  %v940 = vmul.f32 %v818, %v931
  %v941 = vmul.f32 %v820, %v931
  %v942 = vmul.f32 %v823, %v931
  %v943 = vmul.f32 %v825, %v931
  %v944 = vmul.f32 %v828, %v931
  %v945 = vmul.f32 %v830, %v931
  %v946 = vmul.f32 %v833, %v931
  %v947 = vmul.f32 %v835, %v931
  %v948 = vperm.slane %v930, 2
  %v949 = vadd.f32 %v932, %v948
  %v950 = vadd.f32 %v933, %v948
  %v951 = vadd.f32 %v934, %v948
  %v952 = vadd.f32 %v935, %v948
  %v953 = vadd.f32 %v936, %v948
  %v954 = vadd.f32 %v937, %v948
  %v955 = vadd.f32 %v938, %v948
  %v956 = vadd.f32 %v939, %v948
  %v957 = vadd.f32 %v940, %v948
  %v958 = vadd.f32 %v941, %v948
  %v959 = vadd.f32 %v942, %v948
  %v960 = vadd.f32 %v943, %v948
  %v961 = vadd.f32 %v944, %v948
  %v962 = vadd.f32 %v945, %v948
  %v963 = vadd.f32 %v946, %v948
  %v964 = vadd.f32 %v947, %v948
  %v965 = vmax.f32 %v949, 0.0
  %v966 = vmax.f32 %v950, 0.0
  %v967 = vmax.f32 %v951, 0.0
  %v968 = vmax.f32 %v952, 0.0
  %v969 = vmax.f32 %v953, 0.0
  %v970 = vmax.f32 %v954, 0.0
  %v971 = vmax.f32 %v955, 0.0
  %v972 = vmax.f32 %v956, 0.0
  %v973 = vmax.f32 %v957, 0.0
  %v974 = vmax.f32 %v958, 0.0
  %v975 = vmax.f32 %v959, 0.0
  %v976 = vmax.f32 %v960, 0.0
  %v977 = vmax.f32 %v961, 0.0
  %v978 = vmax.f32 %v962, 0.0
  %v979 = vmax.f32 %v963, 0.0
  %v980 = vmax.f32 %v964, 0.0
  %v981 = vpack.c.bf16 %v965, %v965
  %v982 = vpack.c.bf16 %v966, %v966
  %v983 = vpack.c.bf16 %v967, %v967
  %v984 = vpack.c.bf16 %v968, %v968
  %v985 = vpack.c.bf16 %v969, %v969
  %v986 = vpack.c.bf16 %v970, %v970
  %v987 = vpack.c.bf16 %v971, %v971
  %v988 = vpack.c.bf16 %v972, %v972
  %v989 = vpack.c.bf16 %v973, %v973
  %v990 = vpack.c.bf16 %v974, %v974
  %v991 = vpack.c.bf16 %v975, %v975
  %v992 = vpack.c.bf16 %v976, %v976
  %v993 = vpack.c.bf16 %v977, %v977
  %v994 = vpack.c.bf16 %v978, %v978
  %v995 = vpack.c.bf16 %v979, %v979
  %v996 = vpack.c.bf16 %v980, %v980
  %997 = vst [vmem:[%s3] sm:$0xf] %v981
  %998 = vst [vmem:[%s3 + $0x4] sm:$0xf] %v982
  %999 = vst [vmem:[%s3 + $0x8] sm:$0xf] %v983
  %1000 = vst [vmem:[%s3 + $0xc] sm:$0xf] %v984
  %1001 = vst [vmem:[%s3 + $0x10] sm:$0xf] %v985
  %1002 = vst [vmem:[%s3 + $0x14] sm:$0xf] %v986
  %1003 = vst [vmem:[%s3 + $0x18] sm:$0xf] %v987
  %1004 = vst [vmem:[%s3 + $0x1c] sm:$0xf] %v988
  %1005 = vst [vmem:[%s3 + $0x20] sm:$0xf] %v989
  %1006 = vst [vmem:[%s3 + $0x24] sm:$0xf] %v990
  %1007 = vst [vmem:[%s3 + $0x28] sm:$0xf] %v991
  %1008 = vst [vmem:[%s3 + $0x2c] sm:$0xf] %v992
  %1009 = vst [vmem:[%s3 + $0x30] sm:$0xf] %v993
  %1010 = vst [vmem:[%s3 + $0x34] sm:$0xf] %v994
  %1011 = vst [vmem:[%s3 + $0x38] sm:$0xf] %v995
  %1012 = vst [vmem:[%s3 + $0x3c] sm:$0xf] %v996
  // Predicated region
  $region14: #{colorization_forward.15} parent=0 // pred_check
    _
  $region15: #{colorization_forward.15} parent=0 // pred_check_branch
    %1014 = sbr.rel (0) target = $region17
  $region16: #{colorization_forward.15} parent=0 // pred_region
    _
  $region17: #{colorization_forward.15} parent=0 // pred_fallthru
    _
  // Predicated region
  $region18: #{colorization_forward.15} parent=0 // pred_check
    _
  $region19: #{colorization_forward.15} parent=0 // pred_check_branch
    %1016 = sbr.rel (0) target = $region21
  $region20: #{colorization_forward.15} parent=0 // pred_region
    _
  $region21: #{colorization_forward.15} parent=0 // pred_fallthru
    _

// kernel: colorization_forward.16
$region0: #{colorization_forward.16}
  #allocation0 [shape = 'u32[]', space=smem, size = 0x4, offset = 0x4, fixed_abs, tag = 'smem constant byte address 0x4 - core index']
  #allocation1 [shape = 'u32[72,128]{1,0:T(1,128)}', space=vmem, size = 0x9000, scoped, tag = 'internal scratch']
  %s0 = inlined_call_operand.vmem [shape: bf16[128,640], index: 0, kind: input, shape index: {}]
  %s1 = inlined_call_operand.vmem [shape: bf16[640,128], index: 1, kind: input, shape index: {}]
  %s2 = inlined_call_operand.vmem [shape: f32[8,128], index: 2, kind: input, shape index: {}]
  %s3 = inlined_call_operand.vmem [shape: bf16[128,128], index: 3, kind: input, shape index: {}]
  %s4 = inlined_call_operand.vmem [shape: bf16[128,128], index: 4, kind: output, shape index: {}]
  %s5 = sld [smem:[#allocation0]]
  $region26: #{colorization_forward.16} parent=0
    _
  %s7 = ssub.s32 1, %s5
  %s8 = scalar_select 0, %s7, %s5
  // Predicated region
  $region2: #{colorization_forward.16} parent=0 // pred_check
    _
  $region3: #{colorization_forward.16} parent=0 // pred_check_branch
    %10 = sbr.rel (0) target = $region5
  $region4: #{colorization_forward.16} parent=0 // pred_region
    _
  $region5: #{colorization_forward.16} parent=0 // pred_fallthru
    _
  // Predicated region
  $region6: #{colorization_forward.16} parent=0 // pred_check
    _
  $region7: #{colorization_forward.16} parent=0 // pred_check_branch
    %12 = sbr.rel (0) target = $region9
  $region8: #{colorization_forward.16} parent=0 // pred_region
    _
  $region9: #{colorization_forward.16} parent=0 // pred_fallthru
    _
  // Predicated region
  $region10: #{colorization_forward.16} parent=0 // pred_check
    _
  $region11: #{colorization_forward.16} parent=0 // pred_check_branch
    %14 = sbr.rel (0) target = $region13
  $region12: #{colorization_forward.16} parent=0 // pred_region
    _
  $region13: #{colorization_forward.16} parent=0 // pred_fallthru
    _
  // Predicated region
  $region14: #{colorization_forward.16} parent=0 // pred_check
    _
  $region15: #{colorization_forward.16} parent=0 // pred_check_branch
    %16 = sbr.rel (0) target = $region17
  $region16: #{colorization_forward.16} parent=0 // pred_region
    _
  $region17: #{colorization_forward.16} parent=0 // pred_fallthru
    _
  %v17 = vld [vmem:[%s2] sm:$0xff]
  %v18 = vld [vmem:[%s0] sm:$0xff]
  %v19 = vld [vmem:[%s0 + $0x8] sm:$0xff]
  %v20 = vld [vmem:[%s0 + $0x10] sm:$0xf]
  %v21 = vld [vmem:[%s0 + $0x14] sm:$0xff]
  %v22 = vld [vmem:[%s0 + $0x1c] sm:$0xff]
  %v23 = vld [vmem:[%s0 + $0x24] sm:$0xf]
  %v24 = vld [vmem:[%s0 + $0x28] sm:$0xff]
  %v25 = vld [vmem:[%s0 + $0x30] sm:$0xff]
  %v26 = vld [vmem:[%s0 + $0x38] sm:$0xf]
  %v27 = vld [vmem:[%s0 + $0x3c] sm:$0xff]
  %v28 = vld [vmem:[%s0 + $0x44] sm:$0xff]
  %v29 = vld [vmem:[%s0 + $0x4c] sm:$0xf]
  %v30 = vld [vmem:[%s0 + $0x50] sm:$0xff]
  %v31 = vld [vmem:[%s0 + $0x58] sm:$0xff]
  %v32 = vld [vmem:[%s0 + $0x60] sm:$0xf]
  %v33 = vld [vmem:[%s0 + $0x64] sm:$0xff]
  %v34 = vld [vmem:[%s0 + $0x6c] sm:$0xff]
  %v35 = vld [vmem:[%s0 + $0x74] sm:$0xf]
  %v36 = vld [vmem:[%s0 + $0x78] sm:$0xff]
  %v37 = vld [vmem:[%s0 + $0x80] sm:$0xff]
  %v38 = vld [vmem:[%s0 + $0x88] sm:$0xf]
  %v39 = vld [vmem:[%s0 + $0x8c] sm:$0xff]
  %v40 = vld [vmem:[%s0 + $0x94] sm:$0xff]
  %v41 = vld [vmem:[%s0 + $0x9c] sm:$0xf]
  %v42 = vld [vmem:[%s0 + $0xa0] sm:$0xff]
  %v43 = vld [vmem:[%s0 + $0xa8] sm:$0xff]
  %v44 = vld [vmem:[%s0 + $0xb0] sm:$0xf]
  %v45 = vld [vmem:[%s0 + $0xb4] sm:$0xff]
  %v46 = vld [vmem:[%s0 + $0xbc] sm:$0xff]
  %v47 = vld [vmem:[%s0 + $0xc4] sm:$0xf]
  %v48 = vld [vmem:[%s0 + $0xc8] sm:$0xff]
  %v49 = vld [vmem:[%s0 + $0xd0] sm:$0xff]
  %v50 = vld [vmem:[%s0 + $0xd8] sm:$0xf]
  %v51 = vld [vmem:[%s0 + $0xdc] sm:$0xff]
  %v52 = vld [vmem:[%s0 + $0xe4] sm:$0xff]
  %v53 = vld [vmem:[%s0 + $0xec] sm:$0xf]
  %v54 = vld [vmem:[%s0 + $0xf0] sm:$0xff]
  %v55 = vld [vmem:[%s0 + $0xf8] sm:$0xff]
  %v56 = vld [vmem:[%s0 + $0x100] sm:$0xf]
  %v57 = vld [vmem:[%s0 + $0x104] sm:$0xff]
  %v58 = vld [vmem:[%s0 + $0x10c] sm:$0xff]
  %v59 = vld [vmem:[%s0 + $0x114] sm:$0xf]
  %v60 = vld [vmem:[%s0 + $0x118] sm:$0xff]
  %v61 = vld [vmem:[%s0 + $0x120] sm:$0xff]
  %v62 = vld [vmem:[%s0 + $0x128] sm:$0xf]
  %v63 = vld [vmem:[%s0 + $0x12c] sm:$0xff]
  %v64 = vld [vmem:[%s0 + $0x134] sm:$0xff]
  %v65 = vld [vmem:[%s0 + $0x13c] sm:$0xf]
  %v66 = vld [vmem:[%s1] sm:$0xf]
  %v67 = vld [vmem:[%s1 + $0x4] sm:$0xf]
  %v68 = vld [vmem:[%s1 + $0x8] sm:$0xf]
  %v69 = vld [vmem:[%s1 + $0xc] sm:$0xf]
  %v70 = vld [vmem:[%s1 + $0x10] sm:$0xf]
  %v71 = vld [vmem:[%s1 + $0x14] sm:$0xf]
  %v72 = vld [vmem:[%s1 + $0x18] sm:$0xf]
  %v73 = vld [vmem:[%s1 + $0x1c] sm:$0xf]
  %v74 = vld [vmem:[%s1 + $0x20] sm:$0xf]
  %v75 = vld [vmem:[%s1 + $0x24] sm:$0xf]
  %v76 = vld [vmem:[%s1 + $0x28] sm:$0xf]
  %v77 = vld [vmem:[%s1 + $0x2c] sm:$0xf]
  %v78 = vld [vmem:[%s1 + $0x30] sm:$0xf]
  %v79 = vld [vmem:[%s1 + $0x34] sm:$0xf]
  %v80 = vld [vmem:[%s1 + $0x38] sm:$0xf]
  %v81 = vld [vmem:[%s1 + $0x3c] sm:$0xf]
  %v82 = vld [vmem:[%s1 + $0x40] sm:$0xf]
  %v83 = vld [vmem:[%s1 + $0x44] sm:$0xf]
  %v84 = vld [vmem:[%s1 + $0x48] sm:$0xf]
  %v85 = vld [vmem:[%s1 + $0x4c] sm:$0xf]
  %v86 = vld [vmem:[%s1 + $0x50] sm:$0xf]
  %v87 = vld [vmem:[%s1 + $0x54] sm:$0xf]
  %v88 = vld [vmem:[%s1 + $0x58] sm:$0xf]
  %v89 = vld [vmem:[%s1 + $0x5c] sm:$0xf]
  %v90 = vld [vmem:[%s1 + $0x60] sm:$0xf]
  %v91 = vld [vmem:[%s1 + $0x64] sm:$0xf]
  %v92 = vld [vmem:[%s1 + $0x68] sm:$0xf]
  %v93 = vld [vmem:[%s1 + $0x6c] sm:$0xf]
  %v94 = vld [vmem:[%s1 + $0x70] sm:$0xf]
  %v95 = vld [vmem:[%s1 + $0x74] sm:$0xf]
  %v96 = vld [vmem:[%s1 + $0x78] sm:$0xf]
  %v97 = vld [vmem:[%s1 + $0x7c] sm:$0xf]
  %v98 = vld [vmem:[%s1 + $0x80] sm:$0xf]
  %v99 = vld [vmem:[%s1 + $0x84] sm:$0xf]
  %v100 = vld [vmem:[%s1 + $0x88] sm:$0xf]
  %v101 = vld [vmem:[%s1 + $0x8c] sm:$0xf]
  %v102 = vld [vmem:[%s1 + $0x90] sm:$0xf]
  %v103 = vld [vmem:[%s1 + $0x94] sm:$0xf]
  %v104 = vld [vmem:[%s1 + $0x98] sm:$0xf]
  %v105 = vld [vmem:[%s1 + $0x9c] sm:$0xf]
  %v106 = vld [vmem:[%s1 + $0xa0] sm:$0xf]
  %v107 = vld [vmem:[%s1 + $0xa4] sm:$0xf]
  %v108 = vld [vmem:[%s1 + $0xa8] sm:$0xf]
  %v109 = vld [vmem:[%s1 + $0xac] sm:$0xf]
  %v110 = vld [vmem:[%s1 + $0xb0] sm:$0xf]
  %v111 = vld [vmem:[%s1 + $0xb4] sm:$0xf]
  %v112 = vld [vmem:[%s1 + $0xb8] sm:$0xf]
  %v113 = vld [vmem:[%s1 + $0xbc] sm:$0xf]
  %v114 = vld [vmem:[%s1 + $0xc0] sm:$0xf]
  %v115 = vld [vmem:[%s1 + $0xc4] sm:$0xf]
  %v116 = vld [vmem:[%s1 + $0xc8] sm:$0xf]
  %v117 = vld [vmem:[%s1 + $0xcc] sm:$0xf]
  %v118 = vld [vmem:[%s1 + $0xd0] sm:$0xf]
  %v119 = vld [vmem:[%s1 + $0xd4] sm:$0xf]
  %v120 = vld [vmem:[%s1 + $0xd8] sm:$0xf]
  %v121 = vld [vmem:[%s1 + $0xdc] sm:$0xf]
  %v122 = vld [vmem:[%s1 + $0xe0] sm:$0xf]
  %v123 = vld [vmem:[%s1 + $0xe4] sm:$0xf]
  %v124 = vld [vmem:[%s1 + $0xe8] sm:$0xf]
  %v125 = vld [vmem:[%s1 + $0xec] sm:$0xf]
  %v126 = vld [vmem:[%s1 + $0xf0] sm:$0xf]
  %v127 = vld [vmem:[%s1 + $0xf4] sm:$0xf]
  %v128 = vld [vmem:[%s1 + $0xf8] sm:$0xf]
  %v129 = vld [vmem:[%s1 + $0xfc] sm:$0xf]
  %v130 = vld [vmem:[%s1 + $0x100] sm:$0xf]
  %v131 = vld [vmem:[%s1 + $0x104] sm:$0xf]
  %v132 = vld [vmem:[%s1 + $0x108] sm:$0xf]
  %v133 = vld [vmem:[%s1 + $0x10c] sm:$0xf]
  %v134 = vld [vmem:[%s1 + $0x110] sm:$0xf]
  %v135 = vld [vmem:[%s1 + $0x114] sm:$0xf]
  %v136 = vld [vmem:[%s1 + $0x118] sm:$0xf]
  %v137 = vld [vmem:[%s1 + $0x11c] sm:$0xf]
  %v138 = vld [vmem:[%s1 + $0x120] sm:$0xf]
  %v139 = vld [vmem:[%s1 + $0x124] sm:$0xf]
  %v140 = vld [vmem:[%s1 + $0x128] sm:$0xf]
  %v141 = vld [vmem:[%s1 + $0x12c] sm:$0xf]
  %v142 = vld [vmem:[%s1 + $0x130] sm:$0xf]
  %v143 = vld [vmem:[%s1 + $0x134] sm:$0xf]
  %v144 = vld [vmem:[%s1 + $0x138] sm:$0xf]
  %v145 = vld [vmem:[%s1 + $0x13c] sm:$0xf]
  %v146 = vperm.slane %v17, 0
  %v195 = vunpack.c.l.b16 %v18
  %v196 = vunpack.c.h.b16 %v18
  %v197 = vunpack.c.l.b16 %v19
  %v198 = vunpack.c.h.b16 %v19
  %v199 = vunpack.c.l.b16 %v20
  %v200 = vunpack.c.l.b16 %v21
  %v201 = vunpack.c.h.b16 %v21
  %v202 = vunpack.c.l.b16 %v22
  %v203 = vunpack.c.h.b16 %v22
  %v204 = vunpack.c.l.b16 %v23
  %v205 = vunpack.c.l.b16 %v24
  %v206 = vunpack.c.h.b16 %v24
  %v207 = vunpack.c.l.b16 %v25
  %v208 = vunpack.c.h.b16 %v25
  %v209 = vunpack.c.l.b16 %v26
  %v210 = vunpack.c.l.b16 %v27
  %v211 = vunpack.c.h.b16 %v27
  %v212 = vunpack.c.l.b16 %v28
  %v213 = vunpack.c.h.b16 %v28
  %v214 = vunpack.c.l.b16 %v29
  %v215 = vunpack.c.l.b16 %v30
  %v216 = vunpack.c.h.b16 %v30
  %v217 = vunpack.c.l.b16 %v31
  %v218 = vunpack.c.h.b16 %v31
  %v219 = vunpack.c.l.b16 %v32
  %v220 = vunpack.c.l.b16 %v33
  %v221 = vunpack.c.h.b16 %v33
  %v222 = vunpack.c.l.b16 %v34
  %v223 = vunpack.c.h.b16 %v34
  %v224 = vunpack.c.l.b16 %v35
  %v225 = vunpack.c.l.b16 %v36
  %v226 = vunpack.c.h.b16 %v36
  %v227 = vunpack.c.l.b16 %v37
  %v228 = vunpack.c.h.b16 %v37
  %v229 = vunpack.c.l.b16 %v38
  %v230 = vunpack.c.l.b16 %v39
  %v231 = vunpack.c.h.b16 %v39
  %v232 = vunpack.c.l.b16 %v40
  %v233 = vunpack.c.h.b16 %v40
  %v234 = vunpack.c.l.b16 %v41
  %v235 = vunpack.c.l.b16 %v42
  %v236 = vunpack.c.h.b16 %v42
  %v237 = vunpack.c.l.b16 %v43
  %v238 = vunpack.c.h.b16 %v43
  %v239 = vunpack.c.l.b16 %v44
  %v240 = vunpack.c.l.b16 %v45
  %v241 = vunpack.c.h.b16 %v45
  %v242 = vunpack.c.l.b16 %v46
  %v243 = vunpack.c.h.b16 %v46
  %v244 = vunpack.c.l.b16 %v47
  %v245 = vunpack.c.l.b16 %v48
  %v246 = vunpack.c.h.b16 %v48
  %v247 = vunpack.c.l.b16 %v49
  %v248 = vunpack.c.h.b16 %v49
  %v249 = vunpack.c.l.b16 %v50
  %v250 = vunpack.c.l.b16 %v51
  %v251 = vunpack.c.h.b16 %v51
  %v252 = vunpack.c.l.b16 %v52
  %v253 = vunpack.c.h.b16 %v52
  %v254 = vunpack.c.l.b16 %v53
  %v255 = vunpack.c.l.b16 %v54
  %v256 = vunpack.c.h.b16 %v54
  %v257 = vunpack.c.l.b16 %v55
  %v258 = vunpack.c.h.b16 %v55
  %v259 = vunpack.c.l.b16 %v56
  %v260 = vunpack.c.l.b16 %v57
  %v261 = vunpack.c.h.b16 %v57
  %v262 = vunpack.c.l.b16 %v58
  %v263 = vunpack.c.h.b16 %v58
  %v264 = vunpack.c.l.b16 %v59
  %v265 = vunpack.c.l.b16 %v60
  %v266 = vunpack.c.h.b16 %v60
  %v267 = vunpack.c.l.b16 %v61
  %v268 = vunpack.c.h.b16 %v61
  %v269 = vunpack.c.l.b16 %v62
  %v270 = vunpack.c.l.b16 %v63
  %v271 = vunpack.c.h.b16 %v63
  %v272 = vunpack.c.l.b16 %v64
  %v273 = vunpack.c.h.b16 %v64
  %v274 = vunpack.c.l.b16 %v65
  %v275 = vpack.c.b16 %v200, %v195
  %v276 = vpack.c.b16 %v201, %v196
  %v277 = vpack.c.b16 %v202, %v197
  %v278 = vpack.c.b16 %v203, %v198
  %v279 = vpack.c.b16 %v204, %v199
  %v280 = vpack.c.b16 %v210, %v205
  %v281 = vpack.c.b16 %v211, %v206
  %v282 = vpack.c.b16 %v212, %v207
  %v283 = vpack.c.b16 %v213, %v208
  %v284 = vpack.c.b16 %v214, %v209
  %v285 = vpack.c.b16 %v220, %v215
  %v286 = vpack.c.b16 %v221, %v216
  %v287 = vpack.c.b16 %v222, %v217
  %v288 = vpack.c.b16 %v223, %v218
  %v289 = vpack.c.b16 %v224, %v219
  %v290 = vpack.c.b16 %v230, %v225
  %v291 = vpack.c.b16 %v231, %v226
  %v292 = vpack.c.b16 %v232, %v227
  %v293 = vpack.c.b16 %v233, %v228
  %v294 = vpack.c.b16 %v234, %v229
  %v295 = vpack.c.b16 %v240, %v235
  %v296 = vpack.c.b16 %v241, %v236
  %v297 = vpack.c.b16 %v242, %v237
  %v298 = vpack.c.b16 %v243, %v238
  %v299 = vpack.c.b16 %v244, %v239
  %v300 = vpack.c.b16 %v250, %v245
  %v301 = vpack.c.b16 %v251, %v246
  %v302 = vpack.c.b16 %v252, %v247
  %v303 = vpack.c.b16 %v253, %v248
  %v304 = vpack.c.b16 %v254, %v249
  %v305 = vpack.c.b16 %v260, %v255
  %v306 = vpack.c.b16 %v261, %v256
  %v307 = vpack.c.b16 %v262, %v257
  %v308 = vpack.c.b16 %v263, %v258
  %v309 = vpack.c.b16 %v264, %v259
  %v310 = vpack.c.b16 %v270, %v265
  %v311 = vpack.c.b16 %v271, %v266
  %v312 = vpack.c.b16 %v272, %v267
  %v313 = vpack.c.b16 %v273, %v268
  %v314 = vpack.c.b16 %v274, %v269
  %v435 = vunpack.c.l.b16 %v66
  %v436 = vunpack.c.l.b16 %v67
  %v437 = vunpack.c.l.b16 %v68
  %v438 = vunpack.c.l.b16 %v69
  %v439 = vunpack.c.l.b16 %v70
  %v440 = vunpack.c.l.b16 %v71
  %v441 = vunpack.c.l.b16 %v72
  %v442 = vunpack.c.l.b16 %v73
  %v443 = vunpack.c.l.b16 %v74
  %v444 = vunpack.c.l.b16 %v75
  %v445 = vunpack.c.l.b16 %v76
  %v446 = vunpack.c.l.b16 %v77
  %v447 = vunpack.c.l.b16 %v78
  %v448 = vunpack.c.l.b16 %v79
  %v449 = vunpack.c.l.b16 %v80
  %v450 = vunpack.c.l.b16 %v81
  %v451 = vunpack.c.l.b16 %v82
  %v452 = vunpack.c.l.b16 %v83
  %v453 = vunpack.c.l.b16 %v84
  %v454 = vunpack.c.l.b16 %v85
  %v455 = vunpack.c.l.b16 %v86
  %v456 = vunpack.c.l.b16 %v87
  %v457 = vunpack.c.l.b16 %v88
  %v458 = vunpack.c.l.b16 %v89
  %v459 = vunpack.c.l.b16 %v90
  %v460 = vunpack.c.l.b16 %v91
  %v461 = vunpack.c.l.b16 %v92
  %v462 = vunpack.c.l.b16 %v93
  %v463 = vunpack.c.l.b16 %v94
  %v464 = vunpack.c.l.b16 %v95
  %v465 = vunpack.c.l.b16 %v96
  %v466 = vunpack.c.l.b16 %v97
  %v467 = vunpack.c.l.b16 %v98
  %v468 = vunpack.c.l.b16 %v99
  %v469 = vunpack.c.l.b16 %v100
  %v470 = vunpack.c.l.b16 %v101
  %v471 = vunpack.c.l.b16 %v102
  %v472 = vunpack.c.l.b16 %v103
  %v473 = vunpack.c.l.b16 %v104
  %v474 = vunpack.c.l.b16 %v105
  %v475 = vunpack.c.l.b16 %v106
  %v476 = vunpack.c.l.b16 %v107
  %v477 = vunpack.c.l.b16 %v108
  %v478 = vunpack.c.l.b16 %v109
  %v479 = vunpack.c.l.b16 %v110
  %v480 = vunpack.c.l.b16 %v111
  %v481 = vunpack.c.l.b16 %v112
  %v482 = vunpack.c.l.b16 %v113
  %v483 = vunpack.c.l.b16 %v114
  %v484 = vunpack.c.l.b16 %v115
  %v485 = vunpack.c.l.b16 %v116
  %v486 = vunpack.c.l.b16 %v117
  %v487 = vunpack.c.l.b16 %v118
  %v488 = vunpack.c.l.b16 %v119
  %v489 = vunpack.c.l.b16 %v120
  %v490 = vunpack.c.l.b16 %v121
  %v491 = vunpack.c.l.b16 %v122
  %v492 = vunpack.c.l.b16 %v123
  %v493 = vunpack.c.l.b16 %v124
  %v494 = vunpack.c.l.b16 %v125
  %v495 = vunpack.c.l.b16 %v126
  %v496 = vunpack.c.l.b16 %v127
  %v497 = vunpack.c.l.b16 %v128
  %v498 = vunpack.c.l.b16 %v129
  %v499 = vunpack.c.l.b16 %v130
  %v500 = vunpack.c.l.b16 %v131
  %v501 = vunpack.c.l.b16 %v132
  %v502 = vunpack.c.l.b16 %v133
  %v503 = vunpack.c.l.b16 %v134
  %v504 = vunpack.c.l.b16 %v135
  %v505 = vunpack.c.l.b16 %v136
  %v506 = vunpack.c.l.b16 %v137
  %v507 = vunpack.c.l.b16 %v138
  %v508 = vunpack.c.l.b16 %v139
  %v509 = vunpack.c.l.b16 %v140
  %v510 = vunpack.c.l.b16 %v141
  %v511 = vunpack.c.l.b16 %v142
  %v512 = vunpack.c.l.b16 %v143
  %v513 = vunpack.c.l.b16 %v144
  %v514 = vunpack.c.l.b16 %v145
  %v515 = vpack.c.b16 %v436, %v435
  %v516 = vpack.c.b16 %v438, %v437
  %v517 = vpack.c.b16 %v440, %v439
  %v518 = vpack.c.b16 %v442, %v441
  %v519 = vpack.c.b16 %v444, %v443
  %v520 = vpack.c.b16 %v446, %v445
  %v521 = vpack.c.b16 %v448, %v447
  %v522 = vpack.c.b16 %v450, %v449
  %v523 = vpack.c.b16 %v452, %v451
  %v524 = vpack.c.b16 %v454, %v453
  %v525 = vpack.c.b16 %v456, %v455
  %v526 = vpack.c.b16 %v458, %v457
  %v527 = vpack.c.b16 %v460, %v459
  %v528 = vpack.c.b16 %v462, %v461
  %v529 = vpack.c.b16 %v464, %v463
  %v530 = vpack.c.b16 %v466, %v465
  %v531 = vpack.c.b16 %v468, %v467
  %v532 = vpack.c.b16 %v470, %v469
  %v533 = vpack.c.b16 %v472, %v471
  %v534 = vpack.c.b16 %v474, %v473
  %v535 = vpack.c.b16 %v476, %v475
  %v536 = vpack.c.b16 %v478, %v477
  %v537 = vpack.c.b16 %v480, %v479
  %v538 = vpack.c.b16 %v482, %v481
  %v539 = vpack.c.b16 %v484, %v483
  %v540 = vpack.c.b16 %v486, %v485
  %v541 = vpack.c.b16 %v488, %v487
  %v542 = vpack.c.b16 %v490, %v489
  %v543 = vpack.c.b16 %v492, %v491
  %v544 = vpack.c.b16 %v494, %v493
  %v545 = vpack.c.b16 %v496, %v495
  %v546 = vpack.c.b16 %v498, %v497
  %v547 = vpack.c.b16 %v500, %v499
  %v548 = vpack.c.b16 %v502, %v501
  %v549 = vpack.c.b16 %v504, %v503
  %v550 = vpack.c.b16 %v506, %v505
  %v551 = vpack.c.b16 %v508, %v507
  %v552 = vpack.c.b16 %v510, %v509
  %v553 = vpack.c.b16 %v512, %v511
  %v554 = vpack.c.b16 %v514, %v513
  %595 = vmatpush.bf16.msra.mxu0 %v522
  %596 = vmatpush.bf16.msra.mxu0 %v521
  %597 = vmatpush.bf16.msra.mxu0 %v520
  %598 = vmatpush.bf16.msra.mxu0 %v519
  %599 = vmatpush.bf16.msra.mxu0 %v518
  %600 = vmatpush.bf16.msra.mxu0 %v517
  %601 = vmatpush.bf16.msra.mxu0 %v516
  %602 = vmatpush.bf16.msra.mxu0 %v515
  %603 = vmatmul.bf16.gmra.mxu0 %v275
  %v604 = vpop.f32.mrf.mxu0
  %v605 = vadd.f32 %v146, %v604
  %v606 = vpop.f32.mrf.mxu0
  %v607 = vadd.f32 %v146, %v606
  %608 = vmatmul.bf16.gmra.mxu0 %v280
  %v609 = vpop.f32.mrf.mxu0
  %v610 = vadd.f32 %v146, %v609
  %v611 = vpop.f32.mrf.mxu0
  %v612 = vadd.f32 %v146, %v611
  %613 = vmatmul.bf16.gmra.mxu0 %v285
  %v614 = vpop.f32.mrf.mxu0
  %v615 = vadd.f32 %v146, %v614
  %v616 = vpop.f32.mrf.mxu0
  %v617 = vadd.f32 %v146, %v616
  %618 = vmatmul.bf16.gmra.mxu0 %v290
  %v619 = vpop.f32.mrf.mxu0
  %v620 = vadd.f32 %v146, %v619
  %v621 = vpop.f32.mrf.mxu0
  %v622 = vadd.f32 %v146, %v621
  %623 = vmatmul.bf16.gmra.mxu0 %v295
  %v624 = vpop.f32.mrf.mxu0
  %v625 = vadd.f32 %v146, %v624
  %v626 = vpop.f32.mrf.mxu0
  %v627 = vadd.f32 %v146, %v626
  %628 = vmatmul.bf16.gmra.mxu0 %v300
  %v629 = vpop.f32.mrf.mxu0
  %v630 = vadd.f32 %v146, %v629
  %v631 = vpop.f32.mrf.mxu0
  %v632 = vadd.f32 %v146, %v631
  %633 = vmatmul.bf16.gmra.mxu0 %v305
  %v634 = vpop.f32.mrf.mxu0
  %v635 = vadd.f32 %v146, %v634
  %v636 = vpop.f32.mrf.mxu0
  %v637 = vadd.f32 %v146, %v636
  %638 = vmatmul.bf16.gmra.mxu0 %v310
  %v639 = vpop.f32.mrf.mxu0
  %v640 = vadd.f32 %v146, %v639
  %v641 = vpop.f32.mrf.mxu0
  %v642 = vadd.f32 %v146, %v641
  %643 = vdwg.mxu0
  %644 = vmatpush.bf16.msra.mxu0 %v530
  %645 = vmatpush.bf16.msra.mxu0 %v529
  %646 = vmatpush.bf16.msra.mxu0 %v528
  %647 = vmatpush.bf16.msra.mxu0 %v527
  %648 = vmatpush.bf16.msra.mxu0 %v526
  %649 = vmatpush.bf16.msra.mxu0 %v525
  %650 = vmatpush.bf16.msra.mxu0 %v524
  %651 = vmatpush.bf16.msra.mxu0 %v523
  %652 = vmatmul.bf16.gmra.mxu0 %v276
  %v653 = vpop.f32.mrf.mxu0
  %v654 = vadd.f32 %v605, %v653
  %v655 = vpop.f32.mrf.mxu0
  %v656 = vadd.f32 %v607, %v655
  %657 = vmatmul.bf16.gmra.mxu0 %v281
  %v658 = vpop.f32.mrf.mxu0
  %v659 = vadd.f32 %v610, %v658
  %v660 = vpop.f32.mrf.mxu0
  %v661 = vadd.f32 %v612, %v660
  %662 = vmatmul.bf16.gmra.mxu0 %v286
  %v663 = vpop.f32.mrf.mxu0
  %v664 = vadd.f32 %v615, %v663
  %v665 = vpop.f32.mrf.mxu0
  %v666 = vadd.f32 %v617, %v665
  %667 = vmatmul.bf16.gmra.mxu0 %v291
  %v668 = vpop.f32.mrf.mxu0
  %v669 = vadd.f32 %v620, %v668
  %v670 = vpop.f32.mrf.mxu0
  %v671 = vadd.f32 %v622, %v670
  %672 = vmatmul.bf16.gmra.mxu0 %v296
  %v673 = vpop.f32.mrf.mxu0
  %v674 = vadd.f32 %v625, %v673
  %v675 = vpop.f32.mrf.mxu0
  %v676 = vadd.f32 %v627, %v675
  %677 = vmatmul.bf16.gmra.mxu0 %v301
  %v678 = vpop.f32.mrf.mxu0
  %v679 = vadd.f32 %v630, %v678
  %v680 = vpop.f32.mrf.mxu0
  %v681 = vadd.f32 %v632, %v680
  %682 = vmatmul.bf16.gmra.mxu0 %v306
  %v683 = vpop.f32.mrf.mxu0
  %v684 = vadd.f32 %v635, %v683
  %v685 = vpop.f32.mrf.mxu0
  %v686 = vadd.f32 %v637, %v685
  %687 = vmatmul.bf16.gmra.mxu0 %v311
  %v688 = vpop.f32.mrf.mxu0
  %v689 = vadd.f32 %v640, %v688
  %v690 = vpop.f32.mrf.mxu0
  %v691 = vadd.f32 %v642, %v690
  %692 = vdwg.mxu0
  %693 = vmatpush.bf16.msra.mxu0 %v538
  %694 = vmatpush.bf16.msra.mxu0 %v537
  %695 = vmatpush.bf16.msra.mxu0 %v536
  %696 = vmatpush.bf16.msra.mxu0 %v535
  %697 = vmatpush.bf16.msra.mxu0 %v534
  %698 = vmatpush.bf16.msra.mxu0 %v533
  %699 = vmatpush.bf16.msra.mxu0 %v532
  %700 = vmatpush.bf16.msra.mxu0 %v531
  %701 = vmatmul.bf16.gmra.mxu0 %v277
  %v702 = vpop.f32.mrf.mxu0
  %v703 = vadd.f32 %v654, %v702
  %v704 = vpop.f32.mrf.mxu0
  %v705 = vadd.f32 %v656, %v704
  %706 = vmatmul.bf16.gmra.mxu0 %v282
  %v707 = vpop.f32.mrf.mxu0
  %v708 = vadd.f32 %v659, %v707
  %v709 = vpop.f32.mrf.mxu0
  %v710 = vadd.f32 %v661, %v709
  %711 = vmatmul.bf16.gmra.mxu0 %v287
  %v712 = vpop.f32.mrf.mxu0
  %v713 = vadd.f32 %v664, %v712
  %v714 = vpop.f32.mrf.mxu0
  %v715 = vadd.f32 %v666, %v714
  %716 = vmatmul.bf16.gmra.mxu0 %v292
  %v717 = vpop.f32.mrf.mxu0
  %v718 = vadd.f32 %v669, %v717
  %v719 = vpop.f32.mrf.mxu0
  %v720 = vadd.f32 %v671, %v719
  %721 = vmatmul.bf16.gmra.mxu0 %v297
  %v722 = vpop.f32.mrf.mxu0
  %v723 = vadd.f32 %v674, %v722
  %v724 = vpop.f32.mrf.mxu0
  %v725 = vadd.f32 %v676, %v724
  %726 = vmatmul.bf16.gmra.mxu0 %v302
  %v727 = vpop.f32.mrf.mxu0
  %v728 = vadd.f32 %v679, %v727
  %v729 = vpop.f32.mrf.mxu0
  %v730 = vadd.f32 %v681, %v729
  %731 = vmatmul.bf16.gmra.mxu0 %v307
  %v732 = vpop.f32.mrf.mxu0
  %v733 = vadd.f32 %v684, %v732
  %v734 = vpop.f32.mrf.mxu0
  %v735 = vadd.f32 %v686, %v734
  %736 = vmatmul.bf16.gmra.mxu0 %v312
  %v737 = vpop.f32.mrf.mxu0
  %v738 = vadd.f32 %v689, %v737
  %v739 = vpop.f32.mrf.mxu0
  %v740 = vadd.f32 %v691, %v739
  %741 = vdwg.mxu0
  %742 = vmatpush.bf16.msra.mxu0 %v546
  %743 = vmatpush.bf16.msra.mxu0 %v545
  %744 = vmatpush.bf16.msra.mxu0 %v544
  %745 = vmatpush.bf16.msra.mxu0 %v543
  %746 = vmatpush.bf16.msra.mxu0 %v542
  %747 = vmatpush.bf16.msra.mxu0 %v541
  %748 = vmatpush.bf16.msra.mxu0 %v540
  %749 = vmatpush.bf16.msra.mxu0 %v539
  %750 = vmatmul.bf16.gmra.mxu0 %v278
  %v751 = vpop.f32.mrf.mxu0
  %v752 = vadd.f32 %v703, %v751
  %v753 = vpop.f32.mrf.mxu0
  %v754 = vadd.f32 %v705, %v753
  %755 = vmatmul.bf16.gmra.mxu0 %v283
  %v756 = vpop.f32.mrf.mxu0
  %v757 = vadd.f32 %v708, %v756
  %v758 = vpop.f32.mrf.mxu0
  %v759 = vadd.f32 %v710, %v758
  %760 = vmatmul.bf16.gmra.mxu0 %v288
  %v761 = vpop.f32.mrf.mxu0
  %v762 = vadd.f32 %v713, %v761
  %v763 = vpop.f32.mrf.mxu0
  %v764 = vadd.f32 %v715, %v763
  %765 = vmatmul.bf16.gmra.mxu0 %v293
  %v766 = vpop.f32.mrf.mxu0
  %v767 = vadd.f32 %v718, %v766
  %v768 = vpop.f32.mrf.mxu0
  %v769 = vadd.f32 %v720, %v768
  %770 = vmatmul.bf16.gmra.mxu0 %v298
  %v771 = vpop.f32.mrf.mxu0
  %v772 = vadd.f32 %v723, %v771
  %v773 = vpop.f32.mrf.mxu0
  %v774 = vadd.f32 %v725, %v773
  %775 = vmatmul.bf16.gmra.mxu0 %v303
  %v776 = vpop.f32.mrf.mxu0
  %v777 = vadd.f32 %v728, %v776
  %v778 = vpop.f32.mrf.mxu0
  %v779 = vadd.f32 %v730, %v778
  %780 = vmatmul.bf16.gmra.mxu0 %v308
  %v781 = vpop.f32.mrf.mxu0
  %v782 = vadd.f32 %v733, %v781
  %v783 = vpop.f32.mrf.mxu0
  %v784 = vadd.f32 %v735, %v783
  %785 = vmatmul.bf16.gmra.mxu0 %v313
  %v786 = vpop.f32.mrf.mxu0
  %v787 = vadd.f32 %v738, %v786
  %v788 = vpop.f32.mrf.mxu0
  %v789 = vadd.f32 %v740, %v788
  %790 = vdwg.mxu0
  %791 = vmatpush.bf16.msra.mxu0 %v554
  %792 = vmatpush.bf16.msra.mxu0 %v553
  %793 = vmatpush.bf16.msra.mxu0 %v552
  %794 = vmatpush.bf16.msra.mxu0 %v551
  %795 = vmatpush.bf16.msra.mxu0 %v550
  %796 = vmatpush.bf16.msra.mxu0 %v549
  %797 = vmatpush.bf16.msra.mxu0 %v548
  %798 = vmatpush.bf16.msra.mxu0 %v547
  %799 = vmatmul.bf16.gmra.mxu0 %v279
  %v800 = vpop.f32.mrf.mxu0
  %v801 = vadd.f32 %v752, %v800
  %v802 = vpop.f32.mrf.mxu0
  %v803 = vadd.f32 %v754, %v802
  %804 = vmatmul.bf16.gmra.mxu0 %v284
  %v805 = vpop.f32.mrf.mxu0
  %v806 = vadd.f32 %v757, %v805
  %v807 = vpop.f32.mrf.mxu0
  %v808 = vadd.f32 %v759, %v807
  %809 = vmatmul.bf16.gmra.mxu0 %v289
  %v810 = vpop.f32.mrf.mxu0
  %v811 = vadd.f32 %v762, %v810
  %v812 = vpop.f32.mrf.mxu0
  %v813 = vadd.f32 %v764, %v812
  %814 = vmatmul.bf16.gmra.mxu0 %v294
  %v815 = vpop.f32.mrf.mxu0
  %v816 = vadd.f32 %v767, %v815
  %v817 = vpop.f32.mrf.mxu0
  %v818 = vadd.f32 %v769, %v817
  %819 = vmatmul.bf16.gmra.mxu0 %v299
  %v820 = vpop.f32.mrf.mxu0
  %v821 = vadd.f32 %v772, %v820
  %v822 = vpop.f32.mrf.mxu0
  %v823 = vadd.f32 %v774, %v822
  %824 = vmatmul.bf16.gmra.mxu0 %v304
  %v825 = vpop.f32.mrf.mxu0
  %v826 = vadd.f32 %v777, %v825
  %v827 = vpop.f32.mrf.mxu0
  %v828 = vadd.f32 %v779, %v827
  %829 = vmatmul.bf16.gmra.mxu0 %v309
  %v830 = vpop.f32.mrf.mxu0
  %v831 = vadd.f32 %v782, %v830
  %v832 = vpop.f32.mrf.mxu0
  %v833 = vadd.f32 %v784, %v832
  %834 = vmatmul.bf16.gmra.mxu0 %v314
  %v835 = vpop.f32.mrf.mxu0
  %v836 = vadd.f32 %v787, %v835
  %v837 = vpop.f32.mrf.mxu0
  %v838 = vadd.f32 %v789, %v837
  %839 = vdwg.mxu0
  %v840 = vadd.f32 %v801, %v803
  %v841 = vadd.f32 %v840, %v806
  %v842 = vadd.f32 %v841, %v808
  %v843 = vadd.f32 %v842, %v811
  %v844 = vadd.f32 %v843, %v813
  %v845 = vadd.f32 %v844, %v816
  %v846 = vadd.f32 %v845, %v818
  %v847 = vadd.f32 %v846, %v821
  %v848 = vadd.f32 %v847, %v823
  %v849 = vadd.f32 %v848, %v826
  %v850 = vadd.f32 %v849, %v828
  %v851 = vadd.f32 %v850, %v831
  %v852 = vadd.f32 %v851, %v833
  %v853 = vadd.f32 %v852, %v836
  %v854 = vadd.f32 %v853, %v838
  %v855 = vrot.slane %v854, 4
  %v856 = vadd.f32 %v854, %v855
  %v857 = vrot.slane %v856, 2
  %v858 = vadd.f32 %v856, %v857
  %v859 = vrot.slane %v858, 1
  %v860 = vadd.f32 %v858, %v859
  %v861 = vmul.f32 %v860, 0.0078125
  %v862 = vsub.f32 %v801, %v861
  %v863 = vsub.f32 %v803, %v861
  %v864 = vsub.f32 %v806, %v861
  %v865 = vsub.f32 %v808, %v861
  %v866 = vsub.f32 %v811, %v861
  %v867 = vsub.f32 %v813, %v861
  %v868 = vsub.f32 %v816, %v861
  %v869 = vsub.f32 %v818, %v861
  %v870 = vsub.f32 %v821, %v861
  %v871 = vsub.f32 %v823, %v861
  %v872 = vsub.f32 %v826, %v861
  %v873 = vsub.f32 %v828, %v861
  %v874 = vsub.f32 %v831, %v861
  %v875 = vsub.f32 %v833, %v861
  %v876 = vsub.f32 %v836, %v861
  %v877 = vsub.f32 %v838, %v861
  %v878 = vmul.f32 %v862, %v862
  %v879 = vmul.f32 %v863, %v863
  %v880 = vmul.f32 %v864, %v864
  %v881 = vmul.f32 %v865, %v865
  %v882 = vmul.f32 %v866, %v866
  %v883 = vmul.f32 %v867, %v867
  %v884 = vmul.f32 %v868, %v868
  %v885 = vmul.f32 %v869, %v869
  %v886 = vmul.f32 %v870, %v870
  %v887 = vmul.f32 %v871, %v871
  %v888 = vmul.f32 %v872, %v872
  %v889 = vmul.f32 %v873, %v873
  %v890 = vmul.f32 %v874, %v874
  %v891 = vmul.f32 %v875, %v875
  %v892 = vmul.f32 %v876, %v876
  %v893 = vmul.f32 %v877, %v877
  %v894 = vadd.f32 %v878, %v879
  %v895 = vadd.f32 %v894, %v880
  %v896 = vadd.f32 %v895, %v881
  %v897 = vadd.f32 %v896, %v882
  %v898 = vadd.f32 %v897, %v883
  %v899 = vadd.f32 %v898, %v884
  %v900 = vadd.f32 %v899, %v885
  %v901 = vadd.f32 %v900, %v886
  %v902 = vadd.f32 %v901, %v887
  %v903 = vadd.f32 %v902, %v888
  %v904 = vadd.f32 %v903, %v889
  %v905 = vadd.f32 %v904, %v890
  %v906 = vadd.f32 %v905, %v891
  %v907 = vadd.f32 %v906, %v892
  %v908 = vadd.f32 %v907, %v893
  %v909 = vrot.slane %v908, 4
  %v910 = vadd.f32 %v908, %v909
  %v911 = vrot.slane %v910, 2
  %v912 = vadd.f32 %v910, %v911
  %v913 = vrot.slane %v912, 1
  %v914 = vadd.f32 %v912, %v913
  %v915 = vmul.f32 %v914, 0.0078125
  %v916 = vmax.f32 %v915, 0.0
  %v917 = vadd.f32 %v916, 1e-05
  %v918 = vrsqrt.pop %v917
  %v919 = vmul.f32 %v918, %v917
  %v920 = vmul.f32 %v919, %v918
  %v921 = vmul.f32 0.5, %v920
  %v922 = vsub.f32 1.5, %v921
  %v923 = vmul.f32 %v918, %v922
  %vm924 = vweird.f32 %v917
  %vm925 = vweird.f32 %v918
  %vm926 = vmor %vm924, %vm925
  %v927 = vsel %vm926, %v918, %v923
  %v928 = vmul.f32 %v17, %v927
  %v929 = vmul.f32 %v861, %v928
  %v931 = vrot.slane %v929, 7
  %v933 = vsub.f32 %v17, %v931
  %v934 = vperm.slane %v928, 1
  %v935 = vmul.f32 %v801, %v934
  %v936 = vmul.f32 %v803, %v934
  %v937 = vmul.f32 %v806, %v934
  %v938 = vmul.f32 %v808, %v934
  %v939 = vmul.f32 %v811, %v934
  %v940 = vmul.f32 %v813, %v934
  %v941 = vmul.f32 %v816, %v934
  %v942 = vmul.f32 %v818, %v934
  %v943 = vmul.f32 %v821, %v934
  %v944 = vmul.f32 %v823, %v934
  %v945 = vmul.f32 %v826, %v934
  %v946 = vmul.f32 %v828, %v934
  %v947 = vmul.f32 %v831, %v934
  %v948 = vmul.f32 %v833, %v934
  %v949 = vmul.f32 %v836, %v934
  %v950 = vmul.f32 %v838, %v934
  %v951 = vperm.slane %v933, 2
  %v952 = vadd.f32 %v935, %v951
  %v953 = vadd.f32 %v936, %v951
  %v954 = vadd.f32 %v937, %v951
  %v955 = vadd.f32 %v938, %v951
  %v956 = vadd.f32 %v939, %v951
  %v957 = vadd.f32 %v940, %v951
  %v958 = vadd.f32 %v941, %v951
  %v959 = vadd.f32 %v942, %v951
  %v960 = vadd.f32 %v943, %v951
  %v961 = vadd.f32 %v944, %v951
  %v962 = vadd.f32 %v945, %v951
  %v963 = vadd.f32 %v946, %v951
  %v964 = vadd.f32 %v947, %v951
  %v965 = vadd.f32 %v948, %v951
  %v966 = vadd.f32 %v949, %v951
  %v967 = vadd.f32 %v950, %v951
  %v968 = vld [vmem:[%s3] sm:$0xf]
  %v969 = vld [vmem:[%s3 + $0x4] sm:$0xf]
  %v970 = vld [vmem:[%s3 + $0x8] sm:$0xf]
  %v971 = vld [vmem:[%s3 + $0xc] sm:$0xf]
  %v972 = vld [vmem:[%s3 + $0x10] sm:$0xf]
  %v973 = vld [vmem:[%s3 + $0x14] sm:$0xf]
  %v974 = vld [vmem:[%s3 + $0x18] sm:$0xf]
  %v975 = vld [vmem:[%s3 + $0x1c] sm:$0xf]
  %v976 = vld [vmem:[%s3 + $0x20] sm:$0xf]
  %v977 = vld [vmem:[%s3 + $0x24] sm:$0xf]
  %v978 = vld [vmem:[%s3 + $0x28] sm:$0xf]
  %v979 = vld [vmem:[%s3 + $0x2c] sm:$0xf]
  %v980 = vld [vmem:[%s3 + $0x30] sm:$0xf]
  %v981 = vld [vmem:[%s3 + $0x34] sm:$0xf]
  %v982 = vld [vmem:[%s3 + $0x38] sm:$0xf]
  %v983 = vld [vmem:[%s3 + $0x3c] sm:$0xf]
  %v984 = vunpack.c.l.bf16 %v968
  %v985 = vunpack.c.l.bf16 %v969
  %v986 = vunpack.c.l.bf16 %v970
  %v987 = vunpack.c.l.bf16 %v971
  %v988 = vunpack.c.l.bf16 %v972
  %v989 = vunpack.c.l.bf16 %v973
  %v990 = vunpack.c.l.bf16 %v974
  %v991 = vunpack.c.l.bf16 %v975
  %v992 = vunpack.c.l.bf16 %v976
  %v993 = vunpack.c.l.bf16 %v977
  %v994 = vunpack.c.l.bf16 %v978
  %v995 = vunpack.c.l.bf16 %v979
  %v996 = vunpack.c.l.bf16 %v980
  %v997 = vunpack.c.l.bf16 %v981
  %v998 = vunpack.c.l.bf16 %v982
  %v999 = vunpack.c.l.bf16 %v983
  %v1000 = vadd.f32 %v952, %v984
  %v1001 = vadd.f32 %v953, %v985
  %v1002 = vadd.f32 %v954, %v986
  %v1003 = vadd.f32 %v955, %v987
  %v1004 = vadd.f32 %v956, %v988
  %v1005 = vadd.f32 %v957, %v989
  %v1006 = vadd.f32 %v958, %v990
  %v1007 = vadd.f32 %v959, %v991
  %v1008 = vadd.f32 %v960, %v992
  %v1009 = vadd.f32 %v961, %v993
  %v1010 = vadd.f32 %v962, %v994
  %v1011 = vadd.f32 %v963, %v995
  %v1012 = vadd.f32 %v964, %v996
  %v1013 = vadd.f32 %v965, %v997
  %v1014 = vadd.f32 %v966, %v998
  %v1015 = vadd.f32 %v967, %v999
  %v1016 = vmax.f32 %v1000, 0.0
  %v1017 = vmax.f32 %v1001, 0.0
  %v1018 = vmax.f32 %v1002, 0.0
  %v1019 = vmax.f32 %v1003, 0.0
  %v1020 = vmax.f32 %v1004, 0.0
  %v1021 = vmax.f32 %v1005, 0.0
  %v1022 = vmax.f32 %v1006, 0.0
  %v1023 = vmax.f32 %v1007, 0.0
  %v1024 = vmax.f32 %v1008, 0.0
  %v1025 = vmax.f32 %v1009, 0.0
  %v1026 = vmax.f32 %v1010, 0.0
  %v1027 = vmax.f32 %v1011, 0.0
  %v1028 = vmax.f32 %v1012, 0.0
  %v1029 = vmax.f32 %v1013, 0.0
  %v1030 = vmax.f32 %v1014, 0.0
  %v1031 = vmax.f32 %v1015, 0.0
  %v1032 = vpack.c.bf16 %v1016, %v1016
  %v1033 = vpack.c.bf16 %v1017, %v1017
  %v1034 = vpack.c.bf16 %v1018, %v1018
  %v1035 = vpack.c.bf16 %v1019, %v1019
  %v1036 = vpack.c.bf16 %v1020, %v1020
  %v1037 = vpack.c.bf16 %v1021, %v1021
  %v1038 = vpack.c.bf16 %v1022, %v1022
  %v1039 = vpack.c.bf16 %v1023, %v1023
  %v1040 = vpack.c.bf16 %v1024, %v1024
  %v1041 = vpack.c.bf16 %v1025, %v1025
  %v1042 = vpack.c.bf16 %v1026, %v1026
  %v1043 = vpack.c.bf16 %v1027, %v1027
  %v1044 = vpack.c.bf16 %v1028, %v1028
  %v1045 = vpack.c.bf16 %v1029, %v1029
  %v1046 = vpack.c.bf16 %v1030, %v1030
  %v1047 = vpack.c.bf16 %v1031, %v1031
  %1048 = vst [vmem:[%s4] sm:$0xf] %v1032
  %1049 = vst [vmem:[%s4 + $0x4] sm:$0xf] %v1033
  %1050 = vst [vmem:[%s4 + $0x8] sm:$0xf] %v1034
  %1051 = vst [vmem:[%s4 + $0xc] sm:$0xf] %v1035
  %1052 = vst [vmem:[%s4 + $0x10] sm:$0xf] %v1036
  %1053 = vst [vmem:[%s4 + $0x14] sm:$0xf] %v1037
  %1054 = vst [vmem:[%s4 + $0x18] sm:$0xf] %v1038
  %1055 = vst [vmem:[%s4 + $0x1c] sm:$0xf] %v1039
  %1056 = vst [vmem:[%s4 + $0x20] sm:$0xf] %v1040
  %1057 = vst [vmem:[%s4 + $0x24] sm:$0xf] %v1041
  %1058 = vst [vmem:[%s4 + $0x28] sm:$0xf] %v1042
  %1059 = vst [vmem:[%s4 + $0x2c] sm:$0xf] %v1043
  %1060 = vst [vmem:[%s4 + $0x30] sm:$0xf] %v1044
  %1061 = vst [vmem:[%s4 + $0x34] sm:$0xf] %v1045
  %1062 = vst [vmem:[%s4 + $0x38] sm:$0xf] %v1046
  %1063 = vst [vmem:[%s4 + $0x3c] sm:$0xf] %v1047
  // Predicated region
  $region18: #{colorization_forward.16} parent=0 // pred_check
    _
  $region19: #{colorization_forward.16} parent=0 // pred_check_branch
    %1065 = sbr.rel (0) target = $region21
  $region20: #{colorization_forward.16} parent=0 // pred_region
    _
  $region21: #{colorization_forward.16} parent=0 // pred_fallthru
    _
  // Predicated region
  $region22: #{colorization_forward.16} parent=0 // pred_check
    _
  $region23: #{colorization_forward.16} parent=0 // pred_check_branch
    %1067 = sbr.rel (0) target = $region25
  $region24: #{colorization_forward.16} parent=0 // pred_region
    _
  $region25: #{colorization_forward.16} parent=0 // pred_fallthru
    _

// kernel: colorization_forward.19
$region0: #{colorization_forward.19}
  #allocation0 [shape = 'u32[]', space=smem, size = 0x4, offset = 0x4, fixed_abs, tag = 'smem constant byte address 0x4 - core index']
  #allocation1 [shape = 'u32[72,128]{1,0:T(1,128)}', space=vmem, size = 0x9000, scoped, tag = 'internal scratch']
  %s0 = inlined_call_operand.vmem [shape: bf16[32,640], index: 0, kind: input, shape index: {}]
  %s1 = inlined_call_operand.vmem [shape: bf16[640,256], index: 1, kind: input, shape index: {}]
  %s2 = inlined_call_operand.vmem [shape: f32[8,256], index: 2, kind: input, shape index: {}]
  %s3 = inlined_call_operand.vmem [shape: bf16[32,256], index: 3, kind: output, shape index: {}]
  %s4 = sld [smem:[#allocation0]]
  $region22: #{colorization_forward.19} parent=0
    _
  %s6 = ssub.s32 1, %s4
  %s7 = scalar_select 0, %s6, %s4
  // Predicated region
  $region2: #{colorization_forward.19} parent=0 // pred_check
    _
  $region3: #{colorization_forward.19} parent=0 // pred_check_branch
    %9 = sbr.rel (0) target = $region5
  $region4: #{colorization_forward.19} parent=0 // pred_region
    _
  $region5: #{colorization_forward.19} parent=0 // pred_fallthru
    _
  // Predicated region
  $region6: #{colorization_forward.19} parent=0 // pred_check
    _
  $region7: #{colorization_forward.19} parent=0 // pred_check_branch
    %11 = sbr.rel (0) target = $region9
  $region8: #{colorization_forward.19} parent=0 // pred_region
    _
  $region9: #{colorization_forward.19} parent=0 // pred_fallthru
    _
  // Predicated region
  $region10: #{colorization_forward.19} parent=0 // pred_check
    _
  $region11: #{colorization_forward.19} parent=0 // pred_check_branch
    %13 = sbr.rel (0) target = $region13
  $region12: #{colorization_forward.19} parent=0 // pred_region
    _
  $region13: #{colorization_forward.19} parent=0 // pred_fallthru
    _
  %v14 = vld [vmem:[%s2] sm:$0xff]
  %v15 = vld [vmem:[%s2 + $0x8] sm:$0xff]
  %v16 = vld [vmem:[%s0] sm:$0xff]
  %v17 = vld [vmem:[%s0 + $0x8] sm:$0xff]
  %v18 = vld [vmem:[%s0 + $0x10] sm:$0xf]
  %v19 = vld [vmem:[%s0 + $0x14] sm:$0xff]
  %v20 = vld [vmem:[%s0 + $0x1c] sm:$0xff]
  %v21 = vld [vmem:[%s0 + $0x24] sm:$0xf]
  %v22 = vld [vmem:[%s0 + $0x28] sm:$0xff]
  %v23 = vld [vmem:[%s0 + $0x30] sm:$0xff]
  %v24 = vld [vmem:[%s0 + $0x38] sm:$0xf]
  %v25 = vld [vmem:[%s0 + $0x3c] sm:$0xff]
  %v26 = vld [vmem:[%s0 + $0x44] sm:$0xff]
  %v27 = vld [vmem:[%s0 + $0x4c] sm:$0xf]
  %v28 = vld [vmem:[%s1] sm:$0xff]
  %v29 = vld [vmem:[%s1 + $0x8] sm:$0xff]
  %v30 = vld [vmem:[%s1 + $0x10] sm:$0xff]
  %v31 = vld [vmem:[%s1 + $0x18] sm:$0xff]
  %v32 = vld [vmem:[%s1 + $0x20] sm:$0xff]
  %v33 = vld [vmem:[%s1 + $0x28] sm:$0xff]
  %v34 = vld [vmem:[%s1 + $0x30] sm:$0xff]
  %v35 = vld [vmem:[%s1 + $0x38] sm:$0xff]
  %v36 = vld [vmem:[%s1 + $0x40] sm:$0xff]
  %v37 = vld [vmem:[%s1 + $0x48] sm:$0xff]
  %v38 = vld [vmem:[%s1 + $0x50] sm:$0xff]
  %v39 = vld [vmem:[%s1 + $0x58] sm:$0xff]
  %v40 = vld [vmem:[%s1 + $0x60] sm:$0xff]
  %v41 = vld [vmem:[%s1 + $0x68] sm:$0xff]
  %v42 = vld [vmem:[%s1 + $0x70] sm:$0xff]
  %v43 = vld [vmem:[%s1 + $0x78] sm:$0xff]
  %v44 = vld [vmem:[%s1 + $0x80] sm:$0xff]
  %v45 = vld [vmem:[%s1 + $0x88] sm:$0xff]
  %v46 = vld [vmem:[%s1 + $0x90] sm:$0xff]
  %v47 = vld [vmem:[%s1 + $0x98] sm:$0xff]
  %v48 = vld [vmem:[%s1 + $0xa0] sm:$0xff]
  %v49 = vld [vmem:[%s1 + $0xa8] sm:$0xff]
  %v50 = vld [vmem:[%s1 + $0xb0] sm:$0xff]
  %v51 = vld [vmem:[%s1 + $0xb8] sm:$0xff]
  %v52 = vld [vmem:[%s1 + $0xc0] sm:$0xff]
  %v53 = vld [vmem:[%s1 + $0xc8] sm:$0xff]
  %v54 = vld [vmem:[%s1 + $0xd0] sm:$0xff]
  %v55 = vld [vmem:[%s1 + $0xd8] sm:$0xff]
  %v56 = vld [vmem:[%s1 + $0xe0] sm:$0xff]
  %v57 = vld [vmem:[%s1 + $0xe8] sm:$0xff]
  %v58 = vld [vmem:[%s1 + $0xf0] sm:$0xff]
  %v59 = vld [vmem:[%s1 + $0xf8] sm:$0xff]
  %v60 = vld [vmem:[%s1 + $0x100] sm:$0xff]
  %v61 = vld [vmem:[%s1 + $0x108] sm:$0xff]
  %v62 = vld [vmem:[%s1 + $0x110] sm:$0xff]
  %v63 = vld [vmem:[%s1 + $0x118] sm:$0xff]
  %v64 = vld [vmem:[%s1 + $0x120] sm:$0xff]
  %v65 = vld [vmem:[%s1 + $0x128] sm:$0xff]
  %v66 = vld [vmem:[%s1 + $0x130] sm:$0xff]
  %v67 = vld [vmem:[%s1 + $0x138] sm:$0xff]
  %v68 = vld [vmem:[%s1 + $0x140] sm:$0xff]
  %v69 = vld [vmem:[%s1 + $0x148] sm:$0xff]
  %v70 = vld [vmem:[%s1 + $0x150] sm:$0xff]
  %v71 = vld [vmem:[%s1 + $0x158] sm:$0xff]
  %v72 = vld [vmem:[%s1 + $0x160] sm:$0xff]
  %v73 = vld [vmem:[%s1 + $0x168] sm:$0xff]
  %v74 = vld [vmem:[%s1 + $0x170] sm:$0xff]
  %v75 = vld [vmem:[%s1 + $0x178] sm:$0xff]
  %v76 = vld [vmem:[%s1 + $0x180] sm:$0xff]
  %v77 = vld [vmem:[%s1 + $0x188] sm:$0xff]
  %v78 = vld [vmem:[%s1 + $0x190] sm:$0xff]
  %v79 = vld [vmem:[%s1 + $0x198] sm:$0xff]
  %v80 = vld [vmem:[%s1 + $0x1a0] sm:$0xff]
  %v81 = vld [vmem:[%s1 + $0x1a8] sm:$0xff]
  %v82 = vld [vmem:[%s1 + $0x1b0] sm:$0xff]
  %v83 = vld [vmem:[%s1 + $0x1b8] sm:$0xff]
  %v84 = vld [vmem:[%s1 + $0x1c0] sm:$0xff]
  %v85 = vld [vmem:[%s1 + $0x1c8] sm:$0xff]
  %v86 = vld [vmem:[%s1 + $0x1d0] sm:$0xff]
  %v87 = vld [vmem:[%s1 + $0x1d8] sm:$0xff]
  %v88 = vld [vmem:[%s1 + $0x1e0] sm:$0xff]
  %v89 = vld [vmem:[%s1 + $0x1e8] sm:$0xff]
  %v90 = vld [vmem:[%s1 + $0x1f0] sm:$0xff]
  %v91 = vld [vmem:[%s1 + $0x1f8] sm:$0xff]
  %v92 = vld [vmem:[%s1 + $0x200] sm:$0xff]
  %v93 = vld [vmem:[%s1 + $0x208] sm:$0xff]
  %v94 = vld [vmem:[%s1 + $0x210] sm:$0xff]
  %v95 = vld [vmem:[%s1 + $0x218] sm:$0xff]
  %v96 = vld [vmem:[%s1 + $0x220] sm:$0xff]
  %v97 = vld [vmem:[%s1 + $0x228] sm:$0xff]
  %v98 = vld [vmem:[%s1 + $0x230] sm:$0xff]
  %v99 = vld [vmem:[%s1 + $0x238] sm:$0xff]
  %v100 = vld [vmem:[%s1 + $0x240] sm:$0xff]
  %v101 = vld [vmem:[%s1 + $0x248] sm:$0xff]
  %v102 = vld [vmem:[%s1 + $0x250] sm:$0xff]
  %v103 = vld [vmem:[%s1 + $0x258] sm:$0xff]
  %v104 = vld [vmem:[%s1 + $0x260] sm:$0xff]
  %v105 = vld [vmem:[%s1 + $0x268] sm:$0xff]
  %v106 = vld [vmem:[%s1 + $0x270] sm:$0xff]
  %v107 = vld [vmem:[%s1 + $0x278] sm:$0xff]
  %v108 = vperm.slane %v14, 0
  %v109 = vperm.slane %v15, 0
  %v122 = vunpack.c.l.b16 %v16
  %v123 = vunpack.c.h.b16 %v16
  %v124 = vunpack.c.l.b16 %v17
  %v125 = vunpack.c.h.b16 %v17
  %v126 = vunpack.c.l.b16 %v18
  %v127 = vunpack.c.l.b16 %v19
  %v128 = vunpack.c.h.b16 %v19
  %v129 = vunpack.c.l.b16 %v20
  %v130 = vunpack.c.h.b16 %v20
  %v131 = vunpack.c.l.b16 %v21
  %v132 = vunpack.c.l.b16 %v22
  %v133 = vunpack.c.h.b16 %v22
  %v134 = vunpack.c.l.b16 %v23
  %v135 = vunpack.c.h.b16 %v23
  %v136 = vunpack.c.l.b16 %v24
  %v137 = vunpack.c.l.b16 %v25
  %v138 = vunpack.c.h.b16 %v25
  %v139 = vunpack.c.l.b16 %v26
  %v140 = vunpack.c.h.b16 %v26
  %v141 = vunpack.c.l.b16 %v27
  %v142 = vpack.c.b16 %v127, %v122
  %v143 = vpack.c.b16 %v128, %v123
  %v144 = vpack.c.b16 %v129, %v124
  %v145 = vpack.c.b16 %v130, %v125
  %v146 = vpack.c.b16 %v131, %v126
  %v147 = vpack.c.b16 %v137, %v132
  %v148 = vpack.c.b16 %v138, %v133
  %v149 = vpack.c.b16 %v139, %v134
  %v150 = vpack.c.b16 %v140, %v135
  %v151 = vpack.c.b16 %v141, %v136
  %v242 = vunpack.c.l.b16 %v28
  %v243 = vunpack.c.h.b16 %v28
  %v244 = vunpack.c.l.b16 %v29
  %v245 = vunpack.c.h.b16 %v29
  %v246 = vunpack.c.l.b16 %v30
  %v247 = vunpack.c.h.b16 %v30
  %v248 = vunpack.c.l.b16 %v31
  %v249 = vunpack.c.h.b16 %v31
  %v250 = vunpack.c.l.b16 %v32
  %v251 = vunpack.c.h.b16 %v32
  %v252 = vunpack.c.l.b16 %v33
  %v253 = vunpack.c.h.b16 %v33
  %v254 = vunpack.c.l.b16 %v34
  %v255 = vunpack.c.h.b16 %v34
  %v256 = vunpack.c.l.b16 %v35
  %v257 = vunpack.c.h.b16 %v35
  %v258 = vunpack.c.l.b16 %v36
  %v259 = vunpack.c.h.b16 %v36
  %v260 = vunpack.c.l.b16 %v37
  %v261 = vunpack.c.h.b16 %v37
  %v262 = vunpack.c.l.b16 %v38
  %v263 = vunpack.c.h.b16 %v38
  %v264 = vunpack.c.l.b16 %v39
  %v265 = vunpack.c.h.b16 %v39
  %v266 = vunpack.c.l.b16 %v40
  %v267 = vunpack.c.h.b16 %v40
  %v268 = vunpack.c.l.b16 %v41
  %v269 = vunpack.c.h.b16 %v41
  %v270 = vunpack.c.l.b16 %v42
  %v271 = vunpack.c.h.b16 %v42
  %v272 = vunpack.c.l.b16 %v43
  %v273 = vunpack.c.h.b16 %v43
  %v274 = vunpack.c.l.b16 %v44
  %v275 = vunpack.c.h.b16 %v44
  %v276 = vunpack.c.l.b16 %v45
  %v277 = vunpack.c.h.b16 %v45
  %v278 = vunpack.c.l.b16 %v46
  %v279 = vunpack.c.h.b16 %v46
  %v280 = vunpack.c.l.b16 %v47
  %v281 = vunpack.c.h.b16 %v47
  %v282 = vunpack.c.l.b16 %v48
  %v283 = vunpack.c.h.b16 %v48
  %v284 = vunpack.c.l.b16 %v49
  %v285 = vunpack.c.h.b16 %v49
  %v286 = vunpack.c.l.b16 %v50
  %v287 = vunpack.c.h.b16 %v50
  %v288 = vunpack.c.l.b16 %v51
  %v289 = vunpack.c.h.b16 %v51
  %v290 = vunpack.c.l.b16 %v52
  %v291 = vunpack.c.h.b16 %v52
  %v292 = vunpack.c.l.b16 %v53
  %v293 = vunpack.c.h.b16 %v53
  %v294 = vunpack.c.l.b16 %v54
  %v295 = vunpack.c.h.b16 %v54
  %v296 = vunpack.c.l.b16 %v55
  %v297 = vunpack.c.h.b16 %v55
  %v298 = vunpack.c.l.b16 %v56
  %v299 = vunpack.c.h.b16 %v56
  %v300 = vunpack.c.l.b16 %v57
  %v301 = vunpack.c.h.b16 %v57
  %v302 = vunpack.c.l.b16 %v58
  %v303 = vunpack.c.h.b16 %v58
  %v304 = vunpack.c.l.b16 %v59
  %v305 = vunpack.c.h.b16 %v59
  %v306 = vunpack.c.l.b16 %v60
  %v307 = vunpack.c.h.b16 %v60
  %v308 = vunpack.c.l.b16 %v61
  %v309 = vunpack.c.h.b16 %v61
  %v310 = vunpack.c.l.b16 %v62
  %v311 = vunpack.c.h.b16 %v62
  %v312 = vunpack.c.l.b16 %v63
  %v313 = vunpack.c.h.b16 %v63
  %v314 = vunpack.c.l.b16 %v64
  %v315 = vunpack.c.h.b16 %v64
  %v316 = vunpack.c.l.b16 %v65
  %v317 = vunpack.c.h.b16 %v65
  %v318 = vunpack.c.l.b16 %v66
  %v319 = vunpack.c.h.b16 %v66
  %v320 = vunpack.c.l.b16 %v67
  %v321 = vunpack.c.h.b16 %v67
  %v322 = vunpack.c.l.b16 %v68
  %v323 = vunpack.c.h.b16 %v68
  %v324 = vunpack.c.l.b16 %v69
  %v325 = vunpack.c.h.b16 %v69
  %v326 = vunpack.c.l.b16 %v70
  %v327 = vunpack.c.h.b16 %v70
  %v328 = vunpack.c.l.b16 %v71
  %v329 = vunpack.c.h.b16 %v71
  %v330 = vunpack.c.l.b16 %v72
  %v331 = vunpack.c.h.b16 %v72
  %v332 = vunpack.c.l.b16 %v73
  %v333 = vunpack.c.h.b16 %v73
  %v334 = vunpack.c.l.b16 %v74
  %v335 = vunpack.c.h.b16 %v74
  %v336 = vunpack.c.l.b16 %v75
  %v337 = vunpack.c.h.b16 %v75
  %v338 = vunpack.c.l.b16 %v76
  %v339 = vunpack.c.h.b16 %v76
  %v340 = vunpack.c.l.b16 %v77
  %v341 = vunpack.c.h.b16 %v77
  %v342 = vunpack.c.l.b16 %v78
  %v343 = vunpack.c.h.b16 %v78
  %v344 = vunpack.c.l.b16 %v79
  %v345 = vunpack.c.h.b16 %v79
  %v346 = vunpack.c.l.b16 %v80
  %v347 = vunpack.c.h.b16 %v80
  %v348 = vunpack.c.l.b16 %v81
  %v349 = vunpack.c.h.b16 %v81
  %v350 = vunpack.c.l.b16 %v82
  %v351 = vunpack.c.h.b16 %v82
  %v352 = vunpack.c.l.b16 %v83
  %v353 = vunpack.c.h.b16 %v83
  %v354 = vunpack.c.l.b16 %v84
  %v355 = vunpack.c.h.b16 %v84
  %v356 = vunpack.c.l.b16 %v85
  %v357 = vunpack.c.h.b16 %v85
  %v358 = vunpack.c.l.b16 %v86
  %v359 = vunpack.c.h.b16 %v86
  %v360 = vunpack.c.l.b16 %v87
  %v361 = vunpack.c.h.b16 %v87
  %v362 = vunpack.c.l.b16 %v88
  %v363 = vunpack.c.h.b16 %v88
  %v364 = vunpack.c.l.b16 %v89
  %v365 = vunpack.c.h.b16 %v89
  %v366 = vunpack.c.l.b16 %v90
  %v367 = vunpack.c.h.b16 %v90
  %v368 = vunpack.c.l.b16 %v91
  %v369 = vunpack.c.h.b16 %v91
  %v370 = vunpack.c.l.b16 %v92
  %v371 = vunpack.c.h.b16 %v92
  %v372 = vunpack.c.l.b16 %v93
  %v373 = vunpack.c.h.b16 %v93
  %v374 = vunpack.c.l.b16 %v94
  %v375 = vunpack.c.h.b16 %v94
  %v376 = vunpack.c.l.b16 %v95
  %v377 = vunpack.c.h.b16 %v95
  %v378 = vunpack.c.l.b16 %v96
  %v379 = vunpack.c.h.b16 %v96
  %v380 = vunpack.c.l.b16 %v97
  %v381 = vunpack.c.h.b16 %v97
  %v382 = vunpack.c.l.b16 %v98
  %v383 = vunpack.c.h.b16 %v98
  %v384 = vunpack.c.l.b16 %v99
  %v385 = vunpack.c.h.b16 %v99
  %v386 = vunpack.c.l.b16 %v100
  %v387 = vunpack.c.h.b16 %v100
  %v388 = vunpack.c.l.b16 %v101
  %v389 = vunpack.c.h.b16 %v101
  %v390 = vunpack.c.l.b16 %v102
  %v391 = vunpack.c.h.b16 %v102
  %v392 = vunpack.c.l.b16 %v103
  %v393 = vunpack.c.h.b16 %v103
  %v394 = vunpack.c.l.b16 %v104
  %v395 = vunpack.c.h.b16 %v104
  %v396 = vunpack.c.l.b16 %v105
  %v397 = vunpack.c.h.b16 %v105
  %v398 = vunpack.c.l.b16 %v106
  %v399 = vunpack.c.h.b16 %v106
  %v400 = vunpack.c.l.b16 %v107
  %v401 = vunpack.c.h.b16 %v107
  %v402 = vpack.c.b16 %v244, %v242
  %v403 = vpack.c.b16 %v245, %v243
  %v404 = vpack.c.b16 %v248, %v246
  %v405 = vpack.c.b16 %v249, %v247
  %v406 = vpack.c.b16 %v252, %v250
  %v407 = vpack.c.b16 %v253, %v251
  %v408 = vpack.c.b16 %v256, %v254
  %v409 = vpack.c.b16 %v257, %v255
  %v410 = vpack.c.b16 %v260, %v258
  %v411 = vpack.c.b16 %v261, %v259
  %v412 = vpack.c.b16 %v264, %v262
  %v413 = vpack.c.b16 %v265, %v263
  %v414 = vpack.c.b16 %v268, %v266
  %v415 = vpack.c.b16 %v269, %v267
  %v416 = vpack.c.b16 %v272, %v270
  %v417 = vpack.c.b16 %v273, %v271
  %v418 = vpack.c.b16 %v276, %v274
  %v419 = vpack.c.b16 %v277, %v275
  %v420 = vpack.c.b16 %v280, %v278
  %v421 = vpack.c.b16 %v281, %v279
  %v422 = vpack.c.b16 %v284, %v282
  %v423 = vpack.c.b16 %v285, %v283
  %v424 = vpack.c.b16 %v288, %v286
  %v425 = vpack.c.b16 %v289, %v287
  %v426 = vpack.c.b16 %v292, %v290
  %v427 = vpack.c.b16 %v293, %v291
  %v428 = vpack.c.b16 %v296, %v294
  %v429 = vpack.c.b16 %v297, %v295
  %v430 = vpack.c.b16 %v300, %v298
  %v431 = vpack.c.b16 %v301, %v299
  %v432 = vpack.c.b16 %v304, %v302
  %v433 = vpack.c.b16 %v305, %v303
  %v434 = vpack.c.b16 %v308, %v306
  %v435 = vpack.c.b16 %v309, %v307
  %v436 = vpack.c.b16 %v312, %v310
  %v437 = vpack.c.b16 %v313, %v311
  %v438 = vpack.c.b16 %v316, %v314
  %v439 = vpack.c.b16 %v317, %v315
  %v440 = vpack.c.b16 %v320, %v318
  %v441 = vpack.c.b16 %v321, %v319
  %v442 = vpack.c.b16 %v324, %v322
  %v443 = vpack.c.b16 %v325, %v323
  %v444 = vpack.c.b16 %v328, %v326
  %v445 = vpack.c.b16 %v329, %v327
  %v446 = vpack.c.b16 %v332, %v330
  %v447 = vpack.c.b16 %v333, %v331
  %v448 = vpack.c.b16 %v336, %v334
  %v449 = vpack.c.b16 %v337, %v335
  %v450 = vpack.c.b16 %v340, %v338
  %v451 = vpack.c.b16 %v341, %v339
  %v452 = vpack.c.b16 %v344, %v342
  %v453 = vpack.c.b16 %v345, %v343
  %v454 = vpack.c.b16 %v348, %v346
  %v455 = vpack.c.b16 %v349, %v347
  %v456 = vpack.c.b16 %v352, %v350
  %v457 = vpack.c.b16 %v353, %v351
  %v458 = vpack.c.b16 %v356, %v354
  %v459 = vpack.c.b16 %v357, %v355
  %v460 = vpack.c.b16 %v360, %v358
  %v461 = vpack.c.b16 %v361, %v359
  %v462 = vpack.c.b16 %v364, %v362
  %v463 = vpack.c.b16 %v365, %v363
  %v464 = vpack.c.b16 %v368, %v366
  %v465 = vpack.c.b16 %v369, %v367
  %v466 = vpack.c.b16 %v372, %v370
  %v467 = vpack.c.b16 %v373, %v371
  %v468 = vpack.c.b16 %v376, %v374
  %v469 = vpack.c.b16 %v377, %v375
  %v470 = vpack.c.b16 %v380, %v378
  %v471 = vpack.c.b16 %v381, %v379
  %v472 = vpack.c.b16 %v384, %v382
  %v473 = vpack.c.b16 %v385, %v383
  %v474 = vpack.c.b16 %v388, %v386
  %v475 = vpack.c.b16 %v389, %v387
  %v476 = vpack.c.b16 %v392, %v390
  %v477 = vpack.c.b16 %v393, %v391
  %v478 = vpack.c.b16 %v396, %v394
  %v479 = vpack.c.b16 %v397, %v395
  %v480 = vpack.c.b16 %v400, %v398
  %v481 = vpack.c.b16 %v401, %v399
  %562 = vmatpush.bf16.msra.mxu0 %v416
  %563 = vmatpush.bf16.msra.mxu0 %v414
  %564 = vmatpush.bf16.msra.mxu0 %v412
  %565 = vmatpush.bf16.msra.mxu0 %v410
  %566 = vmatpush.bf16.msra.mxu0 %v408
  %567 = vmatpush.bf16.msra.mxu0 %v406
  %568 = vmatpush.bf16.msra.mxu0 %v404
  %569 = vmatpush.bf16.msra.mxu0 %v402
  %570 = vmatmul.bf16.gmra.mxu0 %v142
  %v571 = vpop.f32.mrf.mxu0
  %v572 = vadd.f32 %v108, %v571
  %v573 = vpop.f32.mrf.mxu0
  %v574 = vadd.f32 %v108, %v573
  %575 = vmatmul.bf16.gmra.mxu0 %v147
  %v576 = vpop.f32.mrf.mxu0
  %v577 = vadd.f32 %v108, %v576
  %v578 = vpop.f32.mrf.mxu0
  %v579 = vadd.f32 %v108, %v578
  %580 = vdwg.mxu0
  %581 = vmatpush.bf16.msra.mxu0 %v432
  %582 = vmatpush.bf16.msra.mxu0 %v430
  %583 = vmatpush.bf16.msra.mxu0 %v428
  %584 = vmatpush.bf16.msra.mxu0 %v426
  %585 = vmatpush.bf16.msra.mxu0 %v424
  %586 = vmatpush.bf16.msra.mxu0 %v422
  %587 = vmatpush.bf16.msra.mxu0 %v420
  %588 = vmatpush.bf16.msra.mxu0 %v418
  %589 = vmatmul.bf16.gmra.mxu0 %v143
  %v590 = vpop.f32.mrf.mxu0
  %v591 = vadd.f32 %v572, %v590
  %v592 = vpop.f32.mrf.mxu0
  %v593 = vadd.f32 %v574, %v592
  %594 = vmatmul.bf16.gmra.mxu0 %v148
  %v595 = vpop.f32.mrf.mxu0
  %v596 = vadd.f32 %v577, %v595
  %v597 = vpop.f32.mrf.mxu0
  %v598 = vadd.f32 %v579, %v597
  %599 = vdwg.mxu0
  %600 = vmatpush.bf16.msra.mxu0 %v448
  %601 = vmatpush.bf16.msra.mxu0 %v446
  %602 = vmatpush.bf16.msra.mxu0 %v444
  %603 = vmatpush.bf16.msra.mxu0 %v442
  %604 = vmatpush.bf16.msra.mxu0 %v440
  %605 = vmatpush.bf16.msra.mxu0 %v438
  %606 = vmatpush.bf16.msra.mxu0 %v436
  %607 = vmatpush.bf16.msra.mxu0 %v434
  %608 = vmatmul.bf16.gmra.mxu0 %v144
  %v609 = vpop.f32.mrf.mxu0
  %v610 = vadd.f32 %v591, %v609
  %v611 = vpop.f32.mrf.mxu0
  %v612 = vadd.f32 %v593, %v611
  %613 = vmatmul.bf16.gmra.mxu0 %v149
  %v614 = vpop.f32.mrf.mxu0
  %v615 = vadd.f32 %v596, %v614
  %v616 = vpop.f32.mrf.mxu0
  %v617 = vadd.f32 %v598, %v616
  %618 = vdwg.mxu0
  %619 = vmatpush.bf16.msra.mxu0 %v464
  %620 = vmatpush.bf16.msra.mxu0 %v462
  %621 = vmatpush.bf16.msra.mxu0 %v460
  %622 = vmatpush.bf16.msra.mxu0 %v458
  %623 = vmatpush.bf16.msra.mxu0 %v456
  %624 = vmatpush.bf16.msra.mxu0 %v454
  %625 = vmatpush.bf16.msra.mxu0 %v452
  %626 = vmatpush.bf16.msra.mxu0 %v450
  %627 = vmatmul.bf16.gmra.mxu0 %v145
  %v628 = vpop.f32.mrf.mxu0
  %v629 = vadd.f32 %v610, %v628
  %v630 = vpop.f32.mrf.mxu0
  %v631 = vadd.f32 %v612, %v630
  %632 = vmatmul.bf16.gmra.mxu0 %v150
  %v633 = vpop.f32.mrf.mxu0
  %v634 = vadd.f32 %v615, %v633
  %v635 = vpop.f32.mrf.mxu0
  %v636 = vadd.f32 %v617, %v635
  %637 = vdwg.mxu0
  %638 = vmatpush.bf16.msra.mxu0 %v480
  %639 = vmatpush.bf16.msra.mxu0 %v478
  %640 = vmatpush.bf16.msra.mxu0 %v476
  %641 = vmatpush.bf16.msra.mxu0 %v474
  %642 = vmatpush.bf16.msra.mxu0 %v472
  %643 = vmatpush.bf16.msra.mxu0 %v470
  %644 = vmatpush.bf16.msra.mxu0 %v468
  %645 = vmatpush.bf16.msra.mxu0 %v466
  %646 = vmatmul.bf16.gmra.mxu0 %v146
  %v647 = vpop.f32.mrf.mxu0
  %v648 = vadd.f32 %v629, %v647
  %v649 = vpop.f32.mrf.mxu0
  %v650 = vadd.f32 %v631, %v649
  %651 = vmatmul.bf16.gmra.mxu0 %v151
  %v652 = vpop.f32.mrf.mxu0
  %v653 = vadd.f32 %v634, %v652
  %v654 = vpop.f32.mrf.mxu0
  %v655 = vadd.f32 %v636, %v654
  %656 = vdwg.mxu0
  %657 = vmatpush.bf16.msra.mxu0 %v417
  %658 = vmatpush.bf16.msra.mxu0 %v415
  %659 = vmatpush.bf16.msra.mxu0 %v413
  %660 = vmatpush.bf16.msra.mxu0 %v411
  %661 = vmatpush.bf16.msra.mxu0 %v409
  %662 = vmatpush.bf16.msra.mxu0 %v407
  %663 = vmatpush.bf16.msra.mxu0 %v405
  %664 = vmatpush.bf16.msra.mxu0 %v403
  %665 = vmatmul.bf16.gmra.mxu0 %v142
  %v666 = vpop.f32.mrf.mxu0
  %v667 = vadd.f32 %v109, %v666
  %v668 = vpop.f32.mrf.mxu0
  %v669 = vadd.f32 %v109, %v668
  %670 = vmatmul.bf16.gmra.mxu0 %v147
  %v671 = vpop.f32.mrf.mxu0
  %v672 = vadd.f32 %v109, %v671
  %v673 = vpop.f32.mrf.mxu0
  %v674 = vadd.f32 %v109, %v673
  %675 = vdwg.mxu0
  %676 = vmatpush.bf16.msra.mxu0 %v433
  %677 = vmatpush.bf16.msra.mxu0 %v431
  %678 = vmatpush.bf16.msra.mxu0 %v429
  %679 = vmatpush.bf16.msra.mxu0 %v427
  %680 = vmatpush.bf16.msra.mxu0 %v425
  %681 = vmatpush.bf16.msra.mxu0 %v423
  %682 = vmatpush.bf16.msra.mxu0 %v421
  %683 = vmatpush.bf16.msra.mxu0 %v419
  %684 = vmatmul.bf16.gmra.mxu0 %v143
  %v685 = vpop.f32.mrf.mxu0
  %v686 = vadd.f32 %v667, %v685
  %v687 = vpop.f32.mrf.mxu0
  %v688 = vadd.f32 %v669, %v687
  %689 = vmatmul.bf16.gmra.mxu0 %v148
  %v690 = vpop.f32.mrf.mxu0
  %v691 = vadd.f32 %v672, %v690
  %v692 = vpop.f32.mrf.mxu0
  %v693 = vadd.f32 %v674, %v692
  %694 = vdwg.mxu0
  %695 = vmatpush.bf16.msra.mxu0 %v449
  %696 = vmatpush.bf16.msra.mxu0 %v447
  %697 = vmatpush.bf16.msra.mxu0 %v445
  %698 = vmatpush.bf16.msra.mxu0 %v443
  %699 = vmatpush.bf16.msra.mxu0 %v441
  %700 = vmatpush.bf16.msra.mxu0 %v439
  %701 = vmatpush.bf16.msra.mxu0 %v437
  %702 = vmatpush.bf16.msra.mxu0 %v435
  %703 = vmatmul.bf16.gmra.mxu0 %v144
  %v704 = vpop.f32.mrf.mxu0
  %v705 = vadd.f32 %v686, %v704
  %v706 = vpop.f32.mrf.mxu0
  %v707 = vadd.f32 %v688, %v706
  %708 = vmatmul.bf16.gmra.mxu0 %v149
  %v709 = vpop.f32.mrf.mxu0
  %v710 = vadd.f32 %v691, %v709
  %v711 = vpop.f32.mrf.mxu0
  %v712 = vadd.f32 %v693, %v711
  %713 = vdwg.mxu0
  %714 = vmatpush.bf16.msra.mxu0 %v465
  %715 = vmatpush.bf16.msra.mxu0 %v463
  %716 = vmatpush.bf16.msra.mxu0 %v461
  %717 = vmatpush.bf16.msra.mxu0 %v459
  %718 = vmatpush.bf16.msra.mxu0 %v457
  %719 = vmatpush.bf16.msra.mxu0 %v455
  %720 = vmatpush.bf16.msra.mxu0 %v453
  %721 = vmatpush.bf16.msra.mxu0 %v451
  %722 = vmatmul.bf16.gmra.mxu0 %v145
  %v723 = vpop.f32.mrf.mxu0
  %v724 = vadd.f32 %v705, %v723
  %v725 = vpop.f32.mrf.mxu0
  %v726 = vadd.f32 %v707, %v725
  %727 = vmatmul.bf16.gmra.mxu0 %v150
  %v728 = vpop.f32.mrf.mxu0
  %v729 = vadd.f32 %v710, %v728
  %v730 = vpop.f32.mrf.mxu0
  %v731 = vadd.f32 %v712, %v730
  %732 = vdwg.mxu0
  %733 = vmatpush.bf16.msra.mxu0 %v481
  %734 = vmatpush.bf16.msra.mxu0 %v479
  %735 = vmatpush.bf16.msra.mxu0 %v477
  %736 = vmatpush.bf16.msra.mxu0 %v475
  %737 = vmatpush.bf16.msra.mxu0 %v473
  %738 = vmatpush.bf16.msra.mxu0 %v471
  %739 = vmatpush.bf16.msra.mxu0 %v469
  %740 = vmatpush.bf16.msra.mxu0 %v467
  %741 = vmatmul.bf16.gmra.mxu0 %v146
  %v742 = vpop.f32.mrf.mxu0
  %v743 = vadd.f32 %v724, %v742
  %v744 = vpop.f32.mrf.mxu0
  %v745 = vadd.f32 %v726, %v744
  %746 = vmatmul.bf16.gmra.mxu0 %v151
  %v747 = vpop.f32.mrf.mxu0
  %v748 = vadd.f32 %v729, %v747
  %v749 = vpop.f32.mrf.mxu0
  %v750 = vadd.f32 %v731, %v749
  %751 = vdwg.mxu0
  %v752 = vadd.f32 %v648, %v650
  %v753 = vadd.f32 %v752, %v653
  %v754 = vadd.f32 %v753, %v655
  %v755 = vrot.slane %v754, 4
  %v756 = vadd.f32 %v754, %v755
  %v757 = vrot.slane %v756, 2
  %v758 = vadd.f32 %v756, %v757
  %v759 = vrot.slane %v758, 1
  %v760 = vadd.f32 %v758, %v759
  %v761 = vadd.f32 %v743, %v745
  %v762 = vadd.f32 %v761, %v748
  %v763 = vadd.f32 %v762, %v750
  %v764 = vrot.slane %v763, 4
  %v765 = vadd.f32 %v763, %v764
  %v766 = vrot.slane %v765, 2
  %v767 = vadd.f32 %v765, %v766
  %v768 = vrot.slane %v767, 1
  %v769 = vadd.f32 %v767, %v768
  %v770 = vmul.f32 %v760, 0.03125
  %v771 = vmul.f32 %v769, 0.03125
  %v772 = vsub.f32 %v648, %v770
  %v773 = vsub.f32 %v743, %v771
  %v774 = vsub.f32 %v650, %v770
  %v775 = vsub.f32 %v745, %v771
  %v776 = vsub.f32 %v653, %v770
  %v777 = vsub.f32 %v748, %v771
  %v778 = vsub.f32 %v655, %v770
  %v779 = vsub.f32 %v750, %v771
  %v780 = vmul.f32 %v772, %v772
  %v781 = vmul.f32 %v773, %v773
  %v782 = vmul.f32 %v774, %v774
  %v783 = vmul.f32 %v775, %v775
  %v784 = vmul.f32 %v776, %v776
  %v785 = vmul.f32 %v777, %v777
  %v786 = vmul.f32 %v778, %v778
  %v787 = vmul.f32 %v779, %v779
  %v788 = vadd.f32 %v780, %v782
  %v789 = vadd.f32 %v788, %v784
  %v790 = vadd.f32 %v789, %v786
  %v791 = vrot.slane %v790, 4
  %v792 = vadd.f32 %v790, %v791
  %v793 = vrot.slane %v792, 2
  %v794 = vadd.f32 %v792, %v793
  %v795 = vrot.slane %v794, 1
  %v796 = vadd.f32 %v794, %v795
  %v797 = vadd.f32 %v781, %v783
  %v798 = vadd.f32 %v797, %v785
  %v799 = vadd.f32 %v798, %v787
  %v800 = vrot.slane %v799, 4
  %v801 = vadd.f32 %v799, %v800
  %v802 = vrot.slane %v801, 2
  %v803 = vadd.f32 %v801, %v802
  %v804 = vrot.slane %v803, 1
  %v805 = vadd.f32 %v803, %v804
  %v806 = vmul.f32 %v796, 0.03125
  %v807 = vmul.f32 %v805, 0.03125
  %v808 = vmax.f32 %v806, 0.0
  %v809 = vmax.f32 %v807, 0.0
  %v810 = vadd.f32 %v808, 1e-05
  %v811 = vadd.f32 %v809, 1e-05
  %v812 = vrsqrt.pop %v810
  %v813 = vmul.f32 %v812, %v810
  %v814 = vmul.f32 %v813, %v812
  %v815 = vmul.f32 0.5, %v814
  %v816 = vsub.f32 1.5, %v815
  %v817 = vmul.f32 %v812, %v816
  %vm818 = vweird.f32 %v810
  %vm819 = vweird.f32 %v812
  %vm820 = vmor %vm818, %vm819
  %v821 = vsel %vm820, %v812, %v817
  %v822 = vrsqrt.pop %v811
  %v823 = vmul.f32 %v822, %v811
  %v824 = vmul.f32 %v823, %v822
  %v825 = vmul.f32 0.5, %v824
  %v826 = vsub.f32 1.5, %v825
  %v827 = vmul.f32 %v822, %v826
  %vm828 = vweird.f32 %v811
  %vm829 = vweird.f32 %v822
  %vm830 = vmor %vm828, %vm829
  %v831 = vsel %vm830, %v822, %v827
  %v832 = vmul.f32 %v14, %v821
  %v833 = vmul.f32 %v15, %v831
  %v834 = vmul.f32 %v770, %v832
  %v835 = vmul.f32 %v771, %v833
  %v838 = vrot.slane %v834, 7
  %v839 = vrot.slane %v835, 7
  %v842 = vsub.f32 %v14, %v838
  %v843 = vsub.f32 %v15, %v839
  %v844 = vperm.slane %v832, 1
  %v845 = vperm.slane %v833, 1
  %v846 = vmul.f32 %v648, %v844
  %v847 = vmul.f32 %v743, %v845
  %v848 = vmul.f32 %v650, %v844
  %v849 = vmul.f32 %v745, %v845
  %v850 = vmul.f32 %v653, %v844
  %v851 = vmul.f32 %v748, %v845
  %v852 = vmul.f32 %v655, %v844
  %v853 = vmul.f32 %v750, %v845
  %v854 = vperm.slane %v842, 2
  %v855 = vperm.slane %v843, 2
  %v856 = vadd.f32 %v846, %v854
  %v857 = vadd.f32 %v847, %v855
  %v858 = vadd.f32 %v848, %v854
  %v859 = vadd.f32 %v849, %v855
  %v860 = vadd.f32 %v850, %v854
  %v861 = vadd.f32 %v851, %v855
  %v862 = vadd.f32 %v852, %v854
  %v863 = vadd.f32 %v853, %v855
  %vm864 = vcmp.gt.f32.partialorder %v14, 0.0
  %vm865 = vcmp.gt.f32.partialorder %v15, 0.0
  %v866 = vmax.f32 %v856, 0.0
  %v867 = vmax.f32 %v857, 0.0
  %v868 = vmax.f32 %v858, 0.0
  %v869 = vmax.f32 %v859, 0.0
  %v870 = vmax.f32 %v860, 0.0
  %v871 = vmax.f32 %v861, 0.0
  %v872 = vmax.f32 %v862, 0.0
  %v873 = vmax.f32 %v863, 0.0
  %v874 = vsel %vm864, 1, 0
  %v875 = vsel %vm865, 1, 0
  %v876 = vperm.slane %v874, 3
  %v877 = vperm.slane %v875, 3
  %vm878 = vcmp.eq.s32.totalorder %v876, 1
  %vm879 = vcmp.eq.s32.totalorder %v877, 1
  %v880 = vsel %vm878, %v866, %v856
  %v881 = vsel %vm879, %v867, %v857
  %v882 = vsel %vm878, %v868, %v858
  %v883 = vsel %vm879, %v869, %v859
  %v884 = vsel %vm878, %v870, %v860
  %v885 = vsel %vm879, %v871, %v861
  %v886 = vsel %vm878, %v872, %v862
  %v887 = vsel %vm879, %v873, %v863
  %v888 = vpack.c.bf16 %v881, %v880
  %v889 = vpack.c.bf16 %v883, %v882
  %v890 = vpack.c.bf16 %v885, %v884
  %v891 = vpack.c.bf16 %v887, %v886
  %892 = vst [vmem:[%s3] sm:$0xff] %v888
  %893 = vst [vmem:[%s3 + $0x8] sm:$0xff] %v889
  %894 = vst [vmem:[%s3 + $0x10] sm:$0xff] %v890
  %895 = vst [vmem:[%s3 + $0x18] sm:$0xff] %v891
  // Predicated region
  $region14: #{colorization_forward.19} parent=0 // pred_check
    _
  $region15: #{colorization_forward.19} parent=0 // pred_check_branch
    %897 = sbr.rel (0) target = $region17
  $region16: #{colorization_forward.19} parent=0 // pred_region
    _
  $region17: #{colorization_forward.19} parent=0 // pred_fallthru
    _
  // Predicated region
  $region18: #{colorization_forward.19} parent=0 // pred_check
    _
  $region19: #{colorization_forward.19} parent=0 // pred_check_branch
    %899 = sbr.rel (0) target = $region21
  $region20: #{colorization_forward.19} parent=0 // pred_region
    _
  $region21: #{colorization_forward.19} parent=0 // pred_fallthru
    _

// kernel: colorization_forward.20
$region0: #{colorization_forward.20}
  #allocation0 [shape = 'u32[]', space=smem, size = 0x4, offset = 0x4, fixed_abs, tag = 'smem constant byte address 0x4 - core index']
  #allocation1 [shape = 'u32[72,128]{1,0:T(1,128)}', space=vmem, size = 0x9000, scoped, tag = 'internal scratch']
  %s0 = inlined_call_operand.vmem [shape: bf16[32,1152], index: 0, kind: input, shape index: {}]
  %s1 = inlined_call_operand.vmem [shape: bf16[1152,128], index: 1, kind: input, shape index: {}]
  %s2 = inlined_call_operand.vmem [shape: f32[8,128], index: 2, kind: input, shape index: {}]
  %s3 = inlined_call_operand.vmem [shape: bf16[32,128], index: 3, kind: input, shape index: {}]
  %s4 = inlined_call_operand.vmem [shape: bf16[32,128], index: 4, kind: output, shape index: {}]
  %s5 = sld [smem:[#allocation0]]
  $region26: #{colorization_forward.20} parent=0
    _
  %s7 = ssub.s32 1, %s5
  %s8 = scalar_select 0, %s7, %s5
  // Predicated region
  $region2: #{colorization_forward.20} parent=0 // pred_check
    _
  $region3: #{colorization_forward.20} parent=0 // pred_check_branch
    %10 = sbr.rel (0) target = $region5
  $region4: #{colorization_forward.20} parent=0 // pred_region
    _
  $region5: #{colorization_forward.20} parent=0 // pred_fallthru
    _
  // Predicated region
  $region6: #{colorization_forward.20} parent=0 // pred_check
    _
  $region7: #{colorization_forward.20} parent=0 // pred_check_branch
    %12 = sbr.rel (0) target = $region9
  $region8: #{colorization_forward.20} parent=0 // pred_region
    _
  $region9: #{colorization_forward.20} parent=0 // pred_fallthru
    _
  // Predicated region
  $region10: #{colorization_forward.20} parent=0 // pred_check
    _
  $region11: #{colorization_forward.20} parent=0 // pred_check_branch
    %14 = sbr.rel (0) target = $region13
  $region12: #{colorization_forward.20} parent=0 // pred_region
    _
  $region13: #{colorization_forward.20} parent=0 // pred_fallthru
    _
  // Predicated region
  $region14: #{colorization_forward.20} parent=0 // pred_check
    _
  $region15: #{colorization_forward.20} parent=0 // pred_check_branch
    %16 = sbr.rel (0) target = $region17
  $region16: #{colorization_forward.20} parent=0 // pred_region
    _
  $region17: #{colorization_forward.20} parent=0 // pred_fallthru
    _
  %v17 = vld [vmem:[%s2] sm:$0xff]
  %v18 = vld [vmem:[%s0] sm:$0xff]
  %v19 = vld [vmem:[%s0 + $0x8] sm:$0xff]
  %v20 = vld [vmem:[%s0 + $0x10] sm:$0xff]
  %v21 = vld [vmem:[%s0 + $0x18] sm:$0xff]
  %v22 = vld [vmem:[%s0 + $0x20] sm:$0xf]
  %v23 = vld [vmem:[%s0 + $0x24] sm:$0xff]
  %v24 = vld [vmem:[%s0 + $0x2c] sm:$0xff]
  %v25 = vld [vmem:[%s0 + $0x34] sm:$0xff]
  %v26 = vld [vmem:[%s0 + $0x3c] sm:$0xff]
  %v27 = vld [vmem:[%s0 + $0x44] sm:$0xf]
  %v28 = vld [vmem:[%s0 + $0x48] sm:$0xff]
  %v29 = vld [vmem:[%s0 + $0x50] sm:$0xff]
  %v30 = vld [vmem:[%s0 + $0x58] sm:$0xff]
  %v31 = vld [vmem:[%s0 + $0x60] sm:$0xff]
  %v32 = vld [vmem:[%s0 + $0x68] sm:$0xf]
  %v33 = vld [vmem:[%s0 + $0x6c] sm:$0xff]
  %v34 = vld [vmem:[%s0 + $0x74] sm:$0xff]
  %v35 = vld [vmem:[%s0 + $0x7c] sm:$0xff]
  %v36 = vld [vmem:[%s0 + $0x84] sm:$0xff]
  %v37 = vld [vmem:[%s0 + $0x8c] sm:$0xf]
  %v38 = vld [vmem:[%s1] sm:$0xf]
  %v39 = vld [vmem:[%s1 + $0x4] sm:$0xf]
  %v40 = vld [vmem:[%s1 + $0x8] sm:$0xf]
  %v41 = vld [vmem:[%s1 + $0xc] sm:$0xf]
  %v42 = vld [vmem:[%s1 + $0x10] sm:$0xf]
  %v43 = vld [vmem:[%s1 + $0x14] sm:$0xf]
  %v44 = vld [vmem:[%s1 + $0x18] sm:$0xf]
  %v45 = vld [vmem:[%s1 + $0x1c] sm:$0xf]
  %v46 = vld [vmem:[%s1 + $0x20] sm:$0xf]
  %v47 = vld [vmem:[%s1 + $0x24] sm:$0xf]
  %v48 = vld [vmem:[%s1 + $0x28] sm:$0xf]
  %v49 = vld [vmem:[%s1 + $0x2c] sm:$0xf]
  %v50 = vld [vmem:[%s1 + $0x30] sm:$0xf]
  %v51 = vld [vmem:[%s1 + $0x34] sm:$0xf]
  %v52 = vld [vmem:[%s1 + $0x38] sm:$0xf]
  %v53 = vld [vmem:[%s1 + $0x3c] sm:$0xf]
  %v54 = vld [vmem:[%s1 + $0x40] sm:$0xf]
  %v55 = vld [vmem:[%s1 + $0x44] sm:$0xf]
  %v56 = vld [vmem:[%s1 + $0x48] sm:$0xf]
  %v57 = vld [vmem:[%s1 + $0x4c] sm:$0xf]
  %v58 = vld [vmem:[%s1 + $0x50] sm:$0xf]
  %v59 = vld [vmem:[%s1 + $0x54] sm:$0xf]
  %v60 = vld [vmem:[%s1 + $0x58] sm:$0xf]
  %v61 = vld [vmem:[%s1 + $0x5c] sm:$0xf]
  %v62 = vld [vmem:[%s1 + $0x60] sm:$0xf]
  %v63 = vld [vmem:[%s1 + $0x64] sm:$0xf]
  %v64 = vld [vmem:[%s1 + $0x68] sm:$0xf]
  %v65 = vld [vmem:[%s1 + $0x6c] sm:$0xf]
  %v66 = vld [vmem:[%s1 + $0x70] sm:$0xf]
  %v67 = vld [vmem:[%s1 + $0x74] sm:$0xf]
  %v68 = vld [vmem:[%s1 + $0x78] sm:$0xf]
  %v69 = vld [vmem:[%s1 + $0x7c] sm:$0xf]
  %v70 = vld [vmem:[%s1 + $0x80] sm:$0xf]
  %v71 = vld [vmem:[%s1 + $0x84] sm:$0xf]
  %v72 = vld [vmem:[%s1 + $0x88] sm:$0xf]
  %v73 = vld [vmem:[%s1 + $0x8c] sm:$0xf]
  %v74 = vld [vmem:[%s1 + $0x90] sm:$0xf]
  %v75 = vld [vmem:[%s1 + $0x94] sm:$0xf]
  %v76 = vld [vmem:[%s1 + $0x98] sm:$0xf]
  %v77 = vld [vmem:[%s1 + $0x9c] sm:$0xf]
  %v78 = vld [vmem:[%s1 + $0xa0] sm:$0xf]
  %v79 = vld [vmem:[%s1 + $0xa4] sm:$0xf]
  %v80 = vld [vmem:[%s1 + $0xa8] sm:$0xf]
  %v81 = vld [vmem:[%s1 + $0xac] sm:$0xf]
  %v82 = vld [vmem:[%s1 + $0xb0] sm:$0xf]
  %v83 = vld [vmem:[%s1 + $0xb4] sm:$0xf]
  %v84 = vld [vmem:[%s1 + $0xb8] sm:$0xf]
  %v85 = vld [vmem:[%s1 + $0xbc] sm:$0xf]
  %v86 = vld [vmem:[%s1 + $0xc0] sm:$0xf]
  %v87 = vld [vmem:[%s1 + $0xc4] sm:$0xf]
  %v88 = vld [vmem:[%s1 + $0xc8] sm:$0xf]
  %v89 = vld [vmem:[%s1 + $0xcc] sm:$0xf]
  %v90 = vld [vmem:[%s1 + $0xd0] sm:$0xf]
  %v91 = vld [vmem:[%s1 + $0xd4] sm:$0xf]
  %v92 = vld [vmem:[%s1 + $0xd8] sm:$0xf]
  %v93 = vld [vmem:[%s1 + $0xdc] sm:$0xf]
  %v94 = vld [vmem:[%s1 + $0xe0] sm:$0xf]
  %v95 = vld [vmem:[%s1 + $0xe4] sm:$0xf]
  %v96 = vld [vmem:[%s1 + $0xe8] sm:$0xf]
  %v97 = vld [vmem:[%s1 + $0xec] sm:$0xf]
  %v98 = vld [vmem:[%s1 + $0xf0] sm:$0xf]
  %v99 = vld [vmem:[%s1 + $0xf4] sm:$0xf]
  %v100 = vld [vmem:[%s1 + $0xf8] sm:$0xf]
  %v101 = vld [vmem:[%s1 + $0xfc] sm:$0xf]
  %v102 = vld [vmem:[%s1 + $0x100] sm:$0xf]
  %v103 = vld [vmem:[%s1 + $0x104] sm:$0xf]
  %v104 = vld [vmem:[%s1 + $0x108] sm:$0xf]
  %v105 = vld [vmem:[%s1 + $0x10c] sm:$0xf]
  %v106 = vld [vmem:[%s1 + $0x110] sm:$0xf]
  %v107 = vld [vmem:[%s1 + $0x114] sm:$0xf]
  %v108 = vld [vmem:[%s1 + $0x118] sm:$0xf]
  %v109 = vld [vmem:[%s1 + $0x11c] sm:$0xf]
  %v110 = vld [vmem:[%s1 + $0x120] sm:$0xf]
  %v111 = vld [vmem:[%s1 + $0x124] sm:$0xf]
  %v112 = vld [vmem:[%s1 + $0x128] sm:$0xf]
  %v113 = vld [vmem:[%s1 + $0x12c] sm:$0xf]
  %v114 = vld [vmem:[%s1 + $0x130] sm:$0xf]
  %v115 = vld [vmem:[%s1 + $0x134] sm:$0xf]
  %v116 = vld [vmem:[%s1 + $0x138] sm:$0xf]
  %v117 = vld [vmem:[%s1 + $0x13c] sm:$0xf]
  %v118 = vld [vmem:[%s1 + $0x140] sm:$0xf]
  %v119 = vld [vmem:[%s1 + $0x144] sm:$0xf]
  %v120 = vld [vmem:[%s1 + $0x148] sm:$0xf]
  %v121 = vld [vmem:[%s1 + $0x14c] sm:$0xf]
  %v122 = vld [vmem:[%s1 + $0x150] sm:$0xf]
  %v123 = vld [vmem:[%s1 + $0x154] sm:$0xf]
  %v124 = vld [vmem:[%s1 + $0x158] sm:$0xf]
  %v125 = vld [vmem:[%s1 + $0x15c] sm:$0xf]
  %v126 = vld [vmem:[%s1 + $0x160] sm:$0xf]
  %v127 = vld [vmem:[%s1 + $0x164] sm:$0xf]
  %v128 = vld [vmem:[%s1 + $0x168] sm:$0xf]
  %v129 = vld [vmem:[%s1 + $0x16c] sm:$0xf]
  %v130 = vld [vmem:[%s1 + $0x170] sm:$0xf]
  %v131 = vld [vmem:[%s1 + $0x174] sm:$0xf]
  %v132 = vld [vmem:[%s1 + $0x178] sm:$0xf]
  %v133 = vld [vmem:[%s1 + $0x17c] sm:$0xf]
  %v134 = vld [vmem:[%s1 + $0x180] sm:$0xf]
  %v135 = vld [vmem:[%s1 + $0x184] sm:$0xf]
  %v136 = vld [vmem:[%s1 + $0x188] sm:$0xf]
  %v137 = vld [vmem:[%s1 + $0x18c] sm:$0xf]
  %v138 = vld [vmem:[%s1 + $0x190] sm:$0xf]
  %v139 = vld [vmem:[%s1 + $0x194] sm:$0xf]
  %v140 = vld [vmem:[%s1 + $0x198] sm:$0xf]
  %v141 = vld [vmem:[%s1 + $0x19c] sm:$0xf]
  %v142 = vld [vmem:[%s1 + $0x1a0] sm:$0xf]
  %v143 = vld [vmem:[%s1 + $0x1a4] sm:$0xf]
  %v144 = vld [vmem:[%s1 + $0x1a8] sm:$0xf]
  %v145 = vld [vmem:[%s1 + $0x1ac] sm:$0xf]
  %v146 = vld [vmem:[%s1 + $0x1b0] sm:$0xf]
  %v147 = vld [vmem:[%s1 + $0x1b4] sm:$0xf]
  %v148 = vld [vmem:[%s1 + $0x1b8] sm:$0xf]
  %v149 = vld [vmem:[%s1 + $0x1bc] sm:$0xf]
  %v150 = vld [vmem:[%s1 + $0x1c0] sm:$0xf]
  %v151 = vld [vmem:[%s1 + $0x1c4] sm:$0xf]
  %v152 = vld [vmem:[%s1 + $0x1c8] sm:$0xf]
  %v153 = vld [vmem:[%s1 + $0x1cc] sm:$0xf]
  %v154 = vld [vmem:[%s1 + $0x1d0] sm:$0xf]
  %v155 = vld [vmem:[%s1 + $0x1d4] sm:$0xf]
  %v156 = vld [vmem:[%s1 + $0x1d8] sm:$0xf]
  %v157 = vld [vmem:[%s1 + $0x1dc] sm:$0xf]
  %v158 = vld [vmem:[%s1 + $0x1e0] sm:$0xf]
  %v159 = vld [vmem:[%s1 + $0x1e4] sm:$0xf]
  %v160 = vld [vmem:[%s1 + $0x1e8] sm:$0xf]
  %v161 = vld [vmem:[%s1 + $0x1ec] sm:$0xf]
  %v162 = vld [vmem:[%s1 + $0x1f0] sm:$0xf]
  %v163 = vld [vmem:[%s1 + $0x1f4] sm:$0xf]
  %v164 = vld [vmem:[%s1 + $0x1f8] sm:$0xf]
  %v165 = vld [vmem:[%s1 + $0x1fc] sm:$0xf]
  %v166 = vld [vmem:[%s1 + $0x200] sm:$0xf]
  %v167 = vld [vmem:[%s1 + $0x204] sm:$0xf]
  %v168 = vld [vmem:[%s1 + $0x208] sm:$0xf]
  %v169 = vld [vmem:[%s1 + $0x20c] sm:$0xf]
  %v170 = vld [vmem:[%s1 + $0x210] sm:$0xf]
  %v171 = vld [vmem:[%s1 + $0x214] sm:$0xf]
  %v172 = vld [vmem:[%s1 + $0x218] sm:$0xf]
  %v173 = vld [vmem:[%s1 + $0x21c] sm:$0xf]
  %v174 = vld [vmem:[%s1 + $0x220] sm:$0xf]
  %v175 = vld [vmem:[%s1 + $0x224] sm:$0xf]
  %v176 = vld [vmem:[%s1 + $0x228] sm:$0xf]
  %v177 = vld [vmem:[%s1 + $0x22c] sm:$0xf]
  %v178 = vld [vmem:[%s1 + $0x230] sm:$0xf]
  %v179 = vld [vmem:[%s1 + $0x234] sm:$0xf]
  %v180 = vld [vmem:[%s1 + $0x238] sm:$0xf]
  %v181 = vld [vmem:[%s1 + $0x23c] sm:$0xf]
  %v182 = vperm.slane %v17, 0
  %v203 = vunpack.c.l.b16 %v18
  %v204 = vunpack.c.h.b16 %v18
  %v205 = vunpack.c.l.b16 %v19
  %v206 = vunpack.c.h.b16 %v19
  %v207 = vunpack.c.l.b16 %v20
  %v208 = vunpack.c.h.b16 %v20
  %v209 = vunpack.c.l.b16 %v21
  %v210 = vunpack.c.h.b16 %v21
  %v211 = vunpack.c.l.b16 %v22
  %v212 = vunpack.c.l.b16 %v23
  %v213 = vunpack.c.h.b16 %v23
  %v214 = vunpack.c.l.b16 %v24
  %v215 = vunpack.c.h.b16 %v24
  %v216 = vunpack.c.l.b16 %v25
  %v217 = vunpack.c.h.b16 %v25
  %v218 = vunpack.c.l.b16 %v26
  %v219 = vunpack.c.h.b16 %v26
  %v220 = vunpack.c.l.b16 %v27
  %v221 = vunpack.c.l.b16 %v28
  %v222 = vunpack.c.h.b16 %v28
  %v223 = vunpack.c.l.b16 %v29
  %v224 = vunpack.c.h.b16 %v29
  %v225 = vunpack.c.l.b16 %v30
  %v226 = vunpack.c.h.b16 %v30
  %v227 = vunpack.c.l.b16 %v31
  %v228 = vunpack.c.h.b16 %v31
  %v229 = vunpack.c.l.b16 %v32
  %v230 = vunpack.c.l.b16 %v33
  %v231 = vunpack.c.h.b16 %v33
  %v232 = vunpack.c.l.b16 %v34
  %v233 = vunpack.c.h.b16 %v34
  %v234 = vunpack.c.l.b16 %v35
  %v235 = vunpack.c.h.b16 %v35
  %v236 = vunpack.c.l.b16 %v36
  %v237 = vunpack.c.h.b16 %v36
  %v238 = vunpack.c.l.b16 %v37
  %v239 = vpack.c.b16 %v212, %v203
  %v240 = vpack.c.b16 %v213, %v204
  %v241 = vpack.c.b16 %v214, %v205
  %v242 = vpack.c.b16 %v215, %v206
  %v243 = vpack.c.b16 %v216, %v207
  %v244 = vpack.c.b16 %v217, %v208
  %v245 = vpack.c.b16 %v218, %v209
  %v246 = vpack.c.b16 %v219, %v210
  %v247 = vpack.c.b16 %v220, %v211
  %v248 = vpack.c.b16 %v230, %v221
  %v249 = vpack.c.b16 %v231, %v222
  %v250 = vpack.c.b16 %v232, %v223
  %v251 = vpack.c.b16 %v233, %v224
  %v252 = vpack.c.b16 %v234, %v225
  %v253 = vpack.c.b16 %v235, %v226
  %v254 = vpack.c.b16 %v236, %v227
  %v255 = vpack.c.b16 %v237, %v228
  %v256 = vpack.c.b16 %v238, %v229
  %v419 = vunpack.c.l.b16 %v38
  %v420 = vunpack.c.l.b16 %v39
  %v421 = vunpack.c.l.b16 %v40
  %v422 = vunpack.c.l.b16 %v41
  %v423 = vunpack.c.l.b16 %v42
  %v424 = vunpack.c.l.b16 %v43
  %v425 = vunpack.c.l.b16 %v44
  %v426 = vunpack.c.l.b16 %v45
  %v427 = vunpack.c.l.b16 %v46
  %v428 = vunpack.c.l.b16 %v47
  %v429 = vunpack.c.l.b16 %v48
  %v430 = vunpack.c.l.b16 %v49
  %v431 = vunpack.c.l.b16 %v50
  %v432 = vunpack.c.l.b16 %v51
  %v433 = vunpack.c.l.b16 %v52
  %v434 = vunpack.c.l.b16 %v53
  %v435 = vunpack.c.l.b16 %v54
  %v436 = vunpack.c.l.b16 %v55
  %v437 = vunpack.c.l.b16 %v56
  %v438 = vunpack.c.l.b16 %v57
  %v439 = vunpack.c.l.b16 %v58
  %v440 = vunpack.c.l.b16 %v59
  %v441 = vunpack.c.l.b16 %v60
  %v442 = vunpack.c.l.b16 %v61
  %v443 = vunpack.c.l.b16 %v62
  %v444 = vunpack.c.l.b16 %v63
  %v445 = vunpack.c.l.b16 %v64
  %v446 = vunpack.c.l.b16 %v65
  %v447 = vunpack.c.l.b16 %v66
  %v448 = vunpack.c.l.b16 %v67
  %v449 = vunpack.c.l.b16 %v68
  %v450 = vunpack.c.l.b16 %v69
  %v451 = vunpack.c.l.b16 %v70
  %v452 = vunpack.c.l.b16 %v71
  %v453 = vunpack.c.l.b16 %v72
  %v454 = vunpack.c.l.b16 %v73
  %v455 = vunpack.c.l.b16 %v74
  %v456 = vunpack.c.l.b16 %v75
  %v457 = vunpack.c.l.b16 %v76
  %v458 = vunpack.c.l.b16 %v77
  %v459 = vunpack.c.l.b16 %v78
  %v460 = vunpack.c.l.b16 %v79
  %v461 = vunpack.c.l.b16 %v80
  %v462 = vunpack.c.l.b16 %v81
  %v463 = vunpack.c.l.b16 %v82
  %v464 = vunpack.c.l.b16 %v83
  %v465 = vunpack.c.l.b16 %v84
  %v466 = vunpack.c.l.b16 %v85
  %v467 = vunpack.c.l.b16 %v86
  %v468 = vunpack.c.l.b16 %v87
  %v469 = vunpack.c.l.b16 %v88
  %v470 = vunpack.c.l.b16 %v89
  %v471 = vunpack.c.l.b16 %v90
  %v472 = vunpack.c.l.b16 %v91
  %v473 = vunpack.c.l.b16 %v92
  %v474 = vunpack.c.l.b16 %v93
  %v475 = vunpack.c.l.b16 %v94
  %v476 = vunpack.c.l.b16 %v95
  %v477 = vunpack.c.l.b16 %v96
  %v478 = vunpack.c.l.b16 %v97
  %v479 = vunpack.c.l.b16 %v98
  %v480 = vunpack.c.l.b16 %v99
  %v481 = vunpack.c.l.b16 %v100
  %v482 = vunpack.c.l.b16 %v101
  %v483 = vunpack.c.l.b16 %v102
  %v484 = vunpack.c.l.b16 %v103
  %v485 = vunpack.c.l.b16 %v104
  %v486 = vunpack.c.l.b16 %v105
  %v487 = vunpack.c.l.b16 %v106
  %v488 = vunpack.c.l.b16 %v107
  %v489 = vunpack.c.l.b16 %v108
  %v490 = vunpack.c.l.b16 %v109
  %v491 = vunpack.c.l.b16 %v110
  %v492 = vunpack.c.l.b16 %v111
  %v493 = vunpack.c.l.b16 %v112
  %v494 = vunpack.c.l.b16 %v113
  %v495 = vunpack.c.l.b16 %v114
  %v496 = vunpack.c.l.b16 %v115
  %v497 = vunpack.c.l.b16 %v116
  %v498 = vunpack.c.l.b16 %v117
  %v499 = vunpack.c.l.b16 %v118
  %v500 = vunpack.c.l.b16 %v119
  %v501 = vunpack.c.l.b16 %v120
  %v502 = vunpack.c.l.b16 %v121
  %v503 = vunpack.c.l.b16 %v122
  %v504 = vunpack.c.l.b16 %v123
  %v505 = vunpack.c.l.b16 %v124
  %v506 = vunpack.c.l.b16 %v125
  %v507 = vunpack.c.l.b16 %v126
  %v508 = vunpack.c.l.b16 %v127
  %v509 = vunpack.c.l.b16 %v128
  %v510 = vunpack.c.l.b16 %v129
  %v511 = vunpack.c.l.b16 %v130
  %v512 = vunpack.c.l.b16 %v131
  %v513 = vunpack.c.l.b16 %v132
  %v514 = vunpack.c.l.b16 %v133
  %v515 = vunpack.c.l.b16 %v134
  %v516 = vunpack.c.l.b16 %v135
  %v517 = vunpack.c.l.b16 %v136
  %v518 = vunpack.c.l.b16 %v137
  %v519 = vunpack.c.l.b16 %v138
  %v520 = vunpack.c.l.b16 %v139
  %v521 = vunpack.c.l.b16 %v140
  %v522 = vunpack.c.l.b16 %v141
  %v523 = vunpack.c.l.b16 %v142
  %v524 = vunpack.c.l.b16 %v143
  %v525 = vunpack.c.l.b16 %v144
  %v526 = vunpack.c.l.b16 %v145
  %v527 = vunpack.c.l.b16 %v146
  %v528 = vunpack.c.l.b16 %v147
  %v529 = vunpack.c.l.b16 %v148
  %v530 = vunpack.c.l.b16 %v149
  %v531 = vunpack.c.l.b16 %v150
  %v532 = vunpack.c.l.b16 %v151
  %v533 = vunpack.c.l.b16 %v152
  %v534 = vunpack.c.l.b16 %v153
  %v535 = vunpack.c.l.b16 %v154
  %v536 = vunpack.c.l.b16 %v155
  %v537 = vunpack.c.l.b16 %v156
  %v538 = vunpack.c.l.b16 %v157
  %v539 = vunpack.c.l.b16 %v158
  %v540 = vunpack.c.l.b16 %v159
  %v541 = vunpack.c.l.b16 %v160
  %v542 = vunpack.c.l.b16 %v161
  %v543 = vunpack.c.l.b16 %v162
  %v544 = vunpack.c.l.b16 %v163
  %v545 = vunpack.c.l.b16 %v164
  %v546 = vunpack.c.l.b16 %v165
  %v547 = vunpack.c.l.b16 %v166
  %v548 = vunpack.c.l.b16 %v167
  %v549 = vunpack.c.l.b16 %v168
  %v550 = vunpack.c.l.b16 %v169
  %v551 = vunpack.c.l.b16 %v170
  %v552 = vunpack.c.l.b16 %v171
  %v553 = vunpack.c.l.b16 %v172
  %v554 = vunpack.c.l.b16 %v173
  %v555 = vunpack.c.l.b16 %v174
  %v556 = vunpack.c.l.b16 %v175
  %v557 = vunpack.c.l.b16 %v176
  %v558 = vunpack.c.l.b16 %v177
  %v559 = vunpack.c.l.b16 %v178
  %v560 = vunpack.c.l.b16 %v179
  %v561 = vunpack.c.l.b16 %v180
  %v562 = vunpack.c.l.b16 %v181
  %v563 = vpack.c.b16 %v420, %v419
  %v564 = vpack.c.b16 %v422, %v421
  %v565 = vpack.c.b16 %v424, %v423
  %v566 = vpack.c.b16 %v426, %v425
  %v567 = vpack.c.b16 %v428, %v427
  %v568 = vpack.c.b16 %v430, %v429
  %v569 = vpack.c.b16 %v432, %v431
  %v570 = vpack.c.b16 %v434, %v433
  %v571 = vpack.c.b16 %v436, %v435
  %v572 = vpack.c.b16 %v438, %v437
  %v573 = vpack.c.b16 %v440, %v439
  %v574 = vpack.c.b16 %v442, %v441
  %v575 = vpack.c.b16 %v444, %v443
  %v576 = vpack.c.b16 %v446, %v445
  %v577 = vpack.c.b16 %v448, %v447
  %v578 = vpack.c.b16 %v450, %v449
  %v579 = vpack.c.b16 %v452, %v451
  %v580 = vpack.c.b16 %v454, %v453
  %v581 = vpack.c.b16 %v456, %v455
  %v582 = vpack.c.b16 %v458, %v457
  %v583 = vpack.c.b16 %v460, %v459
  %v584 = vpack.c.b16 %v462, %v461
  %v585 = vpack.c.b16 %v464, %v463
  %v586 = vpack.c.b16 %v466, %v465
  %v587 = vpack.c.b16 %v468, %v467
  %v588 = vpack.c.b16 %v470, %v469
  %v589 = vpack.c.b16 %v472, %v471
  %v590 = vpack.c.b16 %v474, %v473
  %v591 = vpack.c.b16 %v476, %v475
  %v592 = vpack.c.b16 %v478, %v477
  %v593 = vpack.c.b16 %v480, %v479
  %v594 = vpack.c.b16 %v482, %v481
  %v595 = vpack.c.b16 %v484, %v483
  %v596 = vpack.c.b16 %v486, %v485
  %v597 = vpack.c.b16 %v488, %v487
  %v598 = vpack.c.b16 %v490, %v489
  %v599 = vpack.c.b16 %v492, %v491
  %v600 = vpack.c.b16 %v494, %v493
  %v601 = vpack.c.b16 %v496, %v495
  %v602 = vpack.c.b16 %v498, %v497
  %v603 = vpack.c.b16 %v500, %v499
  %v604 = vpack.c.b16 %v502, %v501
  %v605 = vpack.c.b16 %v504, %v503
  %v606 = vpack.c.b16 %v506, %v505
  %v607 = vpack.c.b16 %v508, %v507
  %v608 = vpack.c.b16 %v510, %v509
  %v609 = vpack.c.b16 %v512, %v511
  %v610 = vpack.c.b16 %v514, %v513
  %v611 = vpack.c.b16 %v516, %v515
  %v612 = vpack.c.b16 %v518, %v517
  %v613 = vpack.c.b16 %v520, %v519
  %v614 = vpack.c.b16 %v522, %v521
  %v615 = vpack.c.b16 %v524, %v523
  %v616 = vpack.c.b16 %v526, %v525
  %v617 = vpack.c.b16 %v528, %v527
  %v618 = vpack.c.b16 %v530, %v529
  %v619 = vpack.c.b16 %v532, %v531
  %v620 = vpack.c.b16 %v534, %v533
  %v621 = vpack.c.b16 %v536, %v535
  %v622 = vpack.c.b16 %v538, %v537
  %v623 = vpack.c.b16 %v540, %v539
  %v624 = vpack.c.b16 %v542, %v541
  %v625 = vpack.c.b16 %v544, %v543
  %v626 = vpack.c.b16 %v546, %v545
  %v627 = vpack.c.b16 %v548, %v547
  %v628 = vpack.c.b16 %v550, %v549
  %v629 = vpack.c.b16 %v552, %v551
  %v630 = vpack.c.b16 %v554, %v553
  %v631 = vpack.c.b16 %v556, %v555
  %v632 = vpack.c.b16 %v558, %v557
  %v633 = vpack.c.b16 %v560, %v559
  %v634 = vpack.c.b16 %v562, %v561
  %707 = vmatpush.bf16.msra.mxu0 %v570
  %708 = vmatpush.bf16.msra.mxu0 %v569
  %709 = vmatpush.bf16.msra.mxu0 %v568
  %710 = vmatpush.bf16.msra.mxu0 %v567
  %711 = vmatpush.bf16.msra.mxu0 %v566
  %712 = vmatpush.bf16.msra.mxu0 %v565
  %713 = vmatpush.bf16.msra.mxu0 %v564
  %714 = vmatpush.bf16.msra.mxu0 %v563
  %715 = vmatmul.bf16.gmra.mxu0 %v239
  %v716 = vpop.f32.mrf.mxu0
  %v717 = vadd.f32 %v182, %v716
  %v718 = vpop.f32.mrf.mxu0
  %v719 = vadd.f32 %v182, %v718
  %720 = vmatmul.bf16.gmra.mxu0 %v248
  %v721 = vpop.f32.mrf.mxu0
  %v722 = vadd.f32 %v182, %v721
  %v723 = vpop.f32.mrf.mxu0
  %v724 = vadd.f32 %v182, %v723
  %725 = vdwg.mxu0
  %726 = vmatpush.bf16.msra.mxu0 %v578
  %727 = vmatpush.bf16.msra.mxu0 %v577
  %728 = vmatpush.bf16.msra.mxu0 %v576
  %729 = vmatpush.bf16.msra.mxu0 %v575
  %730 = vmatpush.bf16.msra.mxu0 %v574
  %731 = vmatpush.bf16.msra.mxu0 %v573
  %732 = vmatpush.bf16.msra.mxu0 %v572
  %733 = vmatpush.bf16.msra.mxu0 %v571
  %734 = vmatmul.bf16.gmra.mxu0 %v240
  %v735 = vpop.f32.mrf.mxu0
  %v736 = vadd.f32 %v717, %v735
  %v737 = vpop.f32.mrf.mxu0
  %v738 = vadd.f32 %v719, %v737
  %739 = vmatmul.bf16.gmra.mxu0 %v249
  %v740 = vpop.f32.mrf.mxu0
  %v741 = vadd.f32 %v722, %v740
  %v742 = vpop.f32.mrf.mxu0
  %v743 = vadd.f32 %v724, %v742
  %744 = vdwg.mxu0
  %745 = vmatpush.bf16.msra.mxu0 %v586
  %746 = vmatpush.bf16.msra.mxu0 %v585
  %747 = vmatpush.bf16.msra.mxu0 %v584
  %748 = vmatpush.bf16.msra.mxu0 %v583
  %749 = vmatpush.bf16.msra.mxu0 %v582
  %750 = vmatpush.bf16.msra.mxu0 %v581
  %751 = vmatpush.bf16.msra.mxu0 %v580
  %752 = vmatpush.bf16.msra.mxu0 %v579
  %753 = vmatmul.bf16.gmra.mxu0 %v241
  %v754 = vpop.f32.mrf.mxu0
  %v755 = vadd.f32 %v736, %v754
  %v756 = vpop.f32.mrf.mxu0
  %v757 = vadd.f32 %v738, %v756
  %758 = vmatmul.bf16.gmra.mxu0 %v250
  %v759 = vpop.f32.mrf.mxu0
  %v760 = vadd.f32 %v741, %v759
  %v761 = vpop.f32.mrf.mxu0
  %v762 = vadd.f32 %v743, %v761
  %763 = vdwg.mxu0
  %764 = vmatpush.bf16.msra.mxu0 %v594
  %765 = vmatpush.bf16.msra.mxu0 %v593
  %766 = vmatpush.bf16.msra.mxu0 %v592
  %767 = vmatpush.bf16.msra.mxu0 %v591
  %768 = vmatpush.bf16.msra.mxu0 %v590
  %769 = vmatpush.bf16.msra.mxu0 %v589
  %770 = vmatpush.bf16.msra.mxu0 %v588
  %771 = vmatpush.bf16.msra.mxu0 %v587
  %772 = vmatmul.bf16.gmra.mxu0 %v242
  %v773 = vpop.f32.mrf.mxu0
  %v774 = vadd.f32 %v755, %v773
  %v775 = vpop.f32.mrf.mxu0
  %v776 = vadd.f32 %v757, %v775
  %777 = vmatmul.bf16.gmra.mxu0 %v251
  %v778 = vpop.f32.mrf.mxu0
  %v779 = vadd.f32 %v760, %v778
  %v780 = vpop.f32.mrf.mxu0
  %v781 = vadd.f32 %v762, %v780
  %782 = vdwg.mxu0
  %783 = vmatpush.bf16.msra.mxu0 %v602
  %784 = vmatpush.bf16.msra.mxu0 %v601
  %785 = vmatpush.bf16.msra.mxu0 %v600
  %786 = vmatpush.bf16.msra.mxu0 %v599
  %787 = vmatpush.bf16.msra.mxu0 %v598
  %788 = vmatpush.bf16.msra.mxu0 %v597
  %789 = vmatpush.bf16.msra.mxu0 %v596
  %790 = vmatpush.bf16.msra.mxu0 %v595
  %791 = vmatmul.bf16.gmra.mxu0 %v243
  %v792 = vpop.f32.mrf.mxu0
  %v793 = vadd.f32 %v774, %v792
  %v794 = vpop.f32.mrf.mxu0
  %v795 = vadd.f32 %v776, %v794
  %796 = vmatmul.bf16.gmra.mxu0 %v252
  %v797 = vpop.f32.mrf.mxu0
  %v798 = vadd.f32 %v779, %v797
  %v799 = vpop.f32.mrf.mxu0
  %v800 = vadd.f32 %v781, %v799
  %801 = vdwg.mxu0
  %802 = vmatpush.bf16.msra.mxu0 %v610
  %803 = vmatpush.bf16.msra.mxu0 %v609
  %804 = vmatpush.bf16.msra.mxu0 %v608
  %805 = vmatpush.bf16.msra.mxu0 %v607
  %806 = vmatpush.bf16.msra.mxu0 %v606
  %807 = vmatpush.bf16.msra.mxu0 %v605
  %808 = vmatpush.bf16.msra.mxu0 %v604
  %809 = vmatpush.bf16.msra.mxu0 %v603
  %810 = vmatmul.bf16.gmra.mxu0 %v244
  %v811 = vpop.f32.mrf.mxu0
  %v812 = vadd.f32 %v793, %v811
  %v813 = vpop.f32.mrf.mxu0
  %v814 = vadd.f32 %v795, %v813
  %815 = vmatmul.bf16.gmra.mxu0 %v253
  %v816 = vpop.f32.mrf.mxu0
  %v817 = vadd.f32 %v798, %v816
  %v818 = vpop.f32.mrf.mxu0
  %v819 = vadd.f32 %v800, %v818
  %820 = vdwg.mxu0
  %821 = vmatpush.bf16.msra.mxu0 %v618
  %822 = vmatpush.bf16.msra.mxu0 %v617
  %823 = vmatpush.bf16.msra.mxu0 %v616
  %824 = vmatpush.bf16.msra.mxu0 %v615
  %825 = vmatpush.bf16.msra.mxu0 %v614
  %826 = vmatpush.bf16.msra.mxu0 %v613
  %827 = vmatpush.bf16.msra.mxu0 %v612
  %828 = vmatpush.bf16.msra.mxu0 %v611
  %829 = vmatmul.bf16.gmra.mxu0 %v245
  %v830 = vpop.f32.mrf.mxu0
  %v831 = vadd.f32 %v812, %v830
  %v832 = vpop.f32.mrf.mxu0
  %v833 = vadd.f32 %v814, %v832
  %834 = vmatmul.bf16.gmra.mxu0 %v254
  %v835 = vpop.f32.mrf.mxu0
  %v836 = vadd.f32 %v817, %v835
  %v837 = vpop.f32.mrf.mxu0
  %v838 = vadd.f32 %v819, %v837
  %839 = vdwg.mxu0
  %840 = vmatpush.bf16.msra.mxu0 %v626
  %841 = vmatpush.bf16.msra.mxu0 %v625
  %842 = vmatpush.bf16.msra.mxu0 %v624
  %843 = vmatpush.bf16.msra.mxu0 %v623
  %844 = vmatpush.bf16.msra.mxu0 %v622
  %845 = vmatpush.bf16.msra.mxu0 %v621
  %846 = vmatpush.bf16.msra.mxu0 %v620
  %847 = vmatpush.bf16.msra.mxu0 %v619
  %848 = vmatmul.bf16.gmra.mxu0 %v246
  %v849 = vpop.f32.mrf.mxu0
  %v850 = vadd.f32 %v831, %v849
  %v851 = vpop.f32.mrf.mxu0
  %v852 = vadd.f32 %v833, %v851
  %853 = vmatmul.bf16.gmra.mxu0 %v255
  %v854 = vpop.f32.mrf.mxu0
  %v855 = vadd.f32 %v836, %v854
  %v856 = vpop.f32.mrf.mxu0
  %v857 = vadd.f32 %v838, %v856
  %858 = vdwg.mxu0
  %859 = vmatpush.bf16.msra.mxu0 %v634
  %860 = vmatpush.bf16.msra.mxu0 %v633
  %861 = vmatpush.bf16.msra.mxu0 %v632
  %862 = vmatpush.bf16.msra.mxu0 %v631
  %863 = vmatpush.bf16.msra.mxu0 %v630
  %864 = vmatpush.bf16.msra.mxu0 %v629
  %865 = vmatpush.bf16.msra.mxu0 %v628
  %866 = vmatpush.bf16.msra.mxu0 %v627
  %867 = vmatmul.bf16.gmra.mxu0 %v247
  %v868 = vpop.f32.mrf.mxu0
  %v869 = vadd.f32 %v850, %v868
  %v870 = vpop.f32.mrf.mxu0
  %v871 = vadd.f32 %v852, %v870
  %872 = vmatmul.bf16.gmra.mxu0 %v256
  %v873 = vpop.f32.mrf.mxu0
  %v874 = vadd.f32 %v855, %v873
  %v875 = vpop.f32.mrf.mxu0
  %v876 = vadd.f32 %v857, %v875
  %877 = vdwg.mxu0
  %v878 = vadd.f32 %v869, %v871
  %v879 = vadd.f32 %v878, %v874
  %v880 = vadd.f32 %v879, %v876
  %v881 = vrot.slane %v880, 4
  %v882 = vadd.f32 %v880, %v881
  %v883 = vrot.slane %v882, 2
  %v884 = vadd.f32 %v882, %v883
  %v885 = vrot.slane %v884, 1
  %v886 = vadd.f32 %v884, %v885
  %v887 = vmul.f32 %v886, 0.03125
  %v888 = vsub.f32 %v869, %v887
  %v889 = vsub.f32 %v871, %v887
  %v890 = vsub.f32 %v874, %v887
  %v891 = vsub.f32 %v876, %v887
  %v892 = vmul.f32 %v888, %v888
  %v893 = vmul.f32 %v889, %v889
  %v894 = vmul.f32 %v890, %v890
  %v895 = vmul.f32 %v891, %v891
  %v896 = vadd.f32 %v892, %v893
  %v897 = vadd.f32 %v896, %v894
  %v898 = vadd.f32 %v897, %v895
  %v899 = vrot.slane %v898, 4
  %v900 = vadd.f32 %v898, %v899
  %v901 = vrot.slane %v900, 2
  %v902 = vadd.f32 %v900, %v901
  %v903 = vrot.slane %v902, 1
  %v904 = vadd.f32 %v902, %v903
  %v905 = vmul.f32 %v904, 0.03125
  %v906 = vmax.f32 %v905, 0.0
  %v907 = vadd.f32 %v906, 1e-05
  %v908 = vrsqrt.pop %v907
  %v909 = vmul.f32 %v908, %v907
  %v910 = vmul.f32 %v909, %v908
  %v911 = vmul.f32 0.5, %v910
  %v912 = vsub.f32 1.5, %v911
  %v913 = vmul.f32 %v908, %v912
  %vm914 = vweird.f32 %v907
  %vm915 = vweird.f32 %v908
  %vm916 = vmor %vm914, %vm915
  %v917 = vsel %vm916, %v908, %v913
  %v918 = vmul.f32 %v17, %v917
  %v919 = vmul.f32 %v887, %v918
  %v921 = vrot.slane %v919, 7
  %v923 = vsub.f32 %v17, %v921
  %v924 = vperm.slane %v918, 1
  %v925 = vmul.f32 %v869, %v924
  %v926 = vmul.f32 %v871, %v924
  %v927 = vmul.f32 %v874, %v924
  %v928 = vmul.f32 %v876, %v924
  %v929 = vperm.slane %v923, 2
  %v930 = vadd.f32 %v925, %v929
  %v931 = vadd.f32 %v926, %v929
  %v932 = vadd.f32 %v927, %v929
  %v933 = vadd.f32 %v928, %v929
  %v934 = vld [vmem:[%s3] sm:$0xf]
  %v935 = vld [vmem:[%s3 + $0x4] sm:$0xf]
  %v936 = vld [vmem:[%s3 + $0x8] sm:$0xf]
  %v937 = vld [vmem:[%s3 + $0xc] sm:$0xf]
  %v938 = vunpack.c.l.bf16 %v934
  %v939 = vunpack.c.l.bf16 %v935
  %v940 = vunpack.c.l.bf16 %v936
  %v941 = vunpack.c.l.bf16 %v937
  %v942 = vadd.f32 %v930, %v938
  %v943 = vadd.f32 %v931, %v939
  %v944 = vadd.f32 %v932, %v940
  %v945 = vadd.f32 %v933, %v941
  %v946 = vmax.f32 %v942, 0.0
  %v947 = vmax.f32 %v943, 0.0
  %v948 = vmax.f32 %v944, 0.0
  %v949 = vmax.f32 %v945, 0.0
  %v950 = vpack.c.bf16 %v946, %v946
  %v951 = vpack.c.bf16 %v947, %v947
  %v952 = vpack.c.bf16 %v948, %v948
  %v953 = vpack.c.bf16 %v949, %v949
  %954 = vst [vmem:[%s4] sm:$0xf] %v950
  %955 = vst [vmem:[%s4 + $0x4] sm:$0xf] %v951
  %956 = vst [vmem:[%s4 + $0x8] sm:$0xf] %v952
  %957 = vst [vmem:[%s4 + $0xc] sm:$0xf] %v953
  // Predicated region
  $region18: #{colorization_forward.20} parent=0 // pred_check
    _
  $region19: #{colorization_forward.20} parent=0 // pred_check_branch
    %959 = sbr.rel (0) target = $region21
  $region20: #{colorization_forward.20} parent=0 // pred_region
    _
  $region21: #{colorization_forward.20} parent=0 // pred_fallthru
    _
  // Predicated region
  $region22: #{colorization_forward.20} parent=0 // pred_check
    _
  $region23: #{colorization_forward.20} parent=0 // pred_check_branch
    %961 = sbr.rel (0) target = $region25
  $region24: #{colorization_forward.20} parent=0 // pred_region
    _
  $region25: #{colorization_forward.20} parent=0 // pred_fallthru
    _

// kernel: colorization_forward.21
$region0: #{colorization_forward.21}
  #allocation0 [shape = 'u32[]', space=smem, size = 0x4, offset = 0x4, fixed_abs, tag = 'smem constant byte address 0x4 - core index']
  #allocation1 [shape = 'u32[72,128]{1,0:T(1,128)}', space=vmem, size = 0x9000, scoped, tag = 'internal scratch']
  %s0 = inlined_call_operand.vmem [shape: bf16[32,1152], index: 0, kind: input, shape index: {}]
  %s1 = inlined_call_operand.vmem [shape: bf16[1152,128], index: 1, kind: input, shape index: {}]
  %s2 = inlined_call_operand.vmem [shape: f32[8,128], index: 2, kind: input, shape index: {}]
  %s3 = inlined_call_operand.vmem [shape: bf16[32,128], index: 3, kind: output, shape index: {}]
  %s4 = sld [smem:[#allocation0]]
  $region22: #{colorization_forward.21} parent=0
    _
  %s6 = ssub.s32 1, %s4
  %s7 = scalar_select 0, %s6, %s4
  // Predicated region
  $region2: #{colorization_forward.21} parent=0 // pred_check
    _
  $region3: #{colorization_forward.21} parent=0 // pred_check_branch
    %9 = sbr.rel (0) target = $region5
  $region4: #{colorization_forward.21} parent=0 // pred_region
    _
  $region5: #{colorization_forward.21} parent=0 // pred_fallthru
    _
  // Predicated region
  $region6: #{colorization_forward.21} parent=0 // pred_check
    _
  $region7: #{colorization_forward.21} parent=0 // pred_check_branch
    %11 = sbr.rel (0) target = $region9
  $region8: #{colorization_forward.21} parent=0 // pred_region
    _
  $region9: #{colorization_forward.21} parent=0 // pred_fallthru
    _
  // Predicated region
  $region10: #{colorization_forward.21} parent=0 // pred_check
    _
  $region11: #{colorization_forward.21} parent=0 // pred_check_branch
    %13 = sbr.rel (0) target = $region13
  $region12: #{colorization_forward.21} parent=0 // pred_region
    _
  $region13: #{colorization_forward.21} parent=0 // pred_fallthru
    _
  %v14 = vld [vmem:[%s2] sm:$0xff]
  %v15 = vld [vmem:[%s0] sm:$0xff]
  %v16 = vld [vmem:[%s0 + $0x8] sm:$0xff]
  %v17 = vld [vmem:[%s0 + $0x10] sm:$0xff]
  %v18 = vld [vmem:[%s0 + $0x18] sm:$0xff]
  %v19 = vld [vmem:[%s0 + $0x20] sm:$0xf]
  %v20 = vld [vmem:[%s0 + $0x24] sm:$0xff]
  %v21 = vld [vmem:[%s0 + $0x2c] sm:$0xff]
  %v22 = vld [vmem:[%s0 + $0x34] sm:$0xff]
  %v23 = vld [vmem:[%s0 + $0x3c] sm:$0xff]
  %v24 = vld [vmem:[%s0 + $0x44] sm:$0xf]
  %v25 = vld [vmem:[%s0 + $0x48] sm:$0xff]
  %v26 = vld [vmem:[%s0 + $0x50] sm:$0xff]
  %v27 = vld [vmem:[%s0 + $0x58] sm:$0xff]
  %v28 = vld [vmem:[%s0 + $0x60] sm:$0xff]
  %v29 = vld [vmem:[%s0 + $0x68] sm:$0xf]
  %v30 = vld [vmem:[%s0 + $0x6c] sm:$0xff]
  %v31 = vld [vmem:[%s0 + $0x74] sm:$0xff]
  %v32 = vld [vmem:[%s0 + $0x7c] sm:$0xff]
  %v33 = vld [vmem:[%s0 + $0x84] sm:$0xff]
  %v34 = vld [vmem:[%s0 + $0x8c] sm:$0xf]
  %v35 = vld [vmem:[%s1] sm:$0xf]
  %v36 = vld [vmem:[%s1 + $0x4] sm:$0xf]
  %v37 = vld [vmem:[%s1 + $0x8] sm:$0xf]
  %v38 = vld [vmem:[%s1 + $0xc] sm:$0xf]
  %v39 = vld [vmem:[%s1 + $0x10] sm:$0xf]
  %v40 = vld [vmem:[%s1 + $0x14] sm:$0xf]
  %v41 = vld [vmem:[%s1 + $0x18] sm:$0xf]
  %v42 = vld [vmem:[%s1 + $0x1c] sm:$0xf]
  %v43 = vld [vmem:[%s1 + $0x20] sm:$0xf]
  %v44 = vld [vmem:[%s1 + $0x24] sm:$0xf]
  %v45 = vld [vmem:[%s1 + $0x28] sm:$0xf]
  %v46 = vld [vmem:[%s1 + $0x2c] sm:$0xf]
  %v47 = vld [vmem:[%s1 + $0x30] sm:$0xf]
  %v48 = vld [vmem:[%s1 + $0x34] sm:$0xf]
  %v49 = vld [vmem:[%s1 + $0x38] sm:$0xf]
  %v50 = vld [vmem:[%s1 + $0x3c] sm:$0xf]
  %v51 = vld [vmem:[%s1 + $0x40] sm:$0xf]
  %v52 = vld [vmem:[%s1 + $0x44] sm:$0xf]
  %v53 = vld [vmem:[%s1 + $0x48] sm:$0xf]
  %v54 = vld [vmem:[%s1 + $0x4c] sm:$0xf]
  %v55 = vld [vmem:[%s1 + $0x50] sm:$0xf]
  %v56 = vld [vmem:[%s1 + $0x54] sm:$0xf]
  %v57 = vld [vmem:[%s1 + $0x58] sm:$0xf]
  %v58 = vld [vmem:[%s1 + $0x5c] sm:$0xf]
  %v59 = vld [vmem:[%s1 + $0x60] sm:$0xf]
  %v60 = vld [vmem:[%s1 + $0x64] sm:$0xf]
  %v61 = vld [vmem:[%s1 + $0x68] sm:$0xf]
  %v62 = vld [vmem:[%s1 + $0x6c] sm:$0xf]
  %v63 = vld [vmem:[%s1 + $0x70] sm:$0xf]
  %v64 = vld [vmem:[%s1 + $0x74] sm:$0xf]
  %v65 = vld [vmem:[%s1 + $0x78] sm:$0xf]
  %v66 = vld [vmem:[%s1 + $0x7c] sm:$0xf]
  %v67 = vld [vmem:[%s1 + $0x80] sm:$0xf]
  %v68 = vld [vmem:[%s1 + $0x84] sm:$0xf]
  %v69 = vld [vmem:[%s1 + $0x88] sm:$0xf]
  %v70 = vld [vmem:[%s1 + $0x8c] sm:$0xf]
  %v71 = vld [vmem:[%s1 + $0x90] sm:$0xf]
  %v72 = vld [vmem:[%s1 + $0x94] sm:$0xf]
  %v73 = vld [vmem:[%s1 + $0x98] sm:$0xf]
  %v74 = vld [vmem:[%s1 + $0x9c] sm:$0xf]
  %v75 = vld [vmem:[%s1 + $0xa0] sm:$0xf]
  %v76 = vld [vmem:[%s1 + $0xa4] sm:$0xf]
  %v77 = vld [vmem:[%s1 + $0xa8] sm:$0xf]
  %v78 = vld [vmem:[%s1 + $0xac] sm:$0xf]
  %v79 = vld [vmem:[%s1 + $0xb0] sm:$0xf]
  %v80 = vld [vmem:[%s1 + $0xb4] sm:$0xf]
  %v81 = vld [vmem:[%s1 + $0xb8] sm:$0xf]
  %v82 = vld [vmem:[%s1 + $0xbc] sm:$0xf]
  %v83 = vld [vmem:[%s1 + $0xc0] sm:$0xf]
  %v84 = vld [vmem:[%s1 + $0xc4] sm:$0xf]
  %v85 = vld [vmem:[%s1 + $0xc8] sm:$0xf]
  %v86 = vld [vmem:[%s1 + $0xcc] sm:$0xf]
  %v87 = vld [vmem:[%s1 + $0xd0] sm:$0xf]
  %v88 = vld [vmem:[%s1 + $0xd4] sm:$0xf]
  %v89 = vld [vmem:[%s1 + $0xd8] sm:$0xf]
  %v90 = vld [vmem:[%s1 + $0xdc] sm:$0xf]
  %v91 = vld [vmem:[%s1 + $0xe0] sm:$0xf]
  %v92 = vld [vmem:[%s1 + $0xe4] sm:$0xf]
  %v93 = vld [vmem:[%s1 + $0xe8] sm:$0xf]
  %v94 = vld [vmem:[%s1 + $0xec] sm:$0xf]
  %v95 = vld [vmem:[%s1 + $0xf0] sm:$0xf]
  %v96 = vld [vmem:[%s1 + $0xf4] sm:$0xf]
  %v97 = vld [vmem:[%s1 + $0xf8] sm:$0xf]
  %v98 = vld [vmem:[%s1 + $0xfc] sm:$0xf]
  %v99 = vld [vmem:[%s1 + $0x100] sm:$0xf]
  %v100 = vld [vmem:[%s1 + $0x104] sm:$0xf]
  %v101 = vld [vmem:[%s1 + $0x108] sm:$0xf]
  %v102 = vld [vmem:[%s1 + $0x10c] sm:$0xf]
  %v103 = vld [vmem:[%s1 + $0x110] sm:$0xf]
  %v104 = vld [vmem:[%s1 + $0x114] sm:$0xf]
  %v105 = vld [vmem:[%s1 + $0x118] sm:$0xf]
  %v106 = vld [vmem:[%s1 + $0x11c] sm:$0xf]
  %v107 = vld [vmem:[%s1 + $0x120] sm:$0xf]
  %v108 = vld [vmem:[%s1 + $0x124] sm:$0xf]
  %v109 = vld [vmem:[%s1 + $0x128] sm:$0xf]
  %v110 = vld [vmem:[%s1 + $0x12c] sm:$0xf]
  %v111 = vld [vmem:[%s1 + $0x130] sm:$0xf]
  %v112 = vld [vmem:[%s1 + $0x134] sm:$0xf]
  %v113 = vld [vmem:[%s1 + $0x138] sm:$0xf]
  %v114 = vld [vmem:[%s1 + $0x13c] sm:$0xf]
  %v115 = vld [vmem:[%s1 + $0x140] sm:$0xf]
  %v116 = vld [vmem:[%s1 + $0x144] sm:$0xf]
  %v117 = vld [vmem:[%s1 + $0x148] sm:$0xf]
  %v118 = vld [vmem:[%s1 + $0x14c] sm:$0xf]
  %v119 = vld [vmem:[%s1 + $0x150] sm:$0xf]
  %v120 = vld [vmem:[%s1 + $0x154] sm:$0xf]
  %v121 = vld [vmem:[%s1 + $0x158] sm:$0xf]
  %v122 = vld [vmem:[%s1 + $0x15c] sm:$0xf]
  %v123 = vld [vmem:[%s1 + $0x160] sm:$0xf]
  %v124 = vld [vmem:[%s1 + $0x164] sm:$0xf]
  %v125 = vld [vmem:[%s1 + $0x168] sm:$0xf]
  %v126 = vld [vmem:[%s1 + $0x16c] sm:$0xf]
  %v127 = vld [vmem:[%s1 + $0x170] sm:$0xf]
  %v128 = vld [vmem:[%s1 + $0x174] sm:$0xf]
  %v129 = vld [vmem:[%s1 + $0x178] sm:$0xf]
  %v130 = vld [vmem:[%s1 + $0x17c] sm:$0xf]
  %v131 = vld [vmem:[%s1 + $0x180] sm:$0xf]
  %v132 = vld [vmem:[%s1 + $0x184] sm:$0xf]
  %v133 = vld [vmem:[%s1 + $0x188] sm:$0xf]
  %v134 = vld [vmem:[%s1 + $0x18c] sm:$0xf]
  %v135 = vld [vmem:[%s1 + $0x190] sm:$0xf]
  %v136 = vld [vmem:[%s1 + $0x194] sm:$0xf]
  %v137 = vld [vmem:[%s1 + $0x198] sm:$0xf]
  %v138 = vld [vmem:[%s1 + $0x19c] sm:$0xf]
  %v139 = vld [vmem:[%s1 + $0x1a0] sm:$0xf]
  %v140 = vld [vmem:[%s1 + $0x1a4] sm:$0xf]
  %v141 = vld [vmem:[%s1 + $0x1a8] sm:$0xf]
  %v142 = vld [vmem:[%s1 + $0x1ac] sm:$0xf]
  %v143 = vld [vmem:[%s1 + $0x1b0] sm:$0xf]
  %v144 = vld [vmem:[%s1 + $0x1b4] sm:$0xf]
  %v145 = vld [vmem:[%s1 + $0x1b8] sm:$0xf]
  %v146 = vld [vmem:[%s1 + $0x1bc] sm:$0xf]
  %v147 = vld [vmem:[%s1 + $0x1c0] sm:$0xf]
  %v148 = vld [vmem:[%s1 + $0x1c4] sm:$0xf]
  %v149 = vld [vmem:[%s1 + $0x1c8] sm:$0xf]
  %v150 = vld [vmem:[%s1 + $0x1cc] sm:$0xf]
  %v151 = vld [vmem:[%s1 + $0x1d0] sm:$0xf]
  %v152 = vld [vmem:[%s1 + $0x1d4] sm:$0xf]
  %v153 = vld [vmem:[%s1 + $0x1d8] sm:$0xf]
  %v154 = vld [vmem:[%s1 + $0x1dc] sm:$0xf]
  %v155 = vld [vmem:[%s1 + $0x1e0] sm:$0xf]
  %v156 = vld [vmem:[%s1 + $0x1e4] sm:$0xf]
  %v157 = vld [vmem:[%s1 + $0x1e8] sm:$0xf]
  %v158 = vld [vmem:[%s1 + $0x1ec] sm:$0xf]
  %v159 = vld [vmem:[%s1 + $0x1f0] sm:$0xf]
  %v160 = vld [vmem:[%s1 + $0x1f4] sm:$0xf]
  %v161 = vld [vmem:[%s1 + $0x1f8] sm:$0xf]
  %v162 = vld [vmem:[%s1 + $0x1fc] sm:$0xf]
  %v163 = vld [vmem:[%s1 + $0x200] sm:$0xf]
  %v164 = vld [vmem:[%s1 + $0x204] sm:$0xf]
  %v165 = vld [vmem:[%s1 + $0x208] sm:$0xf]
  %v166 = vld [vmem:[%s1 + $0x20c] sm:$0xf]
  %v167 = vld [vmem:[%s1 + $0x210] sm:$0xf]
  %v168 = vld [vmem:[%s1 + $0x214] sm:$0xf]
  %v169 = vld [vmem:[%s1 + $0x218] sm:$0xf]
  %v170 = vld [vmem:[%s1 + $0x21c] sm:$0xf]
  %v171 = vld [vmem:[%s1 + $0x220] sm:$0xf]
  %v172 = vld [vmem:[%s1 + $0x224] sm:$0xf]
  %v173 = vld [vmem:[%s1 + $0x228] sm:$0xf]
  %v174 = vld [vmem:[%s1 + $0x22c] sm:$0xf]
  %v175 = vld [vmem:[%s1 + $0x230] sm:$0xf]
  %v176 = vld [vmem:[%s1 + $0x234] sm:$0xf]
  %v177 = vld [vmem:[%s1 + $0x238] sm:$0xf]
  %v178 = vld [vmem:[%s1 + $0x23c] sm:$0xf]
  %v179 = vperm.slane %v14, 0
  %v200 = vunpack.c.l.b16 %v15
  %v201 = vunpack.c.h.b16 %v15
  %v202 = vunpack.c.l.b16 %v16
  %v203 = vunpack.c.h.b16 %v16
  %v204 = vunpack.c.l.b16 %v17
  %v205 = vunpack.c.h.b16 %v17
  %v206 = vunpack.c.l.b16 %v18
  %v207 = vunpack.c.h.b16 %v18
  %v208 = vunpack.c.l.b16 %v19
  %v209 = vunpack.c.l.b16 %v20
  %v210 = vunpack.c.h.b16 %v20
  %v211 = vunpack.c.l.b16 %v21
  %v212 = vunpack.c.h.b16 %v21
  %v213 = vunpack.c.l.b16 %v22
  %v214 = vunpack.c.h.b16 %v22
  %v215 = vunpack.c.l.b16 %v23
  %v216 = vunpack.c.h.b16 %v23
  %v217 = vunpack.c.l.b16 %v24
  %v218 = vunpack.c.l.b16 %v25
  %v219 = vunpack.c.h.b16 %v25
  %v220 = vunpack.c.l.b16 %v26
  %v221 = vunpack.c.h.b16 %v26
  %v222 = vunpack.c.l.b16 %v27
  %v223 = vunpack.c.h.b16 %v27
  %v224 = vunpack.c.l.b16 %v28
  %v225 = vunpack.c.h.b16 %v28
  %v226 = vunpack.c.l.b16 %v29
  %v227 = vunpack.c.l.b16 %v30
  %v228 = vunpack.c.h.b16 %v30
  %v229 = vunpack.c.l.b16 %v31
  %v230 = vunpack.c.h.b16 %v31
  %v231 = vunpack.c.l.b16 %v32
  %v232 = vunpack.c.h.b16 %v32
  %v233 = vunpack.c.l.b16 %v33
  %v234 = vunpack.c.h.b16 %v33
  %v235 = vunpack.c.l.b16 %v34
  %v236 = vpack.c.b16 %v209, %v200
  %v237 = vpack.c.b16 %v210, %v201
  %v238 = vpack.c.b16 %v211, %v202
  %v239 = vpack.c.b16 %v212, %v203
  %v240 = vpack.c.b16 %v213, %v204
  %v241 = vpack.c.b16 %v214, %v205
  %v242 = vpack.c.b16 %v215, %v206
  %v243 = vpack.c.b16 %v216, %v207
  %v244 = vpack.c.b16 %v217, %v208
  %v245 = vpack.c.b16 %v227, %v218
  %v246 = vpack.c.b16 %v228, %v219
  %v247 = vpack.c.b16 %v229, %v220
  %v248 = vpack.c.b16 %v230, %v221
  %v249 = vpack.c.b16 %v231, %v222
  %v250 = vpack.c.b16 %v232, %v223
  %v251 = vpack.c.b16 %v233, %v224
  %v252 = vpack.c.b16 %v234, %v225
  %v253 = vpack.c.b16 %v235, %v226
  %v416 = vunpack.c.l.b16 %v35
  %v417 = vunpack.c.l.b16 %v36
  %v418 = vunpack.c.l.b16 %v37
  %v419 = vunpack.c.l.b16 %v38
  %v420 = vunpack.c.l.b16 %v39
  %v421 = vunpack.c.l.b16 %v40
  %v422 = vunpack.c.l.b16 %v41
  %v423 = vunpack.c.l.b16 %v42
  %v424 = vunpack.c.l.b16 %v43
  %v425 = vunpack.c.l.b16 %v44
  %v426 = vunpack.c.l.b16 %v45
  %v427 = vunpack.c.l.b16 %v46
  %v428 = vunpack.c.l.b16 %v47
  %v429 = vunpack.c.l.b16 %v48
  %v430 = vunpack.c.l.b16 %v49
  %v431 = vunpack.c.l.b16 %v50
  %v432 = vunpack.c.l.b16 %v51
  %v433 = vunpack.c.l.b16 %v52
  %v434 = vunpack.c.l.b16 %v53
  %v435 = vunpack.c.l.b16 %v54
  %v436 = vunpack.c.l.b16 %v55
  %v437 = vunpack.c.l.b16 %v56
  %v438 = vunpack.c.l.b16 %v57
  %v439 = vunpack.c.l.b16 %v58
  %v440 = vunpack.c.l.b16 %v59
  %v441 = vunpack.c.l.b16 %v60
  %v442 = vunpack.c.l.b16 %v61
  %v443 = vunpack.c.l.b16 %v62
  %v444 = vunpack.c.l.b16 %v63
  %v445 = vunpack.c.l.b16 %v64
  %v446 = vunpack.c.l.b16 %v65
  %v447 = vunpack.c.l.b16 %v66
  %v448 = vunpack.c.l.b16 %v67
  %v449 = vunpack.c.l.b16 %v68
  %v450 = vunpack.c.l.b16 %v69
  %v451 = vunpack.c.l.b16 %v70
  %v452 = vunpack.c.l.b16 %v71
  %v453 = vunpack.c.l.b16 %v72
  %v454 = vunpack.c.l.b16 %v73
  %v455 = vunpack.c.l.b16 %v74
  %v456 = vunpack.c.l.b16 %v75
  %v457 = vunpack.c.l.b16 %v76
  %v458 = vunpack.c.l.b16 %v77
  %v459 = vunpack.c.l.b16 %v78
  %v460 = vunpack.c.l.b16 %v79
  %v461 = vunpack.c.l.b16 %v80
  %v462 = vunpack.c.l.b16 %v81
  %v463 = vunpack.c.l.b16 %v82
  %v464 = vunpack.c.l.b16 %v83
  %v465 = vunpack.c.l.b16 %v84
  %v466 = vunpack.c.l.b16 %v85
  %v467 = vunpack.c.l.b16 %v86
  %v468 = vunpack.c.l.b16 %v87
  %v469 = vunpack.c.l.b16 %v88
  %v470 = vunpack.c.l.b16 %v89
  %v471 = vunpack.c.l.b16 %v90
  %v472 = vunpack.c.l.b16 %v91
  %v473 = vunpack.c.l.b16 %v92
  %v474 = vunpack.c.l.b16 %v93
  %v475 = vunpack.c.l.b16 %v94
  %v476 = vunpack.c.l.b16 %v95
  %v477 = vunpack.c.l.b16 %v96
  %v478 = vunpack.c.l.b16 %v97
  %v479 = vunpack.c.l.b16 %v98
  %v480 = vunpack.c.l.b16 %v99
  %v481 = vunpack.c.l.b16 %v100
  %v482 = vunpack.c.l.b16 %v101
  %v483 = vunpack.c.l.b16 %v102
  %v484 = vunpack.c.l.b16 %v103
  %v485 = vunpack.c.l.b16 %v104
  %v486 = vunpack.c.l.b16 %v105
  %v487 = vunpack.c.l.b16 %v106
  %v488 = vunpack.c.l.b16 %v107
  %v489 = vunpack.c.l.b16 %v108
  %v490 = vunpack.c.l.b16 %v109
  %v491 = vunpack.c.l.b16 %v110
  %v492 = vunpack.c.l.b16 %v111
  %v493 = vunpack.c.l.b16 %v112
  %v494 = vunpack.c.l.b16 %v113
  %v495 = vunpack.c.l.b16 %v114
  %v496 = vunpack.c.l.b16 %v115
  %v497 = vunpack.c.l.b16 %v116
  %v498 = vunpack.c.l.b16 %v117
  %v499 = vunpack.c.l.b16 %v118
  %v500 = vunpack.c.l.b16 %v119
  %v501 = vunpack.c.l.b16 %v120
  %v502 = vunpack.c.l.b16 %v121
  %v503 = vunpack.c.l.b16 %v122
  %v504 = vunpack.c.l.b16 %v123
  %v505 = vunpack.c.l.b16 %v124
  %v506 = vunpack.c.l.b16 %v125
  %v507 = vunpack.c.l.b16 %v126
  %v508 = vunpack.c.l.b16 %v127
  %v509 = vunpack.c.l.b16 %v128
  %v510 = vunpack.c.l.b16 %v129
  %v511 = vunpack.c.l.b16 %v130
  %v512 = vunpack.c.l.b16 %v131
  %v513 = vunpack.c.l.b16 %v132
  %v514 = vunpack.c.l.b16 %v133
  %v515 = vunpack.c.l.b16 %v134
  %v516 = vunpack.c.l.b16 %v135
  %v517 = vunpack.c.l.b16 %v136
  %v518 = vunpack.c.l.b16 %v137
  %v519 = vunpack.c.l.b16 %v138
  %v520 = vunpack.c.l.b16 %v139
  %v521 = vunpack.c.l.b16 %v140
  %v522 = vunpack.c.l.b16 %v141
  %v523 = vunpack.c.l.b16 %v142
  %v524 = vunpack.c.l.b16 %v143
  %v525 = vunpack.c.l.b16 %v144
  %v526 = vunpack.c.l.b16 %v145
  %v527 = vunpack.c.l.b16 %v146
  %v528 = vunpack.c.l.b16 %v147
  %v529 = vunpack.c.l.b16 %v148
  %v530 = vunpack.c.l.b16 %v149
  %v531 = vunpack.c.l.b16 %v150
  %v532 = vunpack.c.l.b16 %v151
  %v533 = vunpack.c.l.b16 %v152
  %v534 = vunpack.c.l.b16 %v153
  %v535 = vunpack.c.l.b16 %v154
  %v536 = vunpack.c.l.b16 %v155
  %v537 = vunpack.c.l.b16 %v156
  %v538 = vunpack.c.l.b16 %v157
  %v539 = vunpack.c.l.b16 %v158
  %v540 = vunpack.c.l.b16 %v159
  %v541 = vunpack.c.l.b16 %v160
  %v542 = vunpack.c.l.b16 %v161
  %v543 = vunpack.c.l.b16 %v162
  %v544 = vunpack.c.l.b16 %v163
  %v545 = vunpack.c.l.b16 %v164
  %v546 = vunpack.c.l.b16 %v165
  %v547 = vunpack.c.l.b16 %v166
  %v548 = vunpack.c.l.b16 %v167
  %v549 = vunpack.c.l.b16 %v168
  %v550 = vunpack.c.l.b16 %v169
  %v551 = vunpack.c.l.b16 %v170
  %v552 = vunpack.c.l.b16 %v171
  %v553 = vunpack.c.l.b16 %v172
  %v554 = vunpack.c.l.b16 %v173
  %v555 = vunpack.c.l.b16 %v174
  %v556 = vunpack.c.l.b16 %v175
  %v557 = vunpack.c.l.b16 %v176
  %v558 = vunpack.c.l.b16 %v177
  %v559 = vunpack.c.l.b16 %v178
  %v560 = vpack.c.b16 %v417, %v416
  %v561 = vpack.c.b16 %v419, %v418
  %v562 = vpack.c.b16 %v421, %v420
  %v563 = vpack.c.b16 %v423, %v422
  %v564 = vpack.c.b16 %v425, %v424
  %v565 = vpack.c.b16 %v427, %v426
  %v566 = vpack.c.b16 %v429, %v428
  %v567 = vpack.c.b16 %v431, %v430
  %v568 = vpack.c.b16 %v433, %v432
  %v569 = vpack.c.b16 %v435, %v434
  %v570 = vpack.c.b16 %v437, %v436
  %v571 = vpack.c.b16 %v439, %v438
  %v572 = vpack.c.b16 %v441, %v440
  %v573 = vpack.c.b16 %v443, %v442
  %v574 = vpack.c.b16 %v445, %v444
  %v575 = vpack.c.b16 %v447, %v446
  %v576 = vpack.c.b16 %v449, %v448
  %v577 = vpack.c.b16 %v451, %v450
  %v578 = vpack.c.b16 %v453, %v452
  %v579 = vpack.c.b16 %v455, %v454
  %v580 = vpack.c.b16 %v457, %v456
  %v581 = vpack.c.b16 %v459, %v458
  %v582 = vpack.c.b16 %v461, %v460
  %v583 = vpack.c.b16 %v463, %v462
  %v584 = vpack.c.b16 %v465, %v464
  %v585 = vpack.c.b16 %v467, %v466
  %v586 = vpack.c.b16 %v469, %v468
  %v587 = vpack.c.b16 %v471, %v470
  %v588 = vpack.c.b16 %v473, %v472
  %v589 = vpack.c.b16 %v475, %v474
  %v590 = vpack.c.b16 %v477, %v476
  %v591 = vpack.c.b16 %v479, %v478
  %v592 = vpack.c.b16 %v481, %v480
  %v593 = vpack.c.b16 %v483, %v482
  %v594 = vpack.c.b16 %v485, %v484
  %v595 = vpack.c.b16 %v487, %v486
  %v596 = vpack.c.b16 %v489, %v488
  %v597 = vpack.c.b16 %v491, %v490
  %v598 = vpack.c.b16 %v493, %v492
  %v599 = vpack.c.b16 %v495, %v494
  %v600 = vpack.c.b16 %v497, %v496
  %v601 = vpack.c.b16 %v499, %v498
  %v602 = vpack.c.b16 %v501, %v500
  %v603 = vpack.c.b16 %v503, %v502
  %v604 = vpack.c.b16 %v505, %v504
  %v605 = vpack.c.b16 %v507, %v506
  %v606 = vpack.c.b16 %v509, %v508
  %v607 = vpack.c.b16 %v511, %v510
  %v608 = vpack.c.b16 %v513, %v512
  %v609 = vpack.c.b16 %v515, %v514
  %v610 = vpack.c.b16 %v517, %v516
  %v611 = vpack.c.b16 %v519, %v518
  %v612 = vpack.c.b16 %v521, %v520
  %v613 = vpack.c.b16 %v523, %v522
  %v614 = vpack.c.b16 %v525, %v524
  %v615 = vpack.c.b16 %v527, %v526
  %v616 = vpack.c.b16 %v529, %v528
  %v617 = vpack.c.b16 %v531, %v530
  %v618 = vpack.c.b16 %v533, %v532
  %v619 = vpack.c.b16 %v535, %v534
  %v620 = vpack.c.b16 %v537, %v536
  %v621 = vpack.c.b16 %v539, %v538
  %v622 = vpack.c.b16 %v541, %v540
  %v623 = vpack.c.b16 %v543, %v542
  %v624 = vpack.c.b16 %v545, %v544
  %v625 = vpack.c.b16 %v547, %v546
  %v626 = vpack.c.b16 %v549, %v548
  %v627 = vpack.c.b16 %v551, %v550
  %v628 = vpack.c.b16 %v553, %v552
  %v629 = vpack.c.b16 %v555, %v554
  %v630 = vpack.c.b16 %v557, %v556
  %v631 = vpack.c.b16 %v559, %v558
  %704 = vmatpush.bf16.msra.mxu0 %v567
  %705 = vmatpush.bf16.msra.mxu0 %v566
  %706 = vmatpush.bf16.msra.mxu0 %v565
  %707 = vmatpush.bf16.msra.mxu0 %v564
  %708 = vmatpush.bf16.msra.mxu0 %v563
  %709 = vmatpush.bf16.msra.mxu0 %v562
  %710 = vmatpush.bf16.msra.mxu0 %v561
  %711 = vmatpush.bf16.msra.mxu0 %v560
  %712 = vmatmul.bf16.gmra.mxu0 %v236
  %v713 = vpop.f32.mrf.mxu0
  %v714 = vadd.f32 %v179, %v713
  %v715 = vpop.f32.mrf.mxu0
  %v716 = vadd.f32 %v179, %v715
  %717 = vmatmul.bf16.gmra.mxu0 %v245
  %v718 = vpop.f32.mrf.mxu0
  %v719 = vadd.f32 %v179, %v718
  %v720 = vpop.f32.mrf.mxu0
  %v721 = vadd.f32 %v179, %v720
  %722 = vdwg.mxu0
  %723 = vmatpush.bf16.msra.mxu0 %v575
  %724 = vmatpush.bf16.msra.mxu0 %v574
  %725 = vmatpush.bf16.msra.mxu0 %v573
  %726 = vmatpush.bf16.msra.mxu0 %v572
  %727 = vmatpush.bf16.msra.mxu0 %v571
  %728 = vmatpush.bf16.msra.mxu0 %v570
  %729 = vmatpush.bf16.msra.mxu0 %v569
  %730 = vmatpush.bf16.msra.mxu0 %v568
  %731 = vmatmul.bf16.gmra.mxu0 %v237
  %v732 = vpop.f32.mrf.mxu0
  %v733 = vadd.f32 %v714, %v732
  %v734 = vpop.f32.mrf.mxu0
  %v735 = vadd.f32 %v716, %v734
  %736 = vmatmul.bf16.gmra.mxu0 %v246
  %v737 = vpop.f32.mrf.mxu0
  %v738 = vadd.f32 %v719, %v737
  %v739 = vpop.f32.mrf.mxu0
  %v740 = vadd.f32 %v721, %v739
  %741 = vdwg.mxu0
  %742 = vmatpush.bf16.msra.mxu0 %v583
  %743 = vmatpush.bf16.msra.mxu0 %v582
  %744 = vmatpush.bf16.msra.mxu0 %v581
  %745 = vmatpush.bf16.msra.mxu0 %v580
  %746 = vmatpush.bf16.msra.mxu0 %v579
  %747 = vmatpush.bf16.msra.mxu0 %v578
  %748 = vmatpush.bf16.msra.mxu0 %v577
  %749 = vmatpush.bf16.msra.mxu0 %v576
  %750 = vmatmul.bf16.gmra.mxu0 %v238
  %v751 = vpop.f32.mrf.mxu0
  %v752 = vadd.f32 %v733, %v751
  %v753 = vpop.f32.mrf.mxu0
  %v754 = vadd.f32 %v735, %v753
  %755 = vmatmul.bf16.gmra.mxu0 %v247
  %v756 = vpop.f32.mrf.mxu0
  %v757 = vadd.f32 %v738, %v756
  %v758 = vpop.f32.mrf.mxu0
  %v759 = vadd.f32 %v740, %v758
  %760 = vdwg.mxu0
  %761 = vmatpush.bf16.msra.mxu0 %v591
  %762 = vmatpush.bf16.msra.mxu0 %v590
  %763 = vmatpush.bf16.msra.mxu0 %v589
  %764 = vmatpush.bf16.msra.mxu0 %v588
  %765 = vmatpush.bf16.msra.mxu0 %v587
  %766 = vmatpush.bf16.msra.mxu0 %v586
  %767 = vmatpush.bf16.msra.mxu0 %v585
  %768 = vmatpush.bf16.msra.mxu0 %v584
  %769 = vmatmul.bf16.gmra.mxu0 %v239
  %v770 = vpop.f32.mrf.mxu0
  %v771 = vadd.f32 %v752, %v770
  %v772 = vpop.f32.mrf.mxu0
  %v773 = vadd.f32 %v754, %v772
  %774 = vmatmul.bf16.gmra.mxu0 %v248
  %v775 = vpop.f32.mrf.mxu0
  %v776 = vadd.f32 %v757, %v775
  %v777 = vpop.f32.mrf.mxu0
  %v778 = vadd.f32 %v759, %v777
  %779 = vdwg.mxu0
  %780 = vmatpush.bf16.msra.mxu0 %v599
  %781 = vmatpush.bf16.msra.mxu0 %v598
  %782 = vmatpush.bf16.msra.mxu0 %v597
  %783 = vmatpush.bf16.msra.mxu0 %v596
  %784 = vmatpush.bf16.msra.mxu0 %v595
  %785 = vmatpush.bf16.msra.mxu0 %v594
  %786 = vmatpush.bf16.msra.mxu0 %v593
  %787 = vmatpush.bf16.msra.mxu0 %v592
  %788 = vmatmul.bf16.gmra.mxu0 %v240
  %v789 = vpop.f32.mrf.mxu0
  %v790 = vadd.f32 %v771, %v789
  %v791 = vpop.f32.mrf.mxu0
  %v792 = vadd.f32 %v773, %v791
  %793 = vmatmul.bf16.gmra.mxu0 %v249
  %v794 = vpop.f32.mrf.mxu0
  %v795 = vadd.f32 %v776, %v794
  %v796 = vpop.f32.mrf.mxu0
  %v797 = vadd.f32 %v778, %v796
  %798 = vdwg.mxu0
  %799 = vmatpush.bf16.msra.mxu0 %v607
  %800 = vmatpush.bf16.msra.mxu0 %v606
  %801 = vmatpush.bf16.msra.mxu0 %v605
  %802 = vmatpush.bf16.msra.mxu0 %v604
  %803 = vmatpush.bf16.msra.mxu0 %v603
  %804 = vmatpush.bf16.msra.mxu0 %v602
  %805 = vmatpush.bf16.msra.mxu0 %v601
  %806 = vmatpush.bf16.msra.mxu0 %v600
  %807 = vmatmul.bf16.gmra.mxu0 %v241
  %v808 = vpop.f32.mrf.mxu0
  %v809 = vadd.f32 %v790, %v808
  %v810 = vpop.f32.mrf.mxu0
  %v811 = vadd.f32 %v792, %v810
  %812 = vmatmul.bf16.gmra.mxu0 %v250
  %v813 = vpop.f32.mrf.mxu0
  %v814 = vadd.f32 %v795, %v813
  %v815 = vpop.f32.mrf.mxu0
  %v816 = vadd.f32 %v797, %v815
  %817 = vdwg.mxu0
  %818 = vmatpush.bf16.msra.mxu0 %v615
  %819 = vmatpush.bf16.msra.mxu0 %v614
  %820 = vmatpush.bf16.msra.mxu0 %v613
  %821 = vmatpush.bf16.msra.mxu0 %v612
  %822 = vmatpush.bf16.msra.mxu0 %v611
  %823 = vmatpush.bf16.msra.mxu0 %v610
  %824 = vmatpush.bf16.msra.mxu0 %v609
  %825 = vmatpush.bf16.msra.mxu0 %v608
  %826 = vmatmul.bf16.gmra.mxu0 %v242
  %v827 = vpop.f32.mrf.mxu0
  %v828 = vadd.f32 %v809, %v827
  %v829 = vpop.f32.mrf.mxu0
  %v830 = vadd.f32 %v811, %v829
  %831 = vmatmul.bf16.gmra.mxu0 %v251
  %v832 = vpop.f32.mrf.mxu0
  %v833 = vadd.f32 %v814, %v832
  %v834 = vpop.f32.mrf.mxu0
  %v835 = vadd.f32 %v816, %v834
  %836 = vdwg.mxu0
  %837 = vmatpush.bf16.msra.mxu0 %v623
  %838 = vmatpush.bf16.msra.mxu0 %v622
  %839 = vmatpush.bf16.msra.mxu0 %v621
  %840 = vmatpush.bf16.msra.mxu0 %v620
  %841 = vmatpush.bf16.msra.mxu0 %v619
  %842 = vmatpush.bf16.msra.mxu0 %v618
  %843 = vmatpush.bf16.msra.mxu0 %v617
  %844 = vmatpush.bf16.msra.mxu0 %v616
  %845 = vmatmul.bf16.gmra.mxu0 %v243
  %v846 = vpop.f32.mrf.mxu0
  %v847 = vadd.f32 %v828, %v846
  %v848 = vpop.f32.mrf.mxu0
  %v849 = vadd.f32 %v830, %v848
  %850 = vmatmul.bf16.gmra.mxu0 %v252
  %v851 = vpop.f32.mrf.mxu0
  %v852 = vadd.f32 %v833, %v851
  %v853 = vpop.f32.mrf.mxu0
  %v854 = vadd.f32 %v835, %v853
  %855 = vdwg.mxu0
  %856 = vmatpush.bf16.msra.mxu0 %v631
  %857 = vmatpush.bf16.msra.mxu0 %v630
  %858 = vmatpush.bf16.msra.mxu0 %v629
  %859 = vmatpush.bf16.msra.mxu0 %v628
  %860 = vmatpush.bf16.msra.mxu0 %v627
  %861 = vmatpush.bf16.msra.mxu0 %v626
  %862 = vmatpush.bf16.msra.mxu0 %v625
  %863 = vmatpush.bf16.msra.mxu0 %v624
  %864 = vmatmul.bf16.gmra.mxu0 %v244
  %v865 = vpop.f32.mrf.mxu0
  %v866 = vadd.f32 %v847, %v865
  %v867 = vpop.f32.mrf.mxu0
  %v868 = vadd.f32 %v849, %v867
  %869 = vmatmul.bf16.gmra.mxu0 %v253
  %v870 = vpop.f32.mrf.mxu0
  %v871 = vadd.f32 %v852, %v870
  %v872 = vpop.f32.mrf.mxu0
  %v873 = vadd.f32 %v854, %v872
  %874 = vdwg.mxu0
  %v875 = vadd.f32 %v866, %v868
  %v876 = vadd.f32 %v875, %v871
  %v877 = vadd.f32 %v876, %v873
  %v878 = vrot.slane %v877, 4
  %v879 = vadd.f32 %v877, %v878
  %v880 = vrot.slane %v879, 2
  %v881 = vadd.f32 %v879, %v880
  %v882 = vrot.slane %v881, 1
  %v883 = vadd.f32 %v881, %v882
  %v884 = vmul.f32 %v883, 0.03125
  %v885 = vsub.f32 %v866, %v884
  %v886 = vsub.f32 %v868, %v884
  %v887 = vsub.f32 %v871, %v884
  %v888 = vsub.f32 %v873, %v884
  %v889 = vmul.f32 %v885, %v885
  %v890 = vmul.f32 %v886, %v886
  %v891 = vmul.f32 %v887, %v887
  %v892 = vmul.f32 %v888, %v888
  %v893 = vadd.f32 %v889, %v890
  %v894 = vadd.f32 %v893, %v891
  %v895 = vadd.f32 %v894, %v892
  %v896 = vrot.slane %v895, 4
  %v897 = vadd.f32 %v895, %v896
  %v898 = vrot.slane %v897, 2
  %v899 = vadd.f32 %v897, %v898
  %v900 = vrot.slane %v899, 1
  %v901 = vadd.f32 %v899, %v900
  %v902 = vmul.f32 %v901, 0.03125
  %v903 = vmax.f32 %v902, 0.0
  %v904 = vadd.f32 %v903, 1e-05
  %v905 = vrsqrt.pop %v904
  %v906 = vmul.f32 %v905, %v904
  %v907 = vmul.f32 %v906, %v905
  %v908 = vmul.f32 0.5, %v907
  %v909 = vsub.f32 1.5, %v908
  %v910 = vmul.f32 %v905, %v909
  %vm911 = vweird.f32 %v904
  %vm912 = vweird.f32 %v905
  %vm913 = vmor %vm911, %vm912
  %v914 = vsel %vm913, %v905, %v910
  %v915 = vmul.f32 %v14, %v914
  %v916 = vmul.f32 %v884, %v915
  %v918 = vrot.slane %v916, 7
  %v920 = vsub.f32 %v14, %v918
  %v921 = vperm.slane %v915, 1
  %v922 = vmul.f32 %v866, %v921
  %v923 = vmul.f32 %v868, %v921
  %v924 = vmul.f32 %v871, %v921
  %v925 = vmul.f32 %v873, %v921
  %v926 = vperm.slane %v920, 2
  %v927 = vadd.f32 %v922, %v926
  %v928 = vadd.f32 %v923, %v926
  %v929 = vadd.f32 %v924, %v926
  %v930 = vadd.f32 %v925, %v926
  %v931 = vmax.f32 %v927, 0.0
  %v932 = vmax.f32 %v928, 0.0
  %v933 = vmax.f32 %v929, 0.0
  %v934 = vmax.f32 %v930, 0.0
  %v935 = vpack.c.bf16 %v931, %v931
  %v936 = vpack.c.bf16 %v932, %v932
  %v937 = vpack.c.bf16 %v933, %v933
  %v938 = vpack.c.bf16 %v934, %v934
  %939 = vst [vmem:[%s3] sm:$0xf] %v935
  %940 = vst [vmem:[%s3 + $0x4] sm:$0xf] %v936
  %941 = vst [vmem:[%s3 + $0x8] sm:$0xf] %v937
  %942 = vst [vmem:[%s3 + $0xc] sm:$0xf] %v938
  // Predicated region
  $region14: #{colorization_forward.21} parent=0 // pred_check
    _
  $region15: #{colorization_forward.21} parent=0 // pred_check_branch
    %944 = sbr.rel (0) target = $region17
  $region16: #{colorization_forward.21} parent=0 // pred_region
    _
  $region17: #{colorization_forward.21} parent=0 // pred_fallthru
    _
  // Predicated region
  $region18: #{colorization_forward.21} parent=0 // pred_check
    _
  $region19: #{colorization_forward.21} parent=0 // pred_check_branch
    %946 = sbr.rel (0) target = $region21
  $region20: #{colorization_forward.21} parent=0 // pred_region
    _
  $region21: #{colorization_forward.21} parent=0 // pred_fallthru
    _

// kernel: colorization_forward.24
$region0: #{colorization_forward.24}
  #allocation0 [shape = 'u32[]', space=smem, size = 0x4, offset = 0x4, fixed_abs, tag = 'smem constant byte address 0x4 - core index']
  #allocation1 [shape = 'u32[72,128]{1,0:T(1,128)}', space=vmem, size = 0x9000, scoped, tag = 'internal scratch']
  %s0 = inlined_call_operand.vmem [shape: bf16[128,1152], index: 0, kind: input, shape index: {}]
  %s1 = inlined_call_operand.vmem [shape: bf16[1152,128], index: 1, kind: input, shape index: {}]
  %s2 = inlined_call_operand.vmem [shape: f32[8,128], index: 2, kind: input, shape index: {}]
  %s3 = inlined_call_operand.vmem [shape: bf16[128,128], index: 3, kind: output, shape index: {}]
  %s4 = sld [smem:[#allocation0]]
  $region22: #{colorization_forward.24} parent=0
    _
  %s6 = ssub.s32 1, %s4
  %s7 = scalar_select 0, %s6, %s4
  // Predicated region
  $region2: #{colorization_forward.24} parent=0 // pred_check
    _
  $region3: #{colorization_forward.24} parent=0 // pred_check_branch
    %9 = sbr.rel (0) target = $region5
  $region4: #{colorization_forward.24} parent=0 // pred_region
    _
  $region5: #{colorization_forward.24} parent=0 // pred_fallthru
    _
  // Predicated region
  $region6: #{colorization_forward.24} parent=0 // pred_check
    _
  $region7: #{colorization_forward.24} parent=0 // pred_check_branch
    %11 = sbr.rel (0) target = $region9
  $region8: #{colorization_forward.24} parent=0 // pred_region
    _
  $region9: #{colorization_forward.24} parent=0 // pred_fallthru
    _
  // Predicated region
  $region10: #{colorization_forward.24} parent=0 // pred_check
    _
  $region11: #{colorization_forward.24} parent=0 // pred_check_branch
    %13 = sbr.rel (0) target = $region13
  $region12: #{colorization_forward.24} parent=0 // pred_region
    _
  $region13: #{colorization_forward.24} parent=0 // pred_fallthru
    _
  %v14 = vld [vmem:[%s2] sm:$0xff]
  %v15 = vld [vmem:[%s0] sm:$0xff]
  %v16 = vld [vmem:[%s0 + $0x8] sm:$0xff]
  %v17 = vld [vmem:[%s0 + $0x10] sm:$0xff]
  %v18 = vld [vmem:[%s0 + $0x18] sm:$0xff]
  %v19 = vld [vmem:[%s0 + $0x20] sm:$0xf]
  %v20 = vld [vmem:[%s0 + $0x24] sm:$0xff]
  %v21 = vld [vmem:[%s0 + $0x2c] sm:$0xff]
  %v22 = vld [vmem:[%s0 + $0x34] sm:$0xff]
  %v23 = vld [vmem:[%s0 + $0x3c] sm:$0xff]
  %v24 = vld [vmem:[%s0 + $0x44] sm:$0xf]
  %v25 = vld [vmem:[%s0 + $0x48] sm:$0xff]
  %v26 = vld [vmem:[%s0 + $0x50] sm:$0xff]
  %v27 = vld [vmem:[%s0 + $0x58] sm:$0xff]
  %v28 = vld [vmem:[%s0 + $0x60] sm:$0xff]
  %v29 = vld [vmem:[%s0 + $0x68] sm:$0xf]
  %v30 = vld [vmem:[%s0 + $0x6c] sm:$0xff]
  %v31 = vld [vmem:[%s0 + $0x74] sm:$0xff]
  %v32 = vld [vmem:[%s0 + $0x7c] sm:$0xff]
  %v33 = vld [vmem:[%s0 + $0x84] sm:$0xff]
  %v34 = vld [vmem:[%s0 + $0x8c] sm:$0xf]
  %v35 = vld [vmem:[%s0 + $0x90] sm:$0xff]
  %v36 = vld [vmem:[%s0 + $0x98] sm:$0xff]
  %v37 = vld [vmem:[%s0 + $0xa0] sm:$0xff]
  %v38 = vld [vmem:[%s0 + $0xa8] sm:$0xff]
  %v39 = vld [vmem:[%s0 + $0xb0] sm:$0xf]
  %v40 = vld [vmem:[%s0 + $0xb4] sm:$0xff]
  %v41 = vld [vmem:[%s0 + $0xbc] sm:$0xff]
  %v42 = vld [vmem:[%s0 + $0xc4] sm:$0xff]
  %v43 = vld [vmem:[%s0 + $0xcc] sm:$0xff]
  %v44 = vld [vmem:[%s0 + $0xd4] sm:$0xf]
  %v45 = vld [vmem:[%s0 + $0xd8] sm:$0xff]
  %v46 = vld [vmem:[%s0 + $0xe0] sm:$0xff]
  %v47 = vld [vmem:[%s0 + $0xe8] sm:$0xff]
  %v48 = vld [vmem:[%s0 + $0xf0] sm:$0xff]
  %v49 = vld [vmem:[%s0 + $0xf8] sm:$0xf]
  %v50 = vld [vmem:[%s0 + $0xfc] sm:$0xff]
  %v51 = vld [vmem:[%s0 + $0x104] sm:$0xff]
  %v52 = vld [vmem:[%s0 + $0x10c] sm:$0xff]
  %v53 = vld [vmem:[%s0 + $0x114] sm:$0xff]
  %v54 = vld [vmem:[%s0 + $0x11c] sm:$0xf]
  %v55 = vld [vmem:[%s0 + $0x120] sm:$0xff]
  %v56 = vld [vmem:[%s0 + $0x128] sm:$0xff]
  %v57 = vld [vmem:[%s0 + $0x130] sm:$0xff]
  %v58 = vld [vmem:[%s0 + $0x138] sm:$0xff]
  %v59 = vld [vmem:[%s0 + $0x140] sm:$0xf]
  %v60 = vld [vmem:[%s0 + $0x144] sm:$0xff]
  %v61 = vld [vmem:[%s0 + $0x14c] sm:$0xff]
  %v62 = vld [vmem:[%s0 + $0x154] sm:$0xff]
  %v63 = vld [vmem:[%s0 + $0x15c] sm:$0xff]
  %v64 = vld [vmem:[%s0 + $0x164] sm:$0xf]
  %v65 = vld [vmem:[%s0 + $0x168] sm:$0xff]
  %v66 = vld [vmem:[%s0 + $0x170] sm:$0xff]
  %v67 = vld [vmem:[%s0 + $0x178] sm:$0xff]
  %v68 = vld [vmem:[%s0 + $0x180] sm:$0xff]
  %v69 = vld [vmem:[%s0 + $0x188] sm:$0xf]
  %v70 = vld [vmem:[%s0 + $0x18c] sm:$0xff]
  %v71 = vld [vmem:[%s0 + $0x194] sm:$0xff]
  %v72 = vld [vmem:[%s0 + $0x19c] sm:$0xff]
  %v73 = vld [vmem:[%s0 + $0x1a4] sm:$0xff]
  %v74 = vld [vmem:[%s0 + $0x1ac] sm:$0xf]
  %v75 = vld [vmem:[%s0 + $0x1b0] sm:$0xff]
  %v76 = vld [vmem:[%s0 + $0x1b8] sm:$0xff]
  %v77 = vld [vmem:[%s0 + $0x1c0] sm:$0xff]
  %v78 = vld [vmem:[%s0 + $0x1c8] sm:$0xff]
  %v79 = vld [vmem:[%s0 + $0x1d0] sm:$0xf]
  %v80 = vld [vmem:[%s0 + $0x1d4] sm:$0xff]
  %v81 = vld [vmem:[%s0 + $0x1dc] sm:$0xff]
  %v82 = vld [vmem:[%s0 + $0x1e4] sm:$0xff]
  %v83 = vld [vmem:[%s0 + $0x1ec] sm:$0xff]
  %v84 = vld [vmem:[%s0 + $0x1f4] sm:$0xf]
  %v85 = vld [vmem:[%s0 + $0x1f8] sm:$0xff]
  %v86 = vld [vmem:[%s0 + $0x200] sm:$0xff]
  %v87 = vld [vmem:[%s0 + $0x208] sm:$0xff]
  %v88 = vld [vmem:[%s0 + $0x210] sm:$0xff]
  %v89 = vld [vmem:[%s0 + $0x218] sm:$0xf]
  %v90 = vld [vmem:[%s0 + $0x21c] sm:$0xff]
  %v91 = vld [vmem:[%s0 + $0x224] sm:$0xff]
  %v92 = vld [vmem:[%s0 + $0x22c] sm:$0xff]
  %v93 = vld [vmem:[%s0 + $0x234] sm:$0xff]
  %v94 = vld [vmem:[%s0 + $0x23c] sm:$0xf]
  %v95 = vld [vmem:[%s1] sm:$0xf]
  %v96 = vld [vmem:[%s1 + $0x4] sm:$0xf]
  %v97 = vld [vmem:[%s1 + $0x8] sm:$0xf]
  %v98 = vld [vmem:[%s1 + $0xc] sm:$0xf]
  %v99 = vld [vmem:[%s1 + $0x10] sm:$0xf]
  %v100 = vld [vmem:[%s1 + $0x14] sm:$0xf]
  %v101 = vld [vmem:[%s1 + $0x18] sm:$0xf]
  %v102 = vld [vmem:[%s1 + $0x1c] sm:$0xf]
  %v103 = vld [vmem:[%s1 + $0x20] sm:$0xf]
  %v104 = vld [vmem:[%s1 + $0x24] sm:$0xf]
  %v105 = vld [vmem:[%s1 + $0x28] sm:$0xf]
  %v106 = vld [vmem:[%s1 + $0x2c] sm:$0xf]
  %v107 = vld [vmem:[%s1 + $0x30] sm:$0xf]
  %v108 = vld [vmem:[%s1 + $0x34] sm:$0xf]
  %v109 = vld [vmem:[%s1 + $0x38] sm:$0xf]
  %v110 = vld [vmem:[%s1 + $0x3c] sm:$0xf]
  %v111 = vld [vmem:[%s1 + $0x40] sm:$0xf]
  %v112 = vld [vmem:[%s1 + $0x44] sm:$0xf]
  %v113 = vld [vmem:[%s1 + $0x48] sm:$0xf]
  %v114 = vld [vmem:[%s1 + $0x4c] sm:$0xf]
  %v115 = vld [vmem:[%s1 + $0x50] sm:$0xf]
  %v116 = vld [vmem:[%s1 + $0x54] sm:$0xf]
  %v117 = vld [vmem:[%s1 + $0x58] sm:$0xf]
  %v118 = vld [vmem:[%s1 + $0x5c] sm:$0xf]
  %v119 = vld [vmem:[%s1 + $0x60] sm:$0xf]
  %v120 = vld [vmem:[%s1 + $0x64] sm:$0xf]
  %v121 = vld [vmem:[%s1 + $0x68] sm:$0xf]
  %v122 = vld [vmem:[%s1 + $0x6c] sm:$0xf]
  %v123 = vld [vmem:[%s1 + $0x70] sm:$0xf]
  %v124 = vld [vmem:[%s1 + $0x74] sm:$0xf]
  %v125 = vld [vmem:[%s1 + $0x78] sm:$0xf]
  %v126 = vld [vmem:[%s1 + $0x7c] sm:$0xf]
  %v127 = vld [vmem:[%s1 + $0x80] sm:$0xf]
  %v128 = vld [vmem:[%s1 + $0x84] sm:$0xf]
  %v129 = vld [vmem:[%s1 + $0x88] sm:$0xf]
  %v130 = vld [vmem:[%s1 + $0x8c] sm:$0xf]
  %v131 = vld [vmem:[%s1 + $0x90] sm:$0xf]
  %v132 = vld [vmem:[%s1 + $0x94] sm:$0xf]
  %v133 = vld [vmem:[%s1 + $0x98] sm:$0xf]
  %v134 = vld [vmem:[%s1 + $0x9c] sm:$0xf]
  %v135 = vld [vmem:[%s1 + $0xa0] sm:$0xf]
  %v136 = vld [vmem:[%s1 + $0xa4] sm:$0xf]
  %v137 = vld [vmem:[%s1 + $0xa8] sm:$0xf]
  %v138 = vld [vmem:[%s1 + $0xac] sm:$0xf]
  %v139 = vld [vmem:[%s1 + $0xb0] sm:$0xf]
  %v140 = vld [vmem:[%s1 + $0xb4] sm:$0xf]
  %v141 = vld [vmem:[%s1 + $0xb8] sm:$0xf]
  %v142 = vld [vmem:[%s1 + $0xbc] sm:$0xf]
  %v143 = vld [vmem:[%s1 + $0xc0] sm:$0xf]
  %v144 = vld [vmem:[%s1 + $0xc4] sm:$0xf]
  %v145 = vld [vmem:[%s1 + $0xc8] sm:$0xf]
  %v146 = vld [vmem:[%s1 + $0xcc] sm:$0xf]
  %v147 = vld [vmem:[%s1 + $0xd0] sm:$0xf]
  %v148 = vld [vmem:[%s1 + $0xd4] sm:$0xf]
  %v149 = vld [vmem:[%s1 + $0xd8] sm:$0xf]
  %v150 = vld [vmem:[%s1 + $0xdc] sm:$0xf]
  %v151 = vld [vmem:[%s1 + $0xe0] sm:$0xf]
  %v152 = vld [vmem:[%s1 + $0xe4] sm:$0xf]
  %v153 = vld [vmem:[%s1 + $0xe8] sm:$0xf]
  %v154 = vld [vmem:[%s1 + $0xec] sm:$0xf]
  %v155 = vld [vmem:[%s1 + $0xf0] sm:$0xf]
  %v156 = vld [vmem:[%s1 + $0xf4] sm:$0xf]
  %v157 = vld [vmem:[%s1 + $0xf8] sm:$0xf]
  %v158 = vld [vmem:[%s1 + $0xfc] sm:$0xf]
  %v159 = vld [vmem:[%s1 + $0x100] sm:$0xf]
  %v160 = vld [vmem:[%s1 + $0x104] sm:$0xf]
  %v161 = vld [vmem:[%s1 + $0x108] sm:$0xf]
  %v162 = vld [vmem:[%s1 + $0x10c] sm:$0xf]
  %v163 = vld [vmem:[%s1 + $0x110] sm:$0xf]
  %v164 = vld [vmem:[%s1 + $0x114] sm:$0xf]
  %v165 = vld [vmem:[%s1 + $0x118] sm:$0xf]
  %v166 = vld [vmem:[%s1 + $0x11c] sm:$0xf]
  %v167 = vld [vmem:[%s1 + $0x120] sm:$0xf]
  %v168 = vld [vmem:[%s1 + $0x124] sm:$0xf]
  %v169 = vld [vmem:[%s1 + $0x128] sm:$0xf]
  %v170 = vld [vmem:[%s1 + $0x12c] sm:$0xf]
  %v171 = vld [vmem:[%s1 + $0x130] sm:$0xf]
  %v172 = vld [vmem:[%s1 + $0x134] sm:$0xf]
  %v173 = vld [vmem:[%s1 + $0x138] sm:$0xf]
  %v174 = vld [vmem:[%s1 + $0x13c] sm:$0xf]
  %v175 = vld [vmem:[%s1 + $0x140] sm:$0xf]
  %v176 = vld [vmem:[%s1 + $0x144] sm:$0xf]
  %v177 = vld [vmem:[%s1 + $0x148] sm:$0xf]
  %v178 = vld [vmem:[%s1 + $0x14c] sm:$0xf]
  %v179 = vld [vmem:[%s1 + $0x150] sm:$0xf]
  %v180 = vld [vmem:[%s1 + $0x154] sm:$0xf]
  %v181 = vld [vmem:[%s1 + $0x158] sm:$0xf]
  %v182 = vld [vmem:[%s1 + $0x15c] sm:$0xf]
  %v183 = vld [vmem:[%s1 + $0x160] sm:$0xf]
  %v184 = vld [vmem:[%s1 + $0x164] sm:$0xf]
  %v185 = vld [vmem:[%s1 + $0x168] sm:$0xf]
  %v186 = vld [vmem:[%s1 + $0x16c] sm:$0xf]
  %v187 = vld [vmem:[%s1 + $0x170] sm:$0xf]
  %v188 = vld [vmem:[%s1 + $0x174] sm:$0xf]
  %v189 = vld [vmem:[%s1 + $0x178] sm:$0xf]
  %v190 = vld [vmem:[%s1 + $0x17c] sm:$0xf]
  %v191 = vld [vmem:[%s1 + $0x180] sm:$0xf]
  %v192 = vld [vmem:[%s1 + $0x184] sm:$0xf]
  %v193 = vld [vmem:[%s1 + $0x188] sm:$0xf]
  %v194 = vld [vmem:[%s1 + $0x18c] sm:$0xf]
  %v195 = vld [vmem:[%s1 + $0x190] sm:$0xf]
  %v196 = vld [vmem:[%s1 + $0x194] sm:$0xf]
  %v197 = vld [vmem:[%s1 + $0x198] sm:$0xf]
  %v198 = vld [vmem:[%s1 + $0x19c] sm:$0xf]
  %v199 = vld [vmem:[%s1 + $0x1a0] sm:$0xf]
  %v200 = vld [vmem:[%s1 + $0x1a4] sm:$0xf]
  %v201 = vld [vmem:[%s1 + $0x1a8] sm:$0xf]
  %v202 = vld [vmem:[%s1 + $0x1ac] sm:$0xf]
  %v203 = vld [vmem:[%s1 + $0x1b0] sm:$0xf]
  %v204 = vld [vmem:[%s1 + $0x1b4] sm:$0xf]
  %v205 = vld [vmem:[%s1 + $0x1b8] sm:$0xf]
  %v206 = vld [vmem:[%s1 + $0x1bc] sm:$0xf]
  %v207 = vld [vmem:[%s1 + $0x1c0] sm:$0xf]
  %v208 = vld [vmem:[%s1 + $0x1c4] sm:$0xf]
  %v209 = vld [vmem:[%s1 + $0x1c8] sm:$0xf]
  %v210 = vld [vmem:[%s1 + $0x1cc] sm:$0xf]
  %v211 = vld [vmem:[%s1 + $0x1d0] sm:$0xf]
  %v212 = vld [vmem:[%s1 + $0x1d4] sm:$0xf]
  %v213 = vld [vmem:[%s1 + $0x1d8] sm:$0xf]
  %v214 = vld [vmem:[%s1 + $0x1dc] sm:$0xf]
  %v215 = vld [vmem:[%s1 + $0x1e0] sm:$0xf]
  %v216 = vld [vmem:[%s1 + $0x1e4] sm:$0xf]
  %v217 = vld [vmem:[%s1 + $0x1e8] sm:$0xf]
  %v218 = vld [vmem:[%s1 + $0x1ec] sm:$0xf]
  %v219 = vld [vmem:[%s1 + $0x1f0] sm:$0xf]
  %v220 = vld [vmem:[%s1 + $0x1f4] sm:$0xf]
  %v221 = vld [vmem:[%s1 + $0x1f8] sm:$0xf]
  %v222 = vld [vmem:[%s1 + $0x1fc] sm:$0xf]
  %v223 = vld [vmem:[%s1 + $0x200] sm:$0xf]
  %v224 = vld [vmem:[%s1 + $0x204] sm:$0xf]
  %v225 = vld [vmem:[%s1 + $0x208] sm:$0xf]
  %v226 = vld [vmem:[%s1 + $0x20c] sm:$0xf]
  %v227 = vld [vmem:[%s1 + $0x210] sm:$0xf]
  %v228 = vld [vmem:[%s1 + $0x214] sm:$0xf]
  %v229 = vld [vmem:[%s1 + $0x218] sm:$0xf]
  %v230 = vld [vmem:[%s1 + $0x21c] sm:$0xf]
  %v231 = vld [vmem:[%s1 + $0x220] sm:$0xf]
  %v232 = vld [vmem:[%s1 + $0x224] sm:$0xf]
  %v233 = vld [vmem:[%s1 + $0x228] sm:$0xf]
  %v234 = vld [vmem:[%s1 + $0x22c] sm:$0xf]
  %v235 = vld [vmem:[%s1 + $0x230] sm:$0xf]
  %v236 = vld [vmem:[%s1 + $0x234] sm:$0xf]
  %v237 = vld [vmem:[%s1 + $0x238] sm:$0xf]
  %v238 = vld [vmem:[%s1 + $0x23c] sm:$0xf]
  %v239 = vperm.slane %v14, 0
  %v320 = vunpack.c.l.b16 %v15
  %v321 = vunpack.c.h.b16 %v15
  %v322 = vunpack.c.l.b16 %v16
  %v323 = vunpack.c.h.b16 %v16
  %v324 = vunpack.c.l.b16 %v17
  %v325 = vunpack.c.h.b16 %v17
  %v326 = vunpack.c.l.b16 %v18
  %v327 = vunpack.c.h.b16 %v18
  %v328 = vunpack.c.l.b16 %v19
  %v329 = vunpack.c.l.b16 %v20
  %v330 = vunpack.c.h.b16 %v20
  %v331 = vunpack.c.l.b16 %v21
  %v332 = vunpack.c.h.b16 %v21
  %v333 = vunpack.c.l.b16 %v22
  %v334 = vunpack.c.h.b16 %v22
  %v335 = vunpack.c.l.b16 %v23
  %v336 = vunpack.c.h.b16 %v23
  %v337 = vunpack.c.l.b16 %v24
  %v338 = vunpack.c.l.b16 %v25
  %v339 = vunpack.c.h.b16 %v25
  %v340 = vunpack.c.l.b16 %v26
  %v341 = vunpack.c.h.b16 %v26
  %v342 = vunpack.c.l.b16 %v27
  %v343 = vunpack.c.h.b16 %v27
  %v344 = vunpack.c.l.b16 %v28
  %v345 = vunpack.c.h.b16 %v28
  %v346 = vunpack.c.l.b16 %v29
  %v347 = vunpack.c.l.b16 %v30
  %v348 = vunpack.c.h.b16 %v30
  %v349 = vunpack.c.l.b16 %v31
  %v350 = vunpack.c.h.b16 %v31
  %v351 = vunpack.c.l.b16 %v32
  %v352 = vunpack.c.h.b16 %v32
  %v353 = vunpack.c.l.b16 %v33
  %v354 = vunpack.c.h.b16 %v33
  %v355 = vunpack.c.l.b16 %v34
  %v356 = vunpack.c.l.b16 %v35
  %v357 = vunpack.c.h.b16 %v35
  %v358 = vunpack.c.l.b16 %v36
  %v359 = vunpack.c.h.b16 %v36
  %v360 = vunpack.c.l.b16 %v37
  %v361 = vunpack.c.h.b16 %v37
  %v362 = vunpack.c.l.b16 %v38
  %v363 = vunpack.c.h.b16 %v38
  %v364 = vunpack.c.l.b16 %v39
  %v365 = vunpack.c.l.b16 %v40
  %v366 = vunpack.c.h.b16 %v40
  %v367 = vunpack.c.l.b16 %v41
  %v368 = vunpack.c.h.b16 %v41
  %v369 = vunpack.c.l.b16 %v42
  %v370 = vunpack.c.h.b16 %v42
  %v371 = vunpack.c.l.b16 %v43
  %v372 = vunpack.c.h.b16 %v43
  %v373 = vunpack.c.l.b16 %v44
  %v374 = vunpack.c.l.b16 %v45
  %v375 = vunpack.c.h.b16 %v45
  %v376 = vunpack.c.l.b16 %v46
  %v377 = vunpack.c.h.b16 %v46
  %v378 = vunpack.c.l.b16 %v47
  %v379 = vunpack.c.h.b16 %v47
  %v380 = vunpack.c.l.b16 %v48
  %v381 = vunpack.c.h.b16 %v48
  %v382 = vunpack.c.l.b16 %v49
  %v383 = vunpack.c.l.b16 %v50
  %v384 = vunpack.c.h.b16 %v50
  %v385 = vunpack.c.l.b16 %v51
  %v386 = vunpack.c.h.b16 %v51
  %v387 = vunpack.c.l.b16 %v52
  %v388 = vunpack.c.h.b16 %v52
  %v389 = vunpack.c.l.b16 %v53
  %v390 = vunpack.c.h.b16 %v53
  %v391 = vunpack.c.l.b16 %v54
  %v392 = vunpack.c.l.b16 %v55
  %v393 = vunpack.c.h.b16 %v55
  %v394 = vunpack.c.l.b16 %v56
  %v395 = vunpack.c.h.b16 %v56
  %v396 = vunpack.c.l.b16 %v57
  %v397 = vunpack.c.h.b16 %v57
  %v398 = vunpack.c.l.b16 %v58
  %v399 = vunpack.c.h.b16 %v58
  %v400 = vunpack.c.l.b16 %v59
  %v401 = vunpack.c.l.b16 %v60
  %v402 = vunpack.c.h.b16 %v60
  %v403 = vunpack.c.l.b16 %v61
  %v404 = vunpack.c.h.b16 %v61
  %v405 = vunpack.c.l.b16 %v62
  %v406 = vunpack.c.h.b16 %v62
  %v407 = vunpack.c.l.b16 %v63
  %v408 = vunpack.c.h.b16 %v63
  %v409 = vunpack.c.l.b16 %v64
  %v410 = vunpack.c.l.b16 %v65
  %v411 = vunpack.c.h.b16 %v65
  %v412 = vunpack.c.l.b16 %v66
  %v413 = vunpack.c.h.b16 %v66
  %v414 = vunpack.c.l.b16 %v67
  %v415 = vunpack.c.h.b16 %v67
  %v416 = vunpack.c.l.b16 %v68
  %v417 = vunpack.c.h.b16 %v68
  %v418 = vunpack.c.l.b16 %v69
  %v419 = vunpack.c.l.b16 %v70
  %v420 = vunpack.c.h.b16 %v70
  %v421 = vunpack.c.l.b16 %v71
  %v422 = vunpack.c.h.b16 %v71
  %v423 = vunpack.c.l.b16 %v72
  %v424 = vunpack.c.h.b16 %v72
  %v425 = vunpack.c.l.b16 %v73
  %v426 = vunpack.c.h.b16 %v73
  %v427 = vunpack.c.l.b16 %v74
  %v428 = vunpack.c.l.b16 %v75
  %v429 = vunpack.c.h.b16 %v75
  %v430 = vunpack.c.l.b16 %v76
  %v431 = vunpack.c.h.b16 %v76
  %v432 = vunpack.c.l.b16 %v77
  %v433 = vunpack.c.h.b16 %v77
  %v434 = vunpack.c.l.b16 %v78
  %v435 = vunpack.c.h.b16 %v78
  %v436 = vunpack.c.l.b16 %v79
  %v437 = vunpack.c.l.b16 %v80
  %v438 = vunpack.c.h.b16 %v80
  %v439 = vunpack.c.l.b16 %v81
  %v440 = vunpack.c.h.b16 %v81
  %v441 = vunpack.c.l.b16 %v82
  %v442 = vunpack.c.h.b16 %v82
  %v443 = vunpack.c.l.b16 %v83
  %v444 = vunpack.c.h.b16 %v83
  %v445 = vunpack.c.l.b16 %v84
  %v446 = vunpack.c.l.b16 %v85
  %v447 = vunpack.c.h.b16 %v85
  %v448 = vunpack.c.l.b16 %v86
  %v449 = vunpack.c.h.b16 %v86
  %v450 = vunpack.c.l.b16 %v87
  %v451 = vunpack.c.h.b16 %v87
  %v452 = vunpack.c.l.b16 %v88
  %v453 = vunpack.c.h.b16 %v88
  %v454 = vunpack.c.l.b16 %v89
  %v455 = vunpack.c.l.b16 %v90
  %v456 = vunpack.c.h.b16 %v90
  %v457 = vunpack.c.l.b16 %v91
  %v458 = vunpack.c.h.b16 %v91
  %v459 = vunpack.c.l.b16 %v92
  %v460 = vunpack.c.h.b16 %v92
  %v461 = vunpack.c.l.b16 %v93
  %v462 = vunpack.c.h.b16 %v93
  %v463 = vunpack.c.l.b16 %v94
  %v464 = vpack.c.b16 %v329, %v320
  %v465 = vpack.c.b16 %v330, %v321
  %v466 = vpack.c.b16 %v331, %v322
  %v467 = vpack.c.b16 %v332, %v323
  %v468 = vpack.c.b16 %v333, %v324
  %v469 = vpack.c.b16 %v334, %v325
  %v470 = vpack.c.b16 %v335, %v326
  %v471 = vpack.c.b16 %v336, %v327
  %v472 = vpack.c.b16 %v337, %v328
  %v473 = vpack.c.b16 %v347, %v338
  %v474 = vpack.c.b16 %v348, %v339
  %v475 = vpack.c.b16 %v349, %v340
  %v476 = vpack.c.b16 %v350, %v341
  %v477 = vpack.c.b16 %v351, %v342
  %v478 = vpack.c.b16 %v352, %v343
  %v479 = vpack.c.b16 %v353, %v344
  %v480 = vpack.c.b16 %v354, %v345
  %v481 = vpack.c.b16 %v355, %v346
  %v482 = vpack.c.b16 %v365, %v356
  %v483 = vpack.c.b16 %v366, %v357
  %v484 = vpack.c.b16 %v367, %v358
  %v485 = vpack.c.b16 %v368, %v359
  %v486 = vpack.c.b16 %v369, %v360
  %v487 = vpack.c.b16 %v370, %v361
  %v488 = vpack.c.b16 %v371, %v362
  %v489 = vpack.c.b16 %v372, %v363
  %v490 = vpack.c.b16 %v373, %v364
  %v491 = vpack.c.b16 %v383, %v374
  %v492 = vpack.c.b16 %v384, %v375
  %v493 = vpack.c.b16 %v385, %v376
  %v494 = vpack.c.b16 %v386, %v377
  %v495 = vpack.c.b16 %v387, %v378
  %v496 = vpack.c.b16 %v388, %v379
  %v497 = vpack.c.b16 %v389, %v380
  %v498 = vpack.c.b16 %v390, %v381
  %v499 = vpack.c.b16 %v391, %v382
  %v500 = vpack.c.b16 %v401, %v392
  %v501 = vpack.c.b16 %v402, %v393
  %v502 = vpack.c.b16 %v403, %v394
  %v503 = vpack.c.b16 %v404, %v395
  %v504 = vpack.c.b16 %v405, %v396
  %v505 = vpack.c.b16 %v406, %v397
  %v506 = vpack.c.b16 %v407, %v398
  %v507 = vpack.c.b16 %v408, %v399
  %v508 = vpack.c.b16 %v409, %v400
  %v509 = vpack.c.b16 %v419, %v410
  %v510 = vpack.c.b16 %v420, %v411
  %v511 = vpack.c.b16 %v421, %v412
  %v512 = vpack.c.b16 %v422, %v413
  %v513 = vpack.c.b16 %v423, %v414
  %v514 = vpack.c.b16 %v424, %v415
  %v515 = vpack.c.b16 %v425, %v416
  %v516 = vpack.c.b16 %v426, %v417
  %v517 = vpack.c.b16 %v427, %v418
  %v518 = vpack.c.b16 %v437, %v428
  %v519 = vpack.c.b16 %v438, %v429
  %v520 = vpack.c.b16 %v439, %v430
  %v521 = vpack.c.b16 %v440, %v431
  %v522 = vpack.c.b16 %v441, %v432
  %v523 = vpack.c.b16 %v442, %v433
  %v524 = vpack.c.b16 %v443, %v434
  %v525 = vpack.c.b16 %v444, %v435
  %v526 = vpack.c.b16 %v445, %v436
  %v527 = vpack.c.b16 %v455, %v446
  %v528 = vpack.c.b16 %v456, %v447
  %v529 = vpack.c.b16 %v457, %v448
  %v530 = vpack.c.b16 %v458, %v449
  %v531 = vpack.c.b16 %v459, %v450
  %v532 = vpack.c.b16 %v460, %v451
  %v533 = vpack.c.b16 %v461, %v452
  %v534 = vpack.c.b16 %v462, %v453
  %v535 = vpack.c.b16 %v463, %v454
  %v752 = vunpack.c.l.b16 %v95
  %v753 = vunpack.c.l.b16 %v96
  %v754 = vunpack.c.l.b16 %v97
  %v755 = vunpack.c.l.b16 %v98
  %v756 = vunpack.c.l.b16 %v99
  %v757 = vunpack.c.l.b16 %v100
  %v758 = vunpack.c.l.b16 %v101
  %v759 = vunpack.c.l.b16 %v102
  %v760 = vunpack.c.l.b16 %v103
  %v761 = vunpack.c.l.b16 %v104
  %v762 = vunpack.c.l.b16 %v105
  %v763 = vunpack.c.l.b16 %v106
  %v764 = vunpack.c.l.b16 %v107
  %v765 = vunpack.c.l.b16 %v108
  %v766 = vunpack.c.l.b16 %v109
  %v767 = vunpack.c.l.b16 %v110
  %v768 = vunpack.c.l.b16 %v111
  %v769 = vunpack.c.l.b16 %v112
  %v770 = vunpack.c.l.b16 %v113
  %v771 = vunpack.c.l.b16 %v114
  %v772 = vunpack.c.l.b16 %v115
  %v773 = vunpack.c.l.b16 %v116
  %v774 = vunpack.c.l.b16 %v117
  %v775 = vunpack.c.l.b16 %v118
  %v776 = vunpack.c.l.b16 %v119
  %v777 = vunpack.c.l.b16 %v120
  %v778 = vunpack.c.l.b16 %v121
  %v779 = vunpack.c.l.b16 %v122
  %v780 = vunpack.c.l.b16 %v123
  %v781 = vunpack.c.l.b16 %v124
  %v782 = vunpack.c.l.b16 %v125
  %v783 = vunpack.c.l.b16 %v126
  %v784 = vunpack.c.l.b16 %v127
  %v785 = vunpack.c.l.b16 %v128
  %v786 = vunpack.c.l.b16 %v129
  %v787 = vunpack.c.l.b16 %v130
  %v788 = vunpack.c.l.b16 %v131
  %v789 = vunpack.c.l.b16 %v132
  %v790 = vunpack.c.l.b16 %v133
  %v791 = vunpack.c.l.b16 %v134
  %v792 = vunpack.c.l.b16 %v135
  %v793 = vunpack.c.l.b16 %v136
  %v794 = vunpack.c.l.b16 %v137
  %v795 = vunpack.c.l.b16 %v138
  %v796 = vunpack.c.l.b16 %v139
  %v797 = vunpack.c.l.b16 %v140
  %v798 = vunpack.c.l.b16 %v141
  %v799 = vunpack.c.l.b16 %v142
  %v800 = vunpack.c.l.b16 %v143
  %v801 = vunpack.c.l.b16 %v144
  %v802 = vunpack.c.l.b16 %v145
  %v803 = vunpack.c.l.b16 %v146
  %v804 = vunpack.c.l.b16 %v147
  %v805 = vunpack.c.l.b16 %v148
  %v806 = vunpack.c.l.b16 %v149
  %v807 = vunpack.c.l.b16 %v150
  %v808 = vunpack.c.l.b16 %v151
  %v809 = vunpack.c.l.b16 %v152
  %v810 = vunpack.c.l.b16 %v153
  %v811 = vunpack.c.l.b16 %v154
  %v812 = vunpack.c.l.b16 %v155
  %v813 = vunpack.c.l.b16 %v156
  %v814 = vunpack.c.l.b16 %v157
  %v815 = vunpack.c.l.b16 %v158
  %v816 = vunpack.c.l.b16 %v159
  %v817 = vunpack.c.l.b16 %v160
  %v818 = vunpack.c.l.b16 %v161
  %v819 = vunpack.c.l.b16 %v162
  %v820 = vunpack.c.l.b16 %v163
  %v821 = vunpack.c.l.b16 %v164
  %v822 = vunpack.c.l.b16 %v165
  %v823 = vunpack.c.l.b16 %v166
  %v824 = vunpack.c.l.b16 %v167
  %v825 = vunpack.c.l.b16 %v168
  %v826 = vunpack.c.l.b16 %v169
  %v827 = vunpack.c.l.b16 %v170
  %v828 = vunpack.c.l.b16 %v171
  %v829 = vunpack.c.l.b16 %v172
  %v830 = vunpack.c.l.b16 %v173
  %v831 = vunpack.c.l.b16 %v174
  %v832 = vunpack.c.l.b16 %v175
  %v833 = vunpack.c.l.b16 %v176
  %v834 = vunpack.c.l.b16 %v177
  %v835 = vunpack.c.l.b16 %v178
  %v836 = vunpack.c.l.b16 %v179
  %v837 = vunpack.c.l.b16 %v180
  %v838 = vunpack.c.l.b16 %v181
  %v839 = vunpack.c.l.b16 %v182
  %v840 = vunpack.c.l.b16 %v183
  %v841 = vunpack.c.l.b16 %v184
  %v842 = vunpack.c.l.b16 %v185
  %v843 = vunpack.c.l.b16 %v186
  %v844 = vunpack.c.l.b16 %v187
  %v845 = vunpack.c.l.b16 %v188
  %v846 = vunpack.c.l.b16 %v189
  %v847 = vunpack.c.l.b16 %v190
  %v848 = vunpack.c.l.b16 %v191
  %v849 = vunpack.c.l.b16 %v192
  %v850 = vunpack.c.l.b16 %v193
  %v851 = vunpack.c.l.b16 %v194
  %v852 = vunpack.c.l.b16 %v195
  %v853 = vunpack.c.l.b16 %v196
  %v854 = vunpack.c.l.b16 %v197
  %v855 = vunpack.c.l.b16 %v198
  %v856 = vunpack.c.l.b16 %v199
  %v857 = vunpack.c.l.b16 %v200
  %v858 = vunpack.c.l.b16 %v201
  %v859 = vunpack.c.l.b16 %v202
  %v860 = vunpack.c.l.b16 %v203
  %v861 = vunpack.c.l.b16 %v204
  %v862 = vunpack.c.l.b16 %v205
  %v863 = vunpack.c.l.b16 %v206
  %v864 = vunpack.c.l.b16 %v207
  %v865 = vunpack.c.l.b16 %v208
  %v866 = vunpack.c.l.b16 %v209
  %v867 = vunpack.c.l.b16 %v210
  %v868 = vunpack.c.l.b16 %v211
  %v869 = vunpack.c.l.b16 %v212
  %v870 = vunpack.c.l.b16 %v213
  %v871 = vunpack.c.l.b16 %v214
  %v872 = vunpack.c.l.b16 %v215
  %v873 = vunpack.c.l.b16 %v216
  %v874 = vunpack.c.l.b16 %v217
  %v875 = vunpack.c.l.b16 %v218
  %v876 = vunpack.c.l.b16 %v219
  %v877 = vunpack.c.l.b16 %v220
  %v878 = vunpack.c.l.b16 %v221
  %v879 = vunpack.c.l.b16 %v222
  %v880 = vunpack.c.l.b16 %v223
  %v881 = vunpack.c.l.b16 %v224
  %v882 = vunpack.c.l.b16 %v225
  %v883 = vunpack.c.l.b16 %v226
  %v884 = vunpack.c.l.b16 %v227
  %v885 = vunpack.c.l.b16 %v228
  %v886 = vunpack.c.l.b16 %v229
  %v887 = vunpack.c.l.b16 %v230
  %v888 = vunpack.c.l.b16 %v231
  %v889 = vunpack.c.l.b16 %v232
  %v890 = vunpack.c.l.b16 %v233
  %v891 = vunpack.c.l.b16 %v234
  %v892 = vunpack.c.l.b16 %v235
  %v893 = vunpack.c.l.b16 %v236
  %v894 = vunpack.c.l.b16 %v237
  %v895 = vunpack.c.l.b16 %v238
  %v896 = vpack.c.b16 %v753, %v752
  %v897 = vpack.c.b16 %v755, %v754
  %v898 = vpack.c.b16 %v757, %v756
  %v899 = vpack.c.b16 %v759, %v758
  %v900 = vpack.c.b16 %v761, %v760
  %v901 = vpack.c.b16 %v763, %v762
  %v902 = vpack.c.b16 %v765, %v764
  %v903 = vpack.c.b16 %v767, %v766
  %v904 = vpack.c.b16 %v769, %v768
  %v905 = vpack.c.b16 %v771, %v770
  %v906 = vpack.c.b16 %v773, %v772
  %v907 = vpack.c.b16 %v775, %v774
  %v908 = vpack.c.b16 %v777, %v776
  %v909 = vpack.c.b16 %v779, %v778
  %v910 = vpack.c.b16 %v781, %v780
  %v911 = vpack.c.b16 %v783, %v782
  %v912 = vpack.c.b16 %v785, %v784
  %v913 = vpack.c.b16 %v787, %v786
  %v914 = vpack.c.b16 %v789, %v788
  %v915 = vpack.c.b16 %v791, %v790
  %v916 = vpack.c.b16 %v793, %v792
  %v917 = vpack.c.b16 %v795, %v794
  %v918 = vpack.c.b16 %v797, %v796
  %v919 = vpack.c.b16 %v799, %v798
  %v920 = vpack.c.b16 %v801, %v800
  %v921 = vpack.c.b16 %v803, %v802
  %v922 = vpack.c.b16 %v805, %v804
  %v923 = vpack.c.b16 %v807, %v806
  %v924 = vpack.c.b16 %v809, %v808
  %v925 = vpack.c.b16 %v811, %v810
  %v926 = vpack.c.b16 %v813, %v812
  %v927 = vpack.c.b16 %v815, %v814
  %v928 = vpack.c.b16 %v817, %v816
  %v929 = vpack.c.b16 %v819, %v818
  %v930 = vpack.c.b16 %v821, %v820
  %v931 = vpack.c.b16 %v823, %v822
  %v932 = vpack.c.b16 %v825, %v824
  %v933 = vpack.c.b16 %v827, %v826
  %v934 = vpack.c.b16 %v829, %v828
  %v935 = vpack.c.b16 %v831, %v830
  %v936 = vpack.c.b16 %v833, %v832
  %v937 = vpack.c.b16 %v835, %v834
  %v938 = vpack.c.b16 %v837, %v836
  %v939 = vpack.c.b16 %v839, %v838
  %v940 = vpack.c.b16 %v841, %v840
  %v941 = vpack.c.b16 %v843, %v842
  %v942 = vpack.c.b16 %v845, %v844
  %v943 = vpack.c.b16 %v847, %v846
  %v944 = vpack.c.b16 %v849, %v848
  %v945 = vpack.c.b16 %v851, %v850
  %v946 = vpack.c.b16 %v853, %v852
  %v947 = vpack.c.b16 %v855, %v854
  %v948 = vpack.c.b16 %v857, %v856
  %v949 = vpack.c.b16 %v859, %v858
  %v950 = vpack.c.b16 %v861, %v860
  %v951 = vpack.c.b16 %v863, %v862
  %v952 = vpack.c.b16 %v865, %v864
  %v953 = vpack.c.b16 %v867, %v866
  %v954 = vpack.c.b16 %v869, %v868
  %v955 = vpack.c.b16 %v871, %v870
  %v956 = vpack.c.b16 %v873, %v872
  %v957 = vpack.c.b16 %v875, %v874
  %v958 = vpack.c.b16 %v877, %v876
  %v959 = vpack.c.b16 %v879, %v878
  %v960 = vpack.c.b16 %v881, %v880
  %v961 = vpack.c.b16 %v883, %v882
  %v962 = vpack.c.b16 %v885, %v884
  %v963 = vpack.c.b16 %v887, %v886
  %v964 = vpack.c.b16 %v889, %v888
  %v965 = vpack.c.b16 %v891, %v890
  %v966 = vpack.c.b16 %v893, %v892
  %v967 = vpack.c.b16 %v895, %v894
  %1040 = vmatpush.bf16.msra.mxu0 %v903
  %1041 = vmatpush.bf16.msra.mxu0 %v902
  %1042 = vmatpush.bf16.msra.mxu0 %v901
  %1043 = vmatpush.bf16.msra.mxu0 %v900
  %1044 = vmatpush.bf16.msra.mxu0 %v899
  %1045 = vmatpush.bf16.msra.mxu0 %v898
  %1046 = vmatpush.bf16.msra.mxu0 %v897
  %1047 = vmatpush.bf16.msra.mxu0 %v896
  %1048 = vmatmul.bf16.gmra.mxu0 %v464
  %v1049 = vpop.f32.mrf.mxu0
  %v1050 = vadd.f32 %v239, %v1049
  %v1051 = vpop.f32.mrf.mxu0
  %v1052 = vadd.f32 %v239, %v1051
  %1053 = vmatmul.bf16.gmra.mxu0 %v473
  %v1054 = vpop.f32.mrf.mxu0
  %v1055 = vadd.f32 %v239, %v1054
  %v1056 = vpop.f32.mrf.mxu0
  %v1057 = vadd.f32 %v239, %v1056
  %1058 = vmatmul.bf16.gmra.mxu0 %v482
  %v1059 = vpop.f32.mrf.mxu0
  %v1060 = vadd.f32 %v239, %v1059
  %v1061 = vpop.f32.mrf.mxu0
  %v1062 = vadd.f32 %v239, %v1061
  %1063 = vmatmul.bf16.gmra.mxu0 %v491
  %v1064 = vpop.f32.mrf.mxu0
  %v1065 = vadd.f32 %v239, %v1064
  %v1066 = vpop.f32.mrf.mxu0
  %v1067 = vadd.f32 %v239, %v1066
  %1068 = vmatmul.bf16.gmra.mxu0 %v500
  %v1069 = vpop.f32.mrf.mxu0
  %v1070 = vadd.f32 %v239, %v1069
  %v1071 = vpop.f32.mrf.mxu0
  %v1072 = vadd.f32 %v239, %v1071
  %1073 = vmatmul.bf16.gmra.mxu0 %v509
  %v1074 = vpop.f32.mrf.mxu0
  %v1075 = vadd.f32 %v239, %v1074
  %v1076 = vpop.f32.mrf.mxu0
  %v1077 = vadd.f32 %v239, %v1076
  %1078 = vmatmul.bf16.gmra.mxu0 %v518
  %v1079 = vpop.f32.mrf.mxu0
  %v1080 = vadd.f32 %v239, %v1079
  %v1081 = vpop.f32.mrf.mxu0
  %v1082 = vadd.f32 %v239, %v1081
  %1083 = vmatmul.bf16.gmra.mxu0 %v527
  %v1084 = vpop.f32.mrf.mxu0
  %v1085 = vadd.f32 %v239, %v1084
  %v1086 = vpop.f32.mrf.mxu0
  %v1087 = vadd.f32 %v239, %v1086
  %1088 = vdwg.mxu0
  %1089 = vmatpush.bf16.msra.mxu0 %v911
  %1090 = vmatpush.bf16.msra.mxu0 %v910
  %1091 = vmatpush.bf16.msra.mxu0 %v909
  %1092 = vmatpush.bf16.msra.mxu0 %v908
  %1093 = vmatpush.bf16.msra.mxu0 %v907
  %1094 = vmatpush.bf16.msra.mxu0 %v906
  %1095 = vmatpush.bf16.msra.mxu0 %v905
  %1096 = vmatpush.bf16.msra.mxu0 %v904
  %1097 = vmatmul.bf16.gmra.mxu0 %v465
  %v1098 = vpop.f32.mrf.mxu0
  %v1099 = vadd.f32 %v1050, %v1098
  %v1100 = vpop.f32.mrf.mxu0
  %v1101 = vadd.f32 %v1052, %v1100
  %1102 = vmatmul.bf16.gmra.mxu0 %v474
  %v1103 = vpop.f32.mrf.mxu0
  %v1104 = vadd.f32 %v1055, %v1103
  %v1105 = vpop.f32.mrf.mxu0
  %v1106 = vadd.f32 %v1057, %v1105
  %1107 = vmatmul.bf16.gmra.mxu0 %v483
  %v1108 = vpop.f32.mrf.mxu0
  %v1109 = vadd.f32 %v1060, %v1108
  %v1110 = vpop.f32.mrf.mxu0
  %v1111 = vadd.f32 %v1062, %v1110
  %1112 = vmatmul.bf16.gmra.mxu0 %v492
  %v1113 = vpop.f32.mrf.mxu0
  %v1114 = vadd.f32 %v1065, %v1113
  %v1115 = vpop.f32.mrf.mxu0
  %v1116 = vadd.f32 %v1067, %v1115
  %1117 = vmatmul.bf16.gmra.mxu0 %v501
  %v1118 = vpop.f32.mrf.mxu0
  %v1119 = vadd.f32 %v1070, %v1118
  %v1120 = vpop.f32.mrf.mxu0
  %v1121 = vadd.f32 %v1072, %v1120
  %1122 = vmatmul.bf16.gmra.mxu0 %v510
  %v1123 = vpop.f32.mrf.mxu0
  %v1124 = vadd.f32 %v1075, %v1123
  %v1125 = vpop.f32.mrf.mxu0
  %v1126 = vadd.f32 %v1077, %v1125
  %1127 = vmatmul.bf16.gmra.mxu0 %v519
  %v1128 = vpop.f32.mrf.mxu0
  %v1129 = vadd.f32 %v1080, %v1128
  %v1130 = vpop.f32.mrf.mxu0
  %v1131 = vadd.f32 %v1082, %v1130
  %1132 = vmatmul.bf16.gmra.mxu0 %v528
  %v1133 = vpop.f32.mrf.mxu0
  %v1134 = vadd.f32 %v1085, %v1133
  %v1135 = vpop.f32.mrf.mxu0
  %v1136 = vadd.f32 %v1087, %v1135
  %1137 = vdwg.mxu0
  %1138 = vmatpush.bf16.msra.mxu0 %v919
  %1139 = vmatpush.bf16.msra.mxu0 %v918
  %1140 = vmatpush.bf16.msra.mxu0 %v917
  %1141 = vmatpush.bf16.msra.mxu0 %v916
  %1142 = vmatpush.bf16.msra.mxu0 %v915
  %1143 = vmatpush.bf16.msra.mxu0 %v914
  %1144 = vmatpush.bf16.msra.mxu0 %v913
  %1145 = vmatpush.bf16.msra.mxu0 %v912
  %1146 = vmatmul.bf16.gmra.mxu0 %v466
  %v1147 = vpop.f32.mrf.mxu0
  %v1148 = vadd.f32 %v1099, %v1147
  %v1149 = vpop.f32.mrf.mxu0
  %v1150 = vadd.f32 %v1101, %v1149
  %1151 = vmatmul.bf16.gmra.mxu0 %v475
  %v1152 = vpop.f32.mrf.mxu0
  %v1153 = vadd.f32 %v1104, %v1152
  %v1154 = vpop.f32.mrf.mxu0
  %v1155 = vadd.f32 %v1106, %v1154
  %1156 = vmatmul.bf16.gmra.mxu0 %v484
  %v1157 = vpop.f32.mrf.mxu0
  %v1158 = vadd.f32 %v1109, %v1157
  %v1159 = vpop.f32.mrf.mxu0
  %v1160 = vadd.f32 %v1111, %v1159
  %1161 = vmatmul.bf16.gmra.mxu0 %v493
  %v1162 = vpop.f32.mrf.mxu0
  %v1163 = vadd.f32 %v1114, %v1162
  %v1164 = vpop.f32.mrf.mxu0
  %v1165 = vadd.f32 %v1116, %v1164
  %1166 = vmatmul.bf16.gmra.mxu0 %v502
  %v1167 = vpop.f32.mrf.mxu0
  %v1168 = vadd.f32 %v1119, %v1167
  %v1169 = vpop.f32.mrf.mxu0
  %v1170 = vadd.f32 %v1121, %v1169
  %1171 = vmatmul.bf16.gmra.mxu0 %v511
  %v1172 = vpop.f32.mrf.mxu0
  %v1173 = vadd.f32 %v1124, %v1172
  %v1174 = vpop.f32.mrf.mxu0
  %v1175 = vadd.f32 %v1126, %v1174
  %1176 = vmatmul.bf16.gmra.mxu0 %v520
  %v1177 = vpop.f32.mrf.mxu0
  %v1178 = vadd.f32 %v1129, %v1177
  %v1179 = vpop.f32.mrf.mxu0
  %v1180 = vadd.f32 %v1131, %v1179
  %1181 = vmatmul.bf16.gmra.mxu0 %v529
  %v1182 = vpop.f32.mrf.mxu0
  %v1183 = vadd.f32 %v1134, %v1182
  %v1184 = vpop.f32.mrf.mxu0
  %v1185 = vadd.f32 %v1136, %v1184
  %1186 = vdwg.mxu0
  %1187 = vmatpush.bf16.msra.mxu0 %v927
  %1188 = vmatpush.bf16.msra.mxu0 %v926
  %1189 = vmatpush.bf16.msra.mxu0 %v925
  %1190 = vmatpush.bf16.msra.mxu0 %v924
  %1191 = vmatpush.bf16.msra.mxu0 %v923
  %1192 = vmatpush.bf16.msra.mxu0 %v922
  %1193 = vmatpush.bf16.msra.mxu0 %v921
  %1194 = vmatpush.bf16.msra.mxu0 %v920
  %1195 = vmatmul.bf16.gmra.mxu0 %v467
  %v1196 = vpop.f32.mrf.mxu0
  %v1197 = vadd.f32 %v1148, %v1196
  %v1198 = vpop.f32.mrf.mxu0
  %v1199 = vadd.f32 %v1150, %v1198
  %1200 = vmatmul.bf16.gmra.mxu0 %v476
  %v1201 = vpop.f32.mrf.mxu0
  %v1202 = vadd.f32 %v1153, %v1201
  %v1203 = vpop.f32.mrf.mxu0
  %v1204 = vadd.f32 %v1155, %v1203
  %1205 = vmatmul.bf16.gmra.mxu0 %v485
  %v1206 = vpop.f32.mrf.mxu0
  %v1207 = vadd.f32 %v1158, %v1206
  %v1208 = vpop.f32.mrf.mxu0
  %v1209 = vadd.f32 %v1160, %v1208
  %1210 = vmatmul.bf16.gmra.mxu0 %v494
  %v1211 = vpop.f32.mrf.mxu0
  %v1212 = vadd.f32 %v1163, %v1211
  %v1213 = vpop.f32.mrf.mxu0
  %v1214 = vadd.f32 %v1165, %v1213
  %1215 = vmatmul.bf16.gmra.mxu0 %v503
  %v1216 = vpop.f32.mrf.mxu0
  %v1217 = vadd.f32 %v1168, %v1216
  %v1218 = vpop.f32.mrf.mxu0
  %v1219 = vadd.f32 %v1170, %v1218
  %1220 = vmatmul.bf16.gmra.mxu0 %v512
  %v1221 = vpop.f32.mrf.mxu0
  %v1222 = vadd.f32 %v1173, %v1221
  %v1223 = vpop.f32.mrf.mxu0
  %v1224 = vadd.f32 %v1175, %v1223
  %1225 = vmatmul.bf16.gmra.mxu0 %v521
  %v1226 = vpop.f32.mrf.mxu0
  %v1227 = vadd.f32 %v1178, %v1226
  %v1228 = vpop.f32.mrf.mxu0
  %v1229 = vadd.f32 %v1180, %v1228
  %1230 = vmatmul.bf16.gmra.mxu0 %v530
  %v1231 = vpop.f32.mrf.mxu0
  %v1232 = vadd.f32 %v1183, %v1231
  %v1233 = vpop.f32.mrf.mxu0
  %v1234 = vadd.f32 %v1185, %v1233
  %1235 = vdwg.mxu0
  %1236 = vmatpush.bf16.msra.mxu0 %v935
  %1237 = vmatpush.bf16.msra.mxu0 %v934
  %1238 = vmatpush.bf16.msra.mxu0 %v933
  %1239 = vmatpush.bf16.msra.mxu0 %v932
  %1240 = vmatpush.bf16.msra.mxu0 %v931
  %1241 = vmatpush.bf16.msra.mxu0 %v930
  %1242 = vmatpush.bf16.msra.mxu0 %v929
  %1243 = vmatpush.bf16.msra.mxu0 %v928
  %1244 = vmatmul.bf16.gmra.mxu0 %v468
  %v1245 = vpop.f32.mrf.mxu0
  %v1246 = vadd.f32 %v1197, %v1245
  %v1247 = vpop.f32.mrf.mxu0
  %v1248 = vadd.f32 %v1199, %v1247
  %1249 = vmatmul.bf16.gmra.mxu0 %v477
  %v1250 = vpop.f32.mrf.mxu0
  %v1251 = vadd.f32 %v1202, %v1250
  %v1252 = vpop.f32.mrf.mxu0
  %v1253 = vadd.f32 %v1204, %v1252
  %1254 = vmatmul.bf16.gmra.mxu0 %v486
  %v1255 = vpop.f32.mrf.mxu0
  %v1256 = vadd.f32 %v1207, %v1255
  %v1257 = vpop.f32.mrf.mxu0
  %v1258 = vadd.f32 %v1209, %v1257
  %1259 = vmatmul.bf16.gmra.mxu0 %v495
  %v1260 = vpop.f32.mrf.mxu0
  %v1261 = vadd.f32 %v1212, %v1260
  %v1262 = vpop.f32.mrf.mxu0
  %v1263 = vadd.f32 %v1214, %v1262
  %1264 = vmatmul.bf16.gmra.mxu0 %v504
  %v1265 = vpop.f32.mrf.mxu0
  %v1266 = vadd.f32 %v1217, %v1265
  %v1267 = vpop.f32.mrf.mxu0
  %v1268 = vadd.f32 %v1219, %v1267
  %1269 = vmatmul.bf16.gmra.mxu0 %v513
  %v1270 = vpop.f32.mrf.mxu0
  %v1271 = vadd.f32 %v1222, %v1270
  %v1272 = vpop.f32.mrf.mxu0
  %v1273 = vadd.f32 %v1224, %v1272
  %1274 = vmatmul.bf16.gmra.mxu0 %v522
  %v1275 = vpop.f32.mrf.mxu0
  %v1276 = vadd.f32 %v1227, %v1275
  %v1277 = vpop.f32.mrf.mxu0
  %v1278 = vadd.f32 %v1229, %v1277
  %1279 = vmatmul.bf16.gmra.mxu0 %v531
  %v1280 = vpop.f32.mrf.mxu0
  %v1281 = vadd.f32 %v1232, %v1280
  %v1282 = vpop.f32.mrf.mxu0
  %v1283 = vadd.f32 %v1234, %v1282
  %1284 = vdwg.mxu0
  %1285 = vmatpush.bf16.msra.mxu0 %v943
  %1286 = vmatpush.bf16.msra.mxu0 %v942
  %1287 = vmatpush.bf16.msra.mxu0 %v941
  %1288 = vmatpush.bf16.msra.mxu0 %v940
  %1289 = vmatpush.bf16.msra.mxu0 %v939
  %1290 = vmatpush.bf16.msra.mxu0 %v938
  %1291 = vmatpush.bf16.msra.mxu0 %v937
  %1292 = vmatpush.bf16.msra.mxu0 %v936
  %1293 = vmatmul.bf16.gmra.mxu0 %v469
  %v1294 = vpop.f32.mrf.mxu0
  %v1295 = vadd.f32 %v1246, %v1294
  %v1296 = vpop.f32.mrf.mxu0
  %v1297 = vadd.f32 %v1248, %v1296
  %1298 = vmatmul.bf16.gmra.mxu0 %v478
  %v1299 = vpop.f32.mrf.mxu0
  %v1300 = vadd.f32 %v1251, %v1299
  %v1301 = vpop.f32.mrf.mxu0
  %v1302 = vadd.f32 %v1253, %v1301
  %1303 = vmatmul.bf16.gmra.mxu0 %v487
  %v1304 = vpop.f32.mrf.mxu0
  %v1305 = vadd.f32 %v1256, %v1304
  %v1306 = vpop.f32.mrf.mxu0
  %v1307 = vadd.f32 %v1258, %v1306
  %1308 = vmatmul.bf16.gmra.mxu0 %v496
  %v1309 = vpop.f32.mrf.mxu0
  %v1310 = vadd.f32 %v1261, %v1309
  %v1311 = vpop.f32.mrf.mxu0
  %v1312 = vadd.f32 %v1263, %v1311
  %1313 = vmatmul.bf16.gmra.mxu0 %v505
  %v1314 = vpop.f32.mrf.mxu0
  %v1315 = vadd.f32 %v1266, %v1314
  %v1316 = vpop.f32.mrf.mxu0
  %v1317 = vadd.f32 %v1268, %v1316
  %1318 = vmatmul.bf16.gmra.mxu0 %v514
  %v1319 = vpop.f32.mrf.mxu0
  %v1320 = vadd.f32 %v1271, %v1319
  %v1321 = vpop.f32.mrf.mxu0
  %v1322 = vadd.f32 %v1273, %v1321
  %1323 = vmatmul.bf16.gmra.mxu0 %v523
  %v1324 = vpop.f32.mrf.mxu0
  %v1325 = vadd.f32 %v1276, %v1324
  %v1326 = vpop.f32.mrf.mxu0
  %v1327 = vadd.f32 %v1278, %v1326
  %1328 = vmatmul.bf16.gmra.mxu0 %v532
  %v1329 = vpop.f32.mrf.mxu0
  %v1330 = vadd.f32 %v1281, %v1329
  %v1331 = vpop.f32.mrf.mxu0
  %v1332 = vadd.f32 %v1283, %v1331
  %1333 = vdwg.mxu0
  %1334 = vmatpush.bf16.msra.mxu0 %v951
  %1335 = vmatpush.bf16.msra.mxu0 %v950
  %1336 = vmatpush.bf16.msra.mxu0 %v949
  %1337 = vmatpush.bf16.msra.mxu0 %v948
  %1338 = vmatpush.bf16.msra.mxu0 %v947
  %1339 = vmatpush.bf16.msra.mxu0 %v946
  %1340 = vmatpush.bf16.msra.mxu0 %v945
  %1341 = vmatpush.bf16.msra.mxu0 %v944
  %1342 = vmatmul.bf16.gmra.mxu0 %v470
  %v1343 = vpop.f32.mrf.mxu0
  %v1344 = vadd.f32 %v1295, %v1343
  %v1345 = vpop.f32.mrf.mxu0
  %v1346 = vadd.f32 %v1297, %v1345
  %1347 = vmatmul.bf16.gmra.mxu0 %v479
  %v1348 = vpop.f32.mrf.mxu0
  %v1349 = vadd.f32 %v1300, %v1348
  %v1350 = vpop.f32.mrf.mxu0
  %v1351 = vadd.f32 %v1302, %v1350
  %1352 = vmatmul.bf16.gmra.mxu0 %v488
  %v1353 = vpop.f32.mrf.mxu0
  %v1354 = vadd.f32 %v1305, %v1353
  %v1355 = vpop.f32.mrf.mxu0
  %v1356 = vadd.f32 %v1307, %v1355
  %1357 = vmatmul.bf16.gmra.mxu0 %v497
  %v1358 = vpop.f32.mrf.mxu0
  %v1359 = vadd.f32 %v1310, %v1358
  %v1360 = vpop.f32.mrf.mxu0
  %v1361 = vadd.f32 %v1312, %v1360
  %1362 = vmatmul.bf16.gmra.mxu0 %v506
  %v1363 = vpop.f32.mrf.mxu0
  %v1364 = vadd.f32 %v1315, %v1363
  %v1365 = vpop.f32.mrf.mxu0
  %v1366 = vadd.f32 %v1317, %v1365
  %1367 = vmatmul.bf16.gmra.mxu0 %v515
  %v1368 = vpop.f32.mrf.mxu0
  %v1369 = vadd.f32 %v1320, %v1368
  %v1370 = vpop.f32.mrf.mxu0
  %v1371 = vadd.f32 %v1322, %v1370
  %1372 = vmatmul.bf16.gmra.mxu0 %v524
  %v1373 = vpop.f32.mrf.mxu0
  %v1374 = vadd.f32 %v1325, %v1373
  %v1375 = vpop.f32.mrf.mxu0
  %v1376 = vadd.f32 %v1327, %v1375
  %1377 = vmatmul.bf16.gmra.mxu0 %v533
  %v1378 = vpop.f32.mrf.mxu0
  %v1379 = vadd.f32 %v1330, %v1378
  %v1380 = vpop.f32.mrf.mxu0
  %v1381 = vadd.f32 %v1332, %v1380
  %1382 = vdwg.mxu0
  %1383 = vmatpush.bf16.msra.mxu0 %v959
  %1384 = vmatpush.bf16.msra.mxu0 %v958
  %1385 = vmatpush.bf16.msra.mxu0 %v957
  %1386 = vmatpush.bf16.msra.mxu0 %v956
  %1387 = vmatpush.bf16.msra.mxu0 %v955
  %1388 = vmatpush.bf16.msra.mxu0 %v954
  %1389 = vmatpush.bf16.msra.mxu0 %v953
  %1390 = vmatpush.bf16.msra.mxu0 %v952
  %1391 = vmatmul.bf16.gmra.mxu0 %v471
  %v1392 = vpop.f32.mrf.mxu0
  %v1393 = vadd.f32 %v1344, %v1392
  %v1394 = vpop.f32.mrf.mxu0
  %v1395 = vadd.f32 %v1346, %v1394
  %1396 = vmatmul.bf16.gmra.mxu0 %v480
  %v1397 = vpop.f32.mrf.mxu0
  %v1398 = vadd.f32 %v1349, %v1397
  %v1399 = vpop.f32.mrf.mxu0
  %v1400 = vadd.f32 %v1351, %v1399
  %1401 = vmatmul.bf16.gmra.mxu0 %v489
  %v1402 = vpop.f32.mrf.mxu0
  %v1403 = vadd.f32 %v1354, %v1402
  %v1404 = vpop.f32.mrf.mxu0
  %v1405 = vadd.f32 %v1356, %v1404
  %1406 = vmatmul.bf16.gmra.mxu0 %v498
  %v1407 = vpop.f32.mrf.mxu0
  %v1408 = vadd.f32 %v1359, %v1407
  %v1409 = vpop.f32.mrf.mxu0
  %v1410 = vadd.f32 %v1361, %v1409
  %1411 = vmatmul.bf16.gmra.mxu0 %v507
  %v1412 = vpop.f32.mrf.mxu0
  %v1413 = vadd.f32 %v1364, %v1412
  %v1414 = vpop.f32.mrf.mxu0
  %v1415 = vadd.f32 %v1366, %v1414
  %1416 = vmatmul.bf16.gmra.mxu0 %v516
  %v1417 = vpop.f32.mrf.mxu0
  %v1418 = vadd.f32 %v1369, %v1417
  %v1419 = vpop.f32.mrf.mxu0
  %v1420 = vadd.f32 %v1371, %v1419
  %1421 = vmatmul.bf16.gmra.mxu0 %v525
  %v1422 = vpop.f32.mrf.mxu0
  %v1423 = vadd.f32 %v1374, %v1422
  %v1424 = vpop.f32.mrf.mxu0
  %v1425 = vadd.f32 %v1376, %v1424
  %1426 = vmatmul.bf16.gmra.mxu0 %v534
  %v1427 = vpop.f32.mrf.mxu0
  %v1428 = vadd.f32 %v1379, %v1427
  %v1429 = vpop.f32.mrf.mxu0
  %v1430 = vadd.f32 %v1381, %v1429
  %1431 = vdwg.mxu0
  %1432 = vmatpush.bf16.msra.mxu0 %v967
  %1433 = vmatpush.bf16.msra.mxu0 %v966
  %1434 = vmatpush.bf16.msra.mxu0 %v965
  %1435 = vmatpush.bf16.msra.mxu0 %v964
  %1436 = vmatpush.bf16.msra.mxu0 %v963
  %1437 = vmatpush.bf16.msra.mxu0 %v962
  %1438 = vmatpush.bf16.msra.mxu0 %v961
  %1439 = vmatpush.bf16.msra.mxu0 %v960
  %1440 = vmatmul.bf16.gmra.mxu0 %v472
  %v1441 = vpop.f32.mrf.mxu0
  %v1442 = vadd.f32 %v1393, %v1441
  %v1443 = vpop.f32.mrf.mxu0
  %v1444 = vadd.f32 %v1395, %v1443
  %1445 = vmatmul.bf16.gmra.mxu0 %v481
  %v1446 = vpop.f32.mrf.mxu0
  %v1447 = vadd.f32 %v1398, %v1446
  %v1448 = vpop.f32.mrf.mxu0
  %v1449 = vadd.f32 %v1400, %v1448
  %1450 = vmatmul.bf16.gmra.mxu0 %v490
  %v1451 = vpop.f32.mrf.mxu0
  %v1452 = vadd.f32 %v1403, %v1451
  %v1453 = vpop.f32.mrf.mxu0
  %v1454 = vadd.f32 %v1405, %v1453
  %1455 = vmatmul.bf16.gmra.mxu0 %v499
  %v1456 = vpop.f32.mrf.mxu0
  %v1457 = vadd.f32 %v1408, %v1456
  %v1458 = vpop.f32.mrf.mxu0
  %v1459 = vadd.f32 %v1410, %v1458
  %1460 = vmatmul.bf16.gmra.mxu0 %v508
  %v1461 = vpop.f32.mrf.mxu0
  %v1462 = vadd.f32 %v1413, %v1461
  %v1463 = vpop.f32.mrf.mxu0
  %v1464 = vadd.f32 %v1415, %v1463
  %1465 = vmatmul.bf16.gmra.mxu0 %v517
  %v1466 = vpop.f32.mrf.mxu0
  %v1467 = vadd.f32 %v1418, %v1466
  %v1468 = vpop.f32.mrf.mxu0
  %v1469 = vadd.f32 %v1420, %v1468
  %1470 = vmatmul.bf16.gmra.mxu0 %v526
  %v1471 = vpop.f32.mrf.mxu0
  %v1472 = vadd.f32 %v1423, %v1471
  %v1473 = vpop.f32.mrf.mxu0
  %v1474 = vadd.f32 %v1425, %v1473
  %1475 = vmatmul.bf16.gmra.mxu0 %v535
  %v1476 = vpop.f32.mrf.mxu0
  %v1477 = vadd.f32 %v1428, %v1476
  %v1478 = vpop.f32.mrf.mxu0
  %v1479 = vadd.f32 %v1430, %v1478
  %1480 = vdwg.mxu0
  %v1481 = vadd.f32 %v1442, %v1444
  %v1482 = vadd.f32 %v1481, %v1447
  %v1483 = vadd.f32 %v1482, %v1449
  %v1484 = vadd.f32 %v1483, %v1452
  %v1485 = vadd.f32 %v1484, %v1454
  %v1486 = vadd.f32 %v1485, %v1457
  %v1487 = vadd.f32 %v1486, %v1459
  %v1488 = vadd.f32 %v1487, %v1462
  %v1489 = vadd.f32 %v1488, %v1464
  %v1490 = vadd.f32 %v1489, %v1467
  %v1491 = vadd.f32 %v1490, %v1469
  %v1492 = vadd.f32 %v1491, %v1472
  %v1493 = vadd.f32 %v1492, %v1474
  %v1494 = vadd.f32 %v1493, %v1477
  %v1495 = vadd.f32 %v1494, %v1479
  %v1496 = vrot.slane %v1495, 4
  %v1497 = vadd.f32 %v1495, %v1496
  %v1498 = vrot.slane %v1497, 2
  %v1499 = vadd.f32 %v1497, %v1498
  %v1500 = vrot.slane %v1499, 1
  %v1501 = vadd.f32 %v1499, %v1500
  %v1502 = vmul.f32 %v1501, 0.0078125
  %v1503 = vsub.f32 %v1442, %v1502
  %v1504 = vsub.f32 %v1444, %v1502
  %v1505 = vsub.f32 %v1447, %v1502
  %v1506 = vsub.f32 %v1449, %v1502
  %v1507 = vsub.f32 %v1452, %v1502
  %v1508 = vsub.f32 %v1454, %v1502
  %v1509 = vsub.f32 %v1457, %v1502
  %v1510 = vsub.f32 %v1459, %v1502
  %v1511 = vsub.f32 %v1462, %v1502
  %v1512 = vsub.f32 %v1464, %v1502
  %v1513 = vsub.f32 %v1467, %v1502
  %v1514 = vsub.f32 %v1469, %v1502
  %v1515 = vsub.f32 %v1472, %v1502
  %v1516 = vsub.f32 %v1474, %v1502
  %v1517 = vsub.f32 %v1477, %v1502
  %v1518 = vsub.f32 %v1479, %v1502
  %v1519 = vmul.f32 %v1503, %v1503
  %v1520 = vmul.f32 %v1504, %v1504
  %v1521 = vmul.f32 %v1505, %v1505
  %v1522 = vmul.f32 %v1506, %v1506
  %v1523 = vmul.f32 %v1507, %v1507
  %v1524 = vmul.f32 %v1508, %v1508
  %v1525 = vmul.f32 %v1509, %v1509
  %v1526 = vmul.f32 %v1510, %v1510
  %v1527 = vmul.f32 %v1511, %v1511
  %v1528 = vmul.f32 %v1512, %v1512
  %v1529 = vmul.f32 %v1513, %v1513
  %v1530 = vmul.f32 %v1514, %v1514
  %v1531 = vmul.f32 %v1515, %v1515
  %v1532 = vmul.f32 %v1516, %v1516
  %v1533 = vmul.f32 %v1517, %v1517
  %v1534 = vmul.f32 %v1518, %v1518
  %v1535 = vadd.f32 %v1519, %v1520
  %v1536 = vadd.f32 %v1535, %v1521
  %v1537 = vadd.f32 %v1536, %v1522
  %v1538 = vadd.f32 %v1537, %v1523
  %v1539 = vadd.f32 %v1538, %v1524
  %v1540 = vadd.f32 %v1539, %v1525
  %v1541 = vadd.f32 %v1540, %v1526
  %v1542 = vadd.f32 %v1541, %v1527
  %v1543 = vadd.f32 %v1542, %v1528
  %v1544 = vadd.f32 %v1543, %v1529
  %v1545 = vadd.f32 %v1544, %v1530
  %v1546 = vadd.f32 %v1545, %v1531
  %v1547 = vadd.f32 %v1546, %v1532
  %v1548 = vadd.f32 %v1547, %v1533
  %v1549 = vadd.f32 %v1548, %v1534
  %v1550 = vrot.slane %v1549, 4
  %v1551 = vadd.f32 %v1549, %v1550
  %v1552 = vrot.slane %v1551, 2
  %v1553 = vadd.f32 %v1551, %v1552
  %v1554 = vrot.slane %v1553, 1
  %v1555 = vadd.f32 %v1553, %v1554
  %v1556 = vmul.f32 %v1555, 0.0078125
  %v1557 = vmax.f32 %v1556, 0.0
  %v1558 = vadd.f32 %v1557, 1e-05
  %v1559 = vrsqrt.pop %v1558
  %v1560 = vmul.f32 %v1559, %v1558
  %v1561 = vmul.f32 %v1560, %v1559
  %v1562 = vmul.f32 0.5, %v1561
  %v1563 = vsub.f32 1.5, %v1562
  %v1564 = vmul.f32 %v1559, %v1563
  %vm1565 = vweird.f32 %v1558
  %vm1566 = vweird.f32 %v1559
  %vm1567 = vmor %vm1565, %vm1566
  %v1568 = vsel %vm1567, %v1559, %v1564
  %v1569 = vmul.f32 %v14, %v1568
  %v1570 = vmul.f32 %v1502, %v1569
  %v1572 = vrot.slane %v1570, 7
  %v1574 = vsub.f32 %v14, %v1572
  %v1575 = vperm.slane %v1569, 1
  %v1576 = vmul.f32 %v1442, %v1575
  %v1577 = vmul.f32 %v1444, %v1575
  %v1578 = vmul.f32 %v1447, %v1575
  %v1579 = vmul.f32 %v1449, %v1575
  %v1580 = vmul.f32 %v1452, %v1575
  %v1581 = vmul.f32 %v1454, %v1575
  %v1582 = vmul.f32 %v1457, %v1575
  %v1583 = vmul.f32 %v1459, %v1575
  %v1584 = vmul.f32 %v1462, %v1575
  %v1585 = vmul.f32 %v1464, %v1575
  %v1586 = vmul.f32 %v1467, %v1575
  %v1587 = vmul.f32 %v1469, %v1575
  %v1588 = vmul.f32 %v1472, %v1575
  %v1589 = vmul.f32 %v1474, %v1575
  %v1590 = vmul.f32 %v1477, %v1575
  %v1591 = vmul.f32 %v1479, %v1575
  %v1592 = vperm.slane %v1574, 2
  %v1593 = vadd.f32 %v1576, %v1592
  %v1594 = vadd.f32 %v1577, %v1592
  %v1595 = vadd.f32 %v1578, %v1592
  %v1596 = vadd.f32 %v1579, %v1592
  %v1597 = vadd.f32 %v1580, %v1592
  %v1598 = vadd.f32 %v1581, %v1592
  %v1599 = vadd.f32 %v1582, %v1592
  %v1600 = vadd.f32 %v1583, %v1592
  %v1601 = vadd.f32 %v1584, %v1592
  %v1602 = vadd.f32 %v1585, %v1592
  %v1603 = vadd.f32 %v1586, %v1592
  %v1604 = vadd.f32 %v1587, %v1592
  %v1605 = vadd.f32 %v1588, %v1592
  %v1606 = vadd.f32 %v1589, %v1592
  %v1607 = vadd.f32 %v1590, %v1592
  %v1608 = vadd.f32 %v1591, %v1592
  %v1609 = vmax.f32 %v1593, 0.0
  %v1610 = vmax.f32 %v1594, 0.0
  %v1611 = vmax.f32 %v1595, 0.0
  %v1612 = vmax.f32 %v1596, 0.0
  %v1613 = vmax.f32 %v1597, 0.0
  %v1614 = vmax.f32 %v1598, 0.0
  %v1615 = vmax.f32 %v1599, 0.0
  %v1616 = vmax.f32 %v1600, 0.0
  %v1617 = vmax.f32 %v1601, 0.0
  %v1618 = vmax.f32 %v1602, 0.0
  %v1619 = vmax.f32 %v1603, 0.0
  %v1620 = vmax.f32 %v1604, 0.0
  %v1621 = vmax.f32 %v1605, 0.0
  %v1622 = vmax.f32 %v1606, 0.0
  %v1623 = vmax.f32 %v1607, 0.0
  %v1624 = vmax.f32 %v1608, 0.0
  %v1625 = vpack.c.bf16 %v1609, %v1609
  %v1626 = vpack.c.bf16 %v1610, %v1610
  %v1627 = vpack.c.bf16 %v1611, %v1611
  %v1628 = vpack.c.bf16 %v1612, %v1612
  %v1629 = vpack.c.bf16 %v1613, %v1613
  %v1630 = vpack.c.bf16 %v1614, %v1614
  %v1631 = vpack.c.bf16 %v1615, %v1615
  %v1632 = vpack.c.bf16 %v1616, %v1616
  %v1633 = vpack.c.bf16 %v1617, %v1617
  %v1634 = vpack.c.bf16 %v1618, %v1618
  %v1635 = vpack.c.bf16 %v1619, %v1619
  %v1636 = vpack.c.bf16 %v1620, %v1620
  %v1637 = vpack.c.bf16 %v1621, %v1621
  %v1638 = vpack.c.bf16 %v1622, %v1622
  %v1639 = vpack.c.bf16 %v1623, %v1623
  %v1640 = vpack.c.bf16 %v1624, %v1624
  %1641 = vst [vmem:[%s3] sm:$0xf] %v1625
  %1642 = vst [vmem:[%s3 + $0x4] sm:$0xf] %v1626
  %1643 = vst [vmem:[%s3 + $0x8] sm:$0xf] %v1627
  %1644 = vst [vmem:[%s3 + $0xc] sm:$0xf] %v1628
  %1645 = vst [vmem:[%s3 + $0x10] sm:$0xf] %v1629
  %1646 = vst [vmem:[%s3 + $0x14] sm:$0xf] %v1630
  %1647 = vst [vmem:[%s3 + $0x18] sm:$0xf] %v1631
  %1648 = vst [vmem:[%s3 + $0x1c] sm:$0xf] %v1632
  %1649 = vst [vmem:[%s3 + $0x20] sm:$0xf] %v1633
  %1650 = vst [vmem:[%s3 + $0x24] sm:$0xf] %v1634
  %1651 = vst [vmem:[%s3 + $0x28] sm:$0xf] %v1635
  %1652 = vst [vmem:[%s3 + $0x2c] sm:$0xf] %v1636
  %1653 = vst [vmem:[%s3 + $0x30] sm:$0xf] %v1637
  %1654 = vst [vmem:[%s3 + $0x34] sm:$0xf] %v1638
  %1655 = vst [vmem:[%s3 + $0x38] sm:$0xf] %v1639
  %1656 = vst [vmem:[%s3 + $0x3c] sm:$0xf] %v1640
  // Predicated region
  $region14: #{colorization_forward.24} parent=0 // pred_check
    _
  $region15: #{colorization_forward.24} parent=0 // pred_check_branch
    %1658 = sbr.rel (0) target = $region17
  $region16: #{colorization_forward.24} parent=0 // pred_region
    _
  $region17: #{colorization_forward.24} parent=0 // pred_fallthru
    _
  // Predicated region
  $region18: #{colorization_forward.24} parent=0 // pred_check
    _
  $region19: #{colorization_forward.24} parent=0 // pred_check_branch
    %1660 = sbr.rel (0) target = $region21
  $region20: #{colorization_forward.24} parent=0 // pred_region
    _
  $region21: #{colorization_forward.24} parent=0 // pred_fallthru
    _

// kernel: colorization_forward.26
$region0: #{colorization_forward.26}
  #allocation0 [shape = 'u32[]', space=smem, size = 0x4, offset = 0x4, fixed_abs, tag = 'smem constant byte address 0x4 - core index']
  #allocation1 [shape = 'u32[72,128]{1,0:T(1,128)}', space=vmem, size = 0x9000, scoped, tag = 'internal scratch']
  %s0 = inlined_call_operand.vmem [shape: bf16[512,640], index: 0, kind: input, shape index: {}]
  %s1 = inlined_call_operand.vmem [shape: bf16[640,128], index: 1, kind: input, shape index: {}]
  %s2 = inlined_call_operand.vmem [shape: f32[8,128], index: 2, kind: input, shape index: {}]
  %s3 = inlined_call_operand.vmem [shape: bf16[512,128], index: 3, kind: output, shape index: {}]
  %s4 = sld [smem:[#allocation0]]
  $region22: #{colorization_forward.26} parent=0
    _
  %s6 = ssub.s32 1, %s4
  %s7 = scalar_select 0, %s6, %s4
  // Predicated region
  $region2: #{colorization_forward.26} parent=0 // pred_check
    _
  $region3: #{colorization_forward.26} parent=0 // pred_check_branch
    %9 = sbr.rel (0) target = $region5
  $region4: #{colorization_forward.26} parent=0 // pred_region
    _
  $region5: #{colorization_forward.26} parent=0 // pred_fallthru
    _
  // Predicated region
  $region6: #{colorization_forward.26} parent=0 // pred_check
    _
  $region7: #{colorization_forward.26} parent=0 // pred_check_branch
    %11 = sbr.rel (0) target = $region9
  $region8: #{colorization_forward.26} parent=0 // pred_region
    _
  $region9: #{colorization_forward.26} parent=0 // pred_fallthru
    _
  // Predicated region
  $region10: #{colorization_forward.26} parent=0 // pred_check
    _
  $region11: #{colorization_forward.26} parent=0 // pred_check_branch
    %13 = sbr.rel (0) target = $region13
  $region12: #{colorization_forward.26} parent=0 // pred_region
    _
  $region13: #{colorization_forward.26} parent=0 // pred_fallthru
    _
  %v14 = vld [vmem:[%s2] sm:$0xff]
  %v15 = vld [vmem:[%s0] sm:$0xff]
  %v16 = vld [vmem:[%s0 + $0x8] sm:$0xff]
  %v17 = vld [vmem:[%s0 + $0x10] sm:$0xf]
  %v18 = vld [vmem:[%s0 + $0x14] sm:$0xff]
  %v19 = vld [vmem:[%s0 + $0x1c] sm:$0xff]
  %v20 = vld [vmem:[%s0 + $0x24] sm:$0xf]
  %v21 = vld [vmem:[%s0 + $0x28] sm:$0xff]
  %v22 = vld [vmem:[%s0 + $0x30] sm:$0xff]
  %v23 = vld [vmem:[%s0 + $0x38] sm:$0xf]
  %v24 = vld [vmem:[%s0 + $0x3c] sm:$0xff]
  %v25 = vld [vmem:[%s0 + $0x44] sm:$0xff]
  %v26 = vld [vmem:[%s0 + $0x4c] sm:$0xf]
  %v27 = vld [vmem:[%s0 + $0x50] sm:$0xff]
  %v28 = vld [vmem:[%s0 + $0x58] sm:$0xff]
  %v29 = vld [vmem:[%s0 + $0x60] sm:$0xf]
  %v30 = vld [vmem:[%s0 + $0x64] sm:$0xff]
  %v31 = vld [vmem:[%s0 + $0x6c] sm:$0xff]
  %v32 = vld [vmem:[%s0 + $0x74] sm:$0xf]
  %v33 = vld [vmem:[%s0 + $0x78] sm:$0xff]
  %v34 = vld [vmem:[%s0 + $0x80] sm:$0xff]
  %v35 = vld [vmem:[%s0 + $0x88] sm:$0xf]
  %v36 = vld [vmem:[%s0 + $0x8c] sm:$0xff]
  %v37 = vld [vmem:[%s0 + $0x94] sm:$0xff]
  %v38 = vld [vmem:[%s0 + $0x9c] sm:$0xf]
  %v39 = vld [vmem:[%s0 + $0xa0] sm:$0xff]
  %v40 = vld [vmem:[%s0 + $0xa8] sm:$0xff]
  %v41 = vld [vmem:[%s0 + $0xb0] sm:$0xf]
  %v42 = vld [vmem:[%s0 + $0xb4] sm:$0xff]
  %v43 = vld [vmem:[%s0 + $0xbc] sm:$0xff]
  %v44 = vld [vmem:[%s0 + $0xc4] sm:$0xf]
  %v45 = vld [vmem:[%s0 + $0xc8] sm:$0xff]
  %v46 = vld [vmem:[%s0 + $0xd0] sm:$0xff]
  %v47 = vld [vmem:[%s0 + $0xd8] sm:$0xf]
  %v48 = vld [vmem:[%s0 + $0xdc] sm:$0xff]
  %v49 = vld [vmem:[%s0 + $0xe4] sm:$0xff]
  %v50 = vld [vmem:[%s0 + $0xec] sm:$0xf]
  %v51 = vld [vmem:[%s0 + $0xf0] sm:$0xff]
  %v52 = vld [vmem:[%s0 + $0xf8] sm:$0xff]
  %v53 = vld [vmem:[%s0 + $0x100] sm:$0xf]
  %v54 = vld [vmem:[%s0 + $0x104] sm:$0xff]
  %v55 = vld [vmem:[%s0 + $0x10c] sm:$0xff]
  %v56 = vld [vmem:[%s0 + $0x114] sm:$0xf]
  %v57 = vld [vmem:[%s0 + $0x118] sm:$0xff]
  %v58 = vld [vmem:[%s0 + $0x120] sm:$0xff]
  %v59 = vld [vmem:[%s0 + $0x128] sm:$0xf]
  %v60 = vld [vmem:[%s0 + $0x12c] sm:$0xff]
  %v61 = vld [vmem:[%s0 + $0x134] sm:$0xff]
  %v62 = vld [vmem:[%s0 + $0x13c] sm:$0xf]
  %v63 = vld [vmem:[%s0 + $0x140] sm:$0xff]
  %v64 = vld [vmem:[%s0 + $0x148] sm:$0xff]
  %v65 = vld [vmem:[%s0 + $0x150] sm:$0xf]
  %v66 = vld [vmem:[%s0 + $0x154] sm:$0xff]
  %v67 = vld [vmem:[%s0 + $0x15c] sm:$0xff]
  %v68 = vld [vmem:[%s0 + $0x164] sm:$0xf]
  %v69 = vld [vmem:[%s0 + $0x168] sm:$0xff]
  %v70 = vld [vmem:[%s0 + $0x170] sm:$0xff]
  %v71 = vld [vmem:[%s0 + $0x178] sm:$0xf]
  %v72 = vld [vmem:[%s0 + $0x17c] sm:$0xff]
  %v73 = vld [vmem:[%s0 + $0x184] sm:$0xff]
  %v74 = vld [vmem:[%s0 + $0x18c] sm:$0xf]
  %v75 = vld [vmem:[%s0 + $0x190] sm:$0xff]
  %v76 = vld [vmem:[%s0 + $0x198] sm:$0xff]
  %v77 = vld [vmem:[%s0 + $0x1a0] sm:$0xf]
  %v78 = vld [vmem:[%s0 + $0x1a4] sm:$0xff]
  %v79 = vld [vmem:[%s0 + $0x1ac] sm:$0xff]
  %v80 = vld [vmem:[%s0 + $0x1b4] sm:$0xf]
  %v81 = vld [vmem:[%s0 + $0x1b8] sm:$0xff]
  %v82 = vld [vmem:[%s0 + $0x1c0] sm:$0xff]
  %v83 = vld [vmem:[%s0 + $0x1c8] sm:$0xf]
  %v84 = vld [vmem:[%s0 + $0x1cc] sm:$0xff]
  %v85 = vld [vmem:[%s0 + $0x1d4] sm:$0xff]
  %v86 = vld [vmem:[%s0 + $0x1dc] sm:$0xf]
  %v87 = vld [vmem:[%s0 + $0x1e0] sm:$0xff]
  %v88 = vld [vmem:[%s0 + $0x1e8] sm:$0xff]
  %v89 = vld [vmem:[%s0 + $0x1f0] sm:$0xf]
  %v90 = vld [vmem:[%s0 + $0x1f4] sm:$0xff]
  %v91 = vld [vmem:[%s0 + $0x1fc] sm:$0xff]
  %v92 = vld [vmem:[%s0 + $0x204] sm:$0xf]
  %v93 = vld [vmem:[%s0 + $0x208] sm:$0xff]
  %v94 = vld [vmem:[%s0 + $0x210] sm:$0xff]
  %v95 = vld [vmem:[%s0 + $0x218] sm:$0xf]
  %v96 = vld [vmem:[%s0 + $0x21c] sm:$0xff]
  %v97 = vld [vmem:[%s0 + $0x224] sm:$0xff]
  %v98 = vld [vmem:[%s0 + $0x22c] sm:$0xf]
  %v99 = vld [vmem:[%s0 + $0x230] sm:$0xff]
  %v100 = vld [vmem:[%s0 + $0x238] sm:$0xff]
  %v101 = vld [vmem:[%s0 + $0x240] sm:$0xf]
  %v102 = vld [vmem:[%s0 + $0x244] sm:$0xff]
  %v103 = vld [vmem:[%s0 + $0x24c] sm:$0xff]
  %v104 = vld [vmem:[%s0 + $0x254] sm:$0xf]
  %v105 = vld [vmem:[%s0 + $0x258] sm:$0xff]
  %v106 = vld [vmem:[%s0 + $0x260] sm:$0xff]
  %v107 = vld [vmem:[%s0 + $0x268] sm:$0xf]
  %v108 = vld [vmem:[%s0 + $0x26c] sm:$0xff]
  %v109 = vld [vmem:[%s0 + $0x274] sm:$0xff]
  %v110 = vld [vmem:[%s0 + $0x27c] sm:$0xf]
  %v111 = vld [vmem:[%s0 + $0x280] sm:$0xff]
  %v112 = vld [vmem:[%s0 + $0x288] sm:$0xff]
  %v113 = vld [vmem:[%s0 + $0x290] sm:$0xf]
  %v114 = vld [vmem:[%s0 + $0x294] sm:$0xff]
  %v115 = vld [vmem:[%s0 + $0x29c] sm:$0xff]
  %v116 = vld [vmem:[%s0 + $0x2a4] sm:$0xf]
  %v117 = vld [vmem:[%s0 + $0x2a8] sm:$0xff]
  %v118 = vld [vmem:[%s0 + $0x2b0] sm:$0xff]
  %v119 = vld [vmem:[%s0 + $0x2b8] sm:$0xf]
  %v120 = vld [vmem:[%s0 + $0x2bc] sm:$0xff]
  %v121 = vld [vmem:[%s0 + $0x2c4] sm:$0xff]
  %v122 = vld [vmem:[%s0 + $0x2cc] sm:$0xf]
  %v123 = vld [vmem:[%s0 + $0x2d0] sm:$0xff]
  %v124 = vld [vmem:[%s0 + $0x2d8] sm:$0xff]
  %v125 = vld [vmem:[%s0 + $0x2e0] sm:$0xf]
  %v126 = vld [vmem:[%s0 + $0x2e4] sm:$0xff]
  %v127 = vld [vmem:[%s0 + $0x2ec] sm:$0xff]
  %v128 = vld [vmem:[%s0 + $0x2f4] sm:$0xf]
  %v129 = vld [vmem:[%s0 + $0x2f8] sm:$0xff]
  %v130 = vld [vmem:[%s0 + $0x300] sm:$0xff]
  %v131 = vld [vmem:[%s0 + $0x308] sm:$0xf]
  %v132 = vld [vmem:[%s0 + $0x30c] sm:$0xff]
  %v133 = vld [vmem:[%s0 + $0x314] sm:$0xff]
  %v134 = vld [vmem:[%s0 + $0x31c] sm:$0xf]
  %v135 = vld [vmem:[%s0 + $0x320] sm:$0xff]
  %v136 = vld [vmem:[%s0 + $0x328] sm:$0xff]
  %v137 = vld [vmem:[%s0 + $0x330] sm:$0xf]
  %v138 = vld [vmem:[%s0 + $0x334] sm:$0xff]
  %v139 = vld [vmem:[%s0 + $0x33c] sm:$0xff]
  %v140 = vld [vmem:[%s0 + $0x344] sm:$0xf]
  %v141 = vld [vmem:[%s0 + $0x348] sm:$0xff]
  %v142 = vld [vmem:[%s0 + $0x350] sm:$0xff]
  %v143 = vld [vmem:[%s0 + $0x358] sm:$0xf]
  %v144 = vld [vmem:[%s0 + $0x35c] sm:$0xff]
  %v145 = vld [vmem:[%s0 + $0x364] sm:$0xff]
  %v146 = vld [vmem:[%s0 + $0x36c] sm:$0xf]
  %v147 = vld [vmem:[%s0 + $0x370] sm:$0xff]
  %v148 = vld [vmem:[%s0 + $0x378] sm:$0xff]
  %v149 = vld [vmem:[%s0 + $0x380] sm:$0xf]
  %v150 = vld [vmem:[%s0 + $0x384] sm:$0xff]
  %v151 = vld [vmem:[%s0 + $0x38c] sm:$0xff]
  %v152 = vld [vmem:[%s0 + $0x394] sm:$0xf]
  %v153 = vld [vmem:[%s0 + $0x398] sm:$0xff]
  %v154 = vld [vmem:[%s0 + $0x3a0] sm:$0xff]
  %v155 = vld [vmem:[%s0 + $0x3a8] sm:$0xf]
  %v156 = vld [vmem:[%s0 + $0x3ac] sm:$0xff]
  %v157 = vld [vmem:[%s0 + $0x3b4] sm:$0xff]
  %v158 = vld [vmem:[%s0 + $0x3bc] sm:$0xf]
  %v159 = vld [vmem:[%s0 + $0x3c0] sm:$0xff]
  %v160 = vld [vmem:[%s0 + $0x3c8] sm:$0xff]
  %v161 = vld [vmem:[%s0 + $0x3d0] sm:$0xf]
  %v162 = vld [vmem:[%s0 + $0x3d4] sm:$0xff]
  %v163 = vld [vmem:[%s0 + $0x3dc] sm:$0xff]
  %v164 = vld [vmem:[%s0 + $0x3e4] sm:$0xf]
  %v165 = vld [vmem:[%s0 + $0x3e8] sm:$0xff]
  %v166 = vld [vmem:[%s0 + $0x3f0] sm:$0xff]
  %v167 = vld [vmem:[%s0 + $0x3f8] sm:$0xf]
  %v168 = vld [vmem:[%s0 + $0x3fc] sm:$0xff]
  %v169 = vld [vmem:[%s0 + $0x404] sm:$0xff]
  %v170 = vld [vmem:[%s0 + $0x40c] sm:$0xf]
  %v171 = vld [vmem:[%s0 + $0x410] sm:$0xff]
  %v172 = vld [vmem:[%s0 + $0x418] sm:$0xff]
  %v173 = vld [vmem:[%s0 + $0x420] sm:$0xf]
  %v174 = vld [vmem:[%s0 + $0x424] sm:$0xff]
  %v175 = vld [vmem:[%s0 + $0x42c] sm:$0xff]
  %v176 = vld [vmem:[%s0 + $0x434] sm:$0xf]
  %v177 = vld [vmem:[%s0 + $0x438] sm:$0xff]
  %v178 = vld [vmem:[%s0 + $0x440] sm:$0xff]
  %v179 = vld [vmem:[%s0 + $0x448] sm:$0xf]
  %v180 = vld [vmem:[%s0 + $0x44c] sm:$0xff]
  %v181 = vld [vmem:[%s0 + $0x454] sm:$0xff]
  %v182 = vld [vmem:[%s0 + $0x45c] sm:$0xf]
  %v183 = vld [vmem:[%s0 + $0x460] sm:$0xff]
  %v184 = vld [vmem:[%s0 + $0x468] sm:$0xff]
  %v185 = vld [vmem:[%s0 + $0x470] sm:$0xf]
  %v186 = vld [vmem:[%s0 + $0x474] sm:$0xff]
  %v187 = vld [vmem:[%s0 + $0x47c] sm:$0xff]
  %v188 = vld [vmem:[%s0 + $0x484] sm:$0xf]
  %v189 = vld [vmem:[%s0 + $0x488] sm:$0xff]
  %v190 = vld [vmem:[%s0 + $0x490] sm:$0xff]
  %v191 = vld [vmem:[%s0 + $0x498] sm:$0xf]
  %v192 = vld [vmem:[%s0 + $0x49c] sm:$0xff]
  %v193 = vld [vmem:[%s0 + $0x4a4] sm:$0xff]
  %v194 = vld [vmem:[%s0 + $0x4ac] sm:$0xf]
  %v195 = vld [vmem:[%s0 + $0x4b0] sm:$0xff]
  %v196 = vld [vmem:[%s0 + $0x4b8] sm:$0xff]
  %v197 = vld [vmem:[%s0 + $0x4c0] sm:$0xf]
  %v198 = vld [vmem:[%s0 + $0x4c4] sm:$0xff]
  %v199 = vld [vmem:[%s0 + $0x4cc] sm:$0xff]
  %v200 = vld [vmem:[%s0 + $0x4d4] sm:$0xf]
  %v201 = vld [vmem:[%s0 + $0x4d8] sm:$0xff]
  %v202 = vld [vmem:[%s0 + $0x4e0] sm:$0xff]
  %v203 = vld [vmem:[%s0 + $0x4e8] sm:$0xf]
  %v204 = vld [vmem:[%s0 + $0x4ec] sm:$0xff]
  %v205 = vld [vmem:[%s0 + $0x4f4] sm:$0xff]
  %v206 = vld [vmem:[%s0 + $0x4fc] sm:$0xf]
  %v207 = vld [vmem:[%s1] sm:$0xf]
  %v208 = vld [vmem:[%s1 + $0x4] sm:$0xf]
  %v209 = vld [vmem:[%s1 + $0x8] sm:$0xf]
  %v210 = vld [vmem:[%s1 + $0xc] sm:$0xf]
  %v211 = vld [vmem:[%s1 + $0x10] sm:$0xf]
  %v212 = vld [vmem:[%s1 + $0x14] sm:$0xf]
  %v213 = vld [vmem:[%s1 + $0x18] sm:$0xf]
  %v214 = vld [vmem:[%s1 + $0x1c] sm:$0xf]
  %v215 = vld [vmem:[%s1 + $0x20] sm:$0xf]
  %v216 = vld [vmem:[%s1 + $0x24] sm:$0xf]
  %v217 = vld [vmem:[%s1 + $0x28] sm:$0xf]
  %v218 = vld [vmem:[%s1 + $0x2c] sm:$0xf]
  %v219 = vld [vmem:[%s1 + $0x30] sm:$0xf]
  %v220 = vld [vmem:[%s1 + $0x34] sm:$0xf]
  %v221 = vld [vmem:[%s1 + $0x38] sm:$0xf]
  %v222 = vld [vmem:[%s1 + $0x3c] sm:$0xf]
  %v223 = vld [vmem:[%s1 + $0x40] sm:$0xf]
  %v224 = vld [vmem:[%s1 + $0x44] sm:$0xf]
  %v225 = vld [vmem:[%s1 + $0x48] sm:$0xf]
  %v226 = vld [vmem:[%s1 + $0x4c] sm:$0xf]
  %v227 = vld [vmem:[%s1 + $0x50] sm:$0xf]
  %v228 = vld [vmem:[%s1 + $0x54] sm:$0xf]
  %v229 = vld [vmem:[%s1 + $0x58] sm:$0xf]
  %v230 = vld [vmem:[%s1 + $0x5c] sm:$0xf]
  %v231 = vld [vmem:[%s1 + $0x60] sm:$0xf]
  %v232 = vld [vmem:[%s1 + $0x64] sm:$0xf]
  %v233 = vld [vmem:[%s1 + $0x68] sm:$0xf]
  %v234 = vld [vmem:[%s1 + $0x6c] sm:$0xf]
  %v235 = vld [vmem:[%s1 + $0x70] sm:$0xf]
  %v236 = vld [vmem:[%s1 + $0x74] sm:$0xf]
  %v237 = vld [vmem:[%s1 + $0x78] sm:$0xf]
  %v238 = vld [vmem:[%s1 + $0x7c] sm:$0xf]
  %v239 = vld [vmem:[%s1 + $0x80] sm:$0xf]
  %v240 = vld [vmem:[%s1 + $0x84] sm:$0xf]
  %v241 = vld [vmem:[%s1 + $0x88] sm:$0xf]
  %v242 = vld [vmem:[%s1 + $0x8c] sm:$0xf]
  %v243 = vld [vmem:[%s1 + $0x90] sm:$0xf]
  %v244 = vld [vmem:[%s1 + $0x94] sm:$0xf]
  %v245 = vld [vmem:[%s1 + $0x98] sm:$0xf]
  %v246 = vld [vmem:[%s1 + $0x9c] sm:$0xf]
  %v247 = vld [vmem:[%s1 + $0xa0] sm:$0xf]
  %v248 = vld [vmem:[%s1 + $0xa4] sm:$0xf]
  %v249 = vld [vmem:[%s1 + $0xa8] sm:$0xf]
  %v250 = vld [vmem:[%s1 + $0xac] sm:$0xf]
  %v251 = vld [vmem:[%s1 + $0xb0] sm:$0xf]
  %v252 = vld [vmem:[%s1 + $0xb4] sm:$0xf]
  %v253 = vld [vmem:[%s1 + $0xb8] sm:$0xf]
  %v254 = vld [vmem:[%s1 + $0xbc] sm:$0xf]
  %v255 = vld [vmem:[%s1 + $0xc0] sm:$0xf]
  %v256 = vld [vmem:[%s1 + $0xc4] sm:$0xf]
  %v257 = vld [vmem:[%s1 + $0xc8] sm:$0xf]
  %v258 = vld [vmem:[%s1 + $0xcc] sm:$0xf]
  %v259 = vld [vmem:[%s1 + $0xd0] sm:$0xf]
  %v260 = vld [vmem:[%s1 + $0xd4] sm:$0xf]
  %v261 = vld [vmem:[%s1 + $0xd8] sm:$0xf]
  %v262 = vld [vmem:[%s1 + $0xdc] sm:$0xf]
  %v263 = vld [vmem:[%s1 + $0xe0] sm:$0xf]
  %v264 = vld [vmem:[%s1 + $0xe4] sm:$0xf]
  %v265 = vld [vmem:[%s1 + $0xe8] sm:$0xf]
  %v266 = vld [vmem:[%s1 + $0xec] sm:$0xf]
  %v267 = vld [vmem:[%s1 + $0xf0] sm:$0xf]
  %v268 = vld [vmem:[%s1 + $0xf4] sm:$0xf]
  %v269 = vld [vmem:[%s1 + $0xf8] sm:$0xf]
  %v270 = vld [vmem:[%s1 + $0xfc] sm:$0xf]
  %v271 = vld [vmem:[%s1 + $0x100] sm:$0xf]
  %v272 = vld [vmem:[%s1 + $0x104] sm:$0xf]
  %v273 = vld [vmem:[%s1 + $0x108] sm:$0xf]
  %v274 = vld [vmem:[%s1 + $0x10c] sm:$0xf]
  %v275 = vld [vmem:[%s1 + $0x110] sm:$0xf]
  %v276 = vld [vmem:[%s1 + $0x114] sm:$0xf]
  %v277 = vld [vmem:[%s1 + $0x118] sm:$0xf]
  %v278 = vld [vmem:[%s1 + $0x11c] sm:$0xf]
  %v279 = vld [vmem:[%s1 + $0x120] sm:$0xf]
  %v280 = vld [vmem:[%s1 + $0x124] sm:$0xf]
  %v281 = vld [vmem:[%s1 + $0x128] sm:$0xf]
  %v282 = vld [vmem:[%s1 + $0x12c] sm:$0xf]
  %v283 = vld [vmem:[%s1 + $0x130] sm:$0xf]
  %v284 = vld [vmem:[%s1 + $0x134] sm:$0xf]
  %v285 = vld [vmem:[%s1 + $0x138] sm:$0xf]
  %v286 = vld [vmem:[%s1 + $0x13c] sm:$0xf]
  %v287 = vperm.slane %v14, 0
  %v480 = vunpack.c.l.b16 %v15
  %v481 = vunpack.c.h.b16 %v15
  %v482 = vunpack.c.l.b16 %v16
  %v483 = vunpack.c.h.b16 %v16
  %v484 = vunpack.c.l.b16 %v17
  %v485 = vunpack.c.l.b16 %v18
  %v486 = vunpack.c.h.b16 %v18
  %v487 = vunpack.c.l.b16 %v19
  %v488 = vunpack.c.h.b16 %v19
  %v489 = vunpack.c.l.b16 %v20
  %v490 = vunpack.c.l.b16 %v21
  %v491 = vunpack.c.h.b16 %v21
  %v492 = vunpack.c.l.b16 %v22
  %v493 = vunpack.c.h.b16 %v22
  %v494 = vunpack.c.l.b16 %v23
  %v495 = vunpack.c.l.b16 %v24
  %v496 = vunpack.c.h.b16 %v24
  %v497 = vunpack.c.l.b16 %v25
  %v498 = vunpack.c.h.b16 %v25
  %v499 = vunpack.c.l.b16 %v26
  %v500 = vunpack.c.l.b16 %v27
  %v501 = vunpack.c.h.b16 %v27
  %v502 = vunpack.c.l.b16 %v28
  %v503 = vunpack.c.h.b16 %v28
  %v504 = vunpack.c.l.b16 %v29
  %v505 = vunpack.c.l.b16 %v30
  %v506 = vunpack.c.h.b16 %v30
  %v507 = vunpack.c.l.b16 %v31
  %v508 = vunpack.c.h.b16 %v31
  %v509 = vunpack.c.l.b16 %v32
  %v510 = vunpack.c.l.b16 %v33
  %v511 = vunpack.c.h.b16 %v33
  %v512 = vunpack.c.l.b16 %v34
  %v513 = vunpack.c.h.b16 %v34
  %v514 = vunpack.c.l.b16 %v35
  %v515 = vunpack.c.l.b16 %v36
  %v516 = vunpack.c.h.b16 %v36
  %v517 = vunpack.c.l.b16 %v37
  %v518 = vunpack.c.h.b16 %v37
  %v519 = vunpack.c.l.b16 %v38
  %v520 = vunpack.c.l.b16 %v39
  %v521 = vunpack.c.h.b16 %v39
  %v522 = vunpack.c.l.b16 %v40
  %v523 = vunpack.c.h.b16 %v40
  %v524 = vunpack.c.l.b16 %v41
  %v525 = vunpack.c.l.b16 %v42
  %v526 = vunpack.c.h.b16 %v42
  %v527 = vunpack.c.l.b16 %v43
  %v528 = vunpack.c.h.b16 %v43
  %v529 = vunpack.c.l.b16 %v44
  %v530 = vunpack.c.l.b16 %v45
  %v531 = vunpack.c.h.b16 %v45
  %v532 = vunpack.c.l.b16 %v46
  %v533 = vunpack.c.h.b16 %v46
  %v534 = vunpack.c.l.b16 %v47
  %v535 = vunpack.c.l.b16 %v48
  %v536 = vunpack.c.h.b16 %v48
  %v537 = vunpack.c.l.b16 %v49
  %v538 = vunpack.c.h.b16 %v49
  %v539 = vunpack.c.l.b16 %v50
  %v540 = vunpack.c.l.b16 %v51
  %v541 = vunpack.c.h.b16 %v51
  %v542 = vunpack.c.l.b16 %v52
  %v543 = vunpack.c.h.b16 %v52
  %v544 = vunpack.c.l.b16 %v53
  %v545 = vunpack.c.l.b16 %v54
  %v546 = vunpack.c.h.b16 %v54
  %v547 = vunpack.c.l.b16 %v55
  %v548 = vunpack.c.h.b16 %v55
  %v549 = vunpack.c.l.b16 %v56
  %v550 = vunpack.c.l.b16 %v57
  %v551 = vunpack.c.h.b16 %v57
  %v552 = vunpack.c.l.b16 %v58
  %v553 = vunpack.c.h.b16 %v58
  %v554 = vunpack.c.l.b16 %v59
  %v555 = vunpack.c.l.b16 %v60
  %v556 = vunpack.c.h.b16 %v60
  %v557 = vunpack.c.l.b16 %v61
  %v558 = vunpack.c.h.b16 %v61
  %v559 = vunpack.c.l.b16 %v62
  %v560 = vunpack.c.l.b16 %v63
  %v561 = vunpack.c.h.b16 %v63
  %v562 = vunpack.c.l.b16 %v64
  %v563 = vunpack.c.h.b16 %v64
  %v564 = vunpack.c.l.b16 %v65
  %v565 = vunpack.c.l.b16 %v66
  %v566 = vunpack.c.h.b16 %v66
  %v567 = vunpack.c.l.b16 %v67
  %v568 = vunpack.c.h.b16 %v67
  %v569 = vunpack.c.l.b16 %v68
  %v570 = vunpack.c.l.b16 %v69
  %v571 = vunpack.c.h.b16 %v69
  %v572 = vunpack.c.l.b16 %v70
  %v573 = vunpack.c.h.b16 %v70
  %v574 = vunpack.c.l.b16 %v71
  %v575 = vunpack.c.l.b16 %v72
  %v576 = vunpack.c.h.b16 %v72
  %v577 = vunpack.c.l.b16 %v73
  %v578 = vunpack.c.h.b16 %v73
  %v579 = vunpack.c.l.b16 %v74
  %v580 = vunpack.c.l.b16 %v75
  %v581 = vunpack.c.h.b16 %v75
  %v582 = vunpack.c.l.b16 %v76
  %v583 = vunpack.c.h.b16 %v76
  %v584 = vunpack.c.l.b16 %v77
  %v585 = vunpack.c.l.b16 %v78
  %v586 = vunpack.c.h.b16 %v78
  %v587 = vunpack.c.l.b16 %v79
  %v588 = vunpack.c.h.b16 %v79
  %v589 = vunpack.c.l.b16 %v80
  %v590 = vunpack.c.l.b16 %v81
  %v591 = vunpack.c.h.b16 %v81
  %v592 = vunpack.c.l.b16 %v82
  %v593 = vunpack.c.h.b16 %v82
  %v594 = vunpack.c.l.b16 %v83
  %v595 = vunpack.c.l.b16 %v84
  %v596 = vunpack.c.h.b16 %v84
  %v597 = vunpack.c.l.b16 %v85
  %v598 = vunpack.c.h.b16 %v85
  %v599 = vunpack.c.l.b16 %v86
  %v600 = vunpack.c.l.b16 %v87
  %v601 = vunpack.c.h.b16 %v87
  %v602 = vunpack.c.l.b16 %v88
  %v603 = vunpack.c.h.b16 %v88
  %v604 = vunpack.c.l.b16 %v89
  %v605 = vunpack.c.l.b16 %v90
  %v606 = vunpack.c.h.b16 %v90
  %v607 = vunpack.c.l.b16 %v91
  %v608 = vunpack.c.h.b16 %v91
  %v609 = vunpack.c.l.b16 %v92
  %v610 = vunpack.c.l.b16 %v93
  %v611 = vunpack.c.h.b16 %v93
  %v612 = vunpack.c.l.b16 %v94
  %v613 = vunpack.c.h.b16 %v94
  %v614 = vunpack.c.l.b16 %v95
  %v615 = vunpack.c.l.b16 %v96
  %v616 = vunpack.c.h.b16 %v96
  %v617 = vunpack.c.l.b16 %v97
  %v618 = vunpack.c.h.b16 %v97
  %v619 = vunpack.c.l.b16 %v98
  %v620 = vunpack.c.l.b16 %v99
  %v621 = vunpack.c.h.b16 %v99
  %v622 = vunpack.c.l.b16 %v100
  %v623 = vunpack.c.h.b16 %v100
  %v624 = vunpack.c.l.b16 %v101
  %v625 = vunpack.c.l.b16 %v102
  %v626 = vunpack.c.h.b16 %v102
  %v627 = vunpack.c.l.b16 %v103
  %v628 = vunpack.c.h.b16 %v103
  %v629 = vunpack.c.l.b16 %v104
  %v630 = vunpack.c.l.b16 %v105
  %v631 = vunpack.c.h.b16 %v105
  %v632 = vunpack.c.l.b16 %v106
  %v633 = vunpack.c.h.b16 %v106
  %v634 = vunpack.c.l.b16 %v107
  %v635 = vunpack.c.l.b16 %v108
  %v636 = vunpack.c.h.b16 %v108
  %v637 = vunpack.c.l.b16 %v109
  %v638 = vunpack.c.h.b16 %v109
  %v639 = vunpack.c.l.b16 %v110
  %v640 = vunpack.c.l.b16 %v111
  %v641 = vunpack.c.h.b16 %v111
  %v642 = vunpack.c.l.b16 %v112
  %v643 = vunpack.c.h.b16 %v112
  %v644 = vunpack.c.l.b16 %v113
  %v645 = vunpack.c.l.b16 %v114
  %v646 = vunpack.c.h.b16 %v114
  %v647 = vunpack.c.l.b16 %v115
  %v648 = vunpack.c.h.b16 %v115
  %v649 = vunpack.c.l.b16 %v116
  %v650 = vunpack.c.l.b16 %v117
  %v651 = vunpack.c.h.b16 %v117
  %v652 = vunpack.c.l.b16 %v118
  %v653 = vunpack.c.h.b16 %v118
  %v654 = vunpack.c.l.b16 %v119
  %v655 = vunpack.c.l.b16 %v120
  %v656 = vunpack.c.h.b16 %v120
  %v657 = vunpack.c.l.b16 %v121
  %v658 = vunpack.c.h.b16 %v121
  %v659 = vunpack.c.l.b16 %v122
  %v660 = vunpack.c.l.b16 %v123
  %v661 = vunpack.c.h.b16 %v123
  %v662 = vunpack.c.l.b16 %v124
  %v663 = vunpack.c.h.b16 %v124
  %v664 = vunpack.c.l.b16 %v125
  %v665 = vunpack.c.l.b16 %v126
  %v666 = vunpack.c.h.b16 %v126
  %v667 = vunpack.c.l.b16 %v127
  %v668 = vunpack.c.h.b16 %v127
  %v669 = vunpack.c.l.b16 %v128
  %v670 = vunpack.c.l.b16 %v129
  %v671 = vunpack.c.h.b16 %v129
  %v672 = vunpack.c.l.b16 %v130
  %v673 = vunpack.c.h.b16 %v130
  %v674 = vunpack.c.l.b16 %v131
  %v675 = vunpack.c.l.b16 %v132
  %v676 = vunpack.c.h.b16 %v132
  %v677 = vunpack.c.l.b16 %v133
  %v678 = vunpack.c.h.b16 %v133
  %v679 = vunpack.c.l.b16 %v134
  %v680 = vunpack.c.l.b16 %v135
  %v681 = vunpack.c.h.b16 %v135
  %v682 = vunpack.c.l.b16 %v136
  %v683 = vunpack.c.h.b16 %v136
  %v684 = vunpack.c.l.b16 %v137
  %v685 = vunpack.c.l.b16 %v138
  %v686 = vunpack.c.h.b16 %v138
  %v687 = vunpack.c.l.b16 %v139
  %v688 = vunpack.c.h.b16 %v139
  %v689 = vunpack.c.l.b16 %v140
  %v690 = vunpack.c.l.b16 %v141
  %v691 = vunpack.c.h.b16 %v141
  %v692 = vunpack.c.l.b16 %v142
  %v693 = vunpack.c.h.b16 %v142
  %v694 = vunpack.c.l.b16 %v143
  %v695 = vunpack.c.l.b16 %v144
  %v696 = vunpack.c.h.b16 %v144
  %v697 = vunpack.c.l.b16 %v145
  %v698 = vunpack.c.h.b16 %v145
  %v699 = vunpack.c.l.b16 %v146
  %v700 = vunpack.c.l.b16 %v147
  %v701 = vunpack.c.h.b16 %v147
  %v702 = vunpack.c.l.b16 %v148
  %v703 = vunpack.c.h.b16 %v148
  %v704 = vunpack.c.l.b16 %v149
  %v705 = vunpack.c.l.b16 %v150
  %v706 = vunpack.c.h.b16 %v150
  %v707 = vunpack.c.l.b16 %v151
  %v708 = vunpack.c.h.b16 %v151
  %v709 = vunpack.c.l.b16 %v152
  %v710 = vunpack.c.l.b16 %v153
  %v711 = vunpack.c.h.b16 %v153
  %v712 = vunpack.c.l.b16 %v154
  %v713 = vunpack.c.h.b16 %v154
  %v714 = vunpack.c.l.b16 %v155
  %v715 = vunpack.c.l.b16 %v156
  %v716 = vunpack.c.h.b16 %v156
  %v717 = vunpack.c.l.b16 %v157
  %v718 = vunpack.c.h.b16 %v157
  %v719 = vunpack.c.l.b16 %v158
  %v720 = vunpack.c.l.b16 %v159
  %v721 = vunpack.c.h.b16 %v159
  %v722 = vunpack.c.l.b16 %v160
  %v723 = vunpack.c.h.b16 %v160
  %v724 = vunpack.c.l.b16 %v161
  %v725 = vunpack.c.l.b16 %v162
  %v726 = vunpack.c.h.b16 %v162
  %v727 = vunpack.c.l.b16 %v163
  %v728 = vunpack.c.h.b16 %v163
  %v729 = vunpack.c.l.b16 %v164
  %v730 = vunpack.c.l.b16 %v165
  %v731 = vunpack.c.h.b16 %v165
  %v732 = vunpack.c.l.b16 %v166
  %v733 = vunpack.c.h.b16 %v166
  %v734 = vunpack.c.l.b16 %v167
  %v735 = vunpack.c.l.b16 %v168
  %v736 = vunpack.c.h.b16 %v168
  %v737 = vunpack.c.l.b16 %v169
  %v738 = vunpack.c.h.b16 %v169
  %v739 = vunpack.c.l.b16 %v170
  %v740 = vunpack.c.l.b16 %v171
  %v741 = vunpack.c.h.b16 %v171
  %v742 = vunpack.c.l.b16 %v172
  %v743 = vunpack.c.h.b16 %v172
  %v744 = vunpack.c.l.b16 %v173
  %v745 = vunpack.c.l.b16 %v174
  %v746 = vunpack.c.h.b16 %v174
  %v747 = vunpack.c.l.b16 %v175
  %v748 = vunpack.c.h.b16 %v175
  %v749 = vunpack.c.l.b16 %v176
  %v750 = vunpack.c.l.b16 %v177
  %v751 = vunpack.c.h.b16 %v177
  %v752 = vunpack.c.l.b16 %v178
  %v753 = vunpack.c.h.b16 %v178
  %v754 = vunpack.c.l.b16 %v179
  %v755 = vunpack.c.l.b16 %v180
  %v756 = vunpack.c.h.b16 %v180
  %v757 = vunpack.c.l.b16 %v181
  %v758 = vunpack.c.h.b16 %v181
  %v759 = vunpack.c.l.b16 %v182
  %v760 = vunpack.c.l.b16 %v183
  %v761 = vunpack.c.h.b16 %v183
  %v762 = vunpack.c.l.b16 %v184
  %v763 = vunpack.c.h.b16 %v184
  %v764 = vunpack.c.l.b16 %v185
  %v765 = vunpack.c.l.b16 %v186
  %v766 = vunpack.c.h.b16 %v186
  %v767 = vunpack.c.l.b16 %v187
  %v768 = vunpack.c.h.b16 %v187
  %v769 = vunpack.c.l.b16 %v188
  %v770 = vunpack.c.l.b16 %v189
  %v771 = vunpack.c.h.b16 %v189
  %v772 = vunpack.c.l.b16 %v190
  %v773 = vunpack.c.h.b16 %v190
  %v774 = vunpack.c.l.b16 %v191
  %v775 = vunpack.c.l.b16 %v192
  %v776 = vunpack.c.h.b16 %v192
  %v777 = vunpack.c.l.b16 %v193
  %v778 = vunpack.c.h.b16 %v193
  %v779 = vunpack.c.l.b16 %v194
  %v780 = vunpack.c.l.b16 %v195
  %v781 = vunpack.c.h.b16 %v195
  %v782 = vunpack.c.l.b16 %v196
  %v783 = vunpack.c.h.b16 %v196
  %v784 = vunpack.c.l.b16 %v197
  %v785 = vunpack.c.l.b16 %v198
  %v786 = vunpack.c.h.b16 %v198
  %v787 = vunpack.c.l.b16 %v199
  %v788 = vunpack.c.h.b16 %v199
  %v789 = vunpack.c.l.b16 %v200
  %v790 = vunpack.c.l.b16 %v201
  %v791 = vunpack.c.h.b16 %v201
  %v792 = vunpack.c.l.b16 %v202
  %v793 = vunpack.c.h.b16 %v202
  %v794 = vunpack.c.l.b16 %v203
  %v795 = vunpack.c.l.b16 %v204
  %v796 = vunpack.c.h.b16 %v204
  %v797 = vunpack.c.l.b16 %v205
  %v798 = vunpack.c.h.b16 %v205
  %v799 = vunpack.c.l.b16 %v206
  %v800 = vpack.c.b16 %v485, %v480
  %v801 = vpack.c.b16 %v486, %v481
  %v802 = vpack.c.b16 %v487, %v482
  %v803 = vpack.c.b16 %v488, %v483
  %v804 = vpack.c.b16 %v489, %v484
  %v805 = vpack.c.b16 %v495, %v490
  %v806 = vpack.c.b16 %v496, %v491
  %v807 = vpack.c.b16 %v497, %v492
  %v808 = vpack.c.b16 %v498, %v493
  %v809 = vpack.c.b16 %v499, %v494
  %v810 = vpack.c.b16 %v505, %v500
  %v811 = vpack.c.b16 %v506, %v501
  %v812 = vpack.c.b16 %v507, %v502
  %v813 = vpack.c.b16 %v508, %v503
  %v814 = vpack.c.b16 %v509, %v504
  %v815 = vpack.c.b16 %v515, %v510
  %v816 = vpack.c.b16 %v516, %v511
  %v817 = vpack.c.b16 %v517, %v512
  %v818 = vpack.c.b16 %v518, %v513
  %v819 = vpack.c.b16 %v519, %v514
  %v820 = vpack.c.b16 %v525, %v520
  %v821 = vpack.c.b16 %v526, %v521
  %v822 = vpack.c.b16 %v527, %v522
  %v823 = vpack.c.b16 %v528, %v523
  %v824 = vpack.c.b16 %v529, %v524
  %v825 = vpack.c.b16 %v535, %v530
  %v826 = vpack.c.b16 %v536, %v531
  %v827 = vpack.c.b16 %v537, %v532
  %v828 = vpack.c.b16 %v538, %v533
  %v829 = vpack.c.b16 %v539, %v534
  %v830 = vpack.c.b16 %v545, %v540
  %v831 = vpack.c.b16 %v546, %v541
  %v832 = vpack.c.b16 %v547, %v542
  %v833 = vpack.c.b16 %v548, %v543
  %v834 = vpack.c.b16 %v549, %v544
  %v835 = vpack.c.b16 %v555, %v550
  %v836 = vpack.c.b16 %v556, %v551
  %v837 = vpack.c.b16 %v557, %v552
  %v838 = vpack.c.b16 %v558, %v553
  %v839 = vpack.c.b16 %v559, %v554
  %v840 = vpack.c.b16 %v565, %v560
  %v841 = vpack.c.b16 %v566, %v561
  %v842 = vpack.c.b16 %v567, %v562
  %v843 = vpack.c.b16 %v568, %v563
  %v844 = vpack.c.b16 %v569, %v564
  %v845 = vpack.c.b16 %v575, %v570
  %v846 = vpack.c.b16 %v576, %v571
  %v847 = vpack.c.b16 %v577, %v572
  %v848 = vpack.c.b16 %v578, %v573
  %v849 = vpack.c.b16 %v579, %v574
  %v850 = vpack.c.b16 %v585, %v580
  %v851 = vpack.c.b16 %v586, %v581
  %v852 = vpack.c.b16 %v587, %v582
  %v853 = vpack.c.b16 %v588, %v583
  %v854 = vpack.c.b16 %v589, %v584
  %v855 = vpack.c.b16 %v595, %v590
  %v856 = vpack.c.b16 %v596, %v591
  %v857 = vpack.c.b16 %v597, %v592
  %v858 = vpack.c.b16 %v598, %v593
  %v859 = vpack.c.b16 %v599, %v594
  %v860 = vpack.c.b16 %v605, %v600
  %v861 = vpack.c.b16 %v606, %v601
  %v862 = vpack.c.b16 %v607, %v602
  %v863 = vpack.c.b16 %v608, %v603
  %v864 = vpack.c.b16 %v609, %v604
  %v865 = vpack.c.b16 %v615, %v610
  %v866 = vpack.c.b16 %v616, %v611
  %v867 = vpack.c.b16 %v617, %v612
  %v868 = vpack.c.b16 %v618, %v613
  %v869 = vpack.c.b16 %v619, %v614
  %v870 = vpack.c.b16 %v625, %v620
  %v871 = vpack.c.b16 %v626, %v621
  %v872 = vpack.c.b16 %v627, %v622
  %v873 = vpack.c.b16 %v628, %v623
  %v874 = vpack.c.b16 %v629, %v624
  %v875 = vpack.c.b16 %v635, %v630
  %v876 = vpack.c.b16 %v636, %v631
  %v877 = vpack.c.b16 %v637, %v632
  %v878 = vpack.c.b16 %v638, %v633
  %v879 = vpack.c.b16 %v639, %v634
  %v880 = vpack.c.b16 %v645, %v640
  %v881 = vpack.c.b16 %v646, %v641
  %v882 = vpack.c.b16 %v647, %v642
  %v883 = vpack.c.b16 %v648, %v643
  %v884 = vpack.c.b16 %v649, %v644
  %v885 = vpack.c.b16 %v655, %v650
  %v886 = vpack.c.b16 %v656, %v651
  %v887 = vpack.c.b16 %v657, %v652
  %v888 = vpack.c.b16 %v658, %v653
  %v889 = vpack.c.b16 %v659, %v654
  %v890 = vpack.c.b16 %v665, %v660
  %v891 = vpack.c.b16 %v666, %v661
  %v892 = vpack.c.b16 %v667, %v662
  %v893 = vpack.c.b16 %v668, %v663
  %v894 = vpack.c.b16 %v669, %v664
  %v895 = vpack.c.b16 %v675, %v670
  %v896 = vpack.c.b16 %v676, %v671
  %v897 = vpack.c.b16 %v677, %v672
  %v898 = vpack.c.b16 %v678, %v673
  %v899 = vpack.c.b16 %v679, %v674
  %v900 = vpack.c.b16 %v685, %v680
  %v901 = vpack.c.b16 %v686, %v681
  %v902 = vpack.c.b16 %v687, %v682
  %v903 = vpack.c.b16 %v688, %v683
  %v904 = vpack.c.b16 %v689, %v684
  %v905 = vpack.c.b16 %v695, %v690
  %v906 = vpack.c.b16 %v696, %v691
  %v907 = vpack.c.b16 %v697, %v692
  %v908 = vpack.c.b16 %v698, %v693
  %v909 = vpack.c.b16 %v699, %v694
  %v910 = vpack.c.b16 %v705, %v700
  %v911 = vpack.c.b16 %v706, %v701
  %v912 = vpack.c.b16 %v707, %v702
  %v913 = vpack.c.b16 %v708, %v703
  %v914 = vpack.c.b16 %v709, %v704
  %v915 = vpack.c.b16 %v715, %v710
  %v916 = vpack.c.b16 %v716, %v711
  %v917 = vpack.c.b16 %v717, %v712
  %v918 = vpack.c.b16 %v718, %v713
  %v919 = vpack.c.b16 %v719, %v714
  %v920 = vpack.c.b16 %v725, %v720
  %v921 = vpack.c.b16 %v726, %v721
  %v922 = vpack.c.b16 %v727, %v722
  %v923 = vpack.c.b16 %v728, %v723
  %v924 = vpack.c.b16 %v729, %v724
  %v925 = vpack.c.b16 %v735, %v730
  %v926 = vpack.c.b16 %v736, %v731
  %v927 = vpack.c.b16 %v737, %v732
  %v928 = vpack.c.b16 %v738, %v733
  %v929 = vpack.c.b16 %v739, %v734
  %v930 = vpack.c.b16 %v745, %v740
  %v931 = vpack.c.b16 %v746, %v741
  %v932 = vpack.c.b16 %v747, %v742
  %v933 = vpack.c.b16 %v748, %v743
  %v934 = vpack.c.b16 %v749, %v744
  %v935 = vpack.c.b16 %v755, %v750
  %v936 = vpack.c.b16 %v756, %v751
  %v937 = vpack.c.b16 %v757, %v752
  %v938 = vpack.c.b16 %v758, %v753
  %v939 = vpack.c.b16 %v759, %v754
  %v940 = vpack.c.b16 %v765, %v760
  %v941 = vpack.c.b16 %v766, %v761
  %v942 = vpack.c.b16 %v767, %v762
  %v943 = vpack.c.b16 %v768, %v763
  %v944 = vpack.c.b16 %v769, %v764
  %v945 = vpack.c.b16 %v775, %v770
  %v946 = vpack.c.b16 %v776, %v771
  %v947 = vpack.c.b16 %v777, %v772
  %v948 = vpack.c.b16 %v778, %v773
  %v949 = vpack.c.b16 %v779, %v774
  %v950 = vpack.c.b16 %v785, %v780
  %v951 = vpack.c.b16 %v786, %v781
  %v952 = vpack.c.b16 %v787, %v782
  %v953 = vpack.c.b16 %v788, %v783
  %v954 = vpack.c.b16 %v789, %v784
  %v955 = vpack.c.b16 %v795, %v790
  %v956 = vpack.c.b16 %v796, %v791
  %v957 = vpack.c.b16 %v797, %v792
  %v958 = vpack.c.b16 %v798, %v793
  %v959 = vpack.c.b16 %v799, %v794
  %v1200 = vunpack.c.l.b16 %v207
  %v1201 = vunpack.c.l.b16 %v208
  %v1202 = vunpack.c.l.b16 %v209
  %v1203 = vunpack.c.l.b16 %v210
  %v1204 = vunpack.c.l.b16 %v211
  %v1205 = vunpack.c.l.b16 %v212
  %v1206 = vunpack.c.l.b16 %v213
  %v1207 = vunpack.c.l.b16 %v214
  %v1208 = vunpack.c.l.b16 %v215
  %v1209 = vunpack.c.l.b16 %v216
  %v1210 = vunpack.c.l.b16 %v217
  %v1211 = vunpack.c.l.b16 %v218
  %v1212 = vunpack.c.l.b16 %v219
  %v1213 = vunpack.c.l.b16 %v220
  %v1214 = vunpack.c.l.b16 %v221
  %v1215 = vunpack.c.l.b16 %v222
  %v1216 = vunpack.c.l.b16 %v223
  %v1217 = vunpack.c.l.b16 %v224
  %v1218 = vunpack.c.l.b16 %v225
  %v1219 = vunpack.c.l.b16 %v226
  %v1220 = vunpack.c.l.b16 %v227
  %v1221 = vunpack.c.l.b16 %v228
  %v1222 = vunpack.c.l.b16 %v229
  %v1223 = vunpack.c.l.b16 %v230
  %v1224 = vunpack.c.l.b16 %v231
  %v1225 = vunpack.c.l.b16 %v232
  %v1226 = vunpack.c.l.b16 %v233
  %v1227 = vunpack.c.l.b16 %v234
  %v1228 = vunpack.c.l.b16 %v235
  %v1229 = vunpack.c.l.b16 %v236
  %v1230 = vunpack.c.l.b16 %v237
  %v1231 = vunpack.c.l.b16 %v238
  %v1232 = vunpack.c.l.b16 %v239
  %v1233 = vunpack.c.l.b16 %v240
  %v1234 = vunpack.c.l.b16 %v241
  %v1235 = vunpack.c.l.b16 %v242
  %v1236 = vunpack.c.l.b16 %v243
  %v1237 = vunpack.c.l.b16 %v244
  %v1238 = vunpack.c.l.b16 %v245
  %v1239 = vunpack.c.l.b16 %v246
  %v1240 = vunpack.c.l.b16 %v247
  %v1241 = vunpack.c.l.b16 %v248
  %v1242 = vunpack.c.l.b16 %v249
  %v1243 = vunpack.c.l.b16 %v250
  %v1244 = vunpack.c.l.b16 %v251
  %v1245 = vunpack.c.l.b16 %v252
  %v1246 = vunpack.c.l.b16 %v253
  %v1247 = vunpack.c.l.b16 %v254
  %v1248 = vunpack.c.l.b16 %v255
  %v1249 = vunpack.c.l.b16 %v256
  %v1250 = vunpack.c.l.b16 %v257
  %v1251 = vunpack.c.l.b16 %v258
  %v1252 = vunpack.c.l.b16 %v259
  %v1253 = vunpack.c.l.b16 %v260
  %v1254 = vunpack.c.l.b16 %v261
  %v1255 = vunpack.c.l.b16 %v262
  %v1256 = vunpack.c.l.b16 %v263
  %v1257 = vunpack.c.l.b16 %v264
  %v1258 = vunpack.c.l.b16 %v265
  %v1259 = vunpack.c.l.b16 %v266
  %v1260 = vunpack.c.l.b16 %v267
  %v1261 = vunpack.c.l.b16 %v268
  %v1262 = vunpack.c.l.b16 %v269
  %v1263 = vunpack.c.l.b16 %v270
  %v1264 = vunpack.c.l.b16 %v271
  %v1265 = vunpack.c.l.b16 %v272
  %v1266 = vunpack.c.l.b16 %v273
  %v1267 = vunpack.c.l.b16 %v274
  %v1268 = vunpack.c.l.b16 %v275
  %v1269 = vunpack.c.l.b16 %v276
  %v1270 = vunpack.c.l.b16 %v277
  %v1271 = vunpack.c.l.b16 %v278
  %v1272 = vunpack.c.l.b16 %v279
  %v1273 = vunpack.c.l.b16 %v280
  %v1274 = vunpack.c.l.b16 %v281
  %v1275 = vunpack.c.l.b16 %v282
  %v1276 = vunpack.c.l.b16 %v283
  %v1277 = vunpack.c.l.b16 %v284
  %v1278 = vunpack.c.l.b16 %v285
  %v1279 = vunpack.c.l.b16 %v286
  %v1280 = vpack.c.b16 %v1201, %v1200
  %v1281 = vpack.c.b16 %v1203, %v1202
  %v1282 = vpack.c.b16 %v1205, %v1204
  %v1283 = vpack.c.b16 %v1207, %v1206
  %v1284 = vpack.c.b16 %v1209, %v1208
  %v1285 = vpack.c.b16 %v1211, %v1210
  %v1286 = vpack.c.b16 %v1213, %v1212
  %v1287 = vpack.c.b16 %v1215, %v1214
  %v1288 = vpack.c.b16 %v1217, %v1216
  %v1289 = vpack.c.b16 %v1219, %v1218
  %v1290 = vpack.c.b16 %v1221, %v1220
  %v1291 = vpack.c.b16 %v1223, %v1222
  %v1292 = vpack.c.b16 %v1225, %v1224
  %v1293 = vpack.c.b16 %v1227, %v1226
  %v1294 = vpack.c.b16 %v1229, %v1228
  %v1295 = vpack.c.b16 %v1231, %v1230
  %v1296 = vpack.c.b16 %v1233, %v1232
  %v1297 = vpack.c.b16 %v1235, %v1234
  %v1298 = vpack.c.b16 %v1237, %v1236
  %v1299 = vpack.c.b16 %v1239, %v1238
  %v1300 = vpack.c.b16 %v1241, %v1240
  %v1301 = vpack.c.b16 %v1243, %v1242
  %v1302 = vpack.c.b16 %v1245, %v1244
  %v1303 = vpack.c.b16 %v1247, %v1246
  %v1304 = vpack.c.b16 %v1249, %v1248
  %v1305 = vpack.c.b16 %v1251, %v1250
  %v1306 = vpack.c.b16 %v1253, %v1252
  %v1307 = vpack.c.b16 %v1255, %v1254
  %v1308 = vpack.c.b16 %v1257, %v1256
  %v1309 = vpack.c.b16 %v1259, %v1258
  %v1310 = vpack.c.b16 %v1261, %v1260
  %v1311 = vpack.c.b16 %v1263, %v1262
  %v1312 = vpack.c.b16 %v1265, %v1264
  %v1313 = vpack.c.b16 %v1267, %v1266
  %v1314 = vpack.c.b16 %v1269, %v1268
  %v1315 = vpack.c.b16 %v1271, %v1270
  %v1316 = vpack.c.b16 %v1273, %v1272
  %v1317 = vpack.c.b16 %v1275, %v1274
  %v1318 = vpack.c.b16 %v1277, %v1276
  %v1319 = vpack.c.b16 %v1279, %v1278
  %1360 = vmatpush.bf16.msra.mxu0 %v1287
  %1361 = vmatpush.bf16.msra.mxu0 %v1286
  %1362 = vmatpush.bf16.msra.mxu0 %v1285
  %1363 = vmatpush.bf16.msra.mxu0 %v1284
  %1364 = vmatpush.bf16.msra.mxu0 %v1283
  %1365 = vmatpush.bf16.msra.mxu0 %v1282
  %1366 = vmatpush.bf16.msra.mxu0 %v1281
  %1367 = vmatpush.bf16.msra.mxu0 %v1280
  %1368 = vmatmul.bf16.gmra.mxu0 %v800
  %v1369 = vpop.f32.mrf.mxu0
  %v1370 = vadd.f32 %v287, %v1369
  %v1371 = vpop.f32.mrf.mxu0
  %v1372 = vadd.f32 %v287, %v1371
  %1373 = vmatmul.bf16.gmra.mxu0 %v805
  %v1374 = vpop.f32.mrf.mxu0
  %v1375 = vadd.f32 %v287, %v1374
  %v1376 = vpop.f32.mrf.mxu0
  %v1377 = vadd.f32 %v287, %v1376
  %1378 = vmatmul.bf16.gmra.mxu0 %v810
  %v1379 = vpop.f32.mrf.mxu0
  %v1380 = vadd.f32 %v287, %v1379
  %v1381 = vpop.f32.mrf.mxu0
  %v1382 = vadd.f32 %v287, %v1381
  %1383 = vmatmul.bf16.gmra.mxu0 %v815
  %v1384 = vpop.f32.mrf.mxu0
  %v1385 = vadd.f32 %v287, %v1384
  %v1386 = vpop.f32.mrf.mxu0
  %v1387 = vadd.f32 %v287, %v1386
  %1388 = vmatmul.bf16.gmra.mxu0 %v820
  %v1389 = vpop.f32.mrf.mxu0
  %v1390 = vadd.f32 %v287, %v1389
  %v1391 = vpop.f32.mrf.mxu0
  %v1392 = vadd.f32 %v287, %v1391
  %1393 = vmatmul.bf16.gmra.mxu0 %v825
  %v1394 = vpop.f32.mrf.mxu0
  %v1395 = vadd.f32 %v287, %v1394
  %v1396 = vpop.f32.mrf.mxu0
  %v1397 = vadd.f32 %v287, %v1396
  %1398 = vmatmul.bf16.gmra.mxu0 %v830
  %v1399 = vpop.f32.mrf.mxu0
  %v1400 = vadd.f32 %v287, %v1399
  %v1401 = vpop.f32.mrf.mxu0
  %v1402 = vadd.f32 %v287, %v1401
  %1403 = vmatmul.bf16.gmra.mxu0 %v835
  %v1404 = vpop.f32.mrf.mxu0
  %v1405 = vadd.f32 %v287, %v1404
  %v1406 = vpop.f32.mrf.mxu0
  %v1407 = vadd.f32 %v287, %v1406
  %1408 = vmatmul.bf16.gmra.mxu0 %v840
  %v1409 = vpop.f32.mrf.mxu0
  %v1410 = vadd.f32 %v287, %v1409
  %v1411 = vpop.f32.mrf.mxu0
  %v1412 = vadd.f32 %v287, %v1411
  %1413 = vmatmul.bf16.gmra.mxu0 %v845
  %v1414 = vpop.f32.mrf.mxu0
  %v1415 = vadd.f32 %v287, %v1414
  %v1416 = vpop.f32.mrf.mxu0
  %v1417 = vadd.f32 %v287, %v1416
  %1418 = vmatmul.bf16.gmra.mxu0 %v850
  %v1419 = vpop.f32.mrf.mxu0
  %v1420 = vadd.f32 %v287, %v1419
  %v1421 = vpop.f32.mrf.mxu0
  %v1422 = vadd.f32 %v287, %v1421
  %1423 = vmatmul.bf16.gmra.mxu0 %v855
  %v1424 = vpop.f32.mrf.mxu0
  %v1425 = vadd.f32 %v287, %v1424
  %v1426 = vpop.f32.mrf.mxu0
  %v1427 = vadd.f32 %v287, %v1426
  %1428 = vmatmul.bf16.gmra.mxu0 %v860
  %v1429 = vpop.f32.mrf.mxu0
  %v1430 = vadd.f32 %v287, %v1429
  %v1431 = vpop.f32.mrf.mxu0
  %v1432 = vadd.f32 %v287, %v1431
  %1433 = vmatmul.bf16.gmra.mxu0 %v865
  %v1434 = vpop.f32.mrf.mxu0
  %v1435 = vadd.f32 %v287, %v1434
  %v1436 = vpop.f32.mrf.mxu0
  %v1437 = vadd.f32 %v287, %v1436
  %1438 = vmatmul.bf16.gmra.mxu0 %v870
  %v1439 = vpop.f32.mrf.mxu0
  %v1440 = vadd.f32 %v287, %v1439
  %v1441 = vpop.f32.mrf.mxu0
  %v1442 = vadd.f32 %v287, %v1441
  %1443 = vmatmul.bf16.gmra.mxu0 %v875
  %v1444 = vpop.f32.mrf.mxu0
  %v1445 = vadd.f32 %v287, %v1444
  %v1446 = vpop.f32.mrf.mxu0
  %v1447 = vadd.f32 %v287, %v1446
  %1448 = vmatmul.bf16.gmra.mxu0 %v880
  %v1449 = vpop.f32.mrf.mxu0
  %v1450 = vadd.f32 %v287, %v1449
  %v1451 = vpop.f32.mrf.mxu0
  %v1452 = vadd.f32 %v287, %v1451
  %1453 = vmatmul.bf16.gmra.mxu0 %v885
  %v1454 = vpop.f32.mrf.mxu0
  %v1455 = vadd.f32 %v287, %v1454
  %v1456 = vpop.f32.mrf.mxu0
  %v1457 = vadd.f32 %v287, %v1456
  %1458 = vmatmul.bf16.gmra.mxu0 %v890
  %v1459 = vpop.f32.mrf.mxu0
  %v1460 = vadd.f32 %v287, %v1459
  %v1461 = vpop.f32.mrf.mxu0
  %v1462 = vadd.f32 %v287, %v1461
  %1463 = vmatmul.bf16.gmra.mxu0 %v895
  %v1464 = vpop.f32.mrf.mxu0
  %v1465 = vadd.f32 %v287, %v1464
  %v1466 = vpop.f32.mrf.mxu0
  %v1467 = vadd.f32 %v287, %v1466
  %1468 = vmatmul.bf16.gmra.mxu0 %v900
  %v1469 = vpop.f32.mrf.mxu0
  %v1470 = vadd.f32 %v287, %v1469
  %v1471 = vpop.f32.mrf.mxu0
  %v1472 = vadd.f32 %v287, %v1471
  %1473 = vmatmul.bf16.gmra.mxu0 %v905
  %v1474 = vpop.f32.mrf.mxu0
  %v1475 = vadd.f32 %v287, %v1474
  %v1476 = vpop.f32.mrf.mxu0
  %v1477 = vadd.f32 %v287, %v1476
  %1478 = vmatmul.bf16.gmra.mxu0 %v910
  %v1479 = vpop.f32.mrf.mxu0
  %v1480 = vadd.f32 %v287, %v1479
  %v1481 = vpop.f32.mrf.mxu0
  %v1482 = vadd.f32 %v287, %v1481
  %1483 = vmatmul.bf16.gmra.mxu0 %v915
  %v1484 = vpop.f32.mrf.mxu0
  %v1485 = vadd.f32 %v287, %v1484
  %v1486 = vpop.f32.mrf.mxu0
  %v1487 = vadd.f32 %v287, %v1486
  %1488 = vmatmul.bf16.gmra.mxu0 %v920
  %v1489 = vpop.f32.mrf.mxu0
  %v1490 = vadd.f32 %v287, %v1489
  %v1491 = vpop.f32.mrf.mxu0
  %v1492 = vadd.f32 %v287, %v1491
  %1493 = vmatmul.bf16.gmra.mxu0 %v925
  %v1494 = vpop.f32.mrf.mxu0
  %v1495 = vadd.f32 %v287, %v1494
  %v1496 = vpop.f32.mrf.mxu0
  %v1497 = vadd.f32 %v287, %v1496
  %1498 = vmatmul.bf16.gmra.mxu0 %v930
  %v1499 = vpop.f32.mrf.mxu0
  %v1500 = vadd.f32 %v287, %v1499
  %v1501 = vpop.f32.mrf.mxu0
  %v1502 = vadd.f32 %v287, %v1501
  %1503 = vmatmul.bf16.gmra.mxu0 %v935
  %v1504 = vpop.f32.mrf.mxu0
  %v1505 = vadd.f32 %v287, %v1504
  %v1506 = vpop.f32.mrf.mxu0
  %v1507 = vadd.f32 %v287, %v1506
  %1508 = vmatmul.bf16.gmra.mxu0 %v940
  %v1509 = vpop.f32.mrf.mxu0
  %v1510 = vadd.f32 %v287, %v1509
  %v1511 = vpop.f32.mrf.mxu0
  %v1512 = vadd.f32 %v287, %v1511
  %1513 = vmatmul.bf16.gmra.mxu0 %v945
  %v1514 = vpop.f32.mrf.mxu0
  %v1515 = vadd.f32 %v287, %v1514
  %v1516 = vpop.f32.mrf.mxu0
  %v1517 = vadd.f32 %v287, %v1516
  %1518 = vmatmul.bf16.gmra.mxu0 %v950
  %v1519 = vpop.f32.mrf.mxu0
  %v1520 = vadd.f32 %v287, %v1519
  %v1521 = vpop.f32.mrf.mxu0
  %v1522 = vadd.f32 %v287, %v1521
  %1523 = vmatmul.bf16.gmra.mxu0 %v955
  %v1524 = vpop.f32.mrf.mxu0
  %v1525 = vadd.f32 %v287, %v1524
  %v1526 = vpop.f32.mrf.mxu0
  %v1527 = vadd.f32 %v287, %v1526
  %1528 = vdwg.mxu0
  %1529 = vmatpush.bf16.msra.mxu0 %v1295
  %1530 = vmatpush.bf16.msra.mxu0 %v1294
  %1531 = vmatpush.bf16.msra.mxu0 %v1293
  %1532 = vmatpush.bf16.msra.mxu0 %v1292
  %1533 = vmatpush.bf16.msra.mxu0 %v1291
  %1534 = vmatpush.bf16.msra.mxu0 %v1290
  %1535 = vmatpush.bf16.msra.mxu0 %v1289
  %1536 = vmatpush.bf16.msra.mxu0 %v1288
  %1537 = vmatmul.bf16.gmra.mxu0 %v801
  %v1538 = vpop.f32.mrf.mxu0
  %v1539 = vadd.f32 %v1370, %v1538
  %v1540 = vpop.f32.mrf.mxu0
  %v1541 = vadd.f32 %v1372, %v1540
  %1542 = vmatmul.bf16.gmra.mxu0 %v806
  %v1543 = vpop.f32.mrf.mxu0
  %v1544 = vadd.f32 %v1375, %v1543
  %v1545 = vpop.f32.mrf.mxu0
  %v1546 = vadd.f32 %v1377, %v1545
  %1547 = vmatmul.bf16.gmra.mxu0 %v811
  %v1548 = vpop.f32.mrf.mxu0
  %v1549 = vadd.f32 %v1380, %v1548
  %v1550 = vpop.f32.mrf.mxu0
  %v1551 = vadd.f32 %v1382, %v1550
  %1552 = vmatmul.bf16.gmra.mxu0 %v816
  %v1553 = vpop.f32.mrf.mxu0
  %v1554 = vadd.f32 %v1385, %v1553
  %v1555 = vpop.f32.mrf.mxu0
  %v1556 = vadd.f32 %v1387, %v1555
  %1557 = vmatmul.bf16.gmra.mxu0 %v821
  %v1558 = vpop.f32.mrf.mxu0
  %v1559 = vadd.f32 %v1390, %v1558
  %v1560 = vpop.f32.mrf.mxu0
  %v1561 = vadd.f32 %v1392, %v1560
  %1562 = vmatmul.bf16.gmra.mxu0 %v826
  %v1563 = vpop.f32.mrf.mxu0
  %v1564 = vadd.f32 %v1395, %v1563
  %v1565 = vpop.f32.mrf.mxu0
  %v1566 = vadd.f32 %v1397, %v1565
  %1567 = vmatmul.bf16.gmra.mxu0 %v831
  %v1568 = vpop.f32.mrf.mxu0
  %v1569 = vadd.f32 %v1400, %v1568
  %v1570 = vpop.f32.mrf.mxu0
  %v1571 = vadd.f32 %v1402, %v1570
  %1572 = vmatmul.bf16.gmra.mxu0 %v836
  %v1573 = vpop.f32.mrf.mxu0
  %v1574 = vadd.f32 %v1405, %v1573
  %v1575 = vpop.f32.mrf.mxu0
  %v1576 = vadd.f32 %v1407, %v1575
  %1577 = vmatmul.bf16.gmra.mxu0 %v841
  %v1578 = vpop.f32.mrf.mxu0
  %v1579 = vadd.f32 %v1410, %v1578
  %v1580 = vpop.f32.mrf.mxu0
  %v1581 = vadd.f32 %v1412, %v1580
  %1582 = vmatmul.bf16.gmra.mxu0 %v846
  %v1583 = vpop.f32.mrf.mxu0
  %v1584 = vadd.f32 %v1415, %v1583
  %v1585 = vpop.f32.mrf.mxu0
  %v1586 = vadd.f32 %v1417, %v1585
  %1587 = vmatmul.bf16.gmra.mxu0 %v851
  %v1588 = vpop.f32.mrf.mxu0
  %v1589 = vadd.f32 %v1420, %v1588
  %v1590 = vpop.f32.mrf.mxu0
  %v1591 = vadd.f32 %v1422, %v1590
  %1592 = vmatmul.bf16.gmra.mxu0 %v856
  %v1593 = vpop.f32.mrf.mxu0
  %v1594 = vadd.f32 %v1425, %v1593
  %v1595 = vpop.f32.mrf.mxu0
  %v1596 = vadd.f32 %v1427, %v1595
  %1597 = vmatmul.bf16.gmra.mxu0 %v861
  %v1598 = vpop.f32.mrf.mxu0
  %v1599 = vadd.f32 %v1430, %v1598
  %v1600 = vpop.f32.mrf.mxu0
  %v1601 = vadd.f32 %v1432, %v1600
  %1602 = vmatmul.bf16.gmra.mxu0 %v866
  %v1603 = vpop.f32.mrf.mxu0
  %v1604 = vadd.f32 %v1435, %v1603
  %v1605 = vpop.f32.mrf.mxu0
  %v1606 = vadd.f32 %v1437, %v1605
  %1607 = vmatmul.bf16.gmra.mxu0 %v871
  %v1608 = vpop.f32.mrf.mxu0
  %v1609 = vadd.f32 %v1440, %v1608
  %v1610 = vpop.f32.mrf.mxu0
  %v1611 = vadd.f32 %v1442, %v1610
  %1612 = vmatmul.bf16.gmra.mxu0 %v876
  %v1613 = vpop.f32.mrf.mxu0
  %v1614 = vadd.f32 %v1445, %v1613
  %v1615 = vpop.f32.mrf.mxu0
  %v1616 = vadd.f32 %v1447, %v1615
  %1617 = vmatmul.bf16.gmra.mxu0 %v881
  %v1618 = vpop.f32.mrf.mxu0
  %v1619 = vadd.f32 %v1450, %v1618
  %v1620 = vpop.f32.mrf.mxu0
  %v1621 = vadd.f32 %v1452, %v1620
  %1622 = vmatmul.bf16.gmra.mxu0 %v886
  %v1623 = vpop.f32.mrf.mxu0
  %v1624 = vadd.f32 %v1455, %v1623
  %v1625 = vpop.f32.mrf.mxu0
  %v1626 = vadd.f32 %v1457, %v1625
  %1627 = vmatmul.bf16.gmra.mxu0 %v891
  %v1628 = vpop.f32.mrf.mxu0
  %v1629 = vadd.f32 %v1460, %v1628
  %v1630 = vpop.f32.mrf.mxu0
  %v1631 = vadd.f32 %v1462, %v1630
  %1632 = vmatmul.bf16.gmra.mxu0 %v896
  %v1633 = vpop.f32.mrf.mxu0
  %v1634 = vadd.f32 %v1465, %v1633
  %v1635 = vpop.f32.mrf.mxu0
  %v1636 = vadd.f32 %v1467, %v1635
  %1637 = vmatmul.bf16.gmra.mxu0 %v901
  %v1638 = vpop.f32.mrf.mxu0
  %v1639 = vadd.f32 %v1470, %v1638
  %v1640 = vpop.f32.mrf.mxu0
  %v1641 = vadd.f32 %v1472, %v1640
  %1642 = vmatmul.bf16.gmra.mxu0 %v906
  %v1643 = vpop.f32.mrf.mxu0
  %v1644 = vadd.f32 %v1475, %v1643
  %v1645 = vpop.f32.mrf.mxu0
  %v1646 = vadd.f32 %v1477, %v1645
  %1647 = vmatmul.bf16.gmra.mxu0 %v911
  %v1648 = vpop.f32.mrf.mxu0
  %v1649 = vadd.f32 %v1480, %v1648
  %v1650 = vpop.f32.mrf.mxu0
  %v1651 = vadd.f32 %v1482, %v1650
  %1652 = vmatmul.bf16.gmra.mxu0 %v916
  %v1653 = vpop.f32.mrf.mxu0
  %v1654 = vadd.f32 %v1485, %v1653
  %v1655 = vpop.f32.mrf.mxu0
  %v1656 = vadd.f32 %v1487, %v1655
  %1657 = vmatmul.bf16.gmra.mxu0 %v921
  %v1658 = vpop.f32.mrf.mxu0
  %v1659 = vadd.f32 %v1490, %v1658
  %v1660 = vpop.f32.mrf.mxu0
  %v1661 = vadd.f32 %v1492, %v1660
  %1662 = vmatmul.bf16.gmra.mxu0 %v926
  %v1663 = vpop.f32.mrf.mxu0
  %v1664 = vadd.f32 %v1495, %v1663
  %v1665 = vpop.f32.mrf.mxu0
  %v1666 = vadd.f32 %v1497, %v1665
  %1667 = vmatmul.bf16.gmra.mxu0 %v931
  %v1668 = vpop.f32.mrf.mxu0
  %v1669 = vadd.f32 %v1500, %v1668
  %v1670 = vpop.f32.mrf.mxu0
  %v1671 = vadd.f32 %v1502, %v1670
  %1672 = vmatmul.bf16.gmra.mxu0 %v936
  %v1673 = vpop.f32.mrf.mxu0
  %v1674 = vadd.f32 %v1505, %v1673
  %v1675 = vpop.f32.mrf.mxu0
  %v1676 = vadd.f32 %v1507, %v1675
  %1677 = vmatmul.bf16.gmra.mxu0 %v941
  %v1678 = vpop.f32.mrf.mxu0
  %v1679 = vadd.f32 %v1510, %v1678
  %v1680 = vpop.f32.mrf.mxu0
  %v1681 = vadd.f32 %v1512, %v1680
  %1682 = vmatmul.bf16.gmra.mxu0 %v946
  %v1683 = vpop.f32.mrf.mxu0
  %v1684 = vadd.f32 %v1515, %v1683
  %v1685 = vpop.f32.mrf.mxu0
  %v1686 = vadd.f32 %v1517, %v1685
  %1687 = vmatmul.bf16.gmra.mxu0 %v951
  %v1688 = vpop.f32.mrf.mxu0
  %v1689 = vadd.f32 %v1520, %v1688
  %v1690 = vpop.f32.mrf.mxu0
  %v1691 = vadd.f32 %v1522, %v1690
  %1692 = vmatmul.bf16.gmra.mxu0 %v956
  %v1693 = vpop.f32.mrf.mxu0
  %v1694 = vadd.f32 %v1525, %v1693
  %v1695 = vpop.f32.mrf.mxu0
  %v1696 = vadd.f32 %v1527, %v1695
  %1697 = vdwg.mxu0
  %1698 = vmatpush.bf16.msra.mxu0 %v1303
  %1699 = vmatpush.bf16.msra.mxu0 %v1302
  %1700 = vmatpush.bf16.msra.mxu0 %v1301
  %1701 = vmatpush.bf16.msra.mxu0 %v1300
  %1702 = vmatpush.bf16.msra.mxu0 %v1299
  %1703 = vmatpush.bf16.msra.mxu0 %v1298
  %1704 = vmatpush.bf16.msra.mxu0 %v1297
  %1705 = vmatpush.bf16.msra.mxu0 %v1296
  %1706 = vmatmul.bf16.gmra.mxu0 %v802
  %v1707 = vpop.f32.mrf.mxu0
  %v1708 = vadd.f32 %v1539, %v1707
  %v1709 = vpop.f32.mrf.mxu0
  %v1710 = vadd.f32 %v1541, %v1709
  %1711 = vmatmul.bf16.gmra.mxu0 %v807
  %v1712 = vpop.f32.mrf.mxu0
  %v1713 = vadd.f32 %v1544, %v1712
  %v1714 = vpop.f32.mrf.mxu0
  %v1715 = vadd.f32 %v1546, %v1714
  %1716 = vmatmul.bf16.gmra.mxu0 %v812
  %v1717 = vpop.f32.mrf.mxu0
  %v1718 = vadd.f32 %v1549, %v1717
  %v1719 = vpop.f32.mrf.mxu0
  %v1720 = vadd.f32 %v1551, %v1719
  %1721 = vmatmul.bf16.gmra.mxu0 %v817
  %v1722 = vpop.f32.mrf.mxu0
  %v1723 = vadd.f32 %v1554, %v1722
  %v1724 = vpop.f32.mrf.mxu0
  %v1725 = vadd.f32 %v1556, %v1724
  %1726 = vmatmul.bf16.gmra.mxu0 %v822
  %v1727 = vpop.f32.mrf.mxu0
  %v1728 = vadd.f32 %v1559, %v1727
  %v1729 = vpop.f32.mrf.mxu0
  %v1730 = vadd.f32 %v1561, %v1729
  %1731 = vmatmul.bf16.gmra.mxu0 %v827
  %v1732 = vpop.f32.mrf.mxu0
  %v1733 = vadd.f32 %v1564, %v1732
  %v1734 = vpop.f32.mrf.mxu0
  %v1735 = vadd.f32 %v1566, %v1734
  %1736 = vmatmul.bf16.gmra.mxu0 %v832
  %v1737 = vpop.f32.mrf.mxu0
  %v1738 = vadd.f32 %v1569, %v1737
  %v1739 = vpop.f32.mrf.mxu0
  %v1740 = vadd.f32 %v1571, %v1739
  %1741 = vmatmul.bf16.gmra.mxu0 %v837
  %v1742 = vpop.f32.mrf.mxu0
  %v1743 = vadd.f32 %v1574, %v1742
  %v1744 = vpop.f32.mrf.mxu0
  %v1745 = vadd.f32 %v1576, %v1744
  %1746 = vmatmul.bf16.gmra.mxu0 %v842
  %v1747 = vpop.f32.mrf.mxu0
  %v1748 = vadd.f32 %v1579, %v1747
  %v1749 = vpop.f32.mrf.mxu0
  %v1750 = vadd.f32 %v1581, %v1749
  %1751 = vmatmul.bf16.gmra.mxu0 %v847
  %v1752 = vpop.f32.mrf.mxu0
  %v1753 = vadd.f32 %v1584, %v1752
  %v1754 = vpop.f32.mrf.mxu0
  %v1755 = vadd.f32 %v1586, %v1754
  %1756 = vmatmul.bf16.gmra.mxu0 %v852
  %v1757 = vpop.f32.mrf.mxu0
  %v1758 = vadd.f32 %v1589, %v1757
  %v1759 = vpop.f32.mrf.mxu0
  %v1760 = vadd.f32 %v1591, %v1759
  %1761 = vmatmul.bf16.gmra.mxu0 %v857
  %v1762 = vpop.f32.mrf.mxu0
  %v1763 = vadd.f32 %v1594, %v1762
  %v1764 = vpop.f32.mrf.mxu0
  %v1765 = vadd.f32 %v1596, %v1764
  %1766 = vmatmul.bf16.gmra.mxu0 %v862
  %v1767 = vpop.f32.mrf.mxu0
  %v1768 = vadd.f32 %v1599, %v1767
  %v1769 = vpop.f32.mrf.mxu0
  %v1770 = vadd.f32 %v1601, %v1769
  %1771 = vmatmul.bf16.gmra.mxu0 %v867
  %v1772 = vpop.f32.mrf.mxu0
  %v1773 = vadd.f32 %v1604, %v1772
  %v1774 = vpop.f32.mrf.mxu0
  %v1775 = vadd.f32 %v1606, %v1774
  %1776 = vmatmul.bf16.gmra.mxu0 %v872
  %v1777 = vpop.f32.mrf.mxu0
  %v1778 = vadd.f32 %v1609, %v1777
  %v1779 = vpop.f32.mrf.mxu0
  %v1780 = vadd.f32 %v1611, %v1779
  %1781 = vmatmul.bf16.gmra.mxu0 %v877
  %v1782 = vpop.f32.mrf.mxu0
  %v1783 = vadd.f32 %v1614, %v1782
  %v1784 = vpop.f32.mrf.mxu0
  %v1785 = vadd.f32 %v1616, %v1784
  %1786 = vmatmul.bf16.gmra.mxu0 %v882
  %v1787 = vpop.f32.mrf.mxu0
  %v1788 = vadd.f32 %v1619, %v1787
  %v1789 = vpop.f32.mrf.mxu0
  %v1790 = vadd.f32 %v1621, %v1789
  %1791 = vmatmul.bf16.gmra.mxu0 %v887
  %v1792 = vpop.f32.mrf.mxu0
  %v1793 = vadd.f32 %v1624, %v1792
  %v1794 = vpop.f32.mrf.mxu0
  %v1795 = vadd.f32 %v1626, %v1794
  %1796 = vmatmul.bf16.gmra.mxu0 %v892
  %v1797 = vpop.f32.mrf.mxu0
  %v1798 = vadd.f32 %v1629, %v1797
  %v1799 = vpop.f32.mrf.mxu0
  %v1800 = vadd.f32 %v1631, %v1799
  %1801 = vmatmul.bf16.gmra.mxu0 %v897
  %v1802 = vpop.f32.mrf.mxu0
  %v1803 = vadd.f32 %v1634, %v1802
  %v1804 = vpop.f32.mrf.mxu0
  %v1805 = vadd.f32 %v1636, %v1804
  %1806 = vmatmul.bf16.gmra.mxu0 %v902
  %v1807 = vpop.f32.mrf.mxu0
  %v1808 = vadd.f32 %v1639, %v1807
  %v1809 = vpop.f32.mrf.mxu0
  %v1810 = vadd.f32 %v1641, %v1809
  %1811 = vmatmul.bf16.gmra.mxu0 %v907
  %v1812 = vpop.f32.mrf.mxu0
  %v1813 = vadd.f32 %v1644, %v1812
  %v1814 = vpop.f32.mrf.mxu0
  %v1815 = vadd.f32 %v1646, %v1814
  %1816 = vmatmul.bf16.gmra.mxu0 %v912
  %v1817 = vpop.f32.mrf.mxu0
  %v1818 = vadd.f32 %v1649, %v1817
  %v1819 = vpop.f32.mrf.mxu0
  %v1820 = vadd.f32 %v1651, %v1819
  %1821 = vmatmul.bf16.gmra.mxu0 %v917
  %v1822 = vpop.f32.mrf.mxu0
  %v1823 = vadd.f32 %v1654, %v1822
  %v1824 = vpop.f32.mrf.mxu0
  %v1825 = vadd.f32 %v1656, %v1824
  %1826 = vmatmul.bf16.gmra.mxu0 %v922
  %v1827 = vpop.f32.mrf.mxu0
  %v1828 = vadd.f32 %v1659, %v1827
  %v1829 = vpop.f32.mrf.mxu0
  %v1830 = vadd.f32 %v1661, %v1829
  %1831 = vmatmul.bf16.gmra.mxu0 %v927
  %v1832 = vpop.f32.mrf.mxu0
  %v1833 = vadd.f32 %v1664, %v1832
  %v1834 = vpop.f32.mrf.mxu0
  %v1835 = vadd.f32 %v1666, %v1834
  %1836 = vmatmul.bf16.gmra.mxu0 %v932
  %v1837 = vpop.f32.mrf.mxu0
  %v1838 = vadd.f32 %v1669, %v1837
  %v1839 = vpop.f32.mrf.mxu0
  %v1840 = vadd.f32 %v1671, %v1839
  %1841 = vmatmul.bf16.gmra.mxu0 %v937
  %v1842 = vpop.f32.mrf.mxu0
  %v1843 = vadd.f32 %v1674, %v1842
  %v1844 = vpop.f32.mrf.mxu0
  %v1845 = vadd.f32 %v1676, %v1844
  %1846 = vmatmul.bf16.gmra.mxu0 %v942
  %v1847 = vpop.f32.mrf.mxu0
  %v1848 = vadd.f32 %v1679, %v1847
  %v1849 = vpop.f32.mrf.mxu0
  %v1850 = vadd.f32 %v1681, %v1849
  %1851 = vmatmul.bf16.gmra.mxu0 %v947
  %v1852 = vpop.f32.mrf.mxu0
  %v1853 = vadd.f32 %v1684, %v1852
  %v1854 = vpop.f32.mrf.mxu0
  %v1855 = vadd.f32 %v1686, %v1854
  %1856 = vmatmul.bf16.gmra.mxu0 %v952
  %v1857 = vpop.f32.mrf.mxu0
  %v1858 = vadd.f32 %v1689, %v1857
  %v1859 = vpop.f32.mrf.mxu0
  %v1860 = vadd.f32 %v1691, %v1859
  %1861 = vmatmul.bf16.gmra.mxu0 %v957
  %v1862 = vpop.f32.mrf.mxu0
  %v1863 = vadd.f32 %v1694, %v1862
  %v1864 = vpop.f32.mrf.mxu0
  %v1865 = vadd.f32 %v1696, %v1864
  %1866 = vdwg.mxu0
  %1867 = vmatpush.bf16.msra.mxu0 %v1311
  %1868 = vmatpush.bf16.msra.mxu0 %v1310
  %1869 = vmatpush.bf16.msra.mxu0 %v1309
  %1870 = vmatpush.bf16.msra.mxu0 %v1308
  %1871 = vmatpush.bf16.msra.mxu0 %v1307
  %1872 = vmatpush.bf16.msra.mxu0 %v1306
  %1873 = vmatpush.bf16.msra.mxu0 %v1305
  %1874 = vmatpush.bf16.msra.mxu0 %v1304
  %1875 = vmatmul.bf16.gmra.mxu0 %v803
  %v1876 = vpop.f32.mrf.mxu0
  %v1877 = vadd.f32 %v1708, %v1876
  %v1878 = vpop.f32.mrf.mxu0
  %v1879 = vadd.f32 %v1710, %v1878
  %1880 = vmatmul.bf16.gmra.mxu0 %v808
  %v1881 = vpop.f32.mrf.mxu0
  %v1882 = vadd.f32 %v1713, %v1881
  %v1883 = vpop.f32.mrf.mxu0
  %v1884 = vadd.f32 %v1715, %v1883
  %1885 = vmatmul.bf16.gmra.mxu0 %v813
  %v1886 = vpop.f32.mrf.mxu0
  %v1887 = vadd.f32 %v1718, %v1886
  %v1888 = vpop.f32.mrf.mxu0
  %v1889 = vadd.f32 %v1720, %v1888
  %1890 = vmatmul.bf16.gmra.mxu0 %v818
  %v1891 = vpop.f32.mrf.mxu0
  %v1892 = vadd.f32 %v1723, %v1891
  %v1893 = vpop.f32.mrf.mxu0
  %v1894 = vadd.f32 %v1725, %v1893
  %1895 = vmatmul.bf16.gmra.mxu0 %v823
  %v1896 = vpop.f32.mrf.mxu0
  %v1897 = vadd.f32 %v1728, %v1896
  %v1898 = vpop.f32.mrf.mxu0
  %v1899 = vadd.f32 %v1730, %v1898
  %1900 = vmatmul.bf16.gmra.mxu0 %v828
  %v1901 = vpop.f32.mrf.mxu0
  %v1902 = vadd.f32 %v1733, %v1901
  %v1903 = vpop.f32.mrf.mxu0
  %v1904 = vadd.f32 %v1735, %v1903
  %1905 = vmatmul.bf16.gmra.mxu0 %v833
  %v1906 = vpop.f32.mrf.mxu0
  %v1907 = vadd.f32 %v1738, %v1906
  %v1908 = vpop.f32.mrf.mxu0
  %v1909 = vadd.f32 %v1740, %v1908
  %1910 = vmatmul.bf16.gmra.mxu0 %v838
  %v1911 = vpop.f32.mrf.mxu0
  %v1912 = vadd.f32 %v1743, %v1911
  %v1913 = vpop.f32.mrf.mxu0
  %v1914 = vadd.f32 %v1745, %v1913
  %1915 = vmatmul.bf16.gmra.mxu0 %v843
  %v1916 = vpop.f32.mrf.mxu0
  %v1917 = vadd.f32 %v1748, %v1916
  %v1918 = vpop.f32.mrf.mxu0
  %v1919 = vadd.f32 %v1750, %v1918
  %1920 = vmatmul.bf16.gmra.mxu0 %v848
  %v1921 = vpop.f32.mrf.mxu0
  %v1922 = vadd.f32 %v1753, %v1921
  %v1923 = vpop.f32.mrf.mxu0
  %v1924 = vadd.f32 %v1755, %v1923
  %1925 = vmatmul.bf16.gmra.mxu0 %v853
  %v1926 = vpop.f32.mrf.mxu0
  %v1927 = vadd.f32 %v1758, %v1926
  %v1928 = vpop.f32.mrf.mxu0
  %v1929 = vadd.f32 %v1760, %v1928
  %1930 = vmatmul.bf16.gmra.mxu0 %v858
  %v1931 = vpop.f32.mrf.mxu0
  %v1932 = vadd.f32 %v1763, %v1931
  %v1933 = vpop.f32.mrf.mxu0
  %v1934 = vadd.f32 %v1765, %v1933
  %1935 = vmatmul.bf16.gmra.mxu0 %v863
  %v1936 = vpop.f32.mrf.mxu0
  %v1937 = vadd.f32 %v1768, %v1936
  %v1938 = vpop.f32.mrf.mxu0
  %v1939 = vadd.f32 %v1770, %v1938
  %1940 = vmatmul.bf16.gmra.mxu0 %v868
  %v1941 = vpop.f32.mrf.mxu0
  %v1942 = vadd.f32 %v1773, %v1941
  %v1943 = vpop.f32.mrf.mxu0
  %v1944 = vadd.f32 %v1775, %v1943
  %1945 = vmatmul.bf16.gmra.mxu0 %v873
  %v1946 = vpop.f32.mrf.mxu0
  %v1947 = vadd.f32 %v1778, %v1946
  %v1948 = vpop.f32.mrf.mxu0
  %v1949 = vadd.f32 %v1780, %v1948
  %1950 = vmatmul.bf16.gmra.mxu0 %v878
  %v1951 = vpop.f32.mrf.mxu0
  %v1952 = vadd.f32 %v1783, %v1951
  %v1953 = vpop.f32.mrf.mxu0
  %v1954 = vadd.f32 %v1785, %v1953
  %1955 = vmatmul.bf16.gmra.mxu0 %v883
  %v1956 = vpop.f32.mrf.mxu0
  %v1957 = vadd.f32 %v1788, %v1956
  %v1958 = vpop.f32.mrf.mxu0
  %v1959 = vadd.f32 %v1790, %v1958
  %1960 = vmatmul.bf16.gmra.mxu0 %v888
  %v1961 = vpop.f32.mrf.mxu0
  %v1962 = vadd.f32 %v1793, %v1961
  %v1963 = vpop.f32.mrf.mxu0
  %v1964 = vadd.f32 %v1795, %v1963
  %1965 = vmatmul.bf16.gmra.mxu0 %v893
  %v1966 = vpop.f32.mrf.mxu0
  %v1967 = vadd.f32 %v1798, %v1966
  %v1968 = vpop.f32.mrf.mxu0
  %v1969 = vadd.f32 %v1800, %v1968
  %1970 = vmatmul.bf16.gmra.mxu0 %v898
  %v1971 = vpop.f32.mrf.mxu0
  %v1972 = vadd.f32 %v1803, %v1971
  %v1973 = vpop.f32.mrf.mxu0
  %v1974 = vadd.f32 %v1805, %v1973
  %1975 = vmatmul.bf16.gmra.mxu0 %v903
  %v1976 = vpop.f32.mrf.mxu0
  %v1977 = vadd.f32 %v1808, %v1976
  %v1978 = vpop.f32.mrf.mxu0
  %v1979 = vadd.f32 %v1810, %v1978
  %1980 = vmatmul.bf16.gmra.mxu0 %v908
  %v1981 = vpop.f32.mrf.mxu0
  %v1982 = vadd.f32 %v1813, %v1981
  %v1983 = vpop.f32.mrf.mxu0
  %v1984 = vadd.f32 %v1815, %v1983
  %1985 = vmatmul.bf16.gmra.mxu0 %v913
  %v1986 = vpop.f32.mrf.mxu0
  %v1987 = vadd.f32 %v1818, %v1986
  %v1988 = vpop.f32.mrf.mxu0
  %v1989 = vadd.f32 %v1820, %v1988
  %1990 = vmatmul.bf16.gmra.mxu0 %v918
  %v1991 = vpop.f32.mrf.mxu0
  %v1992 = vadd.f32 %v1823, %v1991
  %v1993 = vpop.f32.mrf.mxu0
  %v1994 = vadd.f32 %v1825, %v1993
  %1995 = vmatmul.bf16.gmra.mxu0 %v923
  %v1996 = vpop.f32.mrf.mxu0
  %v1997 = vadd.f32 %v1828, %v1996
  %v1998 = vpop.f32.mrf.mxu0
  %v1999 = vadd.f32 %v1830, %v1998
  %2000 = vmatmul.bf16.gmra.mxu0 %v928
  %v2001 = vpop.f32.mrf.mxu0
  %v2002 = vadd.f32 %v1833, %v2001
  %v2003 = vpop.f32.mrf.mxu0
  %v2004 = vadd.f32 %v1835, %v2003
  %2005 = vmatmul.bf16.gmra.mxu0 %v933
  %v2006 = vpop.f32.mrf.mxu0
  %v2007 = vadd.f32 %v1838, %v2006
  %v2008 = vpop.f32.mrf.mxu0
  %v2009 = vadd.f32 %v1840, %v2008
  %2010 = vmatmul.bf16.gmra.mxu0 %v938
  %v2011 = vpop.f32.mrf.mxu0
  %v2012 = vadd.f32 %v1843, %v2011
  %v2013 = vpop.f32.mrf.mxu0
  %v2014 = vadd.f32 %v1845, %v2013
  %2015 = vmatmul.bf16.gmra.mxu0 %v943
  %v2016 = vpop.f32.mrf.mxu0
  %v2017 = vadd.f32 %v1848, %v2016
  %v2018 = vpop.f32.mrf.mxu0
  %v2019 = vadd.f32 %v1850, %v2018
  %2020 = vmatmul.bf16.gmra.mxu0 %v948
  %v2021 = vpop.f32.mrf.mxu0
  %v2022 = vadd.f32 %v1853, %v2021
  %v2023 = vpop.f32.mrf.mxu0
  %v2024 = vadd.f32 %v1855, %v2023
  %2025 = vmatmul.bf16.gmra.mxu0 %v953
  %v2026 = vpop.f32.mrf.mxu0
  %v2027 = vadd.f32 %v1858, %v2026
  %v2028 = vpop.f32.mrf.mxu0
  %v2029 = vadd.f32 %v1860, %v2028
  %2030 = vmatmul.bf16.gmra.mxu0 %v958
  %v2031 = vpop.f32.mrf.mxu0
  %v2032 = vadd.f32 %v1863, %v2031
  %v2033 = vpop.f32.mrf.mxu0
  %v2034 = vadd.f32 %v1865, %v2033
  %2035 = vdwg.mxu0
  %2036 = vmatpush.bf16.msra.mxu0 %v1319
  %2037 = vmatpush.bf16.msra.mxu0 %v1318
  %2038 = vmatpush.bf16.msra.mxu0 %v1317
  %2039 = vmatpush.bf16.msra.mxu0 %v1316
  %2040 = vmatpush.bf16.msra.mxu0 %v1315
  %2041 = vmatpush.bf16.msra.mxu0 %v1314
  %2042 = vmatpush.bf16.msra.mxu0 %v1313
  %2043 = vmatpush.bf16.msra.mxu0 %v1312
  %2044 = vmatmul.bf16.gmra.mxu0 %v804
  %v2045 = vpop.f32.mrf.mxu0
  %v2046 = vadd.f32 %v1877, %v2045
  %v2047 = vpop.f32.mrf.mxu0
  %v2048 = vadd.f32 %v1879, %v2047
  %2049 = vmatmul.bf16.gmra.mxu0 %v809
  %v2050 = vpop.f32.mrf.mxu0
  %v2051 = vadd.f32 %v1882, %v2050
  %v2052 = vpop.f32.mrf.mxu0
  %v2053 = vadd.f32 %v1884, %v2052
  %2054 = vmatmul.bf16.gmra.mxu0 %v814
  %v2055 = vpop.f32.mrf.mxu0
  %v2056 = vadd.f32 %v1887, %v2055
  %v2057 = vpop.f32.mrf.mxu0
  %v2058 = vadd.f32 %v1889, %v2057
  %2059 = vmatmul.bf16.gmra.mxu0 %v819
  %v2060 = vpop.f32.mrf.mxu0
  %v2061 = vadd.f32 %v1892, %v2060
  %v2062 = vpop.f32.mrf.mxu0
  %v2063 = vadd.f32 %v1894, %v2062
  %2064 = vmatmul.bf16.gmra.mxu0 %v824
  %v2065 = vpop.f32.mrf.mxu0
  %v2066 = vadd.f32 %v1897, %v2065
  %v2067 = vpop.f32.mrf.mxu0
  %v2068 = vadd.f32 %v1899, %v2067
  %2069 = vmatmul.bf16.gmra.mxu0 %v829
  %v2070 = vpop.f32.mrf.mxu0
  %v2071 = vadd.f32 %v1902, %v2070
  %v2072 = vpop.f32.mrf.mxu0
  %v2073 = vadd.f32 %v1904, %v2072
  %2074 = vmatmul.bf16.gmra.mxu0 %v834
  %v2075 = vpop.f32.mrf.mxu0
  %v2076 = vadd.f32 %v1907, %v2075
  %v2077 = vpop.f32.mrf.mxu0
  %v2078 = vadd.f32 %v1909, %v2077
  %2079 = vmatmul.bf16.gmra.mxu0 %v839
  %v2080 = vpop.f32.mrf.mxu0
  %v2081 = vadd.f32 %v1912, %v2080
  %v2082 = vpop.f32.mrf.mxu0
  %v2083 = vadd.f32 %v1914, %v2082
  %2084 = vmatmul.bf16.gmra.mxu0 %v844
  %v2085 = vpop.f32.mrf.mxu0
  %v2086 = vadd.f32 %v1917, %v2085
  %v2087 = vpop.f32.mrf.mxu0
  %v2088 = vadd.f32 %v1919, %v2087
  %2089 = vmatmul.bf16.gmra.mxu0 %v849
  %v2090 = vpop.f32.mrf.mxu0
  %v2091 = vadd.f32 %v1922, %v2090
  %v2092 = vpop.f32.mrf.mxu0
  %v2093 = vadd.f32 %v1924, %v2092
  %2094 = vmatmul.bf16.gmra.mxu0 %v854
  %v2095 = vpop.f32.mrf.mxu0
  %v2096 = vadd.f32 %v1927, %v2095
  %v2097 = vpop.f32.mrf.mxu0
  %v2098 = vadd.f32 %v1929, %v2097
  %2099 = vmatmul.bf16.gmra.mxu0 %v859
  %v2100 = vpop.f32.mrf.mxu0
  %v2101 = vadd.f32 %v1932, %v2100
  %v2102 = vpop.f32.mrf.mxu0
  %v2103 = vadd.f32 %v1934, %v2102
  %2104 = vmatmul.bf16.gmra.mxu0 %v864
  %v2105 = vpop.f32.mrf.mxu0
  %v2106 = vadd.f32 %v1937, %v2105
  %v2107 = vpop.f32.mrf.mxu0
  %v2108 = vadd.f32 %v1939, %v2107
  %2109 = vmatmul.bf16.gmra.mxu0 %v869
  %v2110 = vpop.f32.mrf.mxu0
  %v2111 = vadd.f32 %v1942, %v2110
  %v2112 = vpop.f32.mrf.mxu0
  %v2113 = vadd.f32 %v1944, %v2112
  %2114 = vmatmul.bf16.gmra.mxu0 %v874
  %v2115 = vpop.f32.mrf.mxu0
  %v2116 = vadd.f32 %v1947, %v2115
  %v2117 = vpop.f32.mrf.mxu0
  %v2118 = vadd.f32 %v1949, %v2117
  %2119 = vmatmul.bf16.gmra.mxu0 %v879
  %v2120 = vpop.f32.mrf.mxu0
  %v2121 = vadd.f32 %v1952, %v2120
  %v2122 = vpop.f32.mrf.mxu0
  %v2123 = vadd.f32 %v1954, %v2122
  %2124 = vmatmul.bf16.gmra.mxu0 %v884
  %v2125 = vpop.f32.mrf.mxu0
  %v2126 = vadd.f32 %v1957, %v2125
  %v2127 = vpop.f32.mrf.mxu0
  %v2128 = vadd.f32 %v1959, %v2127
  %2129 = vmatmul.bf16.gmra.mxu0 %v889
  %v2130 = vpop.f32.mrf.mxu0
  %v2131 = vadd.f32 %v1962, %v2130
  %v2132 = vpop.f32.mrf.mxu0
  %v2133 = vadd.f32 %v1964, %v2132
  %2134 = vmatmul.bf16.gmra.mxu0 %v894
  %v2135 = vpop.f32.mrf.mxu0
  %v2136 = vadd.f32 %v1967, %v2135
  %v2137 = vpop.f32.mrf.mxu0
  %v2138 = vadd.f32 %v1969, %v2137
  %2139 = vmatmul.bf16.gmra.mxu0 %v899
  %v2140 = vpop.f32.mrf.mxu0
  %v2141 = vadd.f32 %v1972, %v2140
  %v2142 = vpop.f32.mrf.mxu0
  %v2143 = vadd.f32 %v1974, %v2142
  %2144 = vmatmul.bf16.gmra.mxu0 %v904
  %v2145 = vpop.f32.mrf.mxu0
  %v2146 = vadd.f32 %v1977, %v2145
  %v2147 = vpop.f32.mrf.mxu0
  %v2148 = vadd.f32 %v1979, %v2147
  %2149 = vmatmul.bf16.gmra.mxu0 %v909
  %v2150 = vpop.f32.mrf.mxu0
  %v2151 = vadd.f32 %v1982, %v2150
  %v2152 = vpop.f32.mrf.mxu0
  %v2153 = vadd.f32 %v1984, %v2152
  %2154 = vmatmul.bf16.gmra.mxu0 %v914
  %v2155 = vpop.f32.mrf.mxu0
  %v2156 = vadd.f32 %v1987, %v2155
  %v2157 = vpop.f32.mrf.mxu0
  %v2158 = vadd.f32 %v1989, %v2157
  %2159 = vmatmul.bf16.gmra.mxu0 %v919
  %v2160 = vpop.f32.mrf.mxu0
  %v2161 = vadd.f32 %v1992, %v2160
  %v2162 = vpop.f32.mrf.mxu0
  %v2163 = vadd.f32 %v1994, %v2162
  %2164 = vmatmul.bf16.gmra.mxu0 %v924
  %v2165 = vpop.f32.mrf.mxu0
  %v2166 = vadd.f32 %v1997, %v2165
  %v2167 = vpop.f32.mrf.mxu0
  %v2168 = vadd.f32 %v1999, %v2167
  %2169 = vmatmul.bf16.gmra.mxu0 %v929
  %v2170 = vpop.f32.mrf.mxu0
  %v2171 = vadd.f32 %v2002, %v2170
  %v2172 = vpop.f32.mrf.mxu0
  %v2173 = vadd.f32 %v2004, %v2172
  %2174 = vmatmul.bf16.gmra.mxu0 %v934
  %v2175 = vpop.f32.mrf.mxu0
  %v2176 = vadd.f32 %v2007, %v2175
  %v2177 = vpop.f32.mrf.mxu0
  %v2178 = vadd.f32 %v2009, %v2177
  %2179 = vmatmul.bf16.gmra.mxu0 %v939
  %v2180 = vpop.f32.mrf.mxu0
  %v2181 = vadd.f32 %v2012, %v2180
  %v2182 = vpop.f32.mrf.mxu0
  %v2183 = vadd.f32 %v2014, %v2182
  %2184 = vmatmul.bf16.gmra.mxu0 %v944
  %v2185 = vpop.f32.mrf.mxu0
  %v2186 = vadd.f32 %v2017, %v2185
  %v2187 = vpop.f32.mrf.mxu0
  %v2188 = vadd.f32 %v2019, %v2187
  %2189 = vmatmul.bf16.gmra.mxu0 %v949
  %v2190 = vpop.f32.mrf.mxu0
  %v2191 = vadd.f32 %v2022, %v2190
  %v2192 = vpop.f32.mrf.mxu0
  %v2193 = vadd.f32 %v2024, %v2192
  %2194 = vmatmul.bf16.gmra.mxu0 %v954
  %v2195 = vpop.f32.mrf.mxu0
  %v2196 = vadd.f32 %v2027, %v2195
  %v2197 = vpop.f32.mrf.mxu0
  %v2198 = vadd.f32 %v2029, %v2197
  %2199 = vmatmul.bf16.gmra.mxu0 %v959
  %v2200 = vpop.f32.mrf.mxu0
  %v2201 = vadd.f32 %v2032, %v2200
  %v2202 = vpop.f32.mrf.mxu0
  %v2203 = vadd.f32 %v2034, %v2202
  %2204 = vdwg.mxu0
  %v2205 = vadd.f32 %v2046, %v2048
  %v2206 = vadd.f32 %v2205, %v2051
  %v2207 = vadd.f32 %v2206, %v2053
  %v2208 = vadd.f32 %v2207, %v2056
  %v2209 = vadd.f32 %v2208, %v2058
  %v2210 = vadd.f32 %v2209, %v2061
  %v2211 = vadd.f32 %v2210, %v2063
  %v2212 = vadd.f32 %v2211, %v2066
  %v2213 = vadd.f32 %v2212, %v2068
  %v2214 = vadd.f32 %v2213, %v2071
  %v2215 = vadd.f32 %v2214, %v2073
  %v2216 = vadd.f32 %v2215, %v2076
  %v2217 = vadd.f32 %v2216, %v2078
  %v2218 = vadd.f32 %v2217, %v2081
  %v2219 = vadd.f32 %v2218, %v2083
  %v2220 = vadd.f32 %v2219, %v2086
  %v2221 = vadd.f32 %v2220, %v2088
  %v2222 = vadd.f32 %v2221, %v2091
  %v2223 = vadd.f32 %v2222, %v2093
  %v2224 = vadd.f32 %v2223, %v2096
  %v2225 = vadd.f32 %v2224, %v2098
  %v2226 = vadd.f32 %v2225, %v2101
  %v2227 = vadd.f32 %v2226, %v2103
  %v2228 = vadd.f32 %v2227, %v2106
  %v2229 = vadd.f32 %v2228, %v2108
  %v2230 = vadd.f32 %v2229, %v2111
  %v2231 = vadd.f32 %v2230, %v2113
  %v2232 = vadd.f32 %v2231, %v2116
  %v2233 = vadd.f32 %v2232, %v2118
  %v2234 = vadd.f32 %v2233, %v2121
  %v2235 = vadd.f32 %v2234, %v2123
  %v2236 = vadd.f32 %v2235, %v2126
  %v2237 = vadd.f32 %v2236, %v2128
  %v2238 = vadd.f32 %v2237, %v2131
  %v2239 = vadd.f32 %v2238, %v2133
  %v2240 = vadd.f32 %v2239, %v2136
  %v2241 = vadd.f32 %v2240, %v2138
  %v2242 = vadd.f32 %v2241, %v2141
  %v2243 = vadd.f32 %v2242, %v2143
  %v2244 = vadd.f32 %v2243, %v2146
  %v2245 = vadd.f32 %v2244, %v2148
  %v2246 = vadd.f32 %v2245, %v2151
  %v2247 = vadd.f32 %v2246, %v2153
  %v2248 = vadd.f32 %v2247, %v2156
  %v2249 = vadd.f32 %v2248, %v2158
  %v2250 = vadd.f32 %v2249, %v2161
  %v2251 = vadd.f32 %v2250, %v2163
  %v2252 = vadd.f32 %v2251, %v2166
  %v2253 = vadd.f32 %v2252, %v2168
  %v2254 = vadd.f32 %v2253, %v2171
  %v2255 = vadd.f32 %v2254, %v2173
  %v2256 = vadd.f32 %v2255, %v2176
  %v2257 = vadd.f32 %v2256, %v2178
  %v2258 = vadd.f32 %v2257, %v2181
  %v2259 = vadd.f32 %v2258, %v2183
  %v2260 = vadd.f32 %v2259, %v2186
  %v2261 = vadd.f32 %v2260, %v2188
  %v2262 = vadd.f32 %v2261, %v2191
  %v2263 = vadd.f32 %v2262, %v2193
  %v2264 = vadd.f32 %v2263, %v2196
  %v2265 = vadd.f32 %v2264, %v2198
  %v2266 = vadd.f32 %v2265, %v2201
  %v2267 = vadd.f32 %v2266, %v2203
  %v2268 = vrot.slane %v2267, 4
  %v2269 = vadd.f32 %v2267, %v2268
  %v2270 = vrot.slane %v2269, 2
  %v2271 = vadd.f32 %v2269, %v2270
  %v2272 = vrot.slane %v2271, 1
  %v2273 = vadd.f32 %v2271, %v2272
  %v2274 = vmul.f32 %v2273, 0.001953125
  %v2275 = vsub.f32 %v2046, %v2274
  %v2276 = vsub.f32 %v2048, %v2274
  %v2277 = vsub.f32 %v2051, %v2274
  %v2278 = vsub.f32 %v2053, %v2274
  %v2279 = vsub.f32 %v2056, %v2274
  %v2280 = vsub.f32 %v2058, %v2274
  %v2281 = vsub.f32 %v2061, %v2274
  %v2282 = vsub.f32 %v2063, %v2274
  %v2283 = vsub.f32 %v2066, %v2274
  %v2284 = vsub.f32 %v2068, %v2274
  %v2285 = vsub.f32 %v2071, %v2274
  %v2286 = vsub.f32 %v2073, %v2274
  %v2287 = vsub.f32 %v2076, %v2274
  %v2288 = vsub.f32 %v2078, %v2274
  %v2289 = vsub.f32 %v2081, %v2274
  %v2290 = vsub.f32 %v2083, %v2274
  %v2291 = vsub.f32 %v2086, %v2274
  %v2292 = vsub.f32 %v2088, %v2274
  %v2293 = vsub.f32 %v2091, %v2274
  %v2294 = vsub.f32 %v2093, %v2274
  %v2295 = vsub.f32 %v2096, %v2274
  %v2296 = vsub.f32 %v2098, %v2274
  %v2297 = vsub.f32 %v2101, %v2274
  %v2298 = vsub.f32 %v2103, %v2274
  %v2299 = vsub.f32 %v2106, %v2274
  %v2300 = vsub.f32 %v2108, %v2274
  %v2301 = vsub.f32 %v2111, %v2274
  %v2302 = vsub.f32 %v2113, %v2274
  %v2303 = vsub.f32 %v2116, %v2274
  %v2304 = vsub.f32 %v2118, %v2274
  %v2305 = vsub.f32 %v2121, %v2274
  %v2306 = vsub.f32 %v2123, %v2274
  %v2307 = vsub.f32 %v2126, %v2274
  %v2308 = vsub.f32 %v2128, %v2274
  %v2309 = vsub.f32 %v2131, %v2274
  %v2310 = vsub.f32 %v2133, %v2274
  %v2311 = vsub.f32 %v2136, %v2274
  %v2312 = vsub.f32 %v2138, %v2274
  %v2313 = vsub.f32 %v2141, %v2274
  %v2314 = vsub.f32 %v2143, %v2274
  %v2315 = vsub.f32 %v2146, %v2274
  %v2316 = vsub.f32 %v2148, %v2274
  %v2317 = vsub.f32 %v2151, %v2274
  %v2318 = vsub.f32 %v2153, %v2274
  %v2319 = vsub.f32 %v2156, %v2274
  %v2320 = vsub.f32 %v2158, %v2274
  %v2321 = vsub.f32 %v2161, %v2274
  %v2322 = vsub.f32 %v2163, %v2274
  %v2323 = vsub.f32 %v2166, %v2274
  %v2324 = vsub.f32 %v2168, %v2274
  %v2325 = vsub.f32 %v2171, %v2274
  %v2326 = vsub.f32 %v2173, %v2274
  %v2327 = vsub.f32 %v2176, %v2274
  %v2328 = vsub.f32 %v2178, %v2274
  %v2329 = vsub.f32 %v2181, %v2274
  %v2330 = vsub.f32 %v2183, %v2274
  %v2331 = vsub.f32 %v2186, %v2274
  %v2332 = vsub.f32 %v2188, %v2274
  %v2333 = vsub.f32 %v2191, %v2274
  %v2334 = vsub.f32 %v2193, %v2274
  %v2335 = vsub.f32 %v2196, %v2274
  %v2336 = vsub.f32 %v2198, %v2274
  %v2337 = vsub.f32 %v2201, %v2274
  %v2338 = vsub.f32 %v2203, %v2274
  %v2339 = vmul.f32 %v2275, %v2275
  %v2340 = vmul.f32 %v2276, %v2276
  %v2341 = vmul.f32 %v2277, %v2277
  %v2342 = vmul.f32 %v2278, %v2278
  %v2343 = vmul.f32 %v2279, %v2279
  %v2344 = vmul.f32 %v2280, %v2280
  %v2345 = vmul.f32 %v2281, %v2281
  %v2346 = vmul.f32 %v2282, %v2282
  %v2347 = vmul.f32 %v2283, %v2283
  %v2348 = vmul.f32 %v2284, %v2284
  %v2349 = vmul.f32 %v2285, %v2285
  %v2350 = vmul.f32 %v2286, %v2286
  %v2351 = vmul.f32 %v2287, %v2287
  %v2352 = vmul.f32 %v2288, %v2288
  %v2353 = vmul.f32 %v2289, %v2289
  %v2354 = vmul.f32 %v2290, %v2290
  %v2355 = vmul.f32 %v2291, %v2291
  %v2356 = vmul.f32 %v2292, %v2292
  %v2357 = vmul.f32 %v2293, %v2293
  %v2358 = vmul.f32 %v2294, %v2294
  %v2359 = vmul.f32 %v2295, %v2295
  %v2360 = vmul.f32 %v2296, %v2296
  %v2361 = vmul.f32 %v2297, %v2297
  %v2362 = vmul.f32 %v2298, %v2298
  %v2363 = vmul.f32 %v2299, %v2299
  %v2364 = vmul.f32 %v2300, %v2300
  %v2365 = vmul.f32 %v2301, %v2301
  %v2366 = vmul.f32 %v2302, %v2302
  %v2367 = vmul.f32 %v2303, %v2303
  %v2368 = vmul.f32 %v2304, %v2304
  %v2369 = vmul.f32 %v2305, %v2305
  %v2370 = vmul.f32 %v2306, %v2306
  %v2371 = vmul.f32 %v2307, %v2307
  %v2372 = vmul.f32 %v2308, %v2308
  %v2373 = vmul.f32 %v2309, %v2309
  %v2374 = vmul.f32 %v2310, %v2310
  %v2375 = vmul.f32 %v2311, %v2311
  %v2376 = vmul.f32 %v2312, %v2312
  %v2377 = vmul.f32 %v2313, %v2313
  %v2378 = vmul.f32 %v2314, %v2314
  %v2379 = vmul.f32 %v2315, %v2315
  %v2380 = vmul.f32 %v2316, %v2316
  %v2381 = vmul.f32 %v2317, %v2317
  %v2382 = vmul.f32 %v2318, %v2318
  %v2383 = vmul.f32 %v2319, %v2319
  %v2384 = vmul.f32 %v2320, %v2320
  %v2385 = vmul.f32 %v2321, %v2321
  %v2386 = vmul.f32 %v2322, %v2322
  %v2387 = vmul.f32 %v2323, %v2323
  %v2388 = vmul.f32 %v2324, %v2324
  %v2389 = vmul.f32 %v2325, %v2325
  %v2390 = vmul.f32 %v2326, %v2326
  %v2391 = vmul.f32 %v2327, %v2327
  %v2392 = vmul.f32 %v2328, %v2328
  %v2393 = vmul.f32 %v2329, %v2329
  %v2394 = vmul.f32 %v2330, %v2330
  %v2395 = vmul.f32 %v2331, %v2331
  %v2396 = vmul.f32 %v2332, %v2332
  %v2397 = vmul.f32 %v2333, %v2333
  %v2398 = vmul.f32 %v2334, %v2334
  %v2399 = vmul.f32 %v2335, %v2335
  %v2400 = vmul.f32 %v2336, %v2336
  %v2401 = vmul.f32 %v2337, %v2337
  %v2402 = vmul.f32 %v2338, %v2338
  %v2403 = vadd.f32 %v2339, %v2340
  %v2404 = vadd.f32 %v2403, %v2341
  %v2405 = vadd.f32 %v2404, %v2342
  %v2406 = vadd.f32 %v2405, %v2343
  %v2407 = vadd.f32 %v2406, %v2344
  %v2408 = vadd.f32 %v2407, %v2345
  %v2409 = vadd.f32 %v2408, %v2346
  %v2410 = vadd.f32 %v2409, %v2347
  %v2411 = vadd.f32 %v2410, %v2348
  %v2412 = vadd.f32 %v2411, %v2349
  %v2413 = vadd.f32 %v2412, %v2350
  %v2414 = vadd.f32 %v2413, %v2351
  %v2415 = vadd.f32 %v2414, %v2352
  %v2416 = vadd.f32 %v2415, %v2353
  %v2417 = vadd.f32 %v2416, %v2354
  %v2418 = vadd.f32 %v2417, %v2355
  %v2419 = vadd.f32 %v2418, %v2356
  %v2420 = vadd.f32 %v2419, %v2357
  %v2421 = vadd.f32 %v2420, %v2358
  %v2422 = vadd.f32 %v2421, %v2359
  %v2423 = vadd.f32 %v2422, %v2360
  %v2424 = vadd.f32 %v2423, %v2361
  %v2425 = vadd.f32 %v2424, %v2362
  %v2426 = vadd.f32 %v2425, %v2363
  %v2427 = vadd.f32 %v2426, %v2364
  %v2428 = vadd.f32 %v2427, %v2365
  %v2429 = vadd.f32 %v2428, %v2366
  %v2430 = vadd.f32 %v2429, %v2367
  %v2431 = vadd.f32 %v2430, %v2368
  %v2432 = vadd.f32 %v2431, %v2369
  %v2433 = vadd.f32 %v2432, %v2370
  %v2434 = vadd.f32 %v2433, %v2371
  %v2435 = vadd.f32 %v2434, %v2372
  %v2436 = vadd.f32 %v2435, %v2373
  %v2437 = vadd.f32 %v2436, %v2374
  %v2438 = vadd.f32 %v2437, %v2375
  %v2439 = vadd.f32 %v2438, %v2376
  %v2440 = vadd.f32 %v2439, %v2377
  %v2441 = vadd.f32 %v2440, %v2378
  %v2442 = vadd.f32 %v2441, %v2379
  %v2443 = vadd.f32 %v2442, %v2380
  %v2444 = vadd.f32 %v2443, %v2381
  %v2445 = vadd.f32 %v2444, %v2382
  %v2446 = vadd.f32 %v2445, %v2383
  %v2447 = vadd.f32 %v2446, %v2384
  %v2448 = vadd.f32 %v2447, %v2385
  %v2449 = vadd.f32 %v2448, %v2386
  %v2450 = vadd.f32 %v2449, %v2387
  %v2451 = vadd.f32 %v2450, %v2388
  %v2452 = vadd.f32 %v2451, %v2389
  %v2453 = vadd.f32 %v2452, %v2390
  %v2454 = vadd.f32 %v2453, %v2391
  %v2455 = vadd.f32 %v2454, %v2392
  %v2456 = vadd.f32 %v2455, %v2393
  %v2457 = vadd.f32 %v2456, %v2394
  %v2458 = vadd.f32 %v2457, %v2395
  %v2459 = vadd.f32 %v2458, %v2396
  %v2460 = vadd.f32 %v2459, %v2397
  %v2461 = vadd.f32 %v2460, %v2398
  %v2462 = vadd.f32 %v2461, %v2399
  %v2463 = vadd.f32 %v2462, %v2400
  %v2464 = vadd.f32 %v2463, %v2401
  %v2465 = vadd.f32 %v2464, %v2402
  %v2466 = vrot.slane %v2465, 4
  %v2467 = vadd.f32 %v2465, %v2466
  %v2468 = vrot.slane %v2467, 2
  %v2469 = vadd.f32 %v2467, %v2468
  %v2470 = vrot.slane %v2469, 1
  %v2471 = vadd.f32 %v2469, %v2470
  %v2472 = vmul.f32 %v2471, 0.001953125
  %v2473 = vmax.f32 %v2472, 0.0
  %v2474 = vadd.f32 %v2473, 1e-05
  %v2475 = vrsqrt.pop %v2474
  %v2476 = vmul.f32 %v2475, %v2474
  %v2477 = vmul.f32 %v2476, %v2475
  %v2478 = vmul.f32 0.5, %v2477
  %v2479 = vsub.f32 1.5, %v2478
  %v2480 = vmul.f32 %v2475, %v2479
  %vm2481 = vweird.f32 %v2474
  %vm2482 = vweird.f32 %v2475
  %vm2483 = vmor %vm2481, %vm2482
  %v2484 = vsel %vm2483, %v2475, %v2480
  %v2485 = vmul.f32 %v14, %v2484
  %v2486 = vmul.f32 %v2274, %v2485
  %v2488 = vrot.slane %v2486, 7
  %v2490 = vsub.f32 %v14, %v2488
  %v2491 = vperm.slane %v2485, 1
  %v2492 = vmul.f32 %v2046, %v2491
  %v2493 = vmul.f32 %v2048, %v2491
  %v2494 = vmul.f32 %v2051, %v2491
  %v2495 = vmul.f32 %v2053, %v2491
  %v2496 = vmul.f32 %v2056, %v2491
  %v2497 = vmul.f32 %v2058, %v2491
  %v2498 = vmul.f32 %v2061, %v2491
  %v2499 = vmul.f32 %v2063, %v2491
  %v2500 = vmul.f32 %v2066, %v2491
  %v2501 = vmul.f32 %v2068, %v2491
  %v2502 = vmul.f32 %v2071, %v2491
  %v2503 = vmul.f32 %v2073, %v2491
  %v2504 = vmul.f32 %v2076, %v2491
  %v2505 = vmul.f32 %v2078, %v2491
  %v2506 = vmul.f32 %v2081, %v2491
  %v2507 = vmul.f32 %v2083, %v2491
  %v2508 = vmul.f32 %v2086, %v2491
  %v2509 = vmul.f32 %v2088, %v2491
  %v2510 = vmul.f32 %v2091, %v2491
  %v2511 = vmul.f32 %v2093, %v2491
  %v2512 = vmul.f32 %v2096, %v2491
  %v2513 = vmul.f32 %v2098, %v2491
  %v2514 = vmul.f32 %v2101, %v2491
  %v2515 = vmul.f32 %v2103, %v2491
  %v2516 = vmul.f32 %v2106, %v2491
  %v2517 = vmul.f32 %v2108, %v2491
  %v2518 = vmul.f32 %v2111, %v2491
  %v2519 = vmul.f32 %v2113, %v2491
  %v2520 = vmul.f32 %v2116, %v2491
  %v2521 = vmul.f32 %v2118, %v2491
  %v2522 = vmul.f32 %v2121, %v2491
  %v2523 = vmul.f32 %v2123, %v2491
  %v2524 = vmul.f32 %v2126, %v2491
  %v2525 = vmul.f32 %v2128, %v2491
  %v2526 = vmul.f32 %v2131, %v2491
  %v2527 = vmul.f32 %v2133, %v2491
  %v2528 = vmul.f32 %v2136, %v2491
  %v2529 = vmul.f32 %v2138, %v2491
  %v2530 = vmul.f32 %v2141, %v2491
  %v2531 = vmul.f32 %v2143, %v2491
  %v2532 = vmul.f32 %v2146, %v2491
  %v2533 = vmul.f32 %v2148, %v2491
  %v2534 = vmul.f32 %v2151, %v2491
  %v2535 = vmul.f32 %v2153, %v2491
  %v2536 = vmul.f32 %v2156, %v2491
  %v2537 = vmul.f32 %v2158, %v2491
  %v2538 = vmul.f32 %v2161, %v2491
  %v2539 = vmul.f32 %v2163, %v2491
  %v2540 = vmul.f32 %v2166, %v2491
  %v2541 = vmul.f32 %v2168, %v2491
  %v2542 = vmul.f32 %v2171, %v2491
  %v2543 = vmul.f32 %v2173, %v2491
  %v2544 = vmul.f32 %v2176, %v2491
  %v2545 = vmul.f32 %v2178, %v2491
  %v2546 = vmul.f32 %v2181, %v2491
  %v2547 = vmul.f32 %v2183, %v2491
  %v2548 = vmul.f32 %v2186, %v2491
  %v2549 = vmul.f32 %v2188, %v2491
  %v2550 = vmul.f32 %v2191, %v2491
  %v2551 = vmul.f32 %v2193, %v2491
  %v2552 = vmul.f32 %v2196, %v2491
  %v2553 = vmul.f32 %v2198, %v2491
  %v2554 = vmul.f32 %v2201, %v2491
  %v2555 = vmul.f32 %v2203, %v2491
  %v2556 = vperm.slane %v2490, 2
  %v2557 = vadd.f32 %v2492, %v2556
  %v2558 = vadd.f32 %v2493, %v2556
  %v2559 = vadd.f32 %v2494, %v2556
  %v2560 = vadd.f32 %v2495, %v2556
  %v2561 = vadd.f32 %v2496, %v2556
  %v2562 = vadd.f32 %v2497, %v2556
  %v2563 = vadd.f32 %v2498, %v2556
  %v2564 = vadd.f32 %v2499, %v2556
  %v2565 = vadd.f32 %v2500, %v2556
  %v2566 = vadd.f32 %v2501, %v2556
  %v2567 = vadd.f32 %v2502, %v2556
  %v2568 = vadd.f32 %v2503, %v2556
  %v2569 = vadd.f32 %v2504, %v2556
  %v2570 = vadd.f32 %v2505, %v2556
  %v2571 = vadd.f32 %v2506, %v2556
  %v2572 = vadd.f32 %v2507, %v2556
  %v2573 = vadd.f32 %v2508, %v2556
  %v2574 = vadd.f32 %v2509, %v2556
  %v2575 = vadd.f32 %v2510, %v2556
  %v2576 = vadd.f32 %v2511, %v2556
  %v2577 = vadd.f32 %v2512, %v2556
  %v2578 = vadd.f32 %v2513, %v2556
  %v2579 = vadd.f32 %v2514, %v2556
  %v2580 = vadd.f32 %v2515, %v2556
  %v2581 = vadd.f32 %v2516, %v2556
  %v2582 = vadd.f32 %v2517, %v2556
  %v2583 = vadd.f32 %v2518, %v2556
  %v2584 = vadd.f32 %v2519, %v2556
  %v2585 = vadd.f32 %v2520, %v2556
  %v2586 = vadd.f32 %v2521, %v2556
  %v2587 = vadd.f32 %v2522, %v2556
  %v2588 = vadd.f32 %v2523, %v2556
  %v2589 = vadd.f32 %v2524, %v2556
  %v2590 = vadd.f32 %v2525, %v2556
  %v2591 = vadd.f32 %v2526, %v2556
  %v2592 = vadd.f32 %v2527, %v2556
  %v2593 = vadd.f32 %v2528, %v2556
  %v2594 = vadd.f32 %v2529, %v2556
  %v2595 = vadd.f32 %v2530, %v2556
  %v2596 = vadd.f32 %v2531, %v2556
  %v2597 = vadd.f32 %v2532, %v2556
  %v2598 = vadd.f32 %v2533, %v2556
  %v2599 = vadd.f32 %v2534, %v2556
  %v2600 = vadd.f32 %v2535, %v2556
  %v2601 = vadd.f32 %v2536, %v2556
  %v2602 = vadd.f32 %v2537, %v2556
  %v2603 = vadd.f32 %v2538, %v2556
  %v2604 = vadd.f32 %v2539, %v2556
  %v2605 = vadd.f32 %v2540, %v2556
  %v2606 = vadd.f32 %v2541, %v2556
  %v2607 = vadd.f32 %v2542, %v2556
  %v2608 = vadd.f32 %v2543, %v2556
  %v2609 = vadd.f32 %v2544, %v2556
  %v2610 = vadd.f32 %v2545, %v2556
  %v2611 = vadd.f32 %v2546, %v2556
  %v2612 = vadd.f32 %v2547, %v2556
  %v2613 = vadd.f32 %v2548, %v2556
  %v2614 = vadd.f32 %v2549, %v2556
  %v2615 = vadd.f32 %v2550, %v2556
  %v2616 = vadd.f32 %v2551, %v2556
  %v2617 = vadd.f32 %v2552, %v2556
  %v2618 = vadd.f32 %v2553, %v2556
  %v2619 = vadd.f32 %v2554, %v2556
  %v2620 = vadd.f32 %v2555, %v2556
  %v2621 = vmax.f32 %v2557, 0.0
  %v2622 = vmax.f32 %v2558, 0.0
  %v2623 = vmax.f32 %v2559, 0.0
  %v2624 = vmax.f32 %v2560, 0.0
  %v2625 = vmax.f32 %v2561, 0.0
  %v2626 = vmax.f32 %v2562, 0.0
  %v2627 = vmax.f32 %v2563, 0.0
  %v2628 = vmax.f32 %v2564, 0.0
  %v2629 = vmax.f32 %v2565, 0.0
  %v2630 = vmax.f32 %v2566, 0.0
  %v2631 = vmax.f32 %v2567, 0.0
  %v2632 = vmax.f32 %v2568, 0.0
  %v2633 = vmax.f32 %v2569, 0.0
  %v2634 = vmax.f32 %v2570, 0.0
  %v2635 = vmax.f32 %v2571, 0.0
  %v2636 = vmax.f32 %v2572, 0.0
  %v2637 = vmax.f32 %v2573, 0.0
  %v2638 = vmax.f32 %v2574, 0.0
  %v2639 = vmax.f32 %v2575, 0.0
  %v2640 = vmax.f32 %v2576, 0.0
  %v2641 = vmax.f32 %v2577, 0.0
  %v2642 = vmax.f32 %v2578, 0.0
  %v2643 = vmax.f32 %v2579, 0.0
  %v2644 = vmax.f32 %v2580, 0.0
  %v2645 = vmax.f32 %v2581, 0.0
  %v2646 = vmax.f32 %v2582, 0.0
  %v2647 = vmax.f32 %v2583, 0.0
  %v2648 = vmax.f32 %v2584, 0.0
  %v2649 = vmax.f32 %v2585, 0.0
  %v2650 = vmax.f32 %v2586, 0.0
  %v2651 = vmax.f32 %v2587, 0.0
  %v2652 = vmax.f32 %v2588, 0.0
  %v2653 = vmax.f32 %v2589, 0.0
  %v2654 = vmax.f32 %v2590, 0.0
  %v2655 = vmax.f32 %v2591, 0.0
  %v2656 = vmax.f32 %v2592, 0.0
  %v2657 = vmax.f32 %v2593, 0.0
  %v2658 = vmax.f32 %v2594, 0.0
  %v2659 = vmax.f32 %v2595, 0.0
  %v2660 = vmax.f32 %v2596, 0.0
  %v2661 = vmax.f32 %v2597, 0.0
  %v2662 = vmax.f32 %v2598, 0.0
  %v2663 = vmax.f32 %v2599, 0.0
  %v2664 = vmax.f32 %v2600, 0.0
  %v2665 = vmax.f32 %v2601, 0.0
  %v2666 = vmax.f32 %v2602, 0.0
  %v2667 = vmax.f32 %v2603, 0.0
  %v2668 = vmax.f32 %v2604, 0.0
  %v2669 = vmax.f32 %v2605, 0.0
  %v2670 = vmax.f32 %v2606, 0.0
  %v2671 = vmax.f32 %v2607, 0.0
  %v2672 = vmax.f32 %v2608, 0.0
  %v2673 = vmax.f32 %v2609, 0.0
  %v2674 = vmax.f32 %v2610, 0.0
  %v2675 = vmax.f32 %v2611, 0.0
  %v2676 = vmax.f32 %v2612, 0.0
  %v2677 = vmax.f32 %v2613, 0.0
  %v2678 = vmax.f32 %v2614, 0.0
  %v2679 = vmax.f32 %v2615, 0.0
  %v2680 = vmax.f32 %v2616, 0.0
  %v2681 = vmax.f32 %v2617, 0.0
  %v2682 = vmax.f32 %v2618, 0.0
  %v2683 = vmax.f32 %v2619, 0.0
  %v2684 = vmax.f32 %v2620, 0.0
  %v2685 = vpack.c.bf16 %v2621, %v2621
  %v2686 = vpack.c.bf16 %v2622, %v2622
  %v2687 = vpack.c.bf16 %v2623, %v2623
  %v2688 = vpack.c.bf16 %v2624, %v2624
  %v2689 = vpack.c.bf16 %v2625, %v2625
  %v2690 = vpack.c.bf16 %v2626, %v2626
  %v2691 = vpack.c.bf16 %v2627, %v2627
  %v2692 = vpack.c.bf16 %v2628, %v2628
  %v2693 = vpack.c.bf16 %v2629, %v2629
  %v2694 = vpack.c.bf16 %v2630, %v2630
  %v2695 = vpack.c.bf16 %v2631, %v2631
  %v2696 = vpack.c.bf16 %v2632, %v2632
  %v2697 = vpack.c.bf16 %v2633, %v2633
  %v2698 = vpack.c.bf16 %v2634, %v2634
  %v2699 = vpack.c.bf16 %v2635, %v2635
  %v2700 = vpack.c.bf16 %v2636, %v2636
  %v2701 = vpack.c.bf16 %v2637, %v2637
  %v2702 = vpack.c.bf16 %v2638, %v2638
  %v2703 = vpack.c.bf16 %v2639, %v2639
  %v2704 = vpack.c.bf16 %v2640, %v2640
  %v2705 = vpack.c.bf16 %v2641, %v2641
  %v2706 = vpack.c.bf16 %v2642, %v2642
  %v2707 = vpack.c.bf16 %v2643, %v2643
  %v2708 = vpack.c.bf16 %v2644, %v2644
  %v2709 = vpack.c.bf16 %v2645, %v2645
  %v2710 = vpack.c.bf16 %v2646, %v2646
  %v2711 = vpack.c.bf16 %v2647, %v2647
  %v2712 = vpack.c.bf16 %v2648, %v2648
  %v2713 = vpack.c.bf16 %v2649, %v2649
  %v2714 = vpack.c.bf16 %v2650, %v2650
  %v2715 = vpack.c.bf16 %v2651, %v2651
  %v2716 = vpack.c.bf16 %v2652, %v2652
  %v2717 = vpack.c.bf16 %v2653, %v2653
  %v2718 = vpack.c.bf16 %v2654, %v2654
  %v2719 = vpack.c.bf16 %v2655, %v2655
  %v2720 = vpack.c.bf16 %v2656, %v2656
  %v2721 = vpack.c.bf16 %v2657, %v2657
  %v2722 = vpack.c.bf16 %v2658, %v2658
  %v2723 = vpack.c.bf16 %v2659, %v2659
  %v2724 = vpack.c.bf16 %v2660, %v2660
  %v2725 = vpack.c.bf16 %v2661, %v2661
  %v2726 = vpack.c.bf16 %v2662, %v2662
  %v2727 = vpack.c.bf16 %v2663, %v2663
  %v2728 = vpack.c.bf16 %v2664, %v2664
  %v2729 = vpack.c.bf16 %v2665, %v2665
  %v2730 = vpack.c.bf16 %v2666, %v2666
  %v2731 = vpack.c.bf16 %v2667, %v2667
  %v2732 = vpack.c.bf16 %v2668, %v2668
  %v2733 = vpack.c.bf16 %v2669, %v2669
  %v2734 = vpack.c.bf16 %v2670, %v2670
  %v2735 = vpack.c.bf16 %v2671, %v2671
  %v2736 = vpack.c.bf16 %v2672, %v2672
  %v2737 = vpack.c.bf16 %v2673, %v2673
  %v2738 = vpack.c.bf16 %v2674, %v2674
  %v2739 = vpack.c.bf16 %v2675, %v2675
  %v2740 = vpack.c.bf16 %v2676, %v2676
  %v2741 = vpack.c.bf16 %v2677, %v2677
  %v2742 = vpack.c.bf16 %v2678, %v2678
  %v2743 = vpack.c.bf16 %v2679, %v2679
  %v2744 = vpack.c.bf16 %v2680, %v2680
  %v2745 = vpack.c.bf16 %v2681, %v2681
  %v2746 = vpack.c.bf16 %v2682, %v2682
  %v2747 = vpack.c.bf16 %v2683, %v2683
  %v2748 = vpack.c.bf16 %v2684, %v2684
  %2749 = vst [vmem:[%s3] sm:$0xf] %v2685
  %2750 = vst [vmem:[%s3 + $0x4] sm:$0xf] %v2686
  %2751 = vst [vmem:[%s3 + $0x8] sm:$0xf] %v2687
  %2752 = vst [vmem:[%s3 + $0xc] sm:$0xf] %v2688
  %2753 = vst [vmem:[%s3 + $0x10] sm:$0xf] %v2689
  %2754 = vst [vmem:[%s3 + $0x14] sm:$0xf] %v2690
  %2755 = vst [vmem:[%s3 + $0x18] sm:$0xf] %v2691
  %2756 = vst [vmem:[%s3 + $0x1c] sm:$0xf] %v2692
  %2757 = vst [vmem:[%s3 + $0x20] sm:$0xf] %v2693
  %2758 = vst [vmem:[%s3 + $0x24] sm:$0xf] %v2694
  %2759 = vst [vmem:[%s3 + $0x28] sm:$0xf] %v2695
  %2760 = vst [vmem:[%s3 + $0x2c] sm:$0xf] %v2696
  %2761 = vst [vmem:[%s3 + $0x30] sm:$0xf] %v2697
  %2762 = vst [vmem:[%s3 + $0x34] sm:$0xf] %v2698
  %2763 = vst [vmem:[%s3 + $0x38] sm:$0xf] %v2699
  %2764 = vst [vmem:[%s3 + $0x3c] sm:$0xf] %v2700
  %2765 = vst [vmem:[%s3 + $0x40] sm:$0xf] %v2701
  %2766 = vst [vmem:[%s3 + $0x44] sm:$0xf] %v2702
  %2767 = vst [vmem:[%s3 + $0x48] sm:$0xf] %v2703
  %2768 = vst [vmem:[%s3 + $0x4c] sm:$0xf] %v2704
  %2769 = vst [vmem:[%s3 + $0x50] sm:$0xf] %v2705
  %2770 = vst [vmem:[%s3 + $0x54] sm:$0xf] %v2706
  %2771 = vst [vmem:[%s3 + $0x58] sm:$0xf] %v2707
  %2772 = vst [vmem:[%s3 + $0x5c] sm:$0xf] %v2708
  %2773 = vst [vmem:[%s3 + $0x60] sm:$0xf] %v2709
  %2774 = vst [vmem:[%s3 + $0x64] sm:$0xf] %v2710
  %2775 = vst [vmem:[%s3 + $0x68] sm:$0xf] %v2711
  %2776 = vst [vmem:[%s3 + $0x6c] sm:$0xf] %v2712
  %2777 = vst [vmem:[%s3 + $0x70] sm:$0xf] %v2713
  %2778 = vst [vmem:[%s3 + $0x74] sm:$0xf] %v2714
  %2779 = vst [vmem:[%s3 + $0x78] sm:$0xf] %v2715
  %2780 = vst [vmem:[%s3 + $0x7c] sm:$0xf] %v2716
  %2781 = vst [vmem:[%s3 + $0x80] sm:$0xf] %v2717
  %2782 = vst [vmem:[%s3 + $0x84] sm:$0xf] %v2718
  %2783 = vst [vmem:[%s3 + $0x88] sm:$0xf] %v2719
  %2784 = vst [vmem:[%s3 + $0x8c] sm:$0xf] %v2720
  %2785 = vst [vmem:[%s3 + $0x90] sm:$0xf] %v2721
  %2786 = vst [vmem:[%s3 + $0x94] sm:$0xf] %v2722
  %2787 = vst [vmem:[%s3 + $0x98] sm:$0xf] %v2723
  %2788 = vst [vmem:[%s3 + $0x9c] sm:$0xf] %v2724
  %2789 = vst [vmem:[%s3 + $0xa0] sm:$0xf] %v2725
  %2790 = vst [vmem:[%s3 + $0xa4] sm:$0xf] %v2726
  %2791 = vst [vmem:[%s3 + $0xa8] sm:$0xf] %v2727
  %2792 = vst [vmem:[%s3 + $0xac] sm:$0xf] %v2728
  %2793 = vst [vmem:[%s3 + $0xb0] sm:$0xf] %v2729
  %2794 = vst [vmem:[%s3 + $0xb4] sm:$0xf] %v2730
  %2795 = vst [vmem:[%s3 + $0xb8] sm:$0xf] %v2731
  %2796 = vst [vmem:[%s3 + $0xbc] sm:$0xf] %v2732
  %2797 = vst [vmem:[%s3 + $0xc0] sm:$0xf] %v2733
  %2798 = vst [vmem:[%s3 + $0xc4] sm:$0xf] %v2734
  %2799 = vst [vmem:[%s3 + $0xc8] sm:$0xf] %v2735
  %2800 = vst [vmem:[%s3 + $0xcc] sm:$0xf] %v2736
  %2801 = vst [vmem:[%s3 + $0xd0] sm:$0xf] %v2737
  %2802 = vst [vmem:[%s3 + $0xd4] sm:$0xf] %v2738
  %2803 = vst [vmem:[%s3 + $0xd8] sm:$0xf] %v2739
  %2804 = vst [vmem:[%s3 + $0xdc] sm:$0xf] %v2740
  %2805 = vst [vmem:[%s3 + $0xe0] sm:$0xf] %v2741
  %2806 = vst [vmem:[%s3 + $0xe4] sm:$0xf] %v2742
  %2807 = vst [vmem:[%s3 + $0xe8] sm:$0xf] %v2743
  %2808 = vst [vmem:[%s3 + $0xec] sm:$0xf] %v2744
  %2809 = vst [vmem:[%s3 + $0xf0] sm:$0xf] %v2745
  %2810 = vst [vmem:[%s3 + $0xf4] sm:$0xf] %v2746
  %2811 = vst [vmem:[%s3 + $0xf8] sm:$0xf] %v2747
  %2812 = vst [vmem:[%s3 + $0xfc] sm:$0xf] %v2748
  // Predicated region
  $region14: #{colorization_forward.26} parent=0 // pred_check
    _
  $region15: #{colorization_forward.26} parent=0 // pred_check_branch
    %2814 = sbr.rel (0) target = $region17
  $region16: #{colorization_forward.26} parent=0 // pred_region
    _
  $region17: #{colorization_forward.26} parent=0 // pred_fallthru
    _
  // Predicated region
  $region18: #{colorization_forward.26} parent=0 // pred_check
    _
  $region19: #{colorization_forward.26} parent=0 // pred_check_branch
    %2816 = sbr.rel (0) target = $region21
  $region20: #{colorization_forward.26} parent=0 // pred_region
    _
  $region21: #{colorization_forward.26} parent=0 // pred_fallthru
    _

// kernel: colorization_forward.27
$region0: #{colorization_forward.27}
  #allocation0 [shape = 'u32[]', space=smem, size = 0x4, offset = 0x4, fixed_abs, tag = 'smem constant byte address 0x4 - core index']
  #allocation1 [shape = 'u32[72,128]{1,0:T(1,128)}', space=vmem, size = 0x9000, scoped, tag = 'internal scratch']
  %s0 = inlined_call_operand.vmem [shape: bf16[512,384], index: 0, kind: input, shape index: {}]
  %s1 = inlined_call_operand.vmem [shape: bf16[384,128], index: 1, kind: input, shape index: {}]
  %s2 = inlined_call_operand.vmem [shape: f32[8,128], index: 2, kind: input, shape index: {}]
  %s3 = inlined_call_operand.vmem [shape: f32[512,128], index: 3, kind: output, shape index: {}]
  %s4 = sld [smem:[#allocation0]]
  $region22: #{colorization_forward.27} parent=0
    _
  %s6 = ssub.s32 1, %s4
  %s7 = scalar_select 0, %s6, %s4
  // Predicated region
  $region2: #{colorization_forward.27} parent=0 // pred_check
    _
  $region3: #{colorization_forward.27} parent=0 // pred_check_branch
    %9 = sbr.rel (0) target = $region5
  $region4: #{colorization_forward.27} parent=0 // pred_region
    _
  $region5: #{colorization_forward.27} parent=0 // pred_fallthru
    _
  // Predicated region
  $region6: #{colorization_forward.27} parent=0 // pred_check
    _
  $region7: #{colorization_forward.27} parent=0 // pred_check_branch
    %11 = sbr.rel (0) target = $region9
  $region8: #{colorization_forward.27} parent=0 // pred_region
    _
  $region9: #{colorization_forward.27} parent=0 // pred_fallthru
    _
  // Predicated region
  $region10: #{colorization_forward.27} parent=0 // pred_check
    _
  $region11: #{colorization_forward.27} parent=0 // pred_check_branch
    %13 = sbr.rel (0) target = $region13
  $region12: #{colorization_forward.27} parent=0 // pred_region
    _
  $region13: #{colorization_forward.27} parent=0 // pred_fallthru
    _
  %v14 = vld [vmem:[%s0] sm:$0xff]
  %v15 = vld [vmem:[%s0 + $0x8] sm:$0xf]
  %v16 = vld [vmem:[%s0 + $0xc] sm:$0xff]
  %v17 = vld [vmem:[%s0 + $0x14] sm:$0xf]
  %v18 = vld [vmem:[%s0 + $0x18] sm:$0xff]
  %v19 = vld [vmem:[%s0 + $0x20] sm:$0xf]
  %v20 = vld [vmem:[%s0 + $0x24] sm:$0xff]
  %v21 = vld [vmem:[%s0 + $0x2c] sm:$0xf]
  %v22 = vld [vmem:[%s0 + $0x30] sm:$0xff]
  %v23 = vld [vmem:[%s0 + $0x38] sm:$0xf]
  %v24 = vld [vmem:[%s0 + $0x3c] sm:$0xff]
  %v25 = vld [vmem:[%s0 + $0x44] sm:$0xf]
  %v26 = vld [vmem:[%s0 + $0x48] sm:$0xff]
  %v27 = vld [vmem:[%s0 + $0x50] sm:$0xf]
  %v28 = vld [vmem:[%s0 + $0x54] sm:$0xff]
  %v29 = vld [vmem:[%s0 + $0x5c] sm:$0xf]
  %v30 = vld [vmem:[%s0 + $0x60] sm:$0xff]
  %v31 = vld [vmem:[%s0 + $0x68] sm:$0xf]
  %v32 = vld [vmem:[%s0 + $0x6c] sm:$0xff]
  %v33 = vld [vmem:[%s0 + $0x74] sm:$0xf]
  %v34 = vld [vmem:[%s0 + $0x78] sm:$0xff]
  %v35 = vld [vmem:[%s0 + $0x80] sm:$0xf]
  %v36 = vld [vmem:[%s0 + $0x84] sm:$0xff]
  %v37 = vld [vmem:[%s0 + $0x8c] sm:$0xf]
  %v38 = vld [vmem:[%s0 + $0x90] sm:$0xff]
  %v39 = vld [vmem:[%s0 + $0x98] sm:$0xf]
  %v40 = vld [vmem:[%s0 + $0x9c] sm:$0xff]
  %v41 = vld [vmem:[%s0 + $0xa4] sm:$0xf]
  %v42 = vld [vmem:[%s0 + $0xa8] sm:$0xff]
  %v43 = vld [vmem:[%s0 + $0xb0] sm:$0xf]
  %v44 = vld [vmem:[%s0 + $0xb4] sm:$0xff]
  %v45 = vld [vmem:[%s0 + $0xbc] sm:$0xf]
  %v46 = vld [vmem:[%s0 + $0xc0] sm:$0xff]
  %v47 = vld [vmem:[%s0 + $0xc8] sm:$0xf]
  %v48 = vld [vmem:[%s0 + $0xcc] sm:$0xff]
  %v49 = vld [vmem:[%s0 + $0xd4] sm:$0xf]
  %v50 = vld [vmem:[%s0 + $0xd8] sm:$0xff]
  %v51 = vld [vmem:[%s0 + $0xe0] sm:$0xf]
  %v52 = vld [vmem:[%s0 + $0xe4] sm:$0xff]
  %v53 = vld [vmem:[%s0 + $0xec] sm:$0xf]
  %v54 = vld [vmem:[%s0 + $0xf0] sm:$0xff]
  %v55 = vld [vmem:[%s0 + $0xf8] sm:$0xf]
  %v56 = vld [vmem:[%s0 + $0xfc] sm:$0xff]
  %v57 = vld [vmem:[%s0 + $0x104] sm:$0xf]
  %v58 = vld [vmem:[%s0 + $0x108] sm:$0xff]
  %v59 = vld [vmem:[%s0 + $0x110] sm:$0xf]
  %v60 = vld [vmem:[%s0 + $0x114] sm:$0xff]
  %v61 = vld [vmem:[%s0 + $0x11c] sm:$0xf]
  %v62 = vld [vmem:[%s0 + $0x120] sm:$0xff]
  %v63 = vld [vmem:[%s0 + $0x128] sm:$0xf]
  %v64 = vld [vmem:[%s0 + $0x12c] sm:$0xff]
  %v65 = vld [vmem:[%s0 + $0x134] sm:$0xf]
  %v66 = vld [vmem:[%s0 + $0x138] sm:$0xff]
  %v67 = vld [vmem:[%s0 + $0x140] sm:$0xf]
  %v68 = vld [vmem:[%s0 + $0x144] sm:$0xff]
  %v69 = vld [vmem:[%s0 + $0x14c] sm:$0xf]
  %v70 = vld [vmem:[%s0 + $0x150] sm:$0xff]
  %v71 = vld [vmem:[%s0 + $0x158] sm:$0xf]
  %v72 = vld [vmem:[%s0 + $0x15c] sm:$0xff]
  %v73 = vld [vmem:[%s0 + $0x164] sm:$0xf]
  %v74 = vld [vmem:[%s0 + $0x168] sm:$0xff]
  %v75 = vld [vmem:[%s0 + $0x170] sm:$0xf]
  %v76 = vld [vmem:[%s0 + $0x174] sm:$0xff]
  %v77 = vld [vmem:[%s0 + $0x17c] sm:$0xf]
  %v78 = vld [vmem:[%s0 + $0x180] sm:$0xff]
  %v79 = vld [vmem:[%s0 + $0x188] sm:$0xf]
  %v80 = vld [vmem:[%s0 + $0x18c] sm:$0xff]
  %v81 = vld [vmem:[%s0 + $0x194] sm:$0xf]
  %v82 = vld [vmem:[%s0 + $0x198] sm:$0xff]
  %v83 = vld [vmem:[%s0 + $0x1a0] sm:$0xf]
  %v84 = vld [vmem:[%s0 + $0x1a4] sm:$0xff]
  %v85 = vld [vmem:[%s0 + $0x1ac] sm:$0xf]
  %v86 = vld [vmem:[%s0 + $0x1b0] sm:$0xff]
  %v87 = vld [vmem:[%s0 + $0x1b8] sm:$0xf]
  %v88 = vld [vmem:[%s0 + $0x1bc] sm:$0xff]
  %v89 = vld [vmem:[%s0 + $0x1c4] sm:$0xf]
  %v90 = vld [vmem:[%s0 + $0x1c8] sm:$0xff]
  %v91 = vld [vmem:[%s0 + $0x1d0] sm:$0xf]
  %v92 = vld [vmem:[%s0 + $0x1d4] sm:$0xff]
  %v93 = vld [vmem:[%s0 + $0x1dc] sm:$0xf]
  %v94 = vld [vmem:[%s0 + $0x1e0] sm:$0xff]
  %v95 = vld [vmem:[%s0 + $0x1e8] sm:$0xf]
  %v96 = vld [vmem:[%s0 + $0x1ec] sm:$0xff]
  %v97 = vld [vmem:[%s0 + $0x1f4] sm:$0xf]
  %v98 = vld [vmem:[%s0 + $0x1f8] sm:$0xff]
  %v99 = vld [vmem:[%s0 + $0x200] sm:$0xf]
  %v100 = vld [vmem:[%s0 + $0x204] sm:$0xff]
  %v101 = vld [vmem:[%s0 + $0x20c] sm:$0xf]
  %v102 = vld [vmem:[%s0 + $0x210] sm:$0xff]
  %v103 = vld [vmem:[%s0 + $0x218] sm:$0xf]
  %v104 = vld [vmem:[%s0 + $0x21c] sm:$0xff]
  %v105 = vld [vmem:[%s0 + $0x224] sm:$0xf]
  %v106 = vld [vmem:[%s0 + $0x228] sm:$0xff]
  %v107 = vld [vmem:[%s0 + $0x230] sm:$0xf]
  %v108 = vld [vmem:[%s0 + $0x234] sm:$0xff]
  %v109 = vld [vmem:[%s0 + $0x23c] sm:$0xf]
  %v110 = vld [vmem:[%s0 + $0x240] sm:$0xff]
  %v111 = vld [vmem:[%s0 + $0x248] sm:$0xf]
  %v112 = vld [vmem:[%s0 + $0x24c] sm:$0xff]
  %v113 = vld [vmem:[%s0 + $0x254] sm:$0xf]
  %v114 = vld [vmem:[%s0 + $0x258] sm:$0xff]
  %v115 = vld [vmem:[%s0 + $0x260] sm:$0xf]
  %v116 = vld [vmem:[%s0 + $0x264] sm:$0xff]
  %v117 = vld [vmem:[%s0 + $0x26c] sm:$0xf]
  %v118 = vld [vmem:[%s0 + $0x270] sm:$0xff]
  %v119 = vld [vmem:[%s0 + $0x278] sm:$0xf]
  %v120 = vld [vmem:[%s0 + $0x27c] sm:$0xff]
  %v121 = vld [vmem:[%s0 + $0x284] sm:$0xf]
  %v122 = vld [vmem:[%s0 + $0x288] sm:$0xff]
  %v123 = vld [vmem:[%s0 + $0x290] sm:$0xf]
  %v124 = vld [vmem:[%s0 + $0x294] sm:$0xff]
  %v125 = vld [vmem:[%s0 + $0x29c] sm:$0xf]
  %v126 = vld [vmem:[%s0 + $0x2a0] sm:$0xff]
  %v127 = vld [vmem:[%s0 + $0x2a8] sm:$0xf]
  %v128 = vld [vmem:[%s0 + $0x2ac] sm:$0xff]
  %v129 = vld [vmem:[%s0 + $0x2b4] sm:$0xf]
  %v130 = vld [vmem:[%s0 + $0x2b8] sm:$0xff]
  %v131 = vld [vmem:[%s0 + $0x2c0] sm:$0xf]
  %v132 = vld [vmem:[%s0 + $0x2c4] sm:$0xff]
  %v133 = vld [vmem:[%s0 + $0x2cc] sm:$0xf]
  %v134 = vld [vmem:[%s0 + $0x2d0] sm:$0xff]
  %v135 = vld [vmem:[%s0 + $0x2d8] sm:$0xf]
  %v136 = vld [vmem:[%s0 + $0x2dc] sm:$0xff]
  %v137 = vld [vmem:[%s0 + $0x2e4] sm:$0xf]
  %v138 = vld [vmem:[%s0 + $0x2e8] sm:$0xff]
  %v139 = vld [vmem:[%s0 + $0x2f0] sm:$0xf]
  %v140 = vld [vmem:[%s0 + $0x2f4] sm:$0xff]
  %v141 = vld [vmem:[%s0 + $0x2fc] sm:$0xf]
  %v142 = vld [vmem:[%s1] sm:$0xf]
  %v143 = vld [vmem:[%s1 + $0x4] sm:$0xf]
  %v144 = vld [vmem:[%s1 + $0x8] sm:$0xf]
  %v145 = vld [vmem:[%s1 + $0xc] sm:$0xf]
  %v146 = vld [vmem:[%s1 + $0x10] sm:$0xf]
  %v147 = vld [vmem:[%s1 + $0x14] sm:$0xf]
  %v148 = vld [vmem:[%s1 + $0x18] sm:$0xf]
  %v149 = vld [vmem:[%s1 + $0x1c] sm:$0xf]
  %v150 = vld [vmem:[%s1 + $0x20] sm:$0xf]
  %v151 = vld [vmem:[%s1 + $0x24] sm:$0xf]
  %v152 = vld [vmem:[%s1 + $0x28] sm:$0xf]
  %v153 = vld [vmem:[%s1 + $0x2c] sm:$0xf]
  %v154 = vld [vmem:[%s1 + $0x30] sm:$0xf]
  %v155 = vld [vmem:[%s1 + $0x34] sm:$0xf]
  %v156 = vld [vmem:[%s1 + $0x38] sm:$0xf]
  %v157 = vld [vmem:[%s1 + $0x3c] sm:$0xf]
  %v158 = vld [vmem:[%s1 + $0x40] sm:$0xf]
  %v159 = vld [vmem:[%s1 + $0x44] sm:$0xf]
  %v160 = vld [vmem:[%s1 + $0x48] sm:$0xf]
  %v161 = vld [vmem:[%s1 + $0x4c] sm:$0xf]
  %v162 = vld [vmem:[%s1 + $0x50] sm:$0xf]
  %v163 = vld [vmem:[%s1 + $0x54] sm:$0xf]
  %v164 = vld [vmem:[%s1 + $0x58] sm:$0xf]
  %v165 = vld [vmem:[%s1 + $0x5c] sm:$0xf]
  %v166 = vld [vmem:[%s1 + $0x60] sm:$0xf]
  %v167 = vld [vmem:[%s1 + $0x64] sm:$0xf]
  %v168 = vld [vmem:[%s1 + $0x68] sm:$0xf]
  %v169 = vld [vmem:[%s1 + $0x6c] sm:$0xf]
  %v170 = vld [vmem:[%s1 + $0x70] sm:$0xf]
  %v171 = vld [vmem:[%s1 + $0x74] sm:$0xf]
  %v172 = vld [vmem:[%s1 + $0x78] sm:$0xf]
  %v173 = vld [vmem:[%s1 + $0x7c] sm:$0xf]
  %v174 = vld [vmem:[%s1 + $0x80] sm:$0xf]
  %v175 = vld [vmem:[%s1 + $0x84] sm:$0xf]
  %v176 = vld [vmem:[%s1 + $0x88] sm:$0xf]
  %v177 = vld [vmem:[%s1 + $0x8c] sm:$0xf]
  %v178 = vld [vmem:[%s1 + $0x90] sm:$0xf]
  %v179 = vld [vmem:[%s1 + $0x94] sm:$0xf]
  %v180 = vld [vmem:[%s1 + $0x98] sm:$0xf]
  %v181 = vld [vmem:[%s1 + $0x9c] sm:$0xf]
  %v182 = vld [vmem:[%s1 + $0xa0] sm:$0xf]
  %v183 = vld [vmem:[%s1 + $0xa4] sm:$0xf]
  %v184 = vld [vmem:[%s1 + $0xa8] sm:$0xf]
  %v185 = vld [vmem:[%s1 + $0xac] sm:$0xf]
  %v186 = vld [vmem:[%s1 + $0xb0] sm:$0xf]
  %v187 = vld [vmem:[%s1 + $0xb4] sm:$0xf]
  %v188 = vld [vmem:[%s1 + $0xb8] sm:$0xf]
  %v189 = vld [vmem:[%s1 + $0xbc] sm:$0xf]
  %v190 = vld [vmem:[%s2] sm:$0x1]
  %v191 = vperm.slane %v190, 0
  %v320 = vunpack.c.l.b16 %v14
  %v321 = vunpack.c.h.b16 %v14
  %v322 = vunpack.c.l.b16 %v15
  %v323 = vunpack.c.l.b16 %v16
  %v324 = vunpack.c.h.b16 %v16
  %v325 = vunpack.c.l.b16 %v17
  %v326 = vunpack.c.l.b16 %v18
  %v327 = vunpack.c.h.b16 %v18
  %v328 = vunpack.c.l.b16 %v19
  %v329 = vunpack.c.l.b16 %v20
  %v330 = vunpack.c.h.b16 %v20
  %v331 = vunpack.c.l.b16 %v21
  %v332 = vunpack.c.l.b16 %v22
  %v333 = vunpack.c.h.b16 %v22
  %v334 = vunpack.c.l.b16 %v23
  %v335 = vunpack.c.l.b16 %v24
  %v336 = vunpack.c.h.b16 %v24
  %v337 = vunpack.c.l.b16 %v25
  %v338 = vunpack.c.l.b16 %v26
  %v339 = vunpack.c.h.b16 %v26
  %v340 = vunpack.c.l.b16 %v27
  %v341 = vunpack.c.l.b16 %v28
  %v342 = vunpack.c.h.b16 %v28
  %v343 = vunpack.c.l.b16 %v29
  %v344 = vunpack.c.l.b16 %v30
  %v345 = vunpack.c.h.b16 %v30
  %v346 = vunpack.c.l.b16 %v31
  %v347 = vunpack.c.l.b16 %v32
  %v348 = vunpack.c.h.b16 %v32
  %v349 = vunpack.c.l.b16 %v33
  %v350 = vunpack.c.l.b16 %v34
  %v351 = vunpack.c.h.b16 %v34
  %v352 = vunpack.c.l.b16 %v35
  %v353 = vunpack.c.l.b16 %v36
  %v354 = vunpack.c.h.b16 %v36
  %v355 = vunpack.c.l.b16 %v37
  %v356 = vunpack.c.l.b16 %v38
  %v357 = vunpack.c.h.b16 %v38
  %v358 = vunpack.c.l.b16 %v39
  %v359 = vunpack.c.l.b16 %v40
  %v360 = vunpack.c.h.b16 %v40
  %v361 = vunpack.c.l.b16 %v41
  %v362 = vunpack.c.l.b16 %v42
  %v363 = vunpack.c.h.b16 %v42
  %v364 = vunpack.c.l.b16 %v43
  %v365 = vunpack.c.l.b16 %v44
  %v366 = vunpack.c.h.b16 %v44
  %v367 = vunpack.c.l.b16 %v45
  %v368 = vunpack.c.l.b16 %v46
  %v369 = vunpack.c.h.b16 %v46
  %v370 = vunpack.c.l.b16 %v47
  %v371 = vunpack.c.l.b16 %v48
  %v372 = vunpack.c.h.b16 %v48
  %v373 = vunpack.c.l.b16 %v49
  %v374 = vunpack.c.l.b16 %v50
  %v375 = vunpack.c.h.b16 %v50
  %v376 = vunpack.c.l.b16 %v51
  %v377 = vunpack.c.l.b16 %v52
  %v378 = vunpack.c.h.b16 %v52
  %v379 = vunpack.c.l.b16 %v53
  %v380 = vunpack.c.l.b16 %v54
  %v381 = vunpack.c.h.b16 %v54
  %v382 = vunpack.c.l.b16 %v55
  %v383 = vunpack.c.l.b16 %v56
  %v384 = vunpack.c.h.b16 %v56
  %v385 = vunpack.c.l.b16 %v57
  %v386 = vunpack.c.l.b16 %v58
  %v387 = vunpack.c.h.b16 %v58
  %v388 = vunpack.c.l.b16 %v59
  %v389 = vunpack.c.l.b16 %v60
  %v390 = vunpack.c.h.b16 %v60
  %v391 = vunpack.c.l.b16 %v61
  %v392 = vunpack.c.l.b16 %v62
  %v393 = vunpack.c.h.b16 %v62
  %v394 = vunpack.c.l.b16 %v63
  %v395 = vunpack.c.l.b16 %v64
  %v396 = vunpack.c.h.b16 %v64
  %v397 = vunpack.c.l.b16 %v65
  %v398 = vunpack.c.l.b16 %v66
  %v399 = vunpack.c.h.b16 %v66
  %v400 = vunpack.c.l.b16 %v67
  %v401 = vunpack.c.l.b16 %v68
  %v402 = vunpack.c.h.b16 %v68
  %v403 = vunpack.c.l.b16 %v69
  %v404 = vunpack.c.l.b16 %v70
  %v405 = vunpack.c.h.b16 %v70
  %v406 = vunpack.c.l.b16 %v71
  %v407 = vunpack.c.l.b16 %v72
  %v408 = vunpack.c.h.b16 %v72
  %v409 = vunpack.c.l.b16 %v73
  %v410 = vunpack.c.l.b16 %v74
  %v411 = vunpack.c.h.b16 %v74
  %v412 = vunpack.c.l.b16 %v75
  %v413 = vunpack.c.l.b16 %v76
  %v414 = vunpack.c.h.b16 %v76
  %v415 = vunpack.c.l.b16 %v77
  %v416 = vunpack.c.l.b16 %v78
  %v417 = vunpack.c.h.b16 %v78
  %v418 = vunpack.c.l.b16 %v79
  %v419 = vunpack.c.l.b16 %v80
  %v420 = vunpack.c.h.b16 %v80
  %v421 = vunpack.c.l.b16 %v81
  %v422 = vunpack.c.l.b16 %v82
  %v423 = vunpack.c.h.b16 %v82
  %v424 = vunpack.c.l.b16 %v83
  %v425 = vunpack.c.l.b16 %v84
  %v426 = vunpack.c.h.b16 %v84
  %v427 = vunpack.c.l.b16 %v85
  %v428 = vunpack.c.l.b16 %v86
  %v429 = vunpack.c.h.b16 %v86
  %v430 = vunpack.c.l.b16 %v87
  %v431 = vunpack.c.l.b16 %v88
  %v432 = vunpack.c.h.b16 %v88
  %v433 = vunpack.c.l.b16 %v89
  %v434 = vunpack.c.l.b16 %v90
  %v435 = vunpack.c.h.b16 %v90
  %v436 = vunpack.c.l.b16 %v91
  %v437 = vunpack.c.l.b16 %v92
  %v438 = vunpack.c.h.b16 %v92
  %v439 = vunpack.c.l.b16 %v93
  %v440 = vunpack.c.l.b16 %v94
  %v441 = vunpack.c.h.b16 %v94
  %v442 = vunpack.c.l.b16 %v95
  %v443 = vunpack.c.l.b16 %v96
  %v444 = vunpack.c.h.b16 %v96
  %v445 = vunpack.c.l.b16 %v97
  %v446 = vunpack.c.l.b16 %v98
  %v447 = vunpack.c.h.b16 %v98
  %v448 = vunpack.c.l.b16 %v99
  %v449 = vunpack.c.l.b16 %v100
  %v450 = vunpack.c.h.b16 %v100
  %v451 = vunpack.c.l.b16 %v101
  %v452 = vunpack.c.l.b16 %v102
  %v453 = vunpack.c.h.b16 %v102
  %v454 = vunpack.c.l.b16 %v103
  %v455 = vunpack.c.l.b16 %v104
  %v456 = vunpack.c.h.b16 %v104
  %v457 = vunpack.c.l.b16 %v105
  %v458 = vunpack.c.l.b16 %v106
  %v459 = vunpack.c.h.b16 %v106
  %v460 = vunpack.c.l.b16 %v107
  %v461 = vunpack.c.l.b16 %v108
  %v462 = vunpack.c.h.b16 %v108
  %v463 = vunpack.c.l.b16 %v109
  %v464 = vunpack.c.l.b16 %v110
  %v465 = vunpack.c.h.b16 %v110
  %v466 = vunpack.c.l.b16 %v111
  %v467 = vunpack.c.l.b16 %v112
  %v468 = vunpack.c.h.b16 %v112
  %v469 = vunpack.c.l.b16 %v113
  %v470 = vunpack.c.l.b16 %v114
  %v471 = vunpack.c.h.b16 %v114
  %v472 = vunpack.c.l.b16 %v115
  %v473 = vunpack.c.l.b16 %v116
  %v474 = vunpack.c.h.b16 %v116
  %v475 = vunpack.c.l.b16 %v117
  %v476 = vunpack.c.l.b16 %v118
  %v477 = vunpack.c.h.b16 %v118
  %v478 = vunpack.c.l.b16 %v119
  %v479 = vunpack.c.l.b16 %v120
  %v480 = vunpack.c.h.b16 %v120
  %v481 = vunpack.c.l.b16 %v121
  %v482 = vunpack.c.l.b16 %v122
  %v483 = vunpack.c.h.b16 %v122
  %v484 = vunpack.c.l.b16 %v123
  %v485 = vunpack.c.l.b16 %v124
  %v486 = vunpack.c.h.b16 %v124
  %v487 = vunpack.c.l.b16 %v125
  %v488 = vunpack.c.l.b16 %v126
  %v489 = vunpack.c.h.b16 %v126
  %v490 = vunpack.c.l.b16 %v127
  %v491 = vunpack.c.l.b16 %v128
  %v492 = vunpack.c.h.b16 %v128
  %v493 = vunpack.c.l.b16 %v129
  %v494 = vunpack.c.l.b16 %v130
  %v495 = vunpack.c.h.b16 %v130
  %v496 = vunpack.c.l.b16 %v131
  %v497 = vunpack.c.l.b16 %v132
  %v498 = vunpack.c.h.b16 %v132
  %v499 = vunpack.c.l.b16 %v133
  %v500 = vunpack.c.l.b16 %v134
  %v501 = vunpack.c.h.b16 %v134
  %v502 = vunpack.c.l.b16 %v135
  %v503 = vunpack.c.l.b16 %v136
  %v504 = vunpack.c.h.b16 %v136
  %v505 = vunpack.c.l.b16 %v137
  %v506 = vunpack.c.l.b16 %v138
  %v507 = vunpack.c.h.b16 %v138
  %v508 = vunpack.c.l.b16 %v139
  %v509 = vunpack.c.l.b16 %v140
  %v510 = vunpack.c.h.b16 %v140
  %v511 = vunpack.c.l.b16 %v141
  %v512 = vpack.c.b16 %v323, %v320
  %v513 = vpack.c.b16 %v324, %v321
  %v514 = vpack.c.b16 %v325, %v322
  %v515 = vpack.c.b16 %v329, %v326
  %v516 = vpack.c.b16 %v330, %v327
  %v517 = vpack.c.b16 %v331, %v328
  %v518 = vpack.c.b16 %v335, %v332
  %v519 = vpack.c.b16 %v336, %v333
  %v520 = vpack.c.b16 %v337, %v334
  %v521 = vpack.c.b16 %v341, %v338
  %v522 = vpack.c.b16 %v342, %v339
  %v523 = vpack.c.b16 %v343, %v340
  %v524 = vpack.c.b16 %v347, %v344
  %v525 = vpack.c.b16 %v348, %v345
  %v526 = vpack.c.b16 %v349, %v346
  %v527 = vpack.c.b16 %v353, %v350
  %v528 = vpack.c.b16 %v354, %v351
  %v529 = vpack.c.b16 %v355, %v352
  %v530 = vpack.c.b16 %v359, %v356
  %v531 = vpack.c.b16 %v360, %v357
  %v532 = vpack.c.b16 %v361, %v358
  %v533 = vpack.c.b16 %v365, %v362
  %v534 = vpack.c.b16 %v366, %v363
  %v535 = vpack.c.b16 %v367, %v364
  %v536 = vpack.c.b16 %v371, %v368
  %v537 = vpack.c.b16 %v372, %v369
  %v538 = vpack.c.b16 %v373, %v370
  %v539 = vpack.c.b16 %v377, %v374
  %v540 = vpack.c.b16 %v378, %v375
  %v541 = vpack.c.b16 %v379, %v376
  %v542 = vpack.c.b16 %v383, %v380
  %v543 = vpack.c.b16 %v384, %v381
  %v544 = vpack.c.b16 %v385, %v382
  %v545 = vpack.c.b16 %v389, %v386
  %v546 = vpack.c.b16 %v390, %v387
  %v547 = vpack.c.b16 %v391, %v388
  %v548 = vpack.c.b16 %v395, %v392
  %v549 = vpack.c.b16 %v396, %v393
  %v550 = vpack.c.b16 %v397, %v394
  %v551 = vpack.c.b16 %v401, %v398
  %v552 = vpack.c.b16 %v402, %v399
  %v553 = vpack.c.b16 %v403, %v400
  %v554 = vpack.c.b16 %v407, %v404
  %v555 = vpack.c.b16 %v408, %v405
  %v556 = vpack.c.b16 %v409, %v406
  %v557 = vpack.c.b16 %v413, %v410
  %v558 = vpack.c.b16 %v414, %v411
  %v559 = vpack.c.b16 %v415, %v412
  %v560 = vpack.c.b16 %v419, %v416
  %v561 = vpack.c.b16 %v420, %v417
  %v562 = vpack.c.b16 %v421, %v418
  %v563 = vpack.c.b16 %v425, %v422
  %v564 = vpack.c.b16 %v426, %v423
  %v565 = vpack.c.b16 %v427, %v424
  %v566 = vpack.c.b16 %v431, %v428
  %v567 = vpack.c.b16 %v432, %v429
  %v568 = vpack.c.b16 %v433, %v430
  %v569 = vpack.c.b16 %v437, %v434
  %v570 = vpack.c.b16 %v438, %v435
  %v571 = vpack.c.b16 %v439, %v436
  %v572 = vpack.c.b16 %v443, %v440
  %v573 = vpack.c.b16 %v444, %v441
  %v574 = vpack.c.b16 %v445, %v442
  %v575 = vpack.c.b16 %v449, %v446
  %v576 = vpack.c.b16 %v450, %v447
  %v577 = vpack.c.b16 %v451, %v448
  %v578 = vpack.c.b16 %v455, %v452
  %v579 = vpack.c.b16 %v456, %v453
  %v580 = vpack.c.b16 %v457, %v454
  %v581 = vpack.c.b16 %v461, %v458
  %v582 = vpack.c.b16 %v462, %v459
  %v583 = vpack.c.b16 %v463, %v460
  %v584 = vpack.c.b16 %v467, %v464
  %v585 = vpack.c.b16 %v468, %v465
  %v586 = vpack.c.b16 %v469, %v466
  %v587 = vpack.c.b16 %v473, %v470
  %v588 = vpack.c.b16 %v474, %v471
  %v589 = vpack.c.b16 %v475, %v472
  %v590 = vpack.c.b16 %v479, %v476
  %v591 = vpack.c.b16 %v480, %v477
  %v592 = vpack.c.b16 %v481, %v478
  %v593 = vpack.c.b16 %v485, %v482
  %v594 = vpack.c.b16 %v486, %v483
  %v595 = vpack.c.b16 %v487, %v484
  %v596 = vpack.c.b16 %v491, %v488
  %v597 = vpack.c.b16 %v492, %v489
  %v598 = vpack.c.b16 %v493, %v490
  %v599 = vpack.c.b16 %v497, %v494
  %v600 = vpack.c.b16 %v498, %v495
  %v601 = vpack.c.b16 %v499, %v496
  %v602 = vpack.c.b16 %v503, %v500
  %v603 = vpack.c.b16 %v504, %v501
  %v604 = vpack.c.b16 %v505, %v502
  %v605 = vpack.c.b16 %v509, %v506
  %v606 = vpack.c.b16 %v510, %v507
  %v607 = vpack.c.b16 %v511, %v508
  %v752 = vunpack.c.l.b16 %v142
  %v753 = vunpack.c.l.b16 %v143
  %v754 = vunpack.c.l.b16 %v144
  %v755 = vunpack.c.l.b16 %v145
  %v756 = vunpack.c.l.b16 %v146
  %v757 = vunpack.c.l.b16 %v147
  %v758 = vunpack.c.l.b16 %v148
  %v759 = vunpack.c.l.b16 %v149
  %v760 = vunpack.c.l.b16 %v150
  %v761 = vunpack.c.l.b16 %v151
  %v762 = vunpack.c.l.b16 %v152
  %v763 = vunpack.c.l.b16 %v153
  %v764 = vunpack.c.l.b16 %v154
  %v765 = vunpack.c.l.b16 %v155
  %v766 = vunpack.c.l.b16 %v156
  %v767 = vunpack.c.l.b16 %v157
  %v768 = vunpack.c.l.b16 %v158
  %v769 = vunpack.c.l.b16 %v159
  %v770 = vunpack.c.l.b16 %v160
  %v771 = vunpack.c.l.b16 %v161
  %v772 = vunpack.c.l.b16 %v162
  %v773 = vunpack.c.l.b16 %v163
  %v774 = vunpack.c.l.b16 %v164
  %v775 = vunpack.c.l.b16 %v165
  %v776 = vunpack.c.l.b16 %v166
  %v777 = vunpack.c.l.b16 %v167
  %v778 = vunpack.c.l.b16 %v168
  %v779 = vunpack.c.l.b16 %v169
  %v780 = vunpack.c.l.b16 %v170
  %v781 = vunpack.c.l.b16 %v171
  %v782 = vunpack.c.l.b16 %v172
  %v783 = vunpack.c.l.b16 %v173
  %v784 = vunpack.c.l.b16 %v174
  %v785 = vunpack.c.l.b16 %v175
  %v786 = vunpack.c.l.b16 %v176
  %v787 = vunpack.c.l.b16 %v177
  %v788 = vunpack.c.l.b16 %v178
  %v789 = vunpack.c.l.b16 %v179
  %v790 = vunpack.c.l.b16 %v180
  %v791 = vunpack.c.l.b16 %v181
  %v792 = vunpack.c.l.b16 %v182
  %v793 = vunpack.c.l.b16 %v183
  %v794 = vunpack.c.l.b16 %v184
  %v795 = vunpack.c.l.b16 %v185
  %v796 = vunpack.c.l.b16 %v186
  %v797 = vunpack.c.l.b16 %v187
  %v798 = vunpack.c.l.b16 %v188
  %v799 = vunpack.c.l.b16 %v189
  %v800 = vpack.c.b16 %v753, %v752
  %v801 = vpack.c.b16 %v755, %v754
  %v802 = vpack.c.b16 %v757, %v756
  %v803 = vpack.c.b16 %v759, %v758
  %v804 = vpack.c.b16 %v761, %v760
  %v805 = vpack.c.b16 %v763, %v762
  %v806 = vpack.c.b16 %v765, %v764
  %v807 = vpack.c.b16 %v767, %v766
  %v808 = vpack.c.b16 %v769, %v768
  %v809 = vpack.c.b16 %v771, %v770
  %v810 = vpack.c.b16 %v773, %v772
  %v811 = vpack.c.b16 %v775, %v774
  %v812 = vpack.c.b16 %v777, %v776
  %v813 = vpack.c.b16 %v779, %v778
  %v814 = vpack.c.b16 %v781, %v780
  %v815 = vpack.c.b16 %v783, %v782
  %v816 = vpack.c.b16 %v785, %v784
  %v817 = vpack.c.b16 %v787, %v786
  %v818 = vpack.c.b16 %v789, %v788
  %v819 = vpack.c.b16 %v791, %v790
  %v820 = vpack.c.b16 %v793, %v792
  %v821 = vpack.c.b16 %v795, %v794
  %v822 = vpack.c.b16 %v797, %v796
  %v823 = vpack.c.b16 %v799, %v798
  %848 = vmatpush.bf16.msra.mxu0 %v807
  %849 = vmatpush.bf16.msra.mxu0 %v806
  %850 = vmatpush.bf16.msra.mxu0 %v805
  %851 = vmatpush.bf16.msra.mxu0 %v804
  %852 = vmatpush.bf16.msra.mxu0 %v803
  %853 = vmatpush.bf16.msra.mxu0 %v802
  %854 = vmatpush.bf16.msra.mxu0 %v801
  %855 = vmatpush.bf16.msra.mxu0 %v800
  %856 = vmatmul.bf16.gmra.mxu0 %v512
  %v857 = vpop.f32.mrf.mxu0
  %v858 = vadd.f32 %v191, %v857
  %v859 = vpop.f32.mrf.mxu0
  %v860 = vadd.f32 %v191, %v859
  %861 = vmatmul.bf16.gmra.mxu0 %v515
  %v862 = vpop.f32.mrf.mxu0
  %v863 = vadd.f32 %v191, %v862
  %v864 = vpop.f32.mrf.mxu0
  %v865 = vadd.f32 %v191, %v864
  %866 = vmatmul.bf16.gmra.mxu0 %v518
  %v867 = vpop.f32.mrf.mxu0
  %v868 = vadd.f32 %v191, %v867
  %v869 = vpop.f32.mrf.mxu0
  %v870 = vadd.f32 %v191, %v869
  %871 = vmatmul.bf16.gmra.mxu0 %v521
  %v872 = vpop.f32.mrf.mxu0
  %v873 = vadd.f32 %v191, %v872
  %v874 = vpop.f32.mrf.mxu0
  %v875 = vadd.f32 %v191, %v874
  %876 = vmatmul.bf16.gmra.mxu0 %v524
  %v877 = vpop.f32.mrf.mxu0
  %v878 = vadd.f32 %v191, %v877
  %v879 = vpop.f32.mrf.mxu0
  %v880 = vadd.f32 %v191, %v879
  %881 = vmatmul.bf16.gmra.mxu0 %v527
  %v882 = vpop.f32.mrf.mxu0
  %v883 = vadd.f32 %v191, %v882
  %v884 = vpop.f32.mrf.mxu0
  %v885 = vadd.f32 %v191, %v884
  %886 = vmatmul.bf16.gmra.mxu0 %v530
  %v887 = vpop.f32.mrf.mxu0
  %v888 = vadd.f32 %v191, %v887
  %v889 = vpop.f32.mrf.mxu0
  %v890 = vadd.f32 %v191, %v889
  %891 = vmatmul.bf16.gmra.mxu0 %v533
  %v892 = vpop.f32.mrf.mxu0
  %v893 = vadd.f32 %v191, %v892
  %v894 = vpop.f32.mrf.mxu0
  %v895 = vadd.f32 %v191, %v894
  %896 = vmatmul.bf16.gmra.mxu0 %v536
  %v897 = vpop.f32.mrf.mxu0
  %v898 = vadd.f32 %v191, %v897
  %v899 = vpop.f32.mrf.mxu0
  %v900 = vadd.f32 %v191, %v899
  %901 = vmatmul.bf16.gmra.mxu0 %v539
  %v902 = vpop.f32.mrf.mxu0
  %v903 = vadd.f32 %v191, %v902
  %v904 = vpop.f32.mrf.mxu0
  %v905 = vadd.f32 %v191, %v904
  %906 = vmatmul.bf16.gmra.mxu0 %v542
  %v907 = vpop.f32.mrf.mxu0
  %v908 = vadd.f32 %v191, %v907
  %v909 = vpop.f32.mrf.mxu0
  %v910 = vadd.f32 %v191, %v909
  %911 = vmatmul.bf16.gmra.mxu0 %v545
  %v912 = vpop.f32.mrf.mxu0
  %v913 = vadd.f32 %v191, %v912
  %v914 = vpop.f32.mrf.mxu0
  %v915 = vadd.f32 %v191, %v914
  %916 = vmatmul.bf16.gmra.mxu0 %v548
  %v917 = vpop.f32.mrf.mxu0
  %v918 = vadd.f32 %v191, %v917
  %v919 = vpop.f32.mrf.mxu0
  %v920 = vadd.f32 %v191, %v919
  %921 = vmatmul.bf16.gmra.mxu0 %v551
  %v922 = vpop.f32.mrf.mxu0
  %v923 = vadd.f32 %v191, %v922
  %v924 = vpop.f32.mrf.mxu0
  %v925 = vadd.f32 %v191, %v924
  %926 = vmatmul.bf16.gmra.mxu0 %v554
  %v927 = vpop.f32.mrf.mxu0
  %v928 = vadd.f32 %v191, %v927
  %v929 = vpop.f32.mrf.mxu0
  %v930 = vadd.f32 %v191, %v929
  %931 = vmatmul.bf16.gmra.mxu0 %v557
  %v932 = vpop.f32.mrf.mxu0
  %v933 = vadd.f32 %v191, %v932
  %v934 = vpop.f32.mrf.mxu0
  %v935 = vadd.f32 %v191, %v934
  %936 = vmatmul.bf16.gmra.mxu0 %v560
  %v937 = vpop.f32.mrf.mxu0
  %v938 = vadd.f32 %v191, %v937
  %v939 = vpop.f32.mrf.mxu0
  %v940 = vadd.f32 %v191, %v939
  %941 = vmatmul.bf16.gmra.mxu0 %v563
  %v942 = vpop.f32.mrf.mxu0
  %v943 = vadd.f32 %v191, %v942
  %v944 = vpop.f32.mrf.mxu0
  %v945 = vadd.f32 %v191, %v944
  %946 = vmatmul.bf16.gmra.mxu0 %v566
  %v947 = vpop.f32.mrf.mxu0
  %v948 = vadd.f32 %v191, %v947
  %v949 = vpop.f32.mrf.mxu0
  %v950 = vadd.f32 %v191, %v949
  %951 = vmatmul.bf16.gmra.mxu0 %v569
  %v952 = vpop.f32.mrf.mxu0
  %v953 = vadd.f32 %v191, %v952
  %v954 = vpop.f32.mrf.mxu0
  %v955 = vadd.f32 %v191, %v954
  %956 = vmatmul.bf16.gmra.mxu0 %v572
  %v957 = vpop.f32.mrf.mxu0
  %v958 = vadd.f32 %v191, %v957
  %v959 = vpop.f32.mrf.mxu0
  %v960 = vadd.f32 %v191, %v959
  %961 = vmatmul.bf16.gmra.mxu0 %v575
  %v962 = vpop.f32.mrf.mxu0
  %v963 = vadd.f32 %v191, %v962
  %v964 = vpop.f32.mrf.mxu0
  %v965 = vadd.f32 %v191, %v964
  %966 = vmatmul.bf16.gmra.mxu0 %v578
  %v967 = vpop.f32.mrf.mxu0
  %v968 = vadd.f32 %v191, %v967
  %v969 = vpop.f32.mrf.mxu0
  %v970 = vadd.f32 %v191, %v969
  %971 = vmatmul.bf16.gmra.mxu0 %v581
  %v972 = vpop.f32.mrf.mxu0
  %v973 = vadd.f32 %v191, %v972
  %v974 = vpop.f32.mrf.mxu0
  %v975 = vadd.f32 %v191, %v974
  %976 = vmatmul.bf16.gmra.mxu0 %v584
  %v977 = vpop.f32.mrf.mxu0
  %v978 = vadd.f32 %v191, %v977
  %v979 = vpop.f32.mrf.mxu0
  %v980 = vadd.f32 %v191, %v979
  %981 = vmatmul.bf16.gmra.mxu0 %v587
  %v982 = vpop.f32.mrf.mxu0
  %v983 = vadd.f32 %v191, %v982
  %v984 = vpop.f32.mrf.mxu0
  %v985 = vadd.f32 %v191, %v984
  %986 = vmatmul.bf16.gmra.mxu0 %v590
  %v987 = vpop.f32.mrf.mxu0
  %v988 = vadd.f32 %v191, %v987
  %v989 = vpop.f32.mrf.mxu0
  %v990 = vadd.f32 %v191, %v989
  %991 = vmatmul.bf16.gmra.mxu0 %v593
  %v992 = vpop.f32.mrf.mxu0
  %v993 = vadd.f32 %v191, %v992
  %v994 = vpop.f32.mrf.mxu0
  %v995 = vadd.f32 %v191, %v994
  %996 = vmatmul.bf16.gmra.mxu0 %v596
  %v997 = vpop.f32.mrf.mxu0
  %v998 = vadd.f32 %v191, %v997
  %v999 = vpop.f32.mrf.mxu0
  %v1000 = vadd.f32 %v191, %v999
  %1001 = vmatmul.bf16.gmra.mxu0 %v599
  %v1002 = vpop.f32.mrf.mxu0
  %v1003 = vadd.f32 %v191, %v1002
  %v1004 = vpop.f32.mrf.mxu0
  %v1005 = vadd.f32 %v191, %v1004
  %1006 = vmatmul.bf16.gmra.mxu0 %v602
  %v1007 = vpop.f32.mrf.mxu0
  %v1008 = vadd.f32 %v191, %v1007
  %v1009 = vpop.f32.mrf.mxu0
  %v1010 = vadd.f32 %v191, %v1009
  %1011 = vmatmul.bf16.gmra.mxu0 %v605
  %v1012 = vpop.f32.mrf.mxu0
  %v1013 = vadd.f32 %v191, %v1012
  %v1014 = vpop.f32.mrf.mxu0
  %v1015 = vadd.f32 %v191, %v1014
  %1016 = vdwg.mxu0
  %1017 = vmatpush.bf16.msra.mxu0 %v815
  %1018 = vmatpush.bf16.msra.mxu0 %v814
  %1019 = vmatpush.bf16.msra.mxu0 %v813
  %1020 = vmatpush.bf16.msra.mxu0 %v812
  %1021 = vmatpush.bf16.msra.mxu0 %v811
  %1022 = vmatpush.bf16.msra.mxu0 %v810
  %1023 = vmatpush.bf16.msra.mxu0 %v809
  %1024 = vmatpush.bf16.msra.mxu0 %v808
  %1025 = vmatmul.bf16.gmra.mxu0 %v513
  %v1026 = vpop.f32.mrf.mxu0
  %v1027 = vadd.f32 %v858, %v1026
  %v1028 = vpop.f32.mrf.mxu0
  %v1029 = vadd.f32 %v860, %v1028
  %1030 = vmatmul.bf16.gmra.mxu0 %v516
  %v1031 = vpop.f32.mrf.mxu0
  %v1032 = vadd.f32 %v863, %v1031
  %v1033 = vpop.f32.mrf.mxu0
  %v1034 = vadd.f32 %v865, %v1033
  %1035 = vmatmul.bf16.gmra.mxu0 %v519
  %v1036 = vpop.f32.mrf.mxu0
  %v1037 = vadd.f32 %v868, %v1036
  %v1038 = vpop.f32.mrf.mxu0
  %v1039 = vadd.f32 %v870, %v1038
  %1040 = vmatmul.bf16.gmra.mxu0 %v522
  %v1041 = vpop.f32.mrf.mxu0
  %v1042 = vadd.f32 %v873, %v1041
  %v1043 = vpop.f32.mrf.mxu0
  %v1044 = vadd.f32 %v875, %v1043
  %1045 = vmatmul.bf16.gmra.mxu0 %v525
  %v1046 = vpop.f32.mrf.mxu0
  %v1047 = vadd.f32 %v878, %v1046
  %v1048 = vpop.f32.mrf.mxu0
  %v1049 = vadd.f32 %v880, %v1048
  %1050 = vmatmul.bf16.gmra.mxu0 %v528
  %v1051 = vpop.f32.mrf.mxu0
  %v1052 = vadd.f32 %v883, %v1051
  %v1053 = vpop.f32.mrf.mxu0
  %v1054 = vadd.f32 %v885, %v1053
  %1055 = vmatmul.bf16.gmra.mxu0 %v531
  %v1056 = vpop.f32.mrf.mxu0
  %v1057 = vadd.f32 %v888, %v1056
  %v1058 = vpop.f32.mrf.mxu0
  %v1059 = vadd.f32 %v890, %v1058
  %1060 = vmatmul.bf16.gmra.mxu0 %v534
  %v1061 = vpop.f32.mrf.mxu0
  %v1062 = vadd.f32 %v893, %v1061
  %v1063 = vpop.f32.mrf.mxu0
  %v1064 = vadd.f32 %v895, %v1063
  %1065 = vmatmul.bf16.gmra.mxu0 %v537
  %v1066 = vpop.f32.mrf.mxu0
  %v1067 = vadd.f32 %v898, %v1066
  %v1068 = vpop.f32.mrf.mxu0
  %v1069 = vadd.f32 %v900, %v1068
  %1070 = vmatmul.bf16.gmra.mxu0 %v540
  %v1071 = vpop.f32.mrf.mxu0
  %v1072 = vadd.f32 %v903, %v1071
  %v1073 = vpop.f32.mrf.mxu0
  %v1074 = vadd.f32 %v905, %v1073
  %1075 = vmatmul.bf16.gmra.mxu0 %v543
  %v1076 = vpop.f32.mrf.mxu0
  %v1077 = vadd.f32 %v908, %v1076
  %v1078 = vpop.f32.mrf.mxu0
  %v1079 = vadd.f32 %v910, %v1078
  %1080 = vmatmul.bf16.gmra.mxu0 %v546
  %v1081 = vpop.f32.mrf.mxu0
  %v1082 = vadd.f32 %v913, %v1081
  %v1083 = vpop.f32.mrf.mxu0
  %v1084 = vadd.f32 %v915, %v1083
  %1085 = vmatmul.bf16.gmra.mxu0 %v549
  %v1086 = vpop.f32.mrf.mxu0
  %v1087 = vadd.f32 %v918, %v1086
  %v1088 = vpop.f32.mrf.mxu0
  %v1089 = vadd.f32 %v920, %v1088
  %1090 = vmatmul.bf16.gmra.mxu0 %v552
  %v1091 = vpop.f32.mrf.mxu0
  %v1092 = vadd.f32 %v923, %v1091
  %v1093 = vpop.f32.mrf.mxu0
  %v1094 = vadd.f32 %v925, %v1093
  %1095 = vmatmul.bf16.gmra.mxu0 %v555
  %v1096 = vpop.f32.mrf.mxu0
  %v1097 = vadd.f32 %v928, %v1096
  %v1098 = vpop.f32.mrf.mxu0
  %v1099 = vadd.f32 %v930, %v1098
  %1100 = vmatmul.bf16.gmra.mxu0 %v558
  %v1101 = vpop.f32.mrf.mxu0
  %v1102 = vadd.f32 %v933, %v1101
  %v1103 = vpop.f32.mrf.mxu0
  %v1104 = vadd.f32 %v935, %v1103
  %1105 = vmatmul.bf16.gmra.mxu0 %v561
  %v1106 = vpop.f32.mrf.mxu0
  %v1107 = vadd.f32 %v938, %v1106
  %v1108 = vpop.f32.mrf.mxu0
  %v1109 = vadd.f32 %v940, %v1108
  %1110 = vmatmul.bf16.gmra.mxu0 %v564
  %v1111 = vpop.f32.mrf.mxu0
  %v1112 = vadd.f32 %v943, %v1111
  %v1113 = vpop.f32.mrf.mxu0
  %v1114 = vadd.f32 %v945, %v1113
  %1115 = vmatmul.bf16.gmra.mxu0 %v567
  %v1116 = vpop.f32.mrf.mxu0
  %v1117 = vadd.f32 %v948, %v1116
  %v1118 = vpop.f32.mrf.mxu0
  %v1119 = vadd.f32 %v950, %v1118
  %1120 = vmatmul.bf16.gmra.mxu0 %v570
  %v1121 = vpop.f32.mrf.mxu0
  %v1122 = vadd.f32 %v953, %v1121
  %v1123 = vpop.f32.mrf.mxu0
  %v1124 = vadd.f32 %v955, %v1123
  %1125 = vmatmul.bf16.gmra.mxu0 %v573
  %v1126 = vpop.f32.mrf.mxu0
  %v1127 = vadd.f32 %v958, %v1126
  %v1128 = vpop.f32.mrf.mxu0
  %v1129 = vadd.f32 %v960, %v1128
  %1130 = vmatmul.bf16.gmra.mxu0 %v576
  %v1131 = vpop.f32.mrf.mxu0
  %v1132 = vadd.f32 %v963, %v1131
  %v1133 = vpop.f32.mrf.mxu0
  %v1134 = vadd.f32 %v965, %v1133
  %1135 = vmatmul.bf16.gmra.mxu0 %v579
  %v1136 = vpop.f32.mrf.mxu0
  %v1137 = vadd.f32 %v968, %v1136
  %v1138 = vpop.f32.mrf.mxu0
  %v1139 = vadd.f32 %v970, %v1138
  %1140 = vmatmul.bf16.gmra.mxu0 %v582
  %v1141 = vpop.f32.mrf.mxu0
  %v1142 = vadd.f32 %v973, %v1141
  %v1143 = vpop.f32.mrf.mxu0
  %v1144 = vadd.f32 %v975, %v1143
  %1145 = vmatmul.bf16.gmra.mxu0 %v585
  %v1146 = vpop.f32.mrf.mxu0
  %v1147 = vadd.f32 %v978, %v1146
  %v1148 = vpop.f32.mrf.mxu0
  %v1149 = vadd.f32 %v980, %v1148
  %1150 = vmatmul.bf16.gmra.mxu0 %v588
  %v1151 = vpop.f32.mrf.mxu0
  %v1152 = vadd.f32 %v983, %v1151
  %v1153 = vpop.f32.mrf.mxu0
  %v1154 = vadd.f32 %v985, %v1153
  %1155 = vmatmul.bf16.gmra.mxu0 %v591
  %v1156 = vpop.f32.mrf.mxu0
  %v1157 = vadd.f32 %v988, %v1156
  %v1158 = vpop.f32.mrf.mxu0
  %v1159 = vadd.f32 %v990, %v1158
  %1160 = vmatmul.bf16.gmra.mxu0 %v594
  %v1161 = vpop.f32.mrf.mxu0
  %v1162 = vadd.f32 %v993, %v1161
  %v1163 = vpop.f32.mrf.mxu0
  %v1164 = vadd.f32 %v995, %v1163
  %1165 = vmatmul.bf16.gmra.mxu0 %v597
  %v1166 = vpop.f32.mrf.mxu0
  %v1167 = vadd.f32 %v998, %v1166
  %v1168 = vpop.f32.mrf.mxu0
  %v1169 = vadd.f32 %v1000, %v1168
  %1170 = vmatmul.bf16.gmra.mxu0 %v600
  %v1171 = vpop.f32.mrf.mxu0
  %v1172 = vadd.f32 %v1003, %v1171
  %v1173 = vpop.f32.mrf.mxu0
  %v1174 = vadd.f32 %v1005, %v1173
  %1175 = vmatmul.bf16.gmra.mxu0 %v603
  %v1176 = vpop.f32.mrf.mxu0
  %v1177 = vadd.f32 %v1008, %v1176
  %v1178 = vpop.f32.mrf.mxu0
  %v1179 = vadd.f32 %v1010, %v1178
  %1180 = vmatmul.bf16.gmra.mxu0 %v606
  %v1181 = vpop.f32.mrf.mxu0
  %v1182 = vadd.f32 %v1013, %v1181
  %v1183 = vpop.f32.mrf.mxu0
  %v1184 = vadd.f32 %v1015, %v1183
  %1185 = vdwg.mxu0
  %1186 = vmatpush.bf16.msra.mxu0 %v823
  %1187 = vmatpush.bf16.msra.mxu0 %v822
  %1188 = vmatpush.bf16.msra.mxu0 %v821
  %1189 = vmatpush.bf16.msra.mxu0 %v820
  %1190 = vmatpush.bf16.msra.mxu0 %v819
  %1191 = vmatpush.bf16.msra.mxu0 %v818
  %1192 = vmatpush.bf16.msra.mxu0 %v817
  %1193 = vmatpush.bf16.msra.mxu0 %v816
  %1194 = vmatmul.bf16.gmra.mxu0 %v514
  %v1195 = vpop.f32.mrf.mxu0
  %v1196 = vadd.f32 %v1027, %v1195
  %v1197 = vpop.f32.mrf.mxu0
  %v1198 = vadd.f32 %v1029, %v1197
  %1199 = vmatmul.bf16.gmra.mxu0 %v517
  %v1200 = vpop.f32.mrf.mxu0
  %v1201 = vadd.f32 %v1032, %v1200
  %v1202 = vpop.f32.mrf.mxu0
  %v1203 = vadd.f32 %v1034, %v1202
  %1204 = vmatmul.bf16.gmra.mxu0 %v520
  %v1205 = vpop.f32.mrf.mxu0
  %v1206 = vadd.f32 %v1037, %v1205
  %v1207 = vpop.f32.mrf.mxu0
  %v1208 = vadd.f32 %v1039, %v1207
  %1209 = vmatmul.bf16.gmra.mxu0 %v523
  %v1210 = vpop.f32.mrf.mxu0
  %v1211 = vadd.f32 %v1042, %v1210
  %v1212 = vpop.f32.mrf.mxu0
  %v1213 = vadd.f32 %v1044, %v1212
  %1214 = vmatmul.bf16.gmra.mxu0 %v526
  %v1215 = vpop.f32.mrf.mxu0
  %v1216 = vadd.f32 %v1047, %v1215
  %v1217 = vpop.f32.mrf.mxu0
  %v1218 = vadd.f32 %v1049, %v1217
  %1219 = vmatmul.bf16.gmra.mxu0 %v529
  %v1220 = vpop.f32.mrf.mxu0
  %v1221 = vadd.f32 %v1052, %v1220
  %v1222 = vpop.f32.mrf.mxu0
  %v1223 = vadd.f32 %v1054, %v1222
  %1224 = vmatmul.bf16.gmra.mxu0 %v532
  %v1225 = vpop.f32.mrf.mxu0
  %v1226 = vadd.f32 %v1057, %v1225
  %v1227 = vpop.f32.mrf.mxu0
  %v1228 = vadd.f32 %v1059, %v1227
  %1229 = vmatmul.bf16.gmra.mxu0 %v535
  %v1230 = vpop.f32.mrf.mxu0
  %v1231 = vadd.f32 %v1062, %v1230
  %v1232 = vpop.f32.mrf.mxu0
  %v1233 = vadd.f32 %v1064, %v1232
  %1234 = vmatmul.bf16.gmra.mxu0 %v538
  %v1235 = vpop.f32.mrf.mxu0
  %v1236 = vadd.f32 %v1067, %v1235
  %v1237 = vpop.f32.mrf.mxu0
  %v1238 = vadd.f32 %v1069, %v1237
  %1239 = vmatmul.bf16.gmra.mxu0 %v541
  %v1240 = vpop.f32.mrf.mxu0
  %v1241 = vadd.f32 %v1072, %v1240
  %v1242 = vpop.f32.mrf.mxu0
  %v1243 = vadd.f32 %v1074, %v1242
  %1244 = vmatmul.bf16.gmra.mxu0 %v544
  %v1245 = vpop.f32.mrf.mxu0
  %v1246 = vadd.f32 %v1077, %v1245
  %v1247 = vpop.f32.mrf.mxu0
  %v1248 = vadd.f32 %v1079, %v1247
  %1249 = vmatmul.bf16.gmra.mxu0 %v547
  %v1250 = vpop.f32.mrf.mxu0
  %v1251 = vadd.f32 %v1082, %v1250
  %v1252 = vpop.f32.mrf.mxu0
  %v1253 = vadd.f32 %v1084, %v1252
  %1254 = vmatmul.bf16.gmra.mxu0 %v550
  %v1255 = vpop.f32.mrf.mxu0
  %v1256 = vadd.f32 %v1087, %v1255
  %v1257 = vpop.f32.mrf.mxu0
  %v1258 = vadd.f32 %v1089, %v1257
  %1259 = vmatmul.bf16.gmra.mxu0 %v553
  %v1260 = vpop.f32.mrf.mxu0
  %v1261 = vadd.f32 %v1092, %v1260
  %v1262 = vpop.f32.mrf.mxu0
  %v1263 = vadd.f32 %v1094, %v1262
  %1264 = vmatmul.bf16.gmra.mxu0 %v556
  %v1265 = vpop.f32.mrf.mxu0
  %v1266 = vadd.f32 %v1097, %v1265
  %v1267 = vpop.f32.mrf.mxu0
  %v1268 = vadd.f32 %v1099, %v1267
  %1269 = vmatmul.bf16.gmra.mxu0 %v559
  %v1270 = vpop.f32.mrf.mxu0
  %v1271 = vadd.f32 %v1102, %v1270
  %v1272 = vpop.f32.mrf.mxu0
  %v1273 = vadd.f32 %v1104, %v1272
  %1274 = vmatmul.bf16.gmra.mxu0 %v562
  %v1275 = vpop.f32.mrf.mxu0
  %v1276 = vadd.f32 %v1107, %v1275
  %v1277 = vpop.f32.mrf.mxu0
  %v1278 = vadd.f32 %v1109, %v1277
  %1279 = vmatmul.bf16.gmra.mxu0 %v565
  %v1280 = vpop.f32.mrf.mxu0
  %v1281 = vadd.f32 %v1112, %v1280
  %v1282 = vpop.f32.mrf.mxu0
  %v1283 = vadd.f32 %v1114, %v1282
  %1284 = vmatmul.bf16.gmra.mxu0 %v568
  %v1285 = vpop.f32.mrf.mxu0
  %v1286 = vadd.f32 %v1117, %v1285
  %v1287 = vpop.f32.mrf.mxu0
  %v1288 = vadd.f32 %v1119, %v1287
  %1289 = vmatmul.bf16.gmra.mxu0 %v571
  %v1290 = vpop.f32.mrf.mxu0
  %v1291 = vadd.f32 %v1122, %v1290
  %v1292 = vpop.f32.mrf.mxu0
  %v1293 = vadd.f32 %v1124, %v1292
  %1294 = vmatmul.bf16.gmra.mxu0 %v574
  %v1295 = vpop.f32.mrf.mxu0
  %v1296 = vadd.f32 %v1127, %v1295
  %v1297 = vpop.f32.mrf.mxu0
  %v1298 = vadd.f32 %v1129, %v1297
  %1299 = vmatmul.bf16.gmra.mxu0 %v577
  %v1300 = vpop.f32.mrf.mxu0
  %v1301 = vadd.f32 %v1132, %v1300
  %v1302 = vpop.f32.mrf.mxu0
  %v1303 = vadd.f32 %v1134, %v1302
  %1304 = vmatmul.bf16.gmra.mxu0 %v580
  %v1305 = vpop.f32.mrf.mxu0
  %v1306 = vadd.f32 %v1137, %v1305
  %v1307 = vpop.f32.mrf.mxu0
  %v1308 = vadd.f32 %v1139, %v1307
  %1309 = vmatmul.bf16.gmra.mxu0 %v583
  %v1310 = vpop.f32.mrf.mxu0
  %v1311 = vadd.f32 %v1142, %v1310
  %v1312 = vpop.f32.mrf.mxu0
  %v1313 = vadd.f32 %v1144, %v1312
  %1314 = vmatmul.bf16.gmra.mxu0 %v586
  %v1315 = vpop.f32.mrf.mxu0
  %v1316 = vadd.f32 %v1147, %v1315
  %v1317 = vpop.f32.mrf.mxu0
  %v1318 = vadd.f32 %v1149, %v1317
  %1319 = vmatmul.bf16.gmra.mxu0 %v589
  %v1320 = vpop.f32.mrf.mxu0
  %v1321 = vadd.f32 %v1152, %v1320
  %v1322 = vpop.f32.mrf.mxu0
  %v1323 = vadd.f32 %v1154, %v1322
  %1324 = vmatmul.bf16.gmra.mxu0 %v592
  %v1325 = vpop.f32.mrf.mxu0
  %v1326 = vadd.f32 %v1157, %v1325
  %v1327 = vpop.f32.mrf.mxu0
  %v1328 = vadd.f32 %v1159, %v1327
  %1329 = vmatmul.bf16.gmra.mxu0 %v595
  %v1330 = vpop.f32.mrf.mxu0
  %v1331 = vadd.f32 %v1162, %v1330
  %v1332 = vpop.f32.mrf.mxu0
  %v1333 = vadd.f32 %v1164, %v1332
  %1334 = vmatmul.bf16.gmra.mxu0 %v598
  %v1335 = vpop.f32.mrf.mxu0
  %v1336 = vadd.f32 %v1167, %v1335
  %v1337 = vpop.f32.mrf.mxu0
  %v1338 = vadd.f32 %v1169, %v1337
  %1339 = vmatmul.bf16.gmra.mxu0 %v601
  %v1340 = vpop.f32.mrf.mxu0
  %v1341 = vadd.f32 %v1172, %v1340
  %v1342 = vpop.f32.mrf.mxu0
  %v1343 = vadd.f32 %v1174, %v1342
  %1344 = vmatmul.bf16.gmra.mxu0 %v604
  %v1345 = vpop.f32.mrf.mxu0
  %v1346 = vadd.f32 %v1177, %v1345
  %v1347 = vpop.f32.mrf.mxu0
  %v1348 = vadd.f32 %v1179, %v1347
  %1349 = vmatmul.bf16.gmra.mxu0 %v607
  %v1350 = vpop.f32.mrf.mxu0
  %v1351 = vadd.f32 %v1182, %v1350
  %v1352 = vpop.f32.mrf.mxu0
  %v1353 = vadd.f32 %v1184, %v1352
  %1354 = vdwg.mxu0
  %1355 = vst [vmem:[%s3] sm:$0xff] %v1196
  %1356 = vst [vmem:[%s3 + $0x8] sm:$0xff] %v1198
  %1357 = vst [vmem:[%s3 + $0x10] sm:$0xff] %v1201
  %1358 = vst [vmem:[%s3 + $0x18] sm:$0xff] %v1203
  %1359 = vst [vmem:[%s3 + $0x20] sm:$0xff] %v1206
  %1360 = vst [vmem:[%s3 + $0x28] sm:$0xff] %v1208
  %1361 = vst [vmem:[%s3 + $0x30] sm:$0xff] %v1211
  %1362 = vst [vmem:[%s3 + $0x38] sm:$0xff] %v1213
  %1363 = vst [vmem:[%s3 + $0x40] sm:$0xff] %v1216
  %1364 = vst [vmem:[%s3 + $0x48] sm:$0xff] %v1218
  %1365 = vst [vmem:[%s3 + $0x50] sm:$0xff] %v1221
  %1366 = vst [vmem:[%s3 + $0x58] sm:$0xff] %v1223
  %1367 = vst [vmem:[%s3 + $0x60] sm:$0xff] %v1226
  %1368 = vst [vmem:[%s3 + $0x68] sm:$0xff] %v1228
  %1369 = vst [vmem:[%s3 + $0x70] sm:$0xff] %v1231
  %1370 = vst [vmem:[%s3 + $0x78] sm:$0xff] %v1233
  %1371 = vst [vmem:[%s3 + $0x80] sm:$0xff] %v1236
  %1372 = vst [vmem:[%s3 + $0x88] sm:$0xff] %v1238
  %1373 = vst [vmem:[%s3 + $0x90] sm:$0xff] %v1241
  %1374 = vst [vmem:[%s3 + $0x98] sm:$0xff] %v1243
  %1375 = vst [vmem:[%s3 + $0xa0] sm:$0xff] %v1246
  %1376 = vst [vmem:[%s3 + $0xa8] sm:$0xff] %v1248
  %1377 = vst [vmem:[%s3 + $0xb0] sm:$0xff] %v1251
  %1378 = vst [vmem:[%s3 + $0xb8] sm:$0xff] %v1253
  %1379 = vst [vmem:[%s3 + $0xc0] sm:$0xff] %v1256
  %1380 = vst [vmem:[%s3 + $0xc8] sm:$0xff] %v1258
  %1381 = vst [vmem:[%s3 + $0xd0] sm:$0xff] %v1261
  %1382 = vst [vmem:[%s3 + $0xd8] sm:$0xff] %v1263
  %1383 = vst [vmem:[%s3 + $0xe0] sm:$0xff] %v1266
  %1384 = vst [vmem:[%s3 + $0xe8] sm:$0xff] %v1268
  %1385 = vst [vmem:[%s3 + $0xf0] sm:$0xff] %v1271
  %1386 = vst [vmem:[%s3 + $0xf8] sm:$0xff] %v1273
  %1387 = vst [vmem:[%s3 + $0x100] sm:$0xff] %v1276
  %1388 = vst [vmem:[%s3 + $0x108] sm:$0xff] %v1278
  %1389 = vst [vmem:[%s3 + $0x110] sm:$0xff] %v1281
  %1390 = vst [vmem:[%s3 + $0x118] sm:$0xff] %v1283
  %1391 = vst [vmem:[%s3 + $0x120] sm:$0xff] %v1286
  %1392 = vst [vmem:[%s3 + $0x128] sm:$0xff] %v1288
  %1393 = vst [vmem:[%s3 + $0x130] sm:$0xff] %v1291
  %1394 = vst [vmem:[%s3 + $0x138] sm:$0xff] %v1293
  %1395 = vst [vmem:[%s3 + $0x140] sm:$0xff] %v1296
  %1396 = vst [vmem:[%s3 + $0x148] sm:$0xff] %v1298
  %1397 = vst [vmem:[%s3 + $0x150] sm:$0xff] %v1301
  %1398 = vst [vmem:[%s3 + $0x158] sm:$0xff] %v1303
  %1399 = vst [vmem:[%s3 + $0x160] sm:$0xff] %v1306
  %1400 = vst [vmem:[%s3 + $0x168] sm:$0xff] %v1308
  %1401 = vst [vmem:[%s3 + $0x170] sm:$0xff] %v1311
  %1402 = vst [vmem:[%s3 + $0x178] sm:$0xff] %v1313
  %1403 = vst [vmem:[%s3 + $0x180] sm:$0xff] %v1316
  %1404 = vst [vmem:[%s3 + $0x188] sm:$0xff] %v1318
  %1405 = vst [vmem:[%s3 + $0x190] sm:$0xff] %v1321
  %1406 = vst [vmem:[%s3 + $0x198] sm:$0xff] %v1323
  %1407 = vst [vmem:[%s3 + $0x1a0] sm:$0xff] %v1326
  %1408 = vst [vmem:[%s3 + $0x1a8] sm:$0xff] %v1328
  %1409 = vst [vmem:[%s3 + $0x1b0] sm:$0xff] %v1331
  %1410 = vst [vmem:[%s3 + $0x1b8] sm:$0xff] %v1333
  %1411 = vst [vmem:[%s3 + $0x1c0] sm:$0xff] %v1336
  %1412 = vst [vmem:[%s3 + $0x1c8] sm:$0xff] %v1338
  %1413 = vst [vmem:[%s3 + $0x1d0] sm:$0xff] %v1341
  %1414 = vst [vmem:[%s3 + $0x1d8] sm:$0xff] %v1343
  %1415 = vst [vmem:[%s3 + $0x1e0] sm:$0xff] %v1346
  %1416 = vst [vmem:[%s3 + $0x1e8] sm:$0xff] %v1348
  %1417 = vst [vmem:[%s3 + $0x1f0] sm:$0xff] %v1351
  %1418 = vst [vmem:[%s3 + $0x1f8] sm:$0xff] %v1353
  // Predicated region
  $region14: #{colorization_forward.27} parent=0 // pred_check
    _
  $region15: #{colorization_forward.27} parent=0 // pred_check_branch
    %1420 = sbr.rel (0) target = $region17
  $region16: #{colorization_forward.27} parent=0 // pred_region
    _
  $region17: #{colorization_forward.27} parent=0 // pred_fallthru
    _
  // Predicated region
  $region18: #{colorization_forward.27} parent=0 // pred_check
    _
  $region19: #{colorization_forward.27} parent=0 // pred_check_branch
    %1422 = sbr.rel (0) target = $region21
  $region20: #{colorization_forward.27} parent=0 // pred_region
    _
  $region21: #{colorization_forward.27} parent=0 // pred_fallthru
    _

</llo_original>
